<compile_context>
chip_gen: v7x
topology: tpu7x:2x2x1
jax: 0.10.0
libtpu: 0.0.40
codegen_flags: <defaults>
</compile_context>

<pallas_src>
import math
import functools

import jax
import jax.numpy as jnp
from jax import lax
from jax.experimental import pallas as pl
from jax.experimental.pallas import tpu as pltpu


# ----------------------------------------------------------------------------
# tiling helpers
# ----------------------------------------------------------------------------
def _tile_and_pad(dim, target, align):
    """Pick (tile, padded_dim) for one dimension.

    dim <= target         -> one full-extent block (always layout-legal, no pad).
    aligned divisor found  -> that tile, no pad (only divisors >= target/2 accepted,
                              so we never degrade to tiny 8-row tiles).
    otherwise             -> tile = target, dim padded up to a multiple of it.
    """
    if dim <= target:
        return dim, dim
    t = (target // align) * align
    lo = max(align, t // 2)
    cand = t
    while cand >= lo:
        if dim % cand == 0:
            return cand, dim
        cand -= align
    return t, dim + ((-dim) % t)


def _lane_tile(dim, target):
    """Lane-dim tile: multiple of 128 dividing dim, else full extent."""
    if dim <= target:
        return dim
    t = (target // 128) * 128
    while t >= 128:
        if dim % t == 0:
            return t
        t -= 128
    return dim


# ----------------------------------------------------------------------------
# Tiled matmul with fused bias / activation / residual / LayerNorm epilogue
# ----------------------------------------------------------------------------
def _mm_kernel(*refs, activation, has_residual, has_ln, ln_eps):
    idx = 0
    x_ref = refs[idx]; idx += 1
    w_ref = refs[idx]; idx += 1
    b_ref = refs[idx]; idx += 1
    res_ref = None
    if has_residual:
        res_ref = refs[idx]; idx += 1
    g_ref = bln_ref = None
    if has_ln:
        g_ref = refs[idx]; bln_ref = refs[idx + 1]; idx += 2
    o_ref = refs[idx]; idx += 1
    oln_ref = None
    if has_ln:
        oln_ref = refs[idx]; idx += 1
    acc_ref = refs[idx]

    k = pl.program_id(2)

    @pl.when(k == 0)
    def _init():
        acc_ref[...] = jnp.zeros_like(acc_ref)

    acc_ref[...] += jnp.dot(x_ref[...], w_ref[...],
                            preferred_element_type=jnp.float32)

    @pl.when(k == pl.num_programs(2) - 1)
    def _finalize():
        y = acc_ref[...] + b_ref[...]
        if activation == "gelu":
            # TODO(synk): PyTorch default GELU is exact erf; tanh approximation used here.
            y = jax.nn.gelu(y, approximate=True)
        elif activation == "relu":
            y = jnp.maximum(y, 0.0)
        if res_ref is not None:
            y = y + res_ref[...]
        o_ref[...] = y.astype(o_ref.dtype)
        if oln_ref is not None:
            # LayerNorm over the full row (tn == N is enforced by the wrapper).
            mu = jnp.mean(y, axis=-1, keepdims=True)
            yc = y - mu
            var = jnp.mean(yc * yc, axis=-1, keepdims=True)
            oln_ref[...] = (yc * lax.rsqrt(var + ln_eps) * g_ref[...]
                            + bln_ref[...]).astype(oln_ref.dtype)


def matmul(x, w, b, *, activation=None, residual=None, ln=None,
           out_dtype=jnp.float32, ln_out_dtype=jnp.bfloat16, ln_eps=1e-5):
    """(M,K) @ (K,N) + b (+ activation) (+ residual), optionally also emitting
    LayerNorm(result) as a second (bf16) output when `ln=(gamma, beta)` is given.

    MXU operands are bf16; accumulation / bias / residual / LN stats stay f32.
    Awkward dims are padded to aligned tiles and sliced back (never tm=8 tiles).
    """
    M, K = x.shape
    N = w.shape[1]

    # TODO(synk): v6e can take tm=tn=512/tk=1024 and v5e prefers tn<=256; targets below are
    # safe across v5e/v6e/v7x. vmem_limit_bytes left at default for these footprints.
    tm, Mp = _tile_and_pad(M, 256, 8)
    if ln is not None:
        tn, Npad = N, N                      # LN epilogue needs the whole row in one tile
    else:
        tn, Npad = _tile_and_pad(N, 256, 128)
    tk, Kp = _tile_and_pad(K, 512, 128)

    xb = x.astype(jnp.bfloat16)
    wb = w.astype(jnp.bfloat16)
    if Mp != M or Kp != K:
        xb = jnp.pad(xb, ((0, Mp - M), (0, Kp - K)))
    if Kp != K or Npad != N:
        wb = jnp.pad(wb, ((0, Kp - K), (0, Npad - N)))
    bb = b.reshape(1, N).astype(jnp.float32)
    if Npad != N:
        bb = jnp.pad(bb, ((0, 0), (0, Npad - N)))

    args = [xb, wb, bb]
    in_specs = [
        pl.BlockSpec((tm, tk), lambda i, j, k: (i, k)),
        pl.BlockSpec((tk, tn), lambda i, j, k: (k, j)),
        pl.BlockSpec((1, tn), lambda i, j, k: (0, j)),
    ]
    if residual is not None:
        r = residual.astype(jnp.float32)
        if Mp != M or Npad != N:
            r = jnp.pad(r, ((0, Mp - M), (0, Npad - N)))
        args.append(r)
        in_specs.append(pl.BlockSpec((tm, tn), lambda i, j, k: (i, j)))
    if ln is not None:
        g, beta = ln
        args.append(g.reshape(1, N).astype(jnp.float32))
        args.append(beta.reshape(1, N).astype(jnp.float32))
        in_specs.append(pl.BlockSpec((1, tn), lambda i, j, k: (0, j)))
        in_specs.append(pl.BlockSpec((1, tn), lambda i, j, k: (0, j)))

    out_shape = (jax.ShapeDtypeStruct((Mp, Npad), out_dtype),)
    out_specs = (pl.BlockSpec((tm, tn), lambda i, j, k: (i, j)),)
    if ln is not None:
        out_shape = out_shape + (jax.ShapeDtypeStruct((Mp, Npad), ln_out_dtype),)
        out_specs = out_specs + (pl.BlockSpec((tm, tn), lambda i, j, k: (i, j)),)

    kern = functools.partial(_mm_kernel, activation=activation,
                             has_residual=residual is not None,
                             has_ln=ln is not None, ln_eps=ln_eps)
    outs = pl.pallas_call(
        kern,
        out_shape=out_shape if ln is not None else out_shape[0],
        grid=(Mp // tm, Npad // tn, Kp // tk),
        in_specs=in_specs,
        out_specs=out_specs if ln is not None else out_specs[0],
        scratch_shapes=[pltpu.VMEM((tm, tn), jnp.float32)],
        compiler_params=pltpu.CompilerParams(
            dimension_semantics=("parallel", "parallel", "arbitrary")),
    )(*args)

    if ln is None:
        y = outs
        return y[:M, :N] if (Mp != M or Npad != N) else y
    y, y_ln = outs
    if Mp != M or Npad != N:
        y, y_ln = y[:M, :N], y_ln[:M, :N]
    return y, y_ln


# ----------------------------------------------------------------------------
# Multi-head self-attention: one grid step per batch element, per-head direct stores
# ----------------------------------------------------------------------------
def _mhsa_kernel(qkv_ref, o_ref, *, heads, dh, scale):
    D = heads * dh
    for hh in range(heads):
        q = qkv_ref[0, :, hh * dh:(hh + 1) * dh]
        k = qkv_ref[0, :, D + hh * dh:D + (hh + 1) * dh]
        v = qkv_ref[0, :, 2 * D + hh * dh:2 * D + (hh + 1) * dh]
        s = lax.dot_general(q, k, (((1,), (1,)), ((), ())),
                            preferred_element_type=jnp.float32) * scale
        s = s - jnp.max(s, axis=-1, keepdims=True)
        p = jnp.exp(s)                                        # f32 softmax
        l = jnp.sum(p, axis=-1, keepdims=True)
        o = jnp.dot(p.astype(jnp.bfloat16), v, preferred_element_type=jnp.float32)
        o = o * pl.reciprocal(l, approx=True)                 # EUP reciprocal
        # write each head straight into its slot: caps live data to one head
        o_ref[0, :, hh * dh:(hh + 1) * dh] = o.astype(o_ref.dtype)


def mhsa_attention(qkv, heads):
    """qkv: (B, S, 3D) bf16 -> (B, S, D) bf16."""
    # TODO(synk): for production S/D convert to a kv-tiled flash pattern on a (B, heads)
    # grid (v7x VMEM budget + v6e MXU contraction-depth).
    B, S, threeD = qkv.shape
    D = threeD // 3
    dh = D // heads
    kern = functools.partial(_mhsa_kernel, heads=heads, dh=dh,
                             scale=1.0 / math.sqrt(dh))
    return pl.pallas_call(
        kern,
        out_shape=jax.ShapeDtypeStruct((B, S, D), jnp.bfloat16),
        grid=(B,),
        in_specs=[pl.BlockSpec((1, S, threeD), lambda b: (b, 0, 0))],
        out_specs=pl.BlockSpec((1, S, D), lambda b: (b, 0, 0)),
        compiler_params=pltpu.CompilerParams(dimension_semantics=("parallel",)),
    )(qkv.astype(jnp.bfloat16))


# ----------------------------------------------------------------------------
# Standalone row-tiled LayerNorm (only used for the two "entry" LNs)
# ----------------------------------------------------------------------------
def _layernorm_kernel(x_ref, g_ref, b_ref, o_ref, *, eps):
    x = x_ref[...]
    mu = jnp.mean(x, axis=-1, keepdims=True)
    xc = x - mu
    var = jnp.mean(xc * xc, axis=-1, keepdims=True)
    o_ref[...] = (xc * lax.rsqrt(var + eps) * g_ref[...] + b_ref[...]).astype(o_ref.dtype)


def layer_norm(x, g, b, eps=1e-5, out_dtype=jnp.float32):
    shp = x.shape
    D = shp[-1]
    x2 = x.reshape(-1, D).astype(jnp.float32)
    M = x2.shape[0]
    tm, Mp = _tile_and_pad(M, 1024, 8)
    if Mp != M:
        x2 = jnp.pad(x2, ((0, Mp - M), (0, 0)))
    y = pl.pallas_call(
        functools.partial(_layernorm_kernel, eps=eps),
        out_shape=jax.ShapeDtypeStruct((Mp, D), out_dtype),
        grid=(Mp // tm,),
        in_specs=[
            pl.BlockSpec((tm, D), lambda i: (i, 0)),
            pl.BlockSpec((1, D), lambda i: (0, 0)),
            pl.BlockSpec((1, D), lambda i: (0, 0)),
        ],
        out_specs=pl.BlockSpec((tm, D), lambda i: (i, 0)),
        compiler_params=pltpu.CompilerParams(dimension_semantics=("parallel",)),
    )(x2, g.reshape(1, D).astype(jnp.float32), b.reshape(1, D).astype(jnp.float32))
    if Mp != M:
        y = y[:M]
    return y.reshape(shp)


# ----------------------------------------------------------------------------
# Mask logits: cls @ patches^T with the per-token class-dim LayerNorm fused
# ----------------------------------------------------------------------------
def _mask_logits_kernel(a_ref, b_ref, g_ref, beta_ref, o_ref, *, eps):
    s = lax.dot_general(a_ref[0], b_ref[0], (((1,), (1,)), ((), ())),
                        preferred_element_type=jnp.float32)   # (n_cls, tt)
    mu = jnp.mean(s, axis=0, keepdims=True)
    sc = s - mu
    var = jnp.mean(sc * sc, axis=0, keepdims=True)
    o_ref[0] = (sc * lax.rsqrt(var + eps) * g_ref[...] + beta_ref[...]).astype(o_ref.dtype)


def mask_logits(cls_seg, patches, g, b, eps=1e-5):
    """(B, n_cls, D) x (B, Np, D) -> LayerNorm_over_cls(cls @ patches^T): (B, n_cls, Np)."""
    B, nc, K = cls_seg.shape
    Np = patches.shape[1]
    tt = _lane_tile(Np, 2048)                 # lane-dense token tile
    return pl.pallas_call(
        functools.partial(_mask_logits_kernel, eps=eps),
        out_shape=jax.ShapeDtypeStruct((B, nc, Np), jnp.float32),
        grid=(B, Np // tt),
        in_specs=[
            pl.BlockSpec((1, nc, K), lambda i, j: (i, 0, 0)),
            pl.BlockSpec((1, tt, K), lambda i, j: (i, j, 0)),
            pl.BlockSpec((nc, 1), lambda i, j: (0, 0)),
            pl.BlockSpec((nc, 1), lambda i, j: (0, 0)),
        ],
        out_specs=pl.BlockSpec((1, nc, tt), lambda i, j: (i, 0, j)),
        compiler_params=pltpu.CompilerParams(
            dimension_semantics=("parallel", "parallel")),
    )(cls_seg.astype(jnp.bfloat16), patches.astype(jnp.bfloat16),
      g.reshape(nc, 1).astype(jnp.float32), b.reshape(nc, 1).astype(jnp.float32))


# ----------------------------------------------------------------------------
# Fused gating + channel concat + 1x1-conv Fuser (VPU broadcast-mul-adds, lanes = H*W)
# ----------------------------------------------------------------------------
def _fuse_kernel(w_ref, b_ref, xd_ref, xu_ref, sc_ref, o_ref, *, n_cls):
    sc = sc_ref[0]                                    # (1, tp)
    gd = xd_ref[0] * (1.0 - sc)                       # decoder branch gated by (1 - scale)
    gu = xu_ref[0] * sc                               # unet branch gated by scale
    w = w_ref[...]                                    # (n_cls, 2*n_cls)
    acc = jnp.zeros_like(gd)
    for kk in range(n_cls):                           # tiny channel dim -> VPU, not MXU
        acc = acc + w[:, kk:kk + 1] * gd[kk:kk + 1, :]
        acc = acc + w[:, n_cls + kk:n_cls + kk + 1] * gu[kk:kk + 1, :]
    o_ref[0] = (acc + b_ref[...]).astype(o_ref.dtype)


def fused_gate_and_fuse(xd, xu, scale, w, b, n_cls):
    """xd, xu: (B, n_cls, H, W); scale: (B, 1, H, W); w: (n_cls, 2*n_cls) -> (B, n_cls, H, W)."""
    B, _, H, W = xd.shape
    P = H * W
    tp = _lane_tile(P, 8192)
    out = pl.pallas_call(
        functools.partial(_fuse_kernel, n_cls=n_cls),
        out_shape=jax.ShapeDtypeStruct((B, n_cls, P), jnp.float32),
        grid=(B, P // tp),
        in_specs=[
            pl.BlockSpec((n_cls, 2 * n_cls), lambda i, j: (0, 0)),
            pl.BlockSpec((n_cls, 1), lambda i, j: (0, 0)),
            pl.BlockSpec((1, n_cls, tp), lambda i, j: (i, 0, j)),
            pl.BlockSpec((1, n_cls, tp), lambda i, j: (i, 0, j)),
            pl.BlockSpec((1, 1, tp), lambda i, j: (i, 0, j)),
        ],
        out_specs=pl.BlockSpec((1, n_cls, tp), lambda i, j: (i, 0, j)),
        compiler_params=pltpu.CompilerParams(
            dimension_semantics=("parallel", "parallel")),
    )(w.astype(jnp.float32), b.reshape(n_cls, 1).astype(jnp.float32),
      xd.reshape(B, n_cls, P).astype(jnp.float32),
      xu.reshape(B, n_cls, P).astype(jnp.float32),
      scale.reshape(B, 1, P).astype(jnp.float32))
    return out.reshape(B, n_cls, H, W)


# ----------------------------------------------------------------------------
# Glue (plain JAX: patch extraction, resize)
# ----------------------------------------------------------------------------
def extract_patches(x, p):
    """NCHW -> (B, h*w, C*p*p) with per-patch vector ordered (C, p, p) like Conv2d weights."""
    B, C, H, W = x.shape
    h, w = H // p, W // p
    x = x.reshape(B, C, h, p, w, p)
    x = x.transpose(0, 2, 4, 1, 3, 5)
    return x.reshape(B, h * w, C * p * p)


def bilinear_upsample(x, H_out, W_out):
    # torch interpolate(mode='bilinear', align_corners=False) equivalent (glue, no Pallas op).
    B, C, _, _ = x.shape
    return jax.image.resize(x, (B, C, H_out, W_out), method="bilinear")


# ----------------------------------------------------------------------------
# Transformer block (pre-LN ViT block; every LN fused into the producing matmul)
# ----------------------------------------------------------------------------
def transformer_block(x_res, x_ln, blk, heads, B, S, next_ln_g, next_ln_b):
    """x_res: (B*S, D) f32 residual stream; x_ln = LN1(x_res) in bf16 (already computed).
    Returns (new residual stream, LN(next) of it) where LN(next) uses next_ln_{g,b}."""
    D = x_res.shape[-1]
    qkv = matmul(x_ln, blk["qkv_w"], blk["qkv_b"], out_dtype=jnp.bfloat16)
    attn = mhsa_attention(qkv.reshape(B, S, 3 * D), heads).reshape(B * S, D)
    x_res, y_ln2 = matmul(attn, blk["out_w"], blk["out_b"],
                          residual=x_res, ln=(blk["ln2_g"], blk["ln2_b"]))
    hdn = matmul(y_ln2, blk["fc1_w"], blk["fc1_b"], activation="gelu",
                 out_dtype=jnp.bfloat16)
    x_res, x_ln_next = matmul(hdn, blk["fc2_w"], blk["fc2_b"],
                              residual=x_res, ln=(next_ln_g, next_ln_b))
    return x_res, x_ln_next


def _run_blocks(x_res, blocks, final_g, final_b, heads, B, S):
    """Runs a chain of pre-LN blocks, fusing each next LN into the previous fc2 epilogue.
    Returns the final LayerNorm-ed stream (bf16, shape (B*S, D))."""
    if not blocks:
        return layer_norm(x_res, final_g, final_b, out_dtype=jnp.bfloat16)
    x_ln = layer_norm(x_res, blocks[0]["ln1_g"], blocks[0]["ln1_b"],
                      out_dtype=jnp.bfloat16)
    for i, blk in enumerate(blocks):
        if i + 1 < len(blocks):
            nxt = (blocks[i + 1]["ln1_g"], blocks[i + 1]["ln1_b"])
        else:
            nxt = (final_g, final_b)
        x_res, x_ln = transformer_block(x_res, x_ln, blk, heads, B, S, *nxt)
    return x_ln


def mask_transformer_decoder(xt, params, n_cls, heads, h, w):
    """Segmenter-style mask transformer: tokens + class embeddings -> (B, n_cls, h, w)."""
    B, Np, D = xt.shape
    x = matmul(xt.reshape(B * Np, D), params["dec_proj_w"],
               params["dec_proj_b"]).reshape(B, Np, D)
    cls = jnp.broadcast_to(params["dec_cls_emb"], (B, n_cls, D)).astype(jnp.float32)
    S2 = Np + n_cls
    x_res = jnp.concatenate([x, cls], axis=1).reshape(B * S2, D)

    x_ln = _run_blocks(x_res, params["dec_blocks"], params["dec_ln_g"],
                       params["dec_ln_b"], heads, B, S2)
    x = x_ln.reshape(B, S2, D)                                  # bf16

    patches, cls_seg = x[:, :Np], x[:, Np:]
    zeros_D = jnp.zeros((D,), jnp.float32)
    patches = matmul(patches.reshape(B * Np, D), params["proj_patch"],
                     zeros_D).reshape(B, Np, D)
    cls_seg = matmul(cls_seg.reshape(B * n_cls, D), params["proj_classes"],
                     zeros_D).reshape(B, n_cls, D)
    patches = (patches / jnp.maximum(
        jnp.linalg.norm(patches, axis=-1, keepdims=True), 1e-6)).astype(jnp.bfloat16)
    cls_seg = (cls_seg / jnp.maximum(
        jnp.linalg.norm(cls_seg, axis=-1, keepdims=True), 1e-6)).astype(jnp.bfloat16)

    # lane-dense (n_cls, Np) mask logits with the class-dim LayerNorm fused in-kernel
    masks = mask_logits(cls_seg, patches, params["mask_ln_g"], params["mask_ln_b"])
    return masks.reshape(B, n_cls, h, w)


# ----------------------------------------------------------------------------
# Full forward pass
# ----------------------------------------------------------------------------
def transformer_forward(params, x, *, patch_size, n_cls, enc_heads, dec_heads):
    B, C, H, W = x.shape
    p = patch_size
    h, w = H // p, W // p
    D = params["patch_w"].shape[1]

    flat = extract_patches(x, p).reshape(B * h * w, -1)          # (B*hw, C*p*p)

    # Patch embedding (lane-dense D output; scaler NOT fused -- keeps 128-aligned stores).
    tok = matmul(flat, params["patch_w"], params["patch_b"]).reshape(B, h * w, D)

    # Scaler: 1-column projection per patch -> lane-sparse, left to XLA.
    # TODO(synk): Scaler's real architecture is not provided; modeled as one strided conv.
    scale = flat.astype(jnp.float32) @ params["scaler_w"] + params["scaler_b"]
    scale = scale.reshape(B, h, w, 1).transpose(0, 3, 1, 2)      # (B,1,h,w)
    scale = jax.nn.sigmoid(bilinear_upsample(scale, H, W))       # (B,1,H,W)

    # cls token + positional embedding
    cls = jnp.broadcast_to(params["cls_token"], (B, 1, D))
    xt = jnp.concatenate([cls, tok], axis=1) + params["pos_emb"]
    S = xt.shape[1]

    # Encoder (pre-LN ViT blocks; final LayerNorm fused into the last fc2), drop cls token
    x_ln = _run_blocks(xt.reshape(B * S, D), params["enc_blocks"],
                       params["enc_ln_g"], params["enc_ln_b"], enc_heads, B, S)
    xt_enc = x_ln.reshape(B, S, D)[:, 1:]                        # (B, Np, D) bf16
    Np = xt_enc.shape[1]

    # Transformer mask decoder -> patch-resolution class masks, upsample x p
    xd = mask_transformer_decoder(xt_enc, params, n_cls, dec_heads, h, w)
    xd = bilinear_upsample(xd, H, W)                             # (B, n_cls, H, W)

    # UNet-style decoder.
    # TODO(synk): DMVADecoder definition not provided; modeled as MLP head + bilinear upsample.
    xu_h = matmul(xt_enc.reshape(B * Np, D), params["unet_w1"], params["unet_b1"],
                  activation="relu", out_dtype=jnp.bfloat16)     # bias+ReLU fused
    # D -> n_cls projection is lane-sparse (N = n_cls); left to XLA, emitted channel-first.
    xu = jnp.einsum("bnd,dc->bcn", xu_h.reshape(B, Np, D), params["unet_w2"])
    xu = xu + params["unet_b2"][None, :, None]
    xu = bilinear_upsample(xu.reshape(B, n_cls, h, w), H, W)

    # Fused gating (xd*(1-scale), xu*scale), channel concat and 1x1-conv Fuser.
    return fused_gate_and_fuse(xd, xu, scale, params["fuser_w"], params["fuser_b"], n_cls)


# ----------------------------------------------------------------------------
# Deterministic parameter init (matmul weights stored in bf16 -- no per-call cast pass)
# ----------------------------------------------------------------------------
def init_params(key, *, C, n_cls, H, W, p, enc_layers, dec_layers, D, h_size):
    keys = iter(jax.random.split(key, 512))
    bf = jnp.bfloat16

    def nrm(shape, std=0.02, dtype=jnp.float32):
        return (jax.random.normal(next(keys), shape, jnp.float32) * std).astype(dtype)

    def block_params():
        return dict(
            ln1_g=jnp.ones((D,), jnp.float32), ln1_b=jnp.zeros((D,), jnp.float32),
            qkv_w=nrm((D, 3 * D), dtype=bf), qkv_b=jnp.zeros((3 * D,), jnp.float32),
            out_w=nrm((D, D), dtype=bf), out_b=jnp.zeros((D,), jnp.float32),
            ln2_g=jnp.ones((D,), jnp.float32), ln2_b=jnp.zeros((D,), jnp.float32),
            fc1_w=nrm((D, h_size), dtype=bf), fc1_b=jnp.zeros((h_size,), jnp.float32),
            fc2_w=nrm((h_size, D), dtype=bf), fc2_b=jnp.zeros((D,), jnp.float32),
        )

    n_patches = (H // p) * (W // p)
    return dict(
        patch_w=nrm((C * p * p, D), dtype=bf), patch_b=jnp.zeros((D,), jnp.float32),
        cls_token=nrm((1, 1, D)),
        pos_emb=nrm((1, n_patches + 1, D)),
        enc_blocks=[block_params() for _ in range(enc_layers)],
        enc_ln_g=jnp.ones((D,), jnp.float32), enc_ln_b=jnp.zeros((D,), jnp.float32),
        dec_proj_w=nrm((D, D), dtype=bf), dec_proj_b=jnp.zeros((D,), jnp.float32),
        dec_cls_emb=nrm((1, n_cls, D)),
        dec_blocks=[block_params() for _ in range(dec_layers)],
        dec_ln_g=jnp.ones((D,), jnp.float32), dec_ln_b=jnp.zeros((D,), jnp.float32),
        proj_patch=nrm((D, D), std=D ** -0.5, dtype=bf),
        proj_classes=nrm((D, D), std=D ** -0.5, dtype=bf),
        mask_ln_g=jnp.ones((n_cls,), jnp.float32), mask_ln_b=jnp.zeros((n_cls,), jnp.float32),
        unet_w1=nrm((D, D), dtype=bf), unet_b1=jnp.zeros((D,), jnp.float32),
        unet_w2=nrm((D, n_cls)), unet_b2=jnp.zeros((n_cls,), jnp.float32),
        scaler_w=nrm((C * p * p, 1)), scaler_b=jnp.zeros((1,), jnp.float32),
        fuser_w=nrm((n_cls, 2 * n_cls)), fuser_b=jnp.zeros((n_cls,), jnp.float32),
    )


if __name__ == "__main__":
    # Small config: input (B=2, C=3, 16x16), patch 4, D=32, heads 4, mlp 64,
    # 2 encoder layers, 1 decoder layer, 4 classes.
    B, C, H, W = 2, 3, 16, 16
    patch_size = 4
    n_cls = 4
    D = 32
    h_size = 64
    enc_heads = dec_heads = 4

    key = jax.random.PRNGKey(0)
    k_param, k_x = jax.random.split(key)
    params = init_params(k_param, C=C, n_cls=n_cls, H=H, W=W, p=patch_size,
                         enc_layers=2, dec_layers=1, D=D, h_size=h_size)
    x = jax.random.normal(k_x, (B, C, H, W), jnp.float32)

    fwd = jax.jit(functools.partial(
        transformer_forward, patch_size=patch_size, n_cls=n_cls,
        enc_heads=enc_heads, dec_heads=dec_heads))
    out = jax.block_until_ready(fwd(params, x))

    assert out.shape == (B, n_cls, H, W)
    assert bool(jnp.all(jnp.isfinite(out)))
    print("KERNEL_OK")
</pallas_src>

<mosaic_0001>
module attributes {stable_mosaic.version = 11 : i64} {
  func.func @_mm_kernel(%arg0: i32, %arg1: i32, %arg2: i32, %arg3: memref<34x32xbf16, #tpu.memory_space<vmem>>, %arg4: memref<32x96xbf16, #tpu.memory_space<vmem>>, %arg5: memref<1x96xf32, #tpu.memory_space<vmem>>, %arg6: memref<34x96xbf16, #tpu.memory_space<vmem>>, %arg7: memref<34x96xf32, #tpu.memory_space<vmem>>) attributes {dimension_semantics = [#tpu.dimension_semantics<parallel>, #tpu.dimension_semantics<parallel>, #tpu.dimension_semantics<arbitrary>], iteration_bounds = array<i64: 1, 1, 1>, scalar_prefetch = 0 : i64, scratch_operands = 1 : i64, tpu.core_type = #tpu.core_type<tc>, window_params = [{transform_indices = @transform_0, window_bounds = array<i64: 34, 32>}, {transform_indices = @transform_1, window_bounds = array<i64: 32, 96>}, {transform_indices = @transform_2, window_bounds = array<i64: 1, 96>}, {transform_indices = @transform_3, window_bounds = array<i64: 34, 96>}]} {
    %c0_i32 = arith.constant 0 : i32
    %0 = arith.cmpi eq, %arg2, %c0_i32 : i32
    %1 = arith.extui %0 : i1 to i32
    %c0_i32_0 = arith.constant 0 : i32
    %2 = arith.cmpi ne, %1, %c0_i32_0 : i32
    scf.if %2 {
      %cst_10 = arith.constant 0.000000e+00 : f32
      %12 = vector.broadcast %cst_10 : f32 to vector<34x96xf32>
      %c0_11 = arith.constant 0 : index
      %c0_12 = arith.constant 0 : index
      %13 = vector.load %arg7[%c0_11, %c0_12] : memref<34x96xf32, #tpu.memory_space<vmem>>, vector<34x96xf32>
      tpu.vector_store %arg7[%c0_11, %c0_12], %12 {strides = array<i32>} : memref<34x96xf32, #tpu.memory_space<vmem>>, vector<34x96xf32>,
    } else {
    }
    %c0 = arith.constant 0 : index
    %c0_1 = arith.constant 0 : index
    %3 = vector.load %arg7[%c0, %c0_1] : memref<34x96xf32, #tpu.memory_space<vmem>>, vector<34x96xf32>
    %c0_2 = arith.constant 0 : index
    %c0_3 = arith.constant 0 : index
    %4 = vector.load %arg3[%c0_2, %c0_3] : memref<34x32xbf16, #tpu.memory_space<vmem>>, vector<34x32xbf16>
    %c0_4 = arith.constant 0 : index
    %c0_5 = arith.constant 0 : index
    %5 = vector.load %arg4[%c0_4, %c0_5] : memref<32x96xbf16, #tpu.memory_space<vmem>>, vector<32x96xbf16>
    %cst = arith.constant dense<0.000000e+00> : vector<34x96xf32>
    %6 = tpu.matmul %4, %5, %cst {dimension_numbers = #tpu.dot_dimension_numbers<[1], [0], [0], [1], [0, 0, 1, 1], [], []>} : vector<34x32xbf16>, vector<32x96xbf16>, vector<34x96xf32> -> vector<34x96xf32>
    %7 = arith.addf %3, %6 : vector<34x96xf32>
    %c0_6 = arith.constant 0 : index
    %c0_7 = arith.constant 0 : index
    %8 = vector.load %arg7[%c0_6, %c0_7] : memref<34x96xf32, #tpu.memory_space<vmem>>, vector<34x96xf32>
    tpu.vector_store %arg7[%c0_6, %c0_7], %7 {strides = array<i32>} : memref<34x96xf32, #tpu.memory_space<vmem>>, vector<34x96xf32>,
    %c0_i32_8 = arith.constant 0 : i32
    %9 = arith.cmpi eq, %arg2, %c0_i32_8 : i32
    %10 = arith.extui %9 : i1 to i32
    %c0_i32_9 = arith.constant 0 : i32
    %11 = arith.cmpi ne, %10, %c0_i32_9 : i32
    scf.if %11 {
      %c0_10 = arith.constant 0 : index
      %c0_11 = arith.constant 0 : index
      %12 = vector.load %arg7[%c0_10, %c0_11] : memref<34x96xf32, #tpu.memory_space<vmem>>, vector<34x96xf32>
      %c0_12 = arith.constant 0 : index
      %c0_13 = arith.constant 0 : index
      %13 = vector.load %arg5[%c0_12, %c0_13] : memref<1x96xf32, #tpu.memory_space<vmem>>, vector<1x96xf32>
      %14 = vector.broadcast %13 : vector<1x96xf32> to vector<34x96xf32>
      %15 = arith.addf %12, %14 : vector<34x96xf32>
      %16 = arith.truncf %15 : vector<34x96xf32> to vector<34x96xbf16>
      %c0_14 = arith.constant 0 : index
      %c0_15 = arith.constant 0 : index
      %17 = vector.load %arg6[%c0_14, %c0_15] : memref<34x96xbf16, #tpu.memory_space<vmem>>, vector<34x96xbf16>
      tpu.vector_store %arg6[%c0_14, %c0_15], %16 {strides = array<i32>} : memref<34x96xbf16, #tpu.memory_space<vmem>>, vector<34x96xbf16>,
    } else {
    }
    return
  }
  func.func @transform_0(%arg0: i32, %arg1: i32, %arg2: i32) -> (i32, i32) {
    %c0_i32 = arith.constant 0 : i32
    return %arg0, %arg2 : i32, i32
  }
  func.func @transform_1(%arg0: i32, %arg1: i32, %arg2: i32) -> (i32, i32) {
    %c0_i32 = arith.constant 0 : i32
    return %arg2, %arg1 : i32, i32
  }
  func.func @transform_2(%arg0: i32, %arg1: i32, %arg2: i32) -> (i32, i32) {
    %c0_i32 = arith.constant 0 : i32
    %c0_i32_0 = arith.constant 0 : i32
    return %c0_i32, %arg1 : i32, i32
  }
  func.func @transform_3(%arg0: i32, %arg1: i32, %arg2: i32) -> (i32, i32) {
    %c0_i32 = arith.constant 0 : i32
    return %arg0, %arg1 : i32, i32
  }
}

module attributes {stable_mosaic.version = 11 : i64} {
  func.func @_mm_kernel(%arg0: i32, %arg1: i32, %arg2: i32, %arg3: memref<32x48xbf16, #tpu.memory_space<vmem>>, %arg4: memref<48x32xbf16, #tpu.memory_space<vmem>>, %arg5: memref<1x32xf32, #tpu.memory_space<vmem>>, %arg6: memref<32x32xf32, #tpu.memory_space<vmem>>, %arg7: memref<32x32xf32, #tpu.memory_space<vmem>>) attributes {dimension_semantics = [#tpu.dimension_semantics<parallel>, #tpu.dimension_semantics<parallel>, #tpu.dimension_semantics<arbitrary>], iteration_bounds = array<i64: 1, 1, 1>, scalar_prefetch = 0 : i64, scratch_operands = 1 : i64, tpu.core_type = #tpu.core_type<tc>, window_params = [{transform_indices = @transform_0, window_bounds = array<i64: 32, 48>}, {transform_indices = @transform_1, window_bounds = array<i64: 48, 32>}, {transform_indices = @transform_2, window_bounds = array<i64: 1, 32>}, {transform_indices = @transform_3, window_bounds = array<i64: 32, 32>}]} {
    %c0_i32 = arith.constant 0 : i32
    %0 = arith.cmpi eq, %arg2, %c0_i32 : i32
    %1 = arith.extui %0 : i1 to i32
    %c0_i32_0 = arith.constant 0 : i32
    %2 = arith.cmpi ne, %1, %c0_i32_0 : i32
    scf.if %2 {
      %cst_10 = arith.constant 0.000000e+00 : f32
      %12 = vector.broadcast %cst_10 : f32 to vector<32x32xf32>
      %c0_11 = arith.constant 0 : index
      %c0_12 = arith.constant 0 : index
      %13 = vector.load %arg7[%c0_11, %c0_12] : memref<32x32xf32, #tpu.memory_space<vmem>>, vector<32x32xf32>
      tpu.vector_store %arg7[%c0_11, %c0_12], %12 {strides = array<i32>} : memref<32x32xf32, #tpu.memory_space<vmem>>, vector<32x32xf32>,
    } else {
    }
    %c0 = arith.constant 0 : index
    %c0_1 = arith.constant 0 : index
    %3 = vector.load %arg7[%c0, %c0_1] : memref<32x32xf32, #tpu.memory_space<vmem>>, vector<32x32xf32>
    %c0_2 = arith.constant 0 : index
    %c0_3 = arith.constant 0 : index
    %4 = vector.load %arg3[%c0_2, %c0_3] : memref<32x48xbf16, #tpu.memory_space<vmem>>, vector<32x48xbf16>
    %c0_4 = arith.constant 0 : index
    %c0_5 = arith.constant 0 : index
    %5 = vector.load %arg4[%c0_4, %c0_5] : memref<48x32xbf16, #tpu.memory_space<vmem>>, vector<48x32xbf16>
    %cst = arith.constant dense<0.000000e+00> : vector<32x32xf32>
    %6 = tpu.matmul %4, %5, %cst {dimension_numbers = #tpu.dot_dimension_numbers<[1], [0], [0], [1], [0, 0, 1, 1], [], []>} : vector<32x48xbf16>, vector<48x32xbf16>, vector<32x32xf32> -> vector<32x32xf32>
    %7 = arith.addf %3, %6 : vector<32x32xf32>
    %c0_6 = arith.constant 0 : index
    %c0_7 = arith.constant 0 : index
    %8 = vector.load %arg7[%c0_6, %c0_7] : memref<32x32xf32, #tpu.memory_space<vmem>>, vector<32x32xf32>
    tpu.vector_store %arg7[%c0_6, %c0_7], %7 {strides = array<i32>} : memref<32x32xf32, #tpu.memory_space<vmem>>, vector<32x32xf32>,
    %c0_i32_8 = arith.constant 0 : i32
    %9 = arith.cmpi eq, %arg2, %c0_i32_8 : i32
    %10 = arith.extui %9 : i1 to i32
    %c0_i32_9 = arith.constant 0 : i32
    %11 = arith.cmpi ne, %10, %c0_i32_9 : i32
    scf.if %11 {
      %c0_10 = arith.constant 0 : index
      %c0_11 = arith.constant 0 : index
      %12 = vector.load %arg7[%c0_10, %c0_11] : memref<32x32xf32, #tpu.memory_space<vmem>>, vector<32x32xf32>
      %c0_12 = arith.constant 0 : index
      %c0_13 = arith.constant 0 : index
      %13 = vector.load %arg5[%c0_12, %c0_13] : memref<1x32xf32, #tpu.memory_space<vmem>>, vector<1x32xf32>
      %14 = vector.broadcast %13 : vector<1x32xf32> to vector<32x32xf32>
      %15 = arith.addf %12, %14 : vector<32x32xf32>
      %c0_14 = arith.constant 0 : index
      %c0_15 = arith.constant 0 : index
      %16 = vector.load %arg6[%c0_14, %c0_15] : memref<32x32xf32, #tpu.memory_space<vmem>>, vector<32x32xf32>
      tpu.vector_store %arg6[%c0_14, %c0_15], %15 {strides = array<i32>} : memref<32x32xf32, #tpu.memory_space<vmem>>, vector<32x32xf32>,
    } else {
    }
    return
  }
  func.func @transform_0(%arg0: i32, %arg1: i32, %arg2: i32) -> (i32, i32) {
    %c0_i32 = arith.constant 0 : i32
    return %arg0, %arg2 : i32, i32
  }
  func.func @transform_1(%arg0: i32, %arg1: i32, %arg2: i32) -> (i32, i32) {
    %c0_i32 = arith.constant 0 : i32
    return %arg2, %arg1 : i32, i32
  }
  func.func @transform_2(%arg0: i32, %arg1: i32, %arg2: i32) -> (i32, i32) {
    %c0_i32 = arith.constant 0 : i32
    %c0_i32_0 = arith.constant 0 : i32
    return %c0_i32, %arg1 : i32, i32
  }
  func.func @transform_3(%arg0: i32, %arg1: i32, %arg2: i32) -> (i32, i32) {
    %c0_i32 = arith.constant 0 : i32
    return %arg0, %arg1 : i32, i32
  }
}

module attributes {stable_mosaic.version = 11 : i64} {
  func.func @_layernorm_kernel(%arg0: i32, %arg1: memref<34x32xf32, #tpu.memory_space<vmem>>, %arg2: memref<1x32xf32, #tpu.memory_space<vmem>>, %arg3: memref<1x32xf32, #tpu.memory_space<vmem>>, %arg4: memref<34x32xbf16, #tpu.memory_space<vmem>>) attributes {dimension_semantics = [#tpu.dimension_semantics<parallel>], iteration_bounds = array<i64: 1>, scalar_prefetch = 0 : i64, scratch_operands = 0 : i64, tpu.core_type = #tpu.core_type<tc>, window_params = [{transform_indices = @transform_0, window_bounds = array<i64: 34, 32>}, {pipeline_mode = #tpu.pipeline_mode<synchronous>, transform_indices = @transform_1, window_bounds = array<i64: 1, 32>}, {pipeline_mode = #tpu.pipeline_mode<synchronous>, transform_indices = @transform_2, window_bounds = array<i64: 1, 32>}, {transform_indices = @transform_3, window_bounds = array<i64: 34, 32>}]} {
    %c0 = arith.constant 0 : index
    %c0_0 = arith.constant 0 : index
    %0 = vector.load %arg1[%c0, %c0_0] : memref<34x32xf32, #tpu.memory_space<vmem>>, vector<34x32xf32>
    %cst = arith.constant dense<0.000000e+00> : vector<34xf32>
    %1 = vector.multi_reduction <add>, %0, %cst [1] : vector<34x32xf32> to vector<34xf32>
    %2 = vector.shape_cast %1 : vector<34xf32> to vector<34x1xf32>
    %cst_1 = arith.constant 3.200000e+01 : f32
    %3 = vector.broadcast %cst_1 : f32 to vector<34x1xf32>
    %4 = arith.divf %2, %3 : vector<34x1xf32>
    %5 = vector.broadcast %4 : vector<34x1xf32> to vector<34x32xf32>
    %6 = arith.subf %0, %5 : vector<34x32xf32>
    %7 = arith.mulf %6, %6 : vector<34x32xf32>
    %cst_2 = arith.constant dense<0.000000e+00> : vector<34xf32>
    %8 = vector.multi_reduction <add>, %7, %cst_2 [1] : vector<34x32xf32> to vector<34xf32>
    %9 = vector.shape_cast %8 : vector<34xf32> to vector<34x1xf32>
    %cst_3 = arith.constant 3.200000e+01 : f32
    %10 = vector.broadcast %cst_3 : f32 to vector<34x1xf32>
    %11 = arith.divf %9, %10 : vector<34x1xf32>
    %cst_4 = arith.constant 9.99999974E-6 : f32
    %12 = vector.broadcast %cst_4 : f32 to vector<34x1xf32>
    %13 = arith.addf %11, %12 : vector<34x1xf32>
    %14 = math.rsqrt %13 : vector<34x1xf32>
    %15 = vector.broadcast %14 : vector<34x1xf32> to vector<34x32xf32>
    %16 = arith.mulf %6, %15 : vector<34x32xf32>
    %c0_5 = arith.constant 0 : index
    %c0_6 = arith.constant 0 : index
    %17 = vector.load %arg2[%c0_5, %c0_6] : memref<1x32xf32, #tpu.memory_space<vmem>>, vector<1x32xf32>
    %18 = vector.broadcast %17 : vector<1x32xf32> to vector<34x32xf32>
    %19 = arith.mulf %16, %18 : vector<34x32xf32>
    %c0_7 = arith.constant 0 : index
    %c0_8 = arith.constant 0 : index
    %20 = vector.load %arg3[%c0_7, %c0_8] : memref<1x32xf32, #tpu.memory_space<vmem>>, vector<1x32xf32>
    %21 = vector.broadcast %20 : vector<1x32xf32> to vector<34x32xf32>
    %22 = arith.addf %19, %21 : vector<34x32xf32>
    %23 = arith.truncf %22 : vector<34x32xf32> to vector<34x32xbf16>
    %c0_9 = arith.constant 0 : index
    %c0_10 = arith.constant 0 : index
    %24 = vector.load %arg4[%c0_9, %c0_10] : memref<34x32xbf16, #tpu.memory_space<vmem>>, vector<34x32xbf16>
    tpu.vector_store %arg4[%c0_9, %c0_10], %23 {strides = array<i32>} : memref<34x32xbf16, #tpu.memory_space<vmem>>, vector<34x32xbf16>,
    return
  }
  func.func @transform_0(%arg0: i32) -> (i32, i32) {
    %c0_i32 = arith.constant 0 : i32
    %c0_i32_0 = arith.constant 0 : i32
    return %arg0, %c0_i32 : i32, i32
  }
  func.func @transform_1(%arg0: i32) -> (i32, i32) {
    %c0_i32 = arith.constant 0 : i32
    %c0_i32_0 = arith.constant 0 : i32
    %c0_i32_1 = arith.constant 0 : i32
    return %c0_i32, %c0_i32_0 : i32, i32
  }
  func.func @transform_2(%arg0: i32) -> (i32, i32) {
    %c0_i32 = arith.constant 0 : i32
    %c0_i32_0 = arith.constant 0 : i32
    %c0_i32_1 = arith.constant 0 : i32
    return %c0_i32, %c0_i32_0 : i32, i32
  }
  func.func @transform_3(%arg0: i32) -> (i32, i32) {
    %c0_i32 = arith.constant 0 : i32
    %c0_i32_0 = arith.constant 0 : i32
    return %arg0, %c0_i32 : i32, i32
  }
}

module attributes {stable_mosaic.version = 11 : i64} {
  func.func @_mhsa_kernel(%arg0: i32, %arg1: memref<1x17x96xbf16, #tpu.memory_space<vmem>>, %arg2: memref<1x17x32xbf16, #tpu.memory_space<vmem>>) attributes {dimension_semantics = [#tpu.dimension_semantics<parallel>], iteration_bounds = array<i64: 2>, scalar_prefetch = 0 : i64, scratch_operands = 0 : i64, tpu.core_type = #tpu.core_type<tc>, window_params = [{transform_indices = @transform_0, window_bounds = array<i64: 1, 17, 96>}, {transform_indices = @transform_1, window_bounds = array<i64: 1, 17, 32>}]} {
    %c0 = arith.constant 0 : index
    %c0_0 = arith.constant 0 : index
    %c0_1 = arith.constant 0 : index
    %0 = vector.load %arg1[%c0, %c0_0, %c0_1] : memref<1x17x96xbf16, #tpu.memory_space<vmem>>, vector<1x17x8xbf16>
    %1 = vector.shape_cast %0 : vector<1x17x8xbf16> to vector<17x8xbf16>
    %c0_2 = arith.constant 0 : index
    %c0_3 = arith.constant 0 : index
    %c32 = arith.constant 32 : index
    %2 = vector.load %arg1[%c0_2, %c0_3, %c32] : memref<1x17x96xbf16, #tpu.memory_space<vmem>>, vector<1x17x8xbf16>
    %3 = vector.shape_cast %2 : vector<1x17x8xbf16> to vector<17x8xbf16>
    %c0_4 = arith.constant 0 : index
    %c0_5 = arith.constant 0 : index
    %c64 = arith.constant 64 : index
    %4 = vector.load %arg1[%c0_4, %c0_5, %c64] : memref<1x17x96xbf16, #tpu.memory_space<vmem>>, vector<1x17x8xbf16>
    %5 = vector.shape_cast %4 : vector<1x17x8xbf16> to vector<17x8xbf16>
    %cst = arith.constant dense<0.000000e+00> : vector<17x17xf32>
    %6 = tpu.matmul %1, %3, %cst {dimension_numbers = #tpu.dot_dimension_numbers<[1], [1], [0], [0], [0, 0, 1, 0], [], []>} : vector<17x8xbf16>, vector<17x8xbf16>, vector<17x17xf32> -> vector<17x17xf32>
    %cst_6 = arith.constant 0.353553385 : f32
    %7 = vector.broadcast %cst_6 : f32 to vector<17x17xf32>
    %8 = arith.mulf %6, %7 : vector<17x17xf32>
    %cst_7 = arith.constant dense<0xFF800000> : vector<17xf32>
    %9 = vector.multi_reduction <maximumf>, %8, %cst_7 [1] : vector<17x17xf32> to vector<17xf32>
    %10 = vector.shape_cast %9 : vector<17xf32> to vector<17x1xf32>
    %11 = vector.broadcast %10 : vector<17x1xf32> to vector<17x17xf32>
    %12 = arith.subf %8, %11 : vector<17x17xf32>
    %13 = math.exp %12 : vector<17x17xf32>
    %cst_8 = arith.constant dense<0.000000e+00> : vector<17xf32>
    %14 = vector.multi_reduction <add>, %13, %cst_8 [1] : vector<17x17xf32> to vector<17xf32>
    %15 = vector.shape_cast %14 : vector<17xf32> to vector<17x1xf32>
    %16 = arith.truncf %13 : vector<17x17xf32> to vector<17x17xbf16>
    %cst_9 = arith.constant dense<0.000000e+00> : vector<17x8xf32>
    %17 = tpu.matmul %16, %5, %cst_9 {dimension_numbers = #tpu.dot_dimension_numbers<[1], [0], [0], [1], [0, 0, 1, 1], [], []>} : vector<17x17xbf16>, vector<17x8xbf16>, vector<17x8xf32> -> vector<17x8xf32>
    %18 = tpu.reciprocal %15 {approx = true} : vector<17x1xf32> -> vector<17x1xf32>
    %19 = vector.broadcast %18 : vector<17x1xf32> to vector<17x8xf32>
    %20 = arith.mulf %17, %19 : vector<17x8xf32>
    %21 = arith.truncf %20 : vector<17x8xf32> to vector<17x8xbf16>
    %c0_10 = arith.constant 0 : index
    %c0_11 = arith.constant 0 : index
    %c0_12 = arith.constant 0 : index
    %22 = vector.load %arg2[%c0_10, %c0_11, %c0_12] : memref<1x17x32xbf16, #tpu.memory_space<vmem>>, vector<1x17x8xbf16>
    %23 = vector.shape_cast %22 : vector<1x17x8xbf16> to vector<17x8xbf16>
    %24 = vector.shape_cast %21 : vector<17x8xbf16> to vector<1x17x8xbf16>
    tpu.vector_store %arg2[%c0_10, %c0_11, %c0_12], %24 {strides = array<i32>} : memref<1x17x32xbf16, #tpu.memory_space<vmem>>, vector<1x17x8xbf16>,
    %c0_13 = arith.constant 0 : index
    %c0_14 = arith.constant 0 : index
    %c8 = arith.constant 8 : index
    %25 = vector.load %arg1[%c0_13, %c0_14, %c8] : memref<1x17x96xbf16, #tpu.memory_space<vmem>>, vector<1x17x8xbf16>
    %26 = vector.shape_cast %25 : vector<1x17x8xbf16> to vector<17x8xbf16>
    %c0_15 = arith.constant 0 : index
    %c0_16 = arith.constant 0 : index
    %c40 = arith.constant 40 : index
    %27 = vector.load %arg1[%c0_15, %c0_16, %c40] : memref<1x17x96xbf16, #tpu.memory_space<vmem>>, vector<1x17x8xbf16>
    %28 = vector.shape_cast %27 : vector<1x17x8xbf16> to vector<17x8xbf16>
    %c0_17 = arith.constant 0 : index
    %c0_18 = arith.constant 0 : index
    %c72 = arith.constant 72 : index
    %29 = vector.load %arg1[%c0_17, %c0_18, %c72] : memref<1x17x96xbf16, #tpu.memory_space<vmem>>, vector<1x17x8xbf16>
    %30 = vector.shape_cast %29 : vector<1x17x8xbf16> to vector<17x8xbf16>
    %cst_19 = arith.constant dense<0.000000e+00> : vector<17x17xf32>
    %31 = tpu.matmul %26, %28, %cst_19 {dimension_numbers = #tpu.dot_dimension_numbers<[1], [1], [0], [0], [0, 0, 1, 0], [], []>} : vector<17x8xbf16>, vector<17x8xbf16>, vector<17x17xf32> -> vector<17x17xf32>
    %cst_20 = arith.constant 0.353553385 : f32
    %32 = vector.broadcast %cst_20 : f32 to vector<17x17xf32>
    %33 = arith.mulf %31, %32 : vector<17x17xf32>
    %cst_21 = arith.constant dense<0xFF800000> : vector<17xf32>
    %34 = vector.multi_reduction <maximumf>, %33, %cst_21 [1] : vector<17x17xf32> to vector<17xf32>
    %35 = vector.shape_cast %34 : vector<17xf32> to vector<17x1xf32>
    %36 = vector.broadcast %35 : vector<17x1xf32> to vector<17x17xf32>
    %37 = arith.subf %33, %36 : vector<17x17xf32>
    %38 = math.exp %37 : vector<17x17xf32>
    %cst_22 = arith.constant dense<0.000000e+00> : vector<17xf32>
    %39 = vector.multi_reduction <add>, %38, %cst_22 [1] : vector<17x17xf32> to vector<17xf32>
    %40 = vector.shape_cast %39 : vector<17xf32> to vector<17x1xf32>
    %41 = arith.truncf %38 : vector<17x17xf32> to vector<17x17xbf16>
    %cst_23 = arith.constant dense<0.000000e+00> : vector<17x8xf32>
    %42 = tpu.matmul %41, %30, %cst_23 {dimension_numbers = #tpu.dot_dimension_numbers<[1], [0], [0], [1], [0, 0, 1, 1], [], []>} : vector<17x17xbf16>, vector<17x8xbf16>, vector<17x8xf32> -> vector<17x8xf32>
    %43 = tpu.reciprocal %40 {approx = true} : vector<17x1xf32> -> vector<17x1xf32>
    %44 = vector.broadcast %43 : vector<17x1xf32> to vector<17x8xf32>
    %45 = arith.mulf %42, %44 : vector<17x8xf32>
    %46 = arith.truncf %45 : vector<17x8xf32> to vector<17x8xbf16>
    %c0_24 = arith.constant 0 : index
    %c0_25 = arith.constant 0 : index
    %c8_26 = arith.constant 8 : index
    %47 = vector.load %arg2[%c0_24, %c0_25, %c8_26] : memref<1x17x32xbf16, #tpu.memory_space<vmem>>, vector<1x17x8xbf16>
    %48 = vector.shape_cast %47 : vector<1x17x8xbf16> to vector<17x8xbf16>
    %49 = vector.shape_cast %46 : vector<17x8xbf16> to vector<1x17x8xbf16>
    tpu.vector_store %arg2[%c0_24, %c0_25, %c8_26], %49 {strides = array<i32>} : memref<1x17x32xbf16, #tpu.memory_space<vmem>>, vector<1x17x8xbf16>,
    %c0_27 = arith.constant 0 : index
    %c0_28 = arith.constant 0 : index
    %c16 = arith.constant 16 : index
    %50 = vector.load %arg1[%c0_27, %c0_28, %c16] : memref<1x17x96xbf16, #tpu.memory_space<vmem>>, vector<1x17x8xbf16>
    %51 = vector.shape_cast %50 : vector<1x17x8xbf16> to vector<17x8xbf16>
    %c0_29 = arith.constant 0 : index
    %c0_30 = arith.constant 0 : index
    %c48 = arith.constant 48 : index
    %52 = vector.load %arg1[%c0_29, %c0_30, %c48] : memref<1x17x96xbf16, #tpu.memory_space<vmem>>, vector<1x17x8xbf16>
    %53 = vector.shape_cast %52 : vector<1x17x8xbf16> to vector<17x8xbf16>
    %c0_31 = arith.constant 0 : index
    %c0_32 = arith.constant 0 : index
    %c80 = arith.constant 80 : index
    %54 = vector.load %arg1[%c0_31, %c0_32, %c80] : memref<1x17x96xbf16, #tpu.memory_space<vmem>>, vector<1x17x8xbf16>
    %55 = vector.shape_cast %54 : vector<1x17x8xbf16> to vector<17x8xbf16>
    %cst_33 = arith.constant dense<0.000000e+00> : vector<17x17xf32>
    %56 = tpu.matmul %51, %53, %cst_33 {dimension_numbers = #tpu.dot_dimension_numbers<[1], [1], [0], [0], [0, 0, 1, 0], [], []>} : vector<17x8xbf16>, vector<17x8xbf16>, vector<17x17xf32> -> vector<17x17xf32>
    %cst_34 = arith.constant 0.353553385 : f32
    %57 = vector.broadcast %cst_34 : f32 to vector<17x17xf32>
    %58 = arith.mulf %56, %57 : vector<17x17xf32>
    %cst_35 = arith.constant dense<0xFF800000> : vector<17xf32>
    %59 = vector.multi_reduction <maximumf>, %58, %cst_35 [1] : vector<17x17xf32> to vector<17xf32>
    %60 = vector.shape_cast %59 : vector<17xf32> to vector<17x1xf32>
    %61 = vector.broadcast %60 : vector<17x1xf32> to vector<17x17xf32>
    %62 = arith.subf %58, %61 : vector<17x17xf32>
    %63 = math.exp %62 : vector<17x17xf32>
    %cst_36 = arith.constant dense<0.000000e+00> : vector<17xf32>
    %64 = vector.multi_reduction <add>, %63, %cst_36 [1] : vector<17x17xf32> to vector<17xf32>
    %65 = vector.shape_cast %64 : vector<17xf32> to vector<17x1xf32>
    %66 = arith.truncf %63 : vector<17x17xf32> to vector<17x17xbf16>
    %cst_37 = arith.constant dense<0.000000e+00> : vector<17x8xf32>
    %67 = tpu.matmul %66, %55, %cst_37 {dimension_numbers = #tpu.dot_dimension_numbers<[1], [0], [0], [1], [0, 0, 1, 1], [], []>} : vector<17x17xbf16>, vector<17x8xbf16>, vector<17x8xf32> -> vector<17x8xf32>
    %68 = tpu.reciprocal %65 {approx = true} : vector<17x1xf32> -> vector<17x1xf32>
    %69 = vector.broadcast %68 : vector<17x1xf32> to vector<17x8xf32>
    %70 = arith.mulf %67, %69 : vector<17x8xf32>
    %71 = arith.truncf %70 : vector<17x8xf32> to vector<17x8xbf16>
    %c0_38 = arith.constant 0 : index
    %c0_39 = arith.constant 0 : index
    %c16_40 = arith.constant 16 : index
    %72 = vector.load %arg2[%c0_38, %c0_39, %c16_40] : memref<1x17x32xbf16, #tpu.memory_space<vmem>>, vector<1x17x8xbf16>
    %73 = vector.shape_cast %72 : vector<1x17x8xbf16> to vector<17x8xbf16>
    %74 = vector.shape_cast %71 : vector<17x8xbf16> to vector<1x17x8xbf16>
    tpu.vector_store %arg2[%c0_38, %c0_39, %c16_40], %74 {strides = array<i32>} : memref<1x17x32xbf16, #tpu.memory_space<vmem>>, vector<1x17x8xbf16>,
    %c0_41 = arith.constant 0 : index
    %c0_42 = arith.constant 0 : index
    %c24 = arith.constant 24 : index
    %75 = vector.load %arg1[%c0_41, %c0_42, %c24] : memref<1x17x96xbf16, #tpu.memory_space<vmem>>, vector<1x17x8xbf16>
    %76 = vector.shape_cast %75 : vector<1x17x8xbf16> to vector<17x8xbf16>
    %c0_43 = arith.constant 0 : index
    %c0_44 = arith.constant 0 : index
    %c56 = arith.constant 56 : index
    %77 = vector.load %arg1[%c0_43, %c0_44, %c56] : memref<1x17x96xbf16, #tpu.memory_space<vmem>>, vector<1x17x8xbf16>
    %78 = vector.shape_cast %77 : vector<1x17x8xbf16> to vector<17x8xbf16>
    %c0_45 = arith.constant 0 : index
    %c0_46 = arith.constant 0 : index
    %c88 = arith.constant 88 : index
    %79 = vector.load %arg1[%c0_45, %c0_46, %c88] : memref<1x17x96xbf16, #tpu.memory_space<vmem>>, vector<1x17x8xbf16>
    %80 = vector.shape_cast %79 : vector<1x17x8xbf16> to vector<17x8xbf16>
    %cst_47 = arith.constant dense<0.000000e+00> : vector<17x17xf32>
    %81 = tpu.matmul %76, %78, %cst_47 {dimension_numbers = #tpu.dot_dimension_numbers<[1], [1], [0], [0], [0, 0, 1, 0], [], []>} : vector<17x8xbf16>, vector<17x8xbf16>, vector<17x17xf32> -> vector<17x17xf32>
    %cst_48 = arith.constant 0.353553385 : f32
    %82 = vector.broadcast %cst_48 : f32 to vector<17x17xf32>
    %83 = arith.mulf %81, %82 : vector<17x17xf32>
    %cst_49 = arith.constant dense<0xFF800000> : vector<17xf32>
    %84 = vector.multi_reduction <maximumf>, %83, %cst_49 [1] : vector<17x17xf32> to vector<17xf32>
    %85 = vector.shape_cast %84 : vector<17xf32> to vector<17x1xf32>
    %86 = vector.broadcast %85 : vector<17x1xf32> to vector<17x17xf32>
    %87 = arith.subf %83, %86 : vector<17x17xf32>
    %88 = math.exp %87 : vector<17x17xf32>
    %cst_50 = arith.constant dense<0.000000e+00> : vector<17xf32>
    %89 = vector.multi_reduction <add>, %88, %cst_50 [1] : vector<17x17xf32> to vector<17xf32>
    %90 = vector.shape_cast %89 : vector<17xf32> to vector<17x1xf32>
    %91 = arith.truncf %88 : vector<17x17xf32> to vector<17x17xbf16>
    %cst_51 = arith.constant dense<0.000000e+00> : vector<17x8xf32>
    %92 = tpu.matmul %91, %80, %cst_51 {dimension_numbers = #tpu.dot_dimension_numbers<[1], [0], [0], [1], [0, 0, 1, 1], [], []>} : vector<17x17xbf16>, vector<17x8xbf16>, vector<17x8xf32> -> vector<17x8xf32>
    %93 = tpu.reciprocal %90 {approx = true} : vector<17x1xf32> -> vector<17x1xf32>
    %94 = vector.broadcast %93 : vector<17x1xf32> to vector<17x8xf32>
    %95 = arith.mulf %92, %94 : vector<17x8xf32>
    %96 = arith.truncf %95 : vector<17x8xf32> to vector<17x8xbf16>
    %c0_52 = arith.constant 0 : index
    %c0_53 = arith.constant 0 : index
    %c24_54 = arith.constant 24 : index
    %97 = vector.load %arg2[%c0_52, %c0_53, %c24_54] : memref<1x17x32xbf16, #tpu.memory_space<vmem>>, vector<1x17x8xbf16>
    %98 = vector.shape_cast %97 : vector<1x17x8xbf16> to vector<17x8xbf16>
    %99 = vector.shape_cast %96 : vector<17x8xbf16> to vector<1x17x8xbf16>
    tpu.vector_store %arg2[%c0_52, %c0_53, %c24_54], %99 {strides = array<i32>} : memref<1x17x32xbf16, #tpu.memory_space<vmem>>, vector<1x17x8xbf16>,
    return
  }
  func.func @transform_0(%arg0: i32) -> (i32, i32, i32) {
    %c0_i32 = arith.constant 0 : i32
    %c0_i32_0 = arith.constant 0 : i32
    %c0_i32_1 = arith.constant 0 : i32
    return %arg0, %c0_i32, %c0_i32_0 : i32, i32, i32
  }
  func.func @transform_1(%arg0: i32) -> (i32, i32, i32) {
    %c0_i32 = arith.constant 0 : i32
    %c0_i32_0 = arith.constant 0 : i32
    %c0_i32_1 = arith.constant 0 : i32
    return %arg0, %c0_i32, %c0_i32_0 : i32, i32, i32
  }
}

module attributes {stable_mosaic.version = 11 : i64} {
  func.func @_mm_kernel(%arg0: i32, %arg1: i32, %arg2: i32, %arg3: memref<34x32xbf16, #tpu.memory_space<vmem>>, %arg4: memref<32x64xbf16, #tpu.memory_space<vmem>>, %arg5: memref<1x64xf32, #tpu.memory_space<vmem>>, %arg6: memref<34x64xbf16, #tpu.memory_space<vmem>>, %arg7: memref<34x64xf32, #tpu.memory_space<vmem>>) attributes {dimension_semantics = [#tpu.dimension_semantics<parallel>, #tpu.dimension_semantics<parallel>, #tpu.dimension_semantics<arbitrary>], iteration_bounds = array<i64: 1, 1, 1>, scalar_prefetch = 0 : i64, scratch_operands = 1 : i64, tpu.core_type = #tpu.core_type<tc>, window_params = [{transform_indices = @transform_0, window_bounds = array<i64: 34, 32>}, {transform_indices = @transform_1, window_bounds = array<i64: 32, 64>}, {transform_indices = @transform_2, window_bounds = array<i64: 1, 64>}, {transform_indices = @transform_3, window_bounds = array<i64: 34, 64>}]} {
    %c0_i32 = arith.constant 0 : i32
    %0 = arith.cmpi eq, %arg2, %c0_i32 : i32
    %1 = arith.extui %0 : i1 to i32
    %c0_i32_0 = arith.constant 0 : i32
    %2 = arith.cmpi ne, %1, %c0_i32_0 : i32
    scf.if %2 {
      %cst_10 = arith.constant 0.000000e+00 : f32
      %12 = vector.broadcast %cst_10 : f32 to vector<34x64xf32>
      %c0_11 = arith.constant 0 : index
      %c0_12 = arith.constant 0 : index
      %13 = vector.load %arg7[%c0_11, %c0_12] : memref<34x64xf32, #tpu.memory_space<vmem>>, vector<34x64xf32>
      tpu.vector_store %arg7[%c0_11, %c0_12], %12 {strides = array<i32>} : memref<34x64xf32, #tpu.memory_space<vmem>>, vector<34x64xf32>,
    } else {
    }
    %c0 = arith.constant 0 : index
    %c0_1 = arith.constant 0 : index
    %3 = vector.load %arg7[%c0, %c0_1] : memref<34x64xf32, #tpu.memory_space<vmem>>, vector<34x64xf32>
    %c0_2 = arith.constant 0 : index
    %c0_3 = arith.constant 0 : index
    %4 = vector.load %arg3[%c0_2, %c0_3] : memref<34x32xbf16, #tpu.memory_space<vmem>>, vector<34x32xbf16>
    %c0_4 = arith.constant 0 : index
    %c0_5 = arith.constant 0 : index
    %5 = vector.load %arg4[%c0_4, %c0_5] : memref<32x64xbf16, #tpu.memory_space<vmem>>, vector<32x64xbf16>
    %cst = arith.constant dense<0.000000e+00> : vector<34x64xf32>
    %6 = tpu.matmul %4, %5, %cst {dimension_numbers = #tpu.dot_dimension_numbers<[1], [0], [0], [1], [0, 0, 1, 1], [], []>} : vector<34x32xbf16>, vector<32x64xbf16>, vector<34x64xf32> -> vector<34x64xf32>
    %7 = arith.addf %3, %6 : vector<34x64xf32>
    %c0_6 = arith.constant 0 : index
    %c0_7 = arith.constant 0 : index
    %8 = vector.load %arg7[%c0_6, %c0_7] : memref<34x64xf32, #tpu.memory_space<vmem>>, vector<34x64xf32>
    tpu.vector_store %arg7[%c0_6, %c0_7], %7 {strides = array<i32>} : memref<34x64xf32, #tpu.memory_space<vmem>>, vector<34x64xf32>,
    %c0_i32_8 = arith.constant 0 : i32
    %9 = arith.cmpi eq, %arg2, %c0_i32_8 : i32
    %10 = arith.extui %9 : i1 to i32
    %c0_i32_9 = arith.constant 0 : i32
    %11 = arith.cmpi ne, %10, %c0_i32_9 : i32
    scf.if %11 {
      %c0_10 = arith.constant 0 : index
      %c0_11 = arith.constant 0 : index
      %12 = vector.load %arg7[%c0_10, %c0_11] : memref<34x64xf32, #tpu.memory_space<vmem>>, vector<34x64xf32>
      %c0_12 = arith.constant 0 : index
      %c0_13 = arith.constant 0 : index
      %13 = vector.load %arg5[%c0_12, %c0_13] : memref<1x64xf32, #tpu.memory_space<vmem>>, vector<1x64xf32>
      %14 = vector.broadcast %13 : vector<1x64xf32> to vector<34x64xf32>
      %15 = arith.addf %12, %14 : vector<34x64xf32>
      %16 = arith.mulf %15, %15 : vector<34x64xf32>
      %17 = arith.mulf %15, %16 : vector<34x64xf32>
      %cst_14 = arith.constant 4.471500e-02 : f32
      %18 = vector.broadcast %cst_14 : f32 to vector<34x64xf32>
      %19 = arith.mulf %18, %17 : vector<34x64xf32>
      %20 = arith.addf %15, %19 : vector<34x64xf32>
      %cst_15 = arith.constant 0.797884583 : f32
      %21 = vector.broadcast %cst_15 : f32 to vector<34x64xf32>
      %22 = arith.mulf %21, %20 : vector<34x64xf32>
      %23 = math.tanh %22 : vector<34x64xf32>
      %cst_16 = arith.constant 1.000000e+00 : f32
      %24 = vector.broadcast %cst_16 : f32 to vector<34x64xf32>
      %25 = arith.addf %24, %23 : vector<34x64xf32>
      %cst_17 = arith.constant 5.000000e-01 : f32
      %26 = vector.broadcast %cst_17 : f32 to vector<34x64xf32>
      %27 = arith.mulf %26, %25 : vector<34x64xf32>
      %28 = arith.mulf %15, %27 : vector<34x64xf32>
      %29 = arith.truncf %28 : vector<34x64xf32> to vector<34x64xbf16>
      %c0_18 = arith.constant 0 : index
      %c0_19 = arith.constant 0 : index
      %30 = vector.load %arg6[%c0_18, %c0_19] : memref<34x64xbf16, #tpu.memory_space<vmem>>, vector<34x64xbf16>
      tpu.vector_store %arg6[%c0_18, %c0_19], %29 {strides = array<i32>} : memref<34x64xbf16, #tpu.memory_space<vmem>>, vector<34x64xbf16>,
    } else {
    }
    return
  }
  func.func @transform_0(%arg0: i32, %arg1: i32, %arg2: i32) -> (i32, i32) {
    %c0_i32 = arith.constant 0 : i32
    return %arg0, %arg2 : i32, i32
  }
  func.func @transform_1(%arg0: i32, %arg1: i32, %arg2: i32) -> (i32, i32) {
    %c0_i32 = arith.constant 0 : i32
    return %arg2, %arg1 : i32, i32
  }
  func.func @transform_2(%arg0: i32, %arg1: i32, %arg2: i32) -> (i32, i32) {
    %c0_i32 = arith.constant 0 : i32
    %c0_i32_0 = arith.constant 0 : i32
    return %c0_i32, %arg1 : i32, i32
  }
  func.func @transform_3(%arg0: i32, %arg1: i32, %arg2: i32) -> (i32, i32) {
    %c0_i32 = arith.constant 0 : i32
    return %arg0, %arg1 : i32, i32
  }
}

module attributes {stable_mosaic.version = 11 : i64} {
  func.func @_mm_kernel(%arg0: i32, %arg1: i32, %arg2: i32, %arg3: memref<34x32xbf16, #tpu.memory_space<vmem>>, %arg4: memref<32x32xbf16, #tpu.memory_space<vmem>>, %arg5: memref<1x32xf32, #tpu.memory_space<vmem>>, %arg6: memref<34x32xf32, #tpu.memory_space<vmem>>, %arg7: memref<1x32xf32, #tpu.memory_space<vmem>>, %arg8: memref<1x32xf32, #tpu.memory_space<vmem>>, %arg9: memref<34x32xf32, #tpu.memory_space<vmem>>, %arg10: memref<34x32xbf16, #tpu.memory_space<vmem>>, %arg11: memref<34x32xf32, #tpu.memory_space<vmem>>) attributes {dimension_semantics = [#tpu.dimension_semantics<parallel>, #tpu.dimension_semantics<parallel>, #tpu.dimension_semantics<arbitrary>], iteration_bounds = array<i64: 1, 1, 1>, scalar_prefetch = 0 : i64, scratch_operands = 1 : i64, tpu.core_type = #tpu.core_type<tc>, window_params = [{transform_indices = @transform_0, window_bounds = array<i64: 34, 32>}, {transform_indices = @transform_1, window_bounds = array<i64: 32, 32>}, {transform_indices = @transform_2, window_bounds = array<i64: 1, 32>}, {transform_indices = @transform_3, window_bounds = array<i64: 34, 32>}, {transform_indices = @transform_4, window_bounds = array<i64: 1, 32>}, {transform_indices = @transform_5, window_bounds = array<i64: 1, 32>}, {transform_indices = @transform_6, window_bounds = array<i64: 34, 32>}, {transform_indices = @transform_7, window_bounds = array<i64: 34, 32>}]} {
    %c0_i32 = arith.constant 0 : i32
    %0 = arith.cmpi eq, %arg2, %c0_i32 : i32
    %1 = arith.extui %0 : i1 to i32
    %c0_i32_0 = arith.constant 0 : i32
    %2 = arith.cmpi ne, %1, %c0_i32_0 : i32
    scf.if %2 {
      %cst_10 = arith.constant 0.000000e+00 : f32
      %12 = vector.broadcast %cst_10 : f32 to vector<34x32xf32>
      %c0_11 = arith.constant 0 : index
      %c0_12 = arith.constant 0 : index
      %13 = vector.load %arg11[%c0_11, %c0_12] : memref<34x32xf32, #tpu.memory_space<vmem>>, vector<34x32xf32>
      tpu.vector_store %arg11[%c0_11, %c0_12], %12 {strides = array<i32>} : memref<34x32xf32, #tpu.memory_space<vmem>>, vector<34x32xf32>,
    } else {
    }
    %c0 = arith.constant 0 : index
    %c0_1 = arith.constant 0 : index
    %3 = vector.load %arg11[%c0, %c0_1] : memref<34x32xf32, #tpu.memory_space<vmem>>, vector<34x32xf32>
    %c0_2 = arith.constant 0 : index
    %c0_3 = arith.constant 0 : index
    %4 = vector.load %arg3[%c0_2, %c0_3] : memref<34x32xbf16, #tpu.memory_space<vmem>>, vector<34x32xbf16>
    %c0_4 = arith.constant 0 : index
    %c0_5 = arith.constant 0 : index
    %5 = vector.load %arg4[%c0_4, %c0_5] : memref<32x32xbf16, #tpu.memory_space<vmem>>, vector<32x32xbf16>
    %cst = arith.constant dense<0.000000e+00> : vector<34x32xf32>
    %6 = tpu.matmul %4, %5, %cst {dimension_numbers = #tpu.dot_dimension_numbers<[1], [0], [0], [1], [0, 0, 1, 1], [], []>} : vector<34x32xbf16>, vector<32x32xbf16>, vector<34x32xf32> -> vector<34x32xf32>
    %7 = arith.addf %3, %6 : vector<34x32xf32>
    %c0_6 = arith.constant 0 : index
    %c0_7 = arith.constant 0 : index
    %8 = vector.load %arg11[%c0_6, %c0_7] : memref<34x32xf32, #tpu.memory_space<vmem>>, vector<34x32xf32>
    tpu.vector_store %arg11[%c0_6, %c0_7], %7 {strides = array<i32>} : memref<34x32xf32, #tpu.memory_space<vmem>>, vector<34x32xf32>,
    %c0_i32_8 = arith.constant 0 : i32
    %9 = arith.cmpi eq, %arg2, %c0_i32_8 : i32
    %10 = arith.extui %9 : i1 to i32
    %c0_i32_9 = arith.constant 0 : i32
    %11 = arith.cmpi ne, %10, %c0_i32_9 : i32
    scf.if %11 {
      %c0_10 = arith.constant 0 : index
      %c0_11 = arith.constant 0 : index
      %12 = vector.load %arg11[%c0_10, %c0_11] : memref<34x32xf32, #tpu.memory_space<vmem>>, vector<34x32xf32>
      %c0_12 = arith.constant 0 : index
      %c0_13 = arith.constant 0 : index
      %13 = vector.load %arg5[%c0_12, %c0_13] : memref<1x32xf32, #tpu.memory_space<vmem>>, vector<1x32xf32>
      %14 = vector.broadcast %13 : vector<1x32xf32> to vector<34x32xf32>
      %15 = arith.addf %12, %14 : vector<34x32xf32>
      %c0_14 = arith.constant 0 : index
      %c0_15 = arith.constant 0 : index
      %16 = vector.load %arg6[%c0_14, %c0_15] : memref<34x32xf32, #tpu.memory_space<vmem>>, vector<34x32xf32>
      %17 = arith.addf %15, %16 : vector<34x32xf32>
      %c0_16 = arith.constant 0 : index
      %c0_17 = arith.constant 0 : index
      %18 = vector.load %arg9[%c0_16, %c0_17] : memref<34x32xf32, #tpu.memory_space<vmem>>, vector<34x32xf32>
      tpu.vector_store %arg9[%c0_16, %c0_17], %17 {strides = array<i32>} : memref<34x32xf32, #tpu.memory_space<vmem>>, vector<34x32xf32>,
      %cst_18 = arith.constant dense<0.000000e+00> : vector<34xf32>
      %19 = vector.multi_reduction <add>, %17, %cst_18 [1] : vector<34x32xf32> to vector<34xf32>
      %20 = vector.shape_cast %19 : vector<34xf32> to vector<34x1xf32>
      %cst_19 = arith.constant 3.200000e+01 : f32
      %21 = vector.broadcast %cst_19 : f32 to vector<34x1xf32>
      %22 = arith.divf %20, %21 : vector<34x1xf32>
      %23 = vector.broadcast %22 : vector<34x1xf32> to vector<34x32xf32>
      %24 = arith.subf %17, %23 : vector<34x32xf32>
      %25 = arith.mulf %24, %24 : vector<34x32xf32>
      %cst_20 = arith.constant dense<0.000000e+00> : vector<34xf32>
      %26 = vector.multi_reduction <add>, %25, %cst_20 [1] : vector<34x32xf32> to vector<34xf32>
      %27 = vector.shape_cast %26 : vector<34xf32> to vector<34x1xf32>
      %cst_21 = arith.constant 3.200000e+01 : f32
      %28 = vector.broadcast %cst_21 : f32 to vector<34x1xf32>
      %29 = arith.divf %27, %28 : vector<34x1xf32>
      %cst_22 = arith.constant 9.99999974E-6 : f32
      %30 = vector.broadcast %cst_22 : f32 to vector<34x1xf32>
      %31 = arith.addf %29, %30 : vector<34x1xf32>
      %32 = math.rsqrt %31 : vector<34x1xf32>
      %33 = vector.broadcast %32 : vector<34x1xf32> to vector<34x32xf32>
      %34 = arith.mulf %24, %33 : vector<34x32xf32>
      %c0_23 = arith.constant 0 : index
      %c0_24 = arith.constant 0 : index
      %35 = vector.load %arg7[%c0_23, %c0_24] : memref<1x32xf32, #tpu.memory_space<vmem>>, vector<1x32xf32>
      %36 = vector.broadcast %35 : vector<1x32xf32> to vector<34x32xf32>
      %37 = arith.mulf %34, %36 : vector<34x32xf32>
      %c0_25 = arith.constant 0 : index
      %c0_26 = arith.constant 0 : index
      %38 = vector.load %arg8[%c0_25, %c0_26] : memref<1x32xf32, #tpu.memory_space<vmem>>, vector<1x32xf32>
      %39 = vector.broadcast %38 : vector<1x32xf32> to vector<34x32xf32>
      %40 = arith.addf %37, %39 : vector<34x32xf32>
      %41 = arith.truncf %40 : vector<34x32xf32> to vector<34x32xbf16>
      %c0_27 = arith.constant 0 : index
      %c0_28 = arith.constant 0 : index
      %42 = vector.load %arg10[%c0_27, %c0_28] : memref<34x32xbf16, #tpu.memory_space<vmem>>, vector<34x32xbf16>
      tpu.vector_store %arg10[%c0_27, %c0_28], %41 {strides = array<i32>} : memref<34x32xbf16, #tpu.memory_space<vmem>>, vector<34x32xbf16>,
    } else {
    }
    return
  }
  func.func @transform_0(%arg0: i32, %arg1: i32, %arg2: i32) -> (i32, i32) {
    %c0_i32 = arith.constant 0 : i32
    return %arg0, %arg2 : i32, i32
  }
  func.func @transform_1(%arg0: i32, %arg1: i32, %arg2: i32) -> (i32, i32) {
    %c0_i32 = arith.constant 0 : i32
    return %arg2, %arg1 : i32, i32
  }
  func.func @transform_2(%arg0: i32, %arg1: i32, %arg2: i32) -> (i32, i32) {
    %c0_i32 = arith.constant 0 : i32
    %c0_i32_0 = arith.constant 0 : i32
    return %c0_i32, %arg1 : i32, i32
  }
  func.func @transform_3(%arg0: i32, %arg1: i32, %arg2: i32) -> (i32, i32) {
    %c0_i32 = arith.constant 0 : i32
    return %arg0, %arg1 : i32, i32
  }
  func.func @transform_4(%arg0: i32, %arg1: i32, %arg2: i32) -> (i32, i32) {
    %c0_i32 = arith.constant 0 : i32
    %c0_i32_0 = arith.constant 0 : i32
    return %c0_i32, %arg1 : i32, i32
  }
  func.func @transform_5(%arg0: i32, %arg1: i32, %arg2: i32) -> (i32, i32) {
    %c0_i32 = arith.constant 0 : i32
    %c0_i32_0 = arith.constant 0 : i32
    return %c0_i32, %arg1 : i32, i32
  }
  func.func @transform_6(%arg0: i32, %arg1: i32, %arg2: i32) -> (i32, i32) {
    %c0_i32 = arith.constant 0 : i32
    return %arg0, %arg1 : i32, i32
  }
  func.func @transform_7(%arg0: i32, %arg1: i32, %arg2: i32) -> (i32, i32) {
    %c0_i32 = arith.constant 0 : i32
    return %arg0, %arg1 : i32, i32
  }
}

module attributes {stable_mosaic.version = 11 : i64} {
  func.func @_mm_kernel(%arg0: i32, %arg1: i32, %arg2: i32, %arg3: memref<34x64xbf16, #tpu.memory_space<vmem>>, %arg4: memref<64x32xbf16, #tpu.memory_space<vmem>>, %arg5: memref<1x32xf32, #tpu.memory_space<vmem>>, %arg6: memref<34x32xf32, #tpu.memory_space<vmem>>, %arg7: memref<1x32xf32, #tpu.memory_space<vmem>>, %arg8: memref<1x32xf32, #tpu.memory_space<vmem>>, %arg9: memref<34x32xf32, #tpu.memory_space<vmem>>, %arg10: memref<34x32xbf16, #tpu.memory_space<vmem>>, %arg11: memref<34x32xf32, #tpu.memory_space<vmem>>) attributes {dimension_semantics = [#tpu.dimension_semantics<parallel>, #tpu.dimension_semantics<parallel>, #tpu.dimension_semantics<arbitrary>], iteration_bounds = array<i64: 1, 1, 1>, scalar_prefetch = 0 : i64, scratch_operands = 1 : i64, tpu.core_type = #tpu.core_type<tc>, window_params = [{transform_indices = @transform_0, window_bounds = array<i64: 34, 64>}, {transform_indices = @transform_1, window_bounds = array<i64: 64, 32>}, {transform_indices = @transform_2, window_bounds = array<i64: 1, 32>}, {transform_indices = @transform_3, window_bounds = array<i64: 34, 32>}, {transform_indices = @transform_4, window_bounds = array<i64: 1, 32>}, {transform_indices = @transform_5, window_bounds = array<i64: 1, 32>}, {transform_indices = @transform_6, window_bounds = array<i64: 34, 32>}, {transform_indices = @transform_7, window_bounds = array<i64: 34, 32>}]} {
    %c0_i32 = arith.constant 0 : i32
    %0 = arith.cmpi eq, %arg2, %c0_i32 : i32
    %1 = arith.extui %0 : i1 to i32
    %c0_i32_0 = arith.constant 0 : i32
    %2 = arith.cmpi ne, %1, %c0_i32_0 : i32
    scf.if %2 {
      %cst_10 = arith.constant 0.000000e+00 : f32
      %12 = vector.broadcast %cst_10 : f32 to vector<34x32xf32>
      %c0_11 = arith.constant 0 : index
      %c0_12 = arith.constant 0 : index
      %13 = vector.load %arg11[%c0_11, %c0_12] : memref<34x32xf32, #tpu.memory_space<vmem>>, vector<34x32xf32>
      tpu.vector_store %arg11[%c0_11, %c0_12], %12 {strides = array<i32>} : memref<34x32xf32, #tpu.memory_space<vmem>>, vector<34x32xf32>,
    } else {
    }
    %c0 = arith.constant 0 : index
    %c0_1 = arith.constant 0 : index
    %3 = vector.load %arg11[%c0, %c0_1] : memref<34x32xf32, #tpu.memory_space<vmem>>, vector<34x32xf32>
    %c0_2 = arith.constant 0 : index
    %c0_3 = arith.constant 0 : index
    %4 = vector.load %arg3[%c0_2, %c0_3] : memref<34x64xbf16, #tpu.memory_space<vmem>>, vector<34x64xbf16>
    %c0_4 = arith.constant 0 : index
    %c0_5 = arith.constant 0 : index
    %5 = vector.load %arg4[%c0_4, %c0_5] : memref<64x32xbf16, #tpu.memory_space<vmem>>, vector<64x32xbf16>
    %cst = arith.constant dense<0.000000e+00> : vector<34x32xf32>
    %6 = tpu.matmul %4, %5, %cst {dimension_numbers = #tpu.dot_dimension_numbers<[1], [0], [0], [1], [0, 0, 1, 1], [], []>} : vector<34x64xbf16>, vector<64x32xbf16>, vector<34x32xf32> -> vector<34x32xf32>
    %7 = arith.addf %3, %6 : vector<34x32xf32>
    %c0_6 = arith.constant 0 : index
    %c0_7 = arith.constant 0 : index
    %8 = vector.load %arg11[%c0_6, %c0_7] : memref<34x32xf32, #tpu.memory_space<vmem>>, vector<34x32xf32>
    tpu.vector_store %arg11[%c0_6, %c0_7], %7 {strides = array<i32>} : memref<34x32xf32, #tpu.memory_space<vmem>>, vector<34x32xf32>,
    %c0_i32_8 = arith.constant 0 : i32
    %9 = arith.cmpi eq, %arg2, %c0_i32_8 : i32
    %10 = arith.extui %9 : i1 to i32
    %c0_i32_9 = arith.constant 0 : i32
    %11 = arith.cmpi ne, %10, %c0_i32_9 : i32
    scf.if %11 {
      %c0_10 = arith.constant 0 : index
      %c0_11 = arith.constant 0 : index
      %12 = vector.load %arg11[%c0_10, %c0_11] : memref<34x32xf32, #tpu.memory_space<vmem>>, vector<34x32xf32>
      %c0_12 = arith.constant 0 : index
      %c0_13 = arith.constant 0 : index
      %13 = vector.load %arg5[%c0_12, %c0_13] : memref<1x32xf32, #tpu.memory_space<vmem>>, vector<1x32xf32>
      %14 = vector.broadcast %13 : vector<1x32xf32> to vector<34x32xf32>
      %15 = arith.addf %12, %14 : vector<34x32xf32>
      %c0_14 = arith.constant 0 : index
      %c0_15 = arith.constant 0 : index
      %16 = vector.load %arg6[%c0_14, %c0_15] : memref<34x32xf32, #tpu.memory_space<vmem>>, vector<34x32xf32>
      %17 = arith.addf %15, %16 : vector<34x32xf32>
      %c0_16 = arith.constant 0 : index
      %c0_17 = arith.constant 0 : index
      %18 = vector.load %arg9[%c0_16, %c0_17] : memref<34x32xf32, #tpu.memory_space<vmem>>, vector<34x32xf32>
      tpu.vector_store %arg9[%c0_16, %c0_17], %17 {strides = array<i32>} : memref<34x32xf32, #tpu.memory_space<vmem>>, vector<34x32xf32>,
      %cst_18 = arith.constant dense<0.000000e+00> : vector<34xf32>
      %19 = vector.multi_reduction <add>, %17, %cst_18 [1] : vector<34x32xf32> to vector<34xf32>
      %20 = vector.shape_cast %19 : vector<34xf32> to vector<34x1xf32>
      %cst_19 = arith.constant 3.200000e+01 : f32
      %21 = vector.broadcast %cst_19 : f32 to vector<34x1xf32>
      %22 = arith.divf %20, %21 : vector<34x1xf32>
      %23 = vector.broadcast %22 : vector<34x1xf32> to vector<34x32xf32>
      %24 = arith.subf %17, %23 : vector<34x32xf32>
      %25 = arith.mulf %24, %24 : vector<34x32xf32>
      %cst_20 = arith.constant dense<0.000000e+00> : vector<34xf32>
      %26 = vector.multi_reduction <add>, %25, %cst_20 [1] : vector<34x32xf32> to vector<34xf32>
      %27 = vector.shape_cast %26 : vector<34xf32> to vector<34x1xf32>
      %cst_21 = arith.constant 3.200000e+01 : f32
      %28 = vector.broadcast %cst_21 : f32 to vector<34x1xf32>
      %29 = arith.divf %27, %28 : vector<34x1xf32>
      %cst_22 = arith.constant 9.99999974E-6 : f32
      %30 = vector.broadcast %cst_22 : f32 to vector<34x1xf32>
      %31 = arith.addf %29, %30 : vector<34x1xf32>
      %32 = math.rsqrt %31 : vector<34x1xf32>
      %33 = vector.broadcast %32 : vector<34x1xf32> to vector<34x32xf32>
      %34 = arith.mulf %24, %33 : vector<34x32xf32>
      %c0_23 = arith.constant 0 : index
      %c0_24 = arith.constant 0 : index
      %35 = vector.load %arg7[%c0_23, %c0_24] : memref<1x32xf32, #tpu.memory_space<vmem>>, vector<1x32xf32>
      %36 = vector.broadcast %35 : vector<1x32xf32> to vector<34x32xf32>
      %37 = arith.mulf %34, %36 : vector<34x32xf32>
      %c0_25 = arith.constant 0 : index
      %c0_26 = arith.constant 0 : index
      %38 = vector.load %arg8[%c0_25, %c0_26] : memref<1x32xf32, #tpu.memory_space<vmem>>, vector<1x32xf32>
      %39 = vector.broadcast %38 : vector<1x32xf32> to vector<34x32xf32>
      %40 = arith.addf %37, %39 : vector<34x32xf32>
      %41 = arith.truncf %40 : vector<34x32xf32> to vector<34x32xbf16>
      %c0_27 = arith.constant 0 : index
      %c0_28 = arith.constant 0 : index
      %42 = vector.load %arg10[%c0_27, %c0_28] : memref<34x32xbf16, #tpu.memory_space<vmem>>, vector<34x32xbf16>
      tpu.vector_store %arg10[%c0_27, %c0_28], %41 {strides = array<i32>} : memref<34x32xbf16, #tpu.memory_space<vmem>>, vector<34x32xbf16>,
    } else {
    }
    return
  }
  func.func @transform_0(%arg0: i32, %arg1: i32, %arg2: i32) -> (i32, i32) {
    %c0_i32 = arith.constant 0 : i32
    return %arg0, %arg2 : i32, i32
  }
  func.func @transform_1(%arg0: i32, %arg1: i32, %arg2: i32) -> (i32, i32) {
    %c0_i32 = arith.constant 0 : i32
    return %arg2, %arg1 : i32, i32
  }
  func.func @transform_2(%arg0: i32, %arg1: i32, %arg2: i32) -> (i32, i32) {
    %c0_i32 = arith.constant 0 : i32
    %c0_i32_0 = arith.constant 0 : i32
    return %c0_i32, %arg1 : i32, i32
  }
  func.func @transform_3(%arg0: i32, %arg1: i32, %arg2: i32) -> (i32, i32) {
    %c0_i32 = arith.constant 0 : i32
    return %arg0, %arg1 : i32, i32
  }
  func.func @transform_4(%arg0: i32, %arg1: i32, %arg2: i32) -> (i32, i32) {
    %c0_i32 = arith.constant 0 : i32
    %c0_i32_0 = arith.constant 0 : i32
    return %c0_i32, %arg1 : i32, i32
  }
  func.func @transform_5(%arg0: i32, %arg1: i32, %arg2: i32) -> (i32, i32) {
    %c0_i32 = arith.constant 0 : i32
    %c0_i32_0 = arith.constant 0 : i32
    return %c0_i32, %arg1 : i32, i32
  }
  func.func @transform_6(%arg0: i32, %arg1: i32, %arg2: i32) -> (i32, i32) {
    %c0_i32 = arith.constant 0 : i32
    return %arg0, %arg1 : i32, i32
  }
  func.func @transform_7(%arg0: i32, %arg1: i32, %arg2: i32) -> (i32, i32) {
    %c0_i32 = arith.constant 0 : i32
    return %arg0, %arg1 : i32, i32
  }
}

module attributes {stable_mosaic.version = 11 : i64} {
  func.func @_mm_kernel(%arg0: i32, %arg1: i32, %arg2: i32, %arg3: memref<32x32xbf16, #tpu.memory_space<vmem>>, %arg4: memref<32x32xbf16, #tpu.memory_space<vmem>>, %arg5: memref<1x32xf32, #tpu.memory_space<vmem>>, %arg6: memref<32x32xf32, #tpu.memory_space<vmem>>, %arg7: memref<32x32xf32, #tpu.memory_space<vmem>>) attributes {dimension_semantics = [#tpu.dimension_semantics<parallel>, #tpu.dimension_semantics<parallel>, #tpu.dimension_semantics<arbitrary>], iteration_bounds = array<i64: 1, 1, 1>, scalar_prefetch = 0 : i64, scratch_operands = 1 : i64, tpu.core_type = #tpu.core_type<tc>, window_params = [{transform_indices = @transform_0, window_bounds = array<i64: 32, 32>}, {transform_indices = @transform_1, window_bounds = array<i64: 32, 32>}, {transform_indices = @transform_2, window_bounds = array<i64: 1, 32>}, {transform_indices = @transform_3, window_bounds = array<i64: 32, 32>}]} {
    %c0_i32 = arith.constant 0 : i32
    %0 = arith.cmpi eq, %arg2, %c0_i32 : i32
    %1 = arith.extui %0 : i1 to i32
    %c0_i32_0 = arith.constant 0 : i32
    %2 = arith.cmpi ne, %1, %c0_i32_0 : i32
    scf.if %2 {
      %cst_10 = arith.constant 0.000000e+00 : f32
      %12 = vector.broadcast %cst_10 : f32 to vector<32x32xf32>
      %c0_11 = arith.constant 0 : index
      %c0_12 = arith.constant 0 : index
      %13 = vector.load %arg7[%c0_11, %c0_12] : memref<32x32xf32, #tpu.memory_space<vmem>>, vector<32x32xf32>
      tpu.vector_store %arg7[%c0_11, %c0_12], %12 {strides = array<i32>} : memref<32x32xf32, #tpu.memory_space<vmem>>, vector<32x32xf32>,
    } else {
    }
    %c0 = arith.constant 0 : index
    %c0_1 = arith.constant 0 : index
    %3 = vector.load %arg7[%c0, %c0_1] : memref<32x32xf32, #tpu.memory_space<vmem>>, vector<32x32xf32>
    %c0_2 = arith.constant 0 : index
    %c0_3 = arith.constant 0 : index
    %4 = vector.load %arg3[%c0_2, %c0_3] : memref<32x32xbf16, #tpu.memory_space<vmem>>, vector<32x32xbf16>
    %c0_4 = arith.constant 0 : index
    %c0_5 = arith.constant 0 : index
    %5 = vector.load %arg4[%c0_4, %c0_5] : memref<32x32xbf16, #tpu.memory_space<vmem>>, vector<32x32xbf16>
    %cst = arith.constant dense<0.000000e+00> : vector<32x32xf32>
    %6 = tpu.matmul %4, %5, %cst {dimension_numbers = #tpu.dot_dimension_numbers<[1], [0], [0], [1], [0, 0, 1, 1], [], []>} : vector<32x32xbf16>, vector<32x32xbf16>, vector<32x32xf32> -> vector<32x32xf32>
    %7 = arith.addf %3, %6 : vector<32x32xf32>
    %c0_6 = arith.constant 0 : index
    %c0_7 = arith.constant 0 : index
    %8 = vector.load %arg7[%c0_6, %c0_7] : memref<32x32xf32, #tpu.memory_space<vmem>>, vector<32x32xf32>
    tpu.vector_store %arg7[%c0_6, %c0_7], %7 {strides = array<i32>} : memref<32x32xf32, #tpu.memory_space<vmem>>, vector<32x32xf32>,
    %c0_i32_8 = arith.constant 0 : i32
    %9 = arith.cmpi eq, %arg2, %c0_i32_8 : i32
    %10 = arith.extui %9 : i1 to i32
    %c0_i32_9 = arith.constant 0 : i32
    %11 = arith.cmpi ne, %10, %c0_i32_9 : i32
    scf.if %11 {
      %c0_10 = arith.constant 0 : index
      %c0_11 = arith.constant 0 : index
      %12 = vector.load %arg7[%c0_10, %c0_11] : memref<32x32xf32, #tpu.memory_space<vmem>>, vector<32x32xf32>
      %c0_12 = arith.constant 0 : index
      %c0_13 = arith.constant 0 : index
      %13 = vector.load %arg5[%c0_12, %c0_13] : memref<1x32xf32, #tpu.memory_space<vmem>>, vector<1x32xf32>
      %14 = vector.broadcast %13 : vector<1x32xf32> to vector<32x32xf32>
      %15 = arith.addf %12, %14 : vector<32x32xf32>
      %c0_14 = arith.constant 0 : index
      %c0_15 = arith.constant 0 : index
      %16 = vector.load %arg6[%c0_14, %c0_15] : memref<32x32xf32, #tpu.memory_space<vmem>>, vector<32x32xf32>
      tpu.vector_store %arg6[%c0_14, %c0_15], %15 {strides = array<i32>} : memref<32x32xf32, #tpu.memory_space<vmem>>, vector<32x32xf32>,
    } else {
    }
    return
  }
  func.func @transform_0(%arg0: i32, %arg1: i32, %arg2: i32) -> (i32, i32) {
    %c0_i32 = arith.constant 0 : i32
    return %arg0, %arg2 : i32, i32
  }
  func.func @transform_1(%arg0: i32, %arg1: i32, %arg2: i32) -> (i32, i32) {
    %c0_i32 = arith.constant 0 : i32
    return %arg2, %arg1 : i32, i32
  }
  func.func @transform_2(%arg0: i32, %arg1: i32, %arg2: i32) -> (i32, i32) {
    %c0_i32 = arith.constant 0 : i32
    %c0_i32_0 = arith.constant 0 : i32
    return %c0_i32, %arg1 : i32, i32
  }
  func.func @transform_3(%arg0: i32, %arg1: i32, %arg2: i32) -> (i32, i32) {
    %c0_i32 = arith.constant 0 : i32
    return %arg0, %arg1 : i32, i32
  }
}

module attributes {stable_mosaic.version = 11 : i64} {
  func.func @_mm_kernel(%arg0: i32, %arg1: i32, %arg2: i32, %arg3: memref<40x32xbf16, #tpu.memory_space<vmem>>, %arg4: memref<32x96xbf16, #tpu.memory_space<vmem>>, %arg5: memref<1x96xf32, #tpu.memory_space<vmem>>, %arg6: memref<40x96xbf16, #tpu.memory_space<vmem>>, %arg7: memref<40x96xf32, #tpu.memory_space<vmem>>) attributes {dimension_semantics = [#tpu.dimension_semantics<parallel>, #tpu.dimension_semantics<parallel>, #tpu.dimension_semantics<arbitrary>], iteration_bounds = array<i64: 1, 1, 1>, scalar_prefetch = 0 : i64, scratch_operands = 1 : i64, tpu.core_type = #tpu.core_type<tc>, window_params = [{transform_indices = @transform_0, window_bounds = array<i64: 40, 32>}, {transform_indices = @transform_1, window_bounds = array<i64: 32, 96>}, {transform_indices = @transform_2, window_bounds = array<i64: 1, 96>}, {transform_indices = @transform_3, window_bounds = array<i64: 40, 96>}]} {
    %c0_i32 = arith.constant 0 : i32
    %0 = arith.cmpi eq, %arg2, %c0_i32 : i32
    %1 = arith.extui %0 : i1 to i32
    %c0_i32_0 = arith.constant 0 : i32
    %2 = arith.cmpi ne, %1, %c0_i32_0 : i32
    scf.if %2 {
      %cst_10 = arith.constant 0.000000e+00 : f32
      %12 = vector.broadcast %cst_10 : f32 to vector<40x96xf32>
      %c0_11 = arith.constant 0 : index
      %c0_12 = arith.constant 0 : index
      %13 = vector.load %arg7[%c0_11, %c0_12] : memref<40x96xf32, #tpu.memory_space<vmem>>, vector<40x96xf32>
      tpu.vector_store %arg7[%c0_11, %c0_12], %12 {strides = array<i32>} : memref<40x96xf32, #tpu.memory_space<vmem>>, vector<40x96xf32>,
    } else {
    }
    %c0 = arith.constant 0 : index
    %c0_1 = arith.constant 0 : index
    %3 = vector.load %arg7[%c0, %c0_1] : memref<40x96xf32, #tpu.memory_space<vmem>>, vector<40x96xf32>
    %c0_2 = arith.constant 0 : index
    %c0_3 = arith.constant 0 : index
    %4 = vector.load %arg3[%c0_2, %c0_3] : memref<40x32xbf16, #tpu.memory_space<vmem>>, vector<40x32xbf16>
    %c0_4 = arith.constant 0 : index
    %c0_5 = arith.constant 0 : index
    %5 = vector.load %arg4[%c0_4, %c0_5] : memref<32x96xbf16, #tpu.memory_space<vmem>>, vector<32x96xbf16>
    %cst = arith.constant dense<0.000000e+00> : vector<40x96xf32>
    %6 = tpu.matmul %4, %5, %cst {dimension_numbers = #tpu.dot_dimension_numbers<[1], [0], [0], [1], [0, 0, 1, 1], [], []>} : vector<40x32xbf16>, vector<32x96xbf16>, vector<40x96xf32> -> vector<40x96xf32>
    %7 = arith.addf %3, %6 : vector<40x96xf32>
    %c0_6 = arith.constant 0 : index
    %c0_7 = arith.constant 0 : index
    %8 = vector.load %arg7[%c0_6, %c0_7] : memref<40x96xf32, #tpu.memory_space<vmem>>, vector<40x96xf32>
    tpu.vector_store %arg7[%c0_6, %c0_7], %7 {strides = array<i32>} : memref<40x96xf32, #tpu.memory_space<vmem>>, vector<40x96xf32>,
    %c0_i32_8 = arith.constant 0 : i32
    %9 = arith.cmpi eq, %arg2, %c0_i32_8 : i32
    %10 = arith.extui %9 : i1 to i32
    %c0_i32_9 = arith.constant 0 : i32
    %11 = arith.cmpi ne, %10, %c0_i32_9 : i32
    scf.if %11 {
      %c0_10 = arith.constant 0 : index
      %c0_11 = arith.constant 0 : index
      %12 = vector.load %arg7[%c0_10, %c0_11] : memref<40x96xf32, #tpu.memory_space<vmem>>, vector<40x96xf32>
      %c0_12 = arith.constant 0 : index
      %c0_13 = arith.constant 0 : index
      %13 = vector.load %arg5[%c0_12, %c0_13] : memref<1x96xf32, #tpu.memory_space<vmem>>, vector<1x96xf32>
      %14 = vector.broadcast %13 : vector<1x96xf32> to vector<40x96xf32>
      %15 = arith.addf %12, %14 : vector<40x96xf32>
      %16 = arith.truncf %15 : vector<40x96xf32> to vector<40x96xbf16>
      %c0_14 = arith.constant 0 : index
      %c0_15 = arith.constant 0 : index
      %17 = vector.load %arg6[%c0_14, %c0_15] : memref<40x96xbf16, #tpu.memory_space<vmem>>, vector<40x96xbf16>
      tpu.vector_store %arg6[%c0_14, %c0_15], %16 {strides = array<i32>} : memref<40x96xbf16, #tpu.memory_space<vmem>>, vector<40x96xbf16>,
    } else {
    }
    return
  }
  func.func @transform_0(%arg0: i32, %arg1: i32, %arg2: i32) -> (i32, i32) {
    %c0_i32 = arith.constant 0 : i32
    return %arg0, %arg2 : i32, i32
  }
  func.func @transform_1(%arg0: i32, %arg1: i32, %arg2: i32) -> (i32, i32) {
    %c0_i32 = arith.constant 0 : i32
    return %arg2, %arg1 : i32, i32
  }
  func.func @transform_2(%arg0: i32, %arg1: i32, %arg2: i32) -> (i32, i32) {
    %c0_i32 = arith.constant 0 : i32
    %c0_i32_0 = arith.constant 0 : i32
    return %c0_i32, %arg1 : i32, i32
  }
  func.func @transform_3(%arg0: i32, %arg1: i32, %arg2: i32) -> (i32, i32) {
    %c0_i32 = arith.constant 0 : i32
    return %arg0, %arg1 : i32, i32
  }
}

module attributes {stable_mosaic.version = 11 : i64} {
  func.func @_mm_kernel(%arg0: i32, %arg1: i32, %arg2: i32, %arg3: memref<34x64xbf16, #tpu.memory_space<vmem>>, %arg4: memref<64x32xbf16, #tpu.memory_space<vmem>>, %arg5: memref<1x32xf32, #tpu.memory_space<vmem>>, %arg6: memref<34x32xf32, #tpu.memory_space<vmem>>, %arg7: memref<1x32xf32, #tpu.memory_space<vmem>>, %arg8: memref<1x32xf32, #tpu.memory_space<vmem>>, %arg9: memref<34x32xf32, #tpu.memory_space<vmem>>, %arg10: memref<34x32xbf16, #tpu.memory_space<vmem>>, %arg11: memref<34x32xf32, #tpu.memory_space<vmem>>) attributes {dimension_semantics = [#tpu.dimension_semantics<parallel>, #tpu.dimension_semantics<parallel>, #tpu.dimension_semantics<arbitrary>], iteration_bounds = array<i64: 1, 1, 1>, scalar_prefetch = 0 : i64, scratch_operands = 1 : i64, tpu.core_type = #tpu.core_type<tc>, window_params = [{transform_indices = @transform_0, window_bounds = array<i64: 34, 64>}, {transform_indices = @transform_1, window_bounds = array<i64: 64, 32>}, {transform_indices = @transform_2, window_bounds = array<i64: 1, 32>}, {transform_indices = @transform_3, window_bounds = array<i64: 34, 32>}, {transform_indices = @transform_4, window_bounds = array<i64: 1, 32>}, {transform_indices = @transform_5, window_bounds = array<i64: 1, 32>}, {transform_indices = @transform_6, window_bounds = array<i64: 34, 32>}, {transform_indices = @transform_7, window_bounds = array<i64: 34, 32>}]} {
    %c0_i32 = arith.constant 0 : i32
    %0 = arith.cmpi eq, %arg2, %c0_i32 : i32
    %1 = arith.extui %0 : i1 to i32
    %c0_i32_0 = arith.constant 0 : i32
    %2 = arith.cmpi ne, %1, %c0_i32_0 : i32
    scf.if %2 {
      %cst_10 = arith.constant 0.000000e+00 : f32
      %12 = vector.broadcast %cst_10 : f32 to vector<34x32xf32>
      %c0_11 = arith.constant 0 : index
      %c0_12 = arith.constant 0 : index
      %13 = vector.load %arg11[%c0_11, %c0_12] : memref<34x32xf32, #tpu.memory_space<vmem>>, vector<34x32xf32>
      tpu.vector_store %arg11[%c0_11, %c0_12], %12 {strides = array<i32>} : memref<34x32xf32, #tpu.memory_space<vmem>>, vector<34x32xf32>,
    } else {
    }
    %c0 = arith.constant 0 : index
    %c0_1 = arith.constant 0 : index
    %3 = vector.load %arg11[%c0, %c0_1] : memref<34x32xf32, #tpu.memory_space<vmem>>, vector<34x32xf32>
    %c0_2 = arith.constant 0 : index
    %c0_3 = arith.constant 0 : index
    %4 = vector.load %arg3[%c0_2, %c0_3] : memref<34x64xbf16, #tpu.memory_space<vmem>>, vector<34x64xbf16>
    %c0_4 = arith.constant 0 : index
    %c0_5 = arith.constant 0 : index
    %5 = vector.load %arg4[%c0_4, %c0_5] : memref<64x32xbf16, #tpu.memory_space<vmem>>, vector<64x32xbf16>
    %cst = arith.constant dense<0.000000e+00> : vector<34x32xf32>
    %6 = tpu.matmul %4, %5, %cst {dimension_numbers = #tpu.dot_dimension_numbers<[1], [0], [0], [1], [0, 0, 1, 1], [], []>} : vector<34x64xbf16>, vector<64x32xbf16>, vector<34x32xf32> -> vector<34x32xf32>
    %7 = arith.addf %3, %6 : vector<34x32xf32>
    %c0_6 = arith.constant 0 : index
    %c0_7 = arith.constant 0 : index
    %8 = vector.load %arg11[%c0_6, %c0_7] : memref<34x32xf32, #tpu.memory_space<vmem>>, vector<34x32xf32>
    tpu.vector_store %arg11[%c0_6, %c0_7], %7 {strides = array<i32>} : memref<34x32xf32, #tpu.memory_space<vmem>>, vector<34x32xf32>,
    %c0_i32_8 = arith.constant 0 : i32
    %9 = arith.cmpi eq, %arg2, %c0_i32_8 : i32
    %10 = arith.extui %9 : i1 to i32
    %c0_i32_9 = arith.constant 0 : i32
    %11 = arith.cmpi ne, %10, %c0_i32_9 : i32
    scf.if %11 {
      %c0_10 = arith.constant 0 : index
      %c0_11 = arith.constant 0 : index
      %12 = vector.load %arg11[%c0_10, %c0_11] : memref<34x32xf32, #tpu.memory_space<vmem>>, vector<34x32xf32>
      %c0_12 = arith.constant 0 : index
      %c0_13 = arith.constant 0 : index
      %13 = vector.load %arg5[%c0_12, %c0_13] : memref<1x32xf32, #tpu.memory_space<vmem>>, vector<1x32xf32>
      %14 = vector.broadcast %13 : vector<1x32xf32> to vector<34x32xf32>
      %15 = arith.addf %12, %14 : vector<34x32xf32>
      %c0_14 = arith.constant 0 : index
      %c0_15 = arith.constant 0 : index
      %16 = vector.load %arg6[%c0_14, %c0_15] : memref<34x32xf32, #tpu.memory_space<vmem>>, vector<34x32xf32>
      %17 = arith.addf %15, %16 : vector<34x32xf32>
      %c0_16 = arith.constant 0 : index
      %c0_17 = arith.constant 0 : index
      %18 = vector.load %arg9[%c0_16, %c0_17] : memref<34x32xf32, #tpu.memory_space<vmem>>, vector<34x32xf32>
      tpu.vector_store %arg9[%c0_16, %c0_17], %17 {strides = array<i32>} : memref<34x32xf32, #tpu.memory_space<vmem>>, vector<34x32xf32>,
      %cst_18 = arith.constant dense<0.000000e+00> : vector<34xf32>
      %19 = vector.multi_reduction <add>, %17, %cst_18 [1] : vector<34x32xf32> to vector<34xf32>
      %20 = vector.shape_cast %19 : vector<34xf32> to vector<34x1xf32>
      %cst_19 = arith.constant 3.200000e+01 : f32
      %21 = vector.broadcast %cst_19 : f32 to vector<34x1xf32>
      %22 = arith.divf %20, %21 : vector<34x1xf32>
      %23 = vector.broadcast %22 : vector<34x1xf32> to vector<34x32xf32>
      %24 = arith.subf %17, %23 : vector<34x32xf32>
      %25 = arith.mulf %24, %24 : vector<34x32xf32>
      %cst_20 = arith.constant dense<0.000000e+00> : vector<34xf32>
      %26 = vector.multi_reduction <add>, %25, %cst_20 [1] : vector<34x32xf32> to vector<34xf32>
      %27 = vector.shape_cast %26 : vector<34xf32> to vector<34x1xf32>
      %cst_21 = arith.constant 3.200000e+01 : f32
      %28 = vector.broadcast %cst_21 : f32 to vector<34x1xf32>
      %29 = arith.divf %27, %28 : vector<34x1xf32>
      %cst_22 = arith.constant 9.99999974E-6 : f32
      %30 = vector.broadcast %cst_22 : f32 to vector<34x1xf32>
      %31 = arith.addf %29, %30 : vector<34x1xf32>
      %32 = math.rsqrt %31 : vector<34x1xf32>
      %33 = vector.broadcast %32 : vector<34x1xf32> to vector<34x32xf32>
      %34 = arith.mulf %24, %33 : vector<34x32xf32>
      %c0_23 = arith.constant 0 : index
      %c0_24 = arith.constant 0 : index
      %35 = vector.load %arg7[%c0_23, %c0_24] : memref<1x32xf32, #tpu.memory_space<vmem>>, vector<1x32xf32>
      %36 = vector.broadcast %35 : vector<1x32xf32> to vector<34x32xf32>
      %37 = arith.mulf %34, %36 : vector<34x32xf32>
      %c0_25 = arith.constant 0 : index
      %c0_26 = arith.constant 0 : index
      %38 = vector.load %arg8[%c0_25, %c0_26] : memref<1x32xf32, #tpu.memory_space<vmem>>, vector<1x32xf32>
      %39 = vector.broadcast %38 : vector<1x32xf32> to vector<34x32xf32>
      %40 = arith.addf %37, %39 : vector<34x32xf32>
      %41 = arith.truncf %40 : vector<34x32xf32> to vector<34x32xbf16>
      %c0_27 = arith.constant 0 : index
      %c0_28 = arith.constant 0 : index
      %42 = vector.load %arg10[%c0_27, %c0_28] : memref<34x32xbf16, #tpu.memory_space<vmem>>, vector<34x32xbf16>
      tpu.vector_store %arg10[%c0_27, %c0_28], %41 {strides = array<i32>} : memref<34x32xbf16, #tpu.memory_space<vmem>>, vector<34x32xbf16>,
    } else {
    }
    return
  }
  func.func @transform_0(%arg0: i32, %arg1: i32, %arg2: i32) -> (i32, i32) {
    %c0_i32 = arith.constant 0 : i32
    return %arg0, %arg2 : i32, i32
  }
  func.func @transform_1(%arg0: i32, %arg1: i32, %arg2: i32) -> (i32, i32) {
    %c0_i32 = arith.constant 0 : i32
    return %arg2, %arg1 : i32, i32
  }
  func.func @transform_2(%arg0: i32, %arg1: i32, %arg2: i32) -> (i32, i32) {
    %c0_i32 = arith.constant 0 : i32
    %c0_i32_0 = arith.constant 0 : i32
    return %c0_i32, %arg1 : i32, i32
  }
  func.func @transform_3(%arg0: i32, %arg1: i32, %arg2: i32) -> (i32, i32) {
    %c0_i32 = arith.constant 0 : i32
    return %arg0, %arg1 : i32, i32
  }
  func.func @transform_4(%arg0: i32, %arg1: i32, %arg2: i32) -> (i32, i32) {
    %c0_i32 = arith.constant 0 : i32
    %c0_i32_0 = arith.constant 0 : i32
    return %c0_i32, %arg1 : i32, i32
  }
  func.func @transform_5(%arg0: i32, %arg1: i32, %arg2: i32) -> (i32, i32) {
    %c0_i32 = arith.constant 0 : i32
    %c0_i32_0 = arith.constant 0 : i32
    return %c0_i32, %arg1 : i32, i32
  }
  func.func @transform_6(%arg0: i32, %arg1: i32, %arg2: i32) -> (i32, i32) {
    %c0_i32 = arith.constant 0 : i32
    return %arg0, %arg1 : i32, i32
  }
  func.func @transform_7(%arg0: i32, %arg1: i32, %arg2: i32) -> (i32, i32) {
    %c0_i32 = arith.constant 0 : i32
    return %arg0, %arg1 : i32, i32
  }
}

module attributes {stable_mosaic.version = 11 : i64} {
  func.func @_layernorm_kernel(%arg0: i32, %arg1: memref<40x32xf32, #tpu.memory_space<vmem>>, %arg2: memref<1x32xf32, #tpu.memory_space<vmem>>, %arg3: memref<1x32xf32, #tpu.memory_space<vmem>>, %arg4: memref<40x32xbf16, #tpu.memory_space<vmem>>) attributes {dimension_semantics = [#tpu.dimension_semantics<parallel>], iteration_bounds = array<i64: 1>, scalar_prefetch = 0 : i64, scratch_operands = 0 : i64, tpu.core_type = #tpu.core_type<tc>, window_params = [{transform_indices = @transform_0, window_bounds = array<i64: 40, 32>}, {pipeline_mode = #tpu.pipeline_mode<synchronous>, transform_indices = @transform_1, window_bounds = array<i64: 1, 32>}, {pipeline_mode = #tpu.pipeline_mode<synchronous>, transform_indices = @transform_2, window_bounds = array<i64: 1, 32>}, {transform_indices = @transform_3, window_bounds = array<i64: 40, 32>}]} {
    %c0 = arith.constant 0 : index
    %c0_0 = arith.constant 0 : index
    %0 = vector.load %arg1[%c0, %c0_0] : memref<40x32xf32, #tpu.memory_space<vmem>>, vector<40x32xf32>
    %cst = arith.constant dense<0.000000e+00> : vector<40xf32>
    %1 = vector.multi_reduction <add>, %0, %cst [1] : vector<40x32xf32> to vector<40xf32>
    %2 = vector.shape_cast %1 : vector<40xf32> to vector<40x1xf32>
    %cst_1 = arith.constant 3.200000e+01 : f32
    %3 = vector.broadcast %cst_1 : f32 to vector<40x1xf32>
    %4 = arith.divf %2, %3 : vector<40x1xf32>
    %5 = vector.broadcast %4 : vector<40x1xf32> to vector<40x32xf32>
    %6 = arith.subf %0, %5 : vector<40x32xf32>
    %7 = arith.mulf %6, %6 : vector<40x32xf32>
    %cst_2 = arith.constant dense<0.000000e+00> : vector<40xf32>
    %8 = vector.multi_reduction <add>, %7, %cst_2 [1] : vector<40x32xf32> to vector<40xf32>
    %9 = vector.shape_cast %8 : vector<40xf32> to vector<40x1xf32>
    %cst_3 = arith.constant 3.200000e+01 : f32
    %10 = vector.broadcast %cst_3 : f32 to vector<40x1xf32>
    %11 = arith.divf %9, %10 : vector<40x1xf32>
    %cst_4 = arith.constant 9.99999974E-6 : f32
    %12 = vector.broadcast %cst_4 : f32 to vector<40x1xf32>
    %13 = arith.addf %11, %12 : vector<40x1xf32>
    %14 = math.rsqrt %13 : vector<40x1xf32>
    %15 = vector.broadcast %14 : vector<40x1xf32> to vector<40x32xf32>
    %16 = arith.mulf %6, %15 : vector<40x32xf32>
    %c0_5 = arith.constant 0 : index
    %c0_6 = arith.constant 0 : index
    %17 = vector.load %arg2[%c0_5, %c0_6] : memref<1x32xf32, #tpu.memory_space<vmem>>, vector<1x32xf32>
    %18 = vector.broadcast %17 : vector<1x32xf32> to vector<40x32xf32>
    %19 = arith.mulf %16, %18 : vector<40x32xf32>
    %c0_7 = arith.constant 0 : index
    %c0_8 = arith.constant 0 : index
    %20 = vector.load %arg3[%c0_7, %c0_8] : memref<1x32xf32, #tpu.memory_space<vmem>>, vector<1x32xf32>
    %21 = vector.broadcast %20 : vector<1x32xf32> to vector<40x32xf32>
    %22 = arith.addf %19, %21 : vector<40x32xf32>
    %23 = arith.truncf %22 : vector<40x32xf32> to vector<40x32xbf16>
    %c0_9 = arith.constant 0 : index
    %c0_10 = arith.constant 0 : index
    %24 = vector.load %arg4[%c0_9, %c0_10] : memref<40x32xbf16, #tpu.memory_space<vmem>>, vector<40x32xbf16>
    tpu.vector_store %arg4[%c0_9, %c0_10], %23 {strides = array<i32>} : memref<40x32xbf16, #tpu.memory_space<vmem>>, vector<40x32xbf16>,
    return
  }
  func.func @transform_0(%arg0: i32) -> (i32, i32) {
    %c0_i32 = arith.constant 0 : i32
    %c0_i32_0 = arith.constant 0 : i32
    return %arg0, %c0_i32 : i32, i32
  }
  func.func @transform_1(%arg0: i32) -> (i32, i32) {
    %c0_i32 = arith.constant 0 : i32
    %c0_i32_0 = arith.constant 0 : i32
    %c0_i32_1 = arith.constant 0 : i32
    return %c0_i32, %c0_i32_0 : i32, i32
  }
  func.func @transform_2(%arg0: i32) -> (i32, i32) {
    %c0_i32 = arith.constant 0 : i32
    %c0_i32_0 = arith.constant 0 : i32
    %c0_i32_1 = arith.constant 0 : i32
    return %c0_i32, %c0_i32_0 : i32, i32
  }
  func.func @transform_3(%arg0: i32) -> (i32, i32) {
    %c0_i32 = arith.constant 0 : i32
    %c0_i32_0 = arith.constant 0 : i32
    return %arg0, %c0_i32 : i32, i32
  }
}

module attributes {stable_mosaic.version = 11 : i64} {
  func.func @_mhsa_kernel(%arg0: i32, %arg1: memref<1x20x96xbf16, #tpu.memory_space<vmem>>, %arg2: memref<1x20x32xbf16, #tpu.memory_space<vmem>>) attributes {dimension_semantics = [#tpu.dimension_semantics<parallel>], iteration_bounds = array<i64: 2>, scalar_prefetch = 0 : i64, scratch_operands = 0 : i64, tpu.core_type = #tpu.core_type<tc>, window_params = [{transform_indices = @transform_0, window_bounds = array<i64: 1, 20, 96>}, {transform_indices = @transform_1, window_bounds = array<i64: 1, 20, 32>}]} {
    %c0 = arith.constant 0 : index
    %c0_0 = arith.constant 0 : index
    %c0_1 = arith.constant 0 : index
    %0 = vector.load %arg1[%c0, %c0_0, %c0_1] : memref<1x20x96xbf16, #tpu.memory_space<vmem>>, vector<1x20x8xbf16>
    %1 = vector.shape_cast %0 : vector<1x20x8xbf16> to vector<20x8xbf16>
    %c0_2 = arith.constant 0 : index
    %c0_3 = arith.constant 0 : index
    %c32 = arith.constant 32 : index
    %2 = vector.load %arg1[%c0_2, %c0_3, %c32] : memref<1x20x96xbf16, #tpu.memory_space<vmem>>, vector<1x20x8xbf16>
    %3 = vector.shape_cast %2 : vector<1x20x8xbf16> to vector<20x8xbf16>
    %c0_4 = arith.constant 0 : index
    %c0_5 = arith.constant 0 : index
    %c64 = arith.constant 64 : index
    %4 = vector.load %arg1[%c0_4, %c0_5, %c64] : memref<1x20x96xbf16, #tpu.memory_space<vmem>>, vector<1x20x8xbf16>
    %5 = vector.shape_cast %4 : vector<1x20x8xbf16> to vector<20x8xbf16>
    %cst = arith.constant dense<0.000000e+00> : vector<20x20xf32>
    %6 = tpu.matmul %1, %3, %cst {dimension_numbers = #tpu.dot_dimension_numbers<[1], [1], [0], [0], [0, 0, 1, 0], [], []>} : vector<20x8xbf16>, vector<20x8xbf16>, vector<20x20xf32> -> vector<20x20xf32>
    %cst_6 = arith.constant 0.353553385 : f32
    %7 = vector.broadcast %cst_6 : f32 to vector<20x20xf32>
    %8 = arith.mulf %6, %7 : vector<20x20xf32>
    %cst_7 = arith.constant dense<0xFF800000> : vector<20xf32>
    %9 = vector.multi_reduction <maximumf>, %8, %cst_7 [1] : vector<20x20xf32> to vector<20xf32>
    %10 = vector.shape_cast %9 : vector<20xf32> to vector<20x1xf32>
    %11 = vector.broadcast %10 : vector<20x1xf32> to vector<20x20xf32>
    %12 = arith.subf %8, %11 : vector<20x20xf32>
    %13 = math.exp %12 : vector<20x20xf32>
    %cst_8 = arith.constant dense<0.000000e+00> : vector<20xf32>
    %14 = vector.multi_reduction <add>, %13, %cst_8 [1] : vector<20x20xf32> to vector<20xf32>
    %15 = vector.shape_cast %14 : vector<20xf32> to vector<20x1xf32>
    %16 = arith.truncf %13 : vector<20x20xf32> to vector<20x20xbf16>
    %cst_9 = arith.constant dense<0.000000e+00> : vector<20x8xf32>
    %17 = tpu.matmul %16, %5, %cst_9 {dimension_numbers = #tpu.dot_dimension_numbers<[1], [0], [0], [1], [0, 0, 1, 1], [], []>} : vector<20x20xbf16>, vector<20x8xbf16>, vector<20x8xf32> -> vector<20x8xf32>
    %18 = tpu.reciprocal %15 {approx = true} : vector<20x1xf32> -> vector<20x1xf32>
    %19 = vector.broadcast %18 : vector<20x1xf32> to vector<20x8xf32>
    %20 = arith.mulf %17, %19 : vector<20x8xf32>
    %21 = arith.truncf %20 : vector<20x8xf32> to vector<20x8xbf16>
    %c0_10 = arith.constant 0 : index
    %c0_11 = arith.constant 0 : index
    %c0_12 = arith.constant 0 : index
    %22 = vector.load %arg2[%c0_10, %c0_11, %c0_12] : memref<1x20x32xbf16, #tpu.memory_space<vmem>>, vector<1x20x8xbf16>
    %23 = vector.shape_cast %22 : vector<1x20x8xbf16> to vector<20x8xbf16>
    %24 = vector.shape_cast %21 : vector<20x8xbf16> to vector<1x20x8xbf16>
    tpu.vector_store %arg2[%c0_10, %c0_11, %c0_12], %24 {strides = array<i32>} : memref<1x20x32xbf16, #tpu.memory_space<vmem>>, vector<1x20x8xbf16>,
    %c0_13 = arith.constant 0 : index
    %c0_14 = arith.constant 0 : index
    %c8 = arith.constant 8 : index
    %25 = vector.load %arg1[%c0_13, %c0_14, %c8] : memref<1x20x96xbf16, #tpu.memory_space<vmem>>, vector<1x20x8xbf16>
    %26 = vector.shape_cast %25 : vector<1x20x8xbf16> to vector<20x8xbf16>
    %c0_15 = arith.constant 0 : index
    %c0_16 = arith.constant 0 : index
    %c40 = arith.constant 40 : index
    %27 = vector.load %arg1[%c0_15, %c0_16, %c40] : memref<1x20x96xbf16, #tpu.memory_space<vmem>>, vector<1x20x8xbf16>
    %28 = vector.shape_cast %27 : vector<1x20x8xbf16> to vector<20x8xbf16>
    %c0_17 = arith.constant 0 : index
    %c0_18 = arith.constant 0 : index
    %c72 = arith.constant 72 : index
    %29 = vector.load %arg1[%c0_17, %c0_18, %c72] : memref<1x20x96xbf16, #tpu.memory_space<vmem>>, vector<1x20x8xbf16>
    %30 = vector.shape_cast %29 : vector<1x20x8xbf16> to vector<20x8xbf16>
    %cst_19 = arith.constant dense<0.000000e+00> : vector<20x20xf32>
    %31 = tpu.matmul %26, %28, %cst_19 {dimension_numbers = #tpu.dot_dimension_numbers<[1], [1], [0], [0], [0, 0, 1, 0], [], []>} : vector<20x8xbf16>, vector<20x8xbf16>, vector<20x20xf32> -> vector<20x20xf32>
    %cst_20 = arith.constant 0.353553385 : f32
    %32 = vector.broadcast %cst_20 : f32 to vector<20x20xf32>
    %33 = arith.mulf %31, %32 : vector<20x20xf32>
    %cst_21 = arith.constant dense<0xFF800000> : vector<20xf32>
    %34 = vector.multi_reduction <maximumf>, %33, %cst_21 [1] : vector<20x20xf32> to vector<20xf32>
    %35 = vector.shape_cast %34 : vector<20xf32> to vector<20x1xf32>
    %36 = vector.broadcast %35 : vector<20x1xf32> to vector<20x20xf32>
    %37 = arith.subf %33, %36 : vector<20x20xf32>
    %38 = math.exp %37 : vector<20x20xf32>
    %cst_22 = arith.constant dense<0.000000e+00> : vector<20xf32>
    %39 = vector.multi_reduction <add>, %38, %cst_22 [1] : vector<20x20xf32> to vector<20xf32>
    %40 = vector.shape_cast %39 : vector<20xf32> to vector<20x1xf32>
    %41 = arith.truncf %38 : vector<20x20xf32> to vector<20x20xbf16>
    %cst_23 = arith.constant dense<0.000000e+00> : vector<20x8xf32>
    %42 = tpu.matmul %41, %30, %cst_23 {dimension_numbers = #tpu.dot_dimension_numbers<[1], [0], [0], [1], [0, 0, 1, 1], [], []>} : vector<20x20xbf16>, vector<20x8xbf16>, vector<20x8xf32> -> vector<20x8xf32>
    %43 = tpu.reciprocal %40 {approx = true} : vector<20x1xf32> -> vector<20x1xf32>
    %44 = vector.broadcast %43 : vector<20x1xf32> to vector<20x8xf32>
    %45 = arith.mulf %42, %44 : vector<20x8xf32>
    %46 = arith.truncf %45 : vector<20x8xf32> to vector<20x8xbf16>
    %c0_24 = arith.constant 0 : index
    %c0_25 = arith.constant 0 : index
    %c8_26 = arith.constant 8 : index
    %47 = vector.load %arg2[%c0_24, %c0_25, %c8_26] : memref<1x20x32xbf16, #tpu.memory_space<vmem>>, vector<1x20x8xbf16>
    %48 = vector.shape_cast %47 : vector<1x20x8xbf16> to vector<20x8xbf16>
    %49 = vector.shape_cast %46 : vector<20x8xbf16> to vector<1x20x8xbf16>
    tpu.vector_store %arg2[%c0_24, %c0_25, %c8_26], %49 {strides = array<i32>} : memref<1x20x32xbf16, #tpu.memory_space<vmem>>, vector<1x20x8xbf16>,
    %c0_27 = arith.constant 0 : index
    %c0_28 = arith.constant 0 : index
    %c16 = arith.constant 16 : index
    %50 = vector.load %arg1[%c0_27, %c0_28, %c16] : memref<1x20x96xbf16, #tpu.memory_space<vmem>>, vector<1x20x8xbf16>
    %51 = vector.shape_cast %50 : vector<1x20x8xbf16> to vector<20x8xbf16>
    %c0_29 = arith.constant 0 : index
    %c0_30 = arith.constant 0 : index
    %c48 = arith.constant 48 : index
    %52 = vector.load %arg1[%c0_29, %c0_30, %c48] : memref<1x20x96xbf16, #tpu.memory_space<vmem>>, vector<1x20x8xbf16>
    %53 = vector.shape_cast %52 : vector<1x20x8xbf16> to vector<20x8xbf16>
    %c0_31 = arith.constant 0 : index
    %c0_32 = arith.constant 0 : index
    %c80 = arith.constant 80 : index
    %54 = vector.load %arg1[%c0_31, %c0_32, %c80] : memref<1x20x96xbf16, #tpu.memory_space<vmem>>, vector<1x20x8xbf16>
    %55 = vector.shape_cast %54 : vector<1x20x8xbf16> to vector<20x8xbf16>
    %cst_33 = arith.constant dense<0.000000e+00> : vector<20x20xf32>
    %56 = tpu.matmul %51, %53, %cst_33 {dimension_numbers = #tpu.dot_dimension_numbers<[1], [1], [0], [0], [0, 0, 1, 0], [], []>} : vector<20x8xbf16>, vector<20x8xbf16>, vector<20x20xf32> -> vector<20x20xf32>
    %cst_34 = arith.constant 0.353553385 : f32
    %57 = vector.broadcast %cst_34 : f32 to vector<20x20xf32>
    %58 = arith.mulf %56, %57 : vector<20x20xf32>
    %cst_35 = arith.constant dense<0xFF800000> : vector<20xf32>
    %59 = vector.multi_reduction <maximumf>, %58, %cst_35 [1] : vector<20x20xf32> to vector<20xf32>
    %60 = vector.shape_cast %59 : vector<20xf32> to vector<20x1xf32>
    %61 = vector.broadcast %60 : vector<20x1xf32> to vector<20x20xf32>
    %62 = arith.subf %58, %61 : vector<20x20xf32>
    %63 = math.exp %62 : vector<20x20xf32>
    %cst_36 = arith.constant dense<0.000000e+00> : vector<20xf32>
    %64 = vector.multi_reduction <add>, %63, %cst_36 [1] : vector<20x20xf32> to vector<20xf32>
    %65 = vector.shape_cast %64 : vector<20xf32> to vector<20x1xf32>
    %66 = arith.truncf %63 : vector<20x20xf32> to vector<20x20xbf16>
    %cst_37 = arith.constant dense<0.000000e+00> : vector<20x8xf32>
    %67 = tpu.matmul %66, %55, %cst_37 {dimension_numbers = #tpu.dot_dimension_numbers<[1], [0], [0], [1], [0, 0, 1, 1], [], []>} : vector<20x20xbf16>, vector<20x8xbf16>, vector<20x8xf32> -> vector<20x8xf32>
    %68 = tpu.reciprocal %65 {approx = true} : vector<20x1xf32> -> vector<20x1xf32>
    %69 = vector.broadcast %68 : vector<20x1xf32> to vector<20x8xf32>
    %70 = arith.mulf %67, %69 : vector<20x8xf32>
    %71 = arith.truncf %70 : vector<20x8xf32> to vector<20x8xbf16>
    %c0_38 = arith.constant 0 : index
    %c0_39 = arith.constant 0 : index
    %c16_40 = arith.constant 16 : index
    %72 = vector.load %arg2[%c0_38, %c0_39, %c16_40] : memref<1x20x32xbf16, #tpu.memory_space<vmem>>, vector<1x20x8xbf16>
    %73 = vector.shape_cast %72 : vector<1x20x8xbf16> to vector<20x8xbf16>
    %74 = vector.shape_cast %71 : vector<20x8xbf16> to vector<1x20x8xbf16>
    tpu.vector_store %arg2[%c0_38, %c0_39, %c16_40], %74 {strides = array<i32>} : memref<1x20x32xbf16, #tpu.memory_space<vmem>>, vector<1x20x8xbf16>,
    %c0_41 = arith.constant 0 : index
    %c0_42 = arith.constant 0 : index
    %c24 = arith.constant 24 : index
    %75 = vector.load %arg1[%c0_41, %c0_42, %c24] : memref<1x20x96xbf16, #tpu.memory_space<vmem>>, vector<1x20x8xbf16>
    %76 = vector.shape_cast %75 : vector<1x20x8xbf16> to vector<20x8xbf16>
    %c0_43 = arith.constant 0 : index
    %c0_44 = arith.constant 0 : index
    %c56 = arith.constant 56 : index
    %77 = vector.load %arg1[%c0_43, %c0_44, %c56] : memref<1x20x96xbf16, #tpu.memory_space<vmem>>, vector<1x20x8xbf16>
    %78 = vector.shape_cast %77 : vector<1x20x8xbf16> to vector<20x8xbf16>
    %c0_45 = arith.constant 0 : index
    %c0_46 = arith.constant 0 : index
    %c88 = arith.constant 88 : index
    %79 = vector.load %arg1[%c0_45, %c0_46, %c88] : memref<1x20x96xbf16, #tpu.memory_space<vmem>>, vector<1x20x8xbf16>
    %80 = vector.shape_cast %79 : vector<1x20x8xbf16> to vector<20x8xbf16>
    %cst_47 = arith.constant dense<0.000000e+00> : vector<20x20xf32>
    %81 = tpu.matmul %76, %78, %cst_47 {dimension_numbers = #tpu.dot_dimension_numbers<[1], [1], [0], [0], [0, 0, 1, 0], [], []>} : vector<20x8xbf16>, vector<20x8xbf16>, vector<20x20xf32> -> vector<20x20xf32>
    %cst_48 = arith.constant 0.353553385 : f32
    %82 = vector.broadcast %cst_48 : f32 to vector<20x20xf32>
    %83 = arith.mulf %81, %82 : vector<20x20xf32>
    %cst_49 = arith.constant dense<0xFF800000> : vector<20xf32>
    %84 = vector.multi_reduction <maximumf>, %83, %cst_49 [1] : vector<20x20xf32> to vector<20xf32>
    %85 = vector.shape_cast %84 : vector<20xf32> to vector<20x1xf32>
    %86 = vector.broadcast %85 : vector<20x1xf32> to vector<20x20xf32>
    %87 = arith.subf %83, %86 : vector<20x20xf32>
    %88 = math.exp %87 : vector<20x20xf32>
    %cst_50 = arith.constant dense<0.000000e+00> : vector<20xf32>
    %89 = vector.multi_reduction <add>, %88, %cst_50 [1] : vector<20x20xf32> to vector<20xf32>
    %90 = vector.shape_cast %89 : vector<20xf32> to vector<20x1xf32>
    %91 = arith.truncf %88 : vector<20x20xf32> to vector<20x20xbf16>
    %cst_51 = arith.constant dense<0.000000e+00> : vector<20x8xf32>
    %92 = tpu.matmul %91, %80, %cst_51 {dimension_numbers = #tpu.dot_dimension_numbers<[1], [0], [0], [1], [0, 0, 1, 1], [], []>} : vector<20x20xbf16>, vector<20x8xbf16>, vector<20x8xf32> -> vector<20x8xf32>
    %93 = tpu.reciprocal %90 {approx = true} : vector<20x1xf32> -> vector<20x1xf32>
    %94 = vector.broadcast %93 : vector<20x1xf32> to vector<20x8xf32>
    %95 = arith.mulf %92, %94 : vector<20x8xf32>
    %96 = arith.truncf %95 : vector<20x8xf32> to vector<20x8xbf16>
    %c0_52 = arith.constant 0 : index
    %c0_53 = arith.constant 0 : index
    %c24_54 = arith.constant 24 : index
    %97 = vector.load %arg2[%c0_52, %c0_53, %c24_54] : memref<1x20x32xbf16, #tpu.memory_space<vmem>>, vector<1x20x8xbf16>
    %98 = vector.shape_cast %97 : vector<1x20x8xbf16> to vector<20x8xbf16>
    %99 = vector.shape_cast %96 : vector<20x8xbf16> to vector<1x20x8xbf16>
    tpu.vector_store %arg2[%c0_52, %c0_53, %c24_54], %99 {strides = array<i32>} : memref<1x20x32xbf16, #tpu.memory_space<vmem>>, vector<1x20x8xbf16>,
    return
  }
  func.func @transform_0(%arg0: i32) -> (i32, i32, i32) {
    %c0_i32 = arith.constant 0 : i32
    %c0_i32_0 = arith.constant 0 : i32
    %c0_i32_1 = arith.constant 0 : i32
    return %arg0, %c0_i32, %c0_i32_0 : i32, i32, i32
  }
  func.func @transform_1(%arg0: i32) -> (i32, i32, i32) {
    %c0_i32 = arith.constant 0 : i32
    %c0_i32_0 = arith.constant 0 : i32
    %c0_i32_1 = arith.constant 0 : i32
    return %arg0, %c0_i32, %c0_i32_0 : i32, i32, i32
  }
}

module attributes {stable_mosaic.version = 11 : i64} {
  func.func @_mm_kernel(%arg0: i32, %arg1: i32, %arg2: i32, %arg3: memref<40x32xbf16, #tpu.memory_space<vmem>>, %arg4: memref<32x64xbf16, #tpu.memory_space<vmem>>, %arg5: memref<1x64xf32, #tpu.memory_space<vmem>>, %arg6: memref<40x64xbf16, #tpu.memory_space<vmem>>, %arg7: memref<40x64xf32, #tpu.memory_space<vmem>>) attributes {dimension_semantics = [#tpu.dimension_semantics<parallel>, #tpu.dimension_semantics<parallel>, #tpu.dimension_semantics<arbitrary>], iteration_bounds = array<i64: 1, 1, 1>, scalar_prefetch = 0 : i64, scratch_operands = 1 : i64, tpu.core_type = #tpu.core_type<tc>, window_params = [{transform_indices = @transform_0, window_bounds = array<i64: 40, 32>}, {transform_indices = @transform_1, window_bounds = array<i64: 32, 64>}, {transform_indices = @transform_2, window_bounds = array<i64: 1, 64>}, {transform_indices = @transform_3, window_bounds = array<i64: 40, 64>}]} {
    %c0_i32 = arith.constant 0 : i32
    %0 = arith.cmpi eq, %arg2, %c0_i32 : i32
    %1 = arith.extui %0 : i1 to i32
    %c0_i32_0 = arith.constant 0 : i32
    %2 = arith.cmpi ne, %1, %c0_i32_0 : i32
    scf.if %2 {
      %cst_10 = arith.constant 0.000000e+00 : f32
      %12 = vector.broadcast %cst_10 : f32 to vector<40x64xf32>
      %c0_11 = arith.constant 0 : index
      %c0_12 = arith.constant 0 : index
      %13 = vector.load %arg7[%c0_11, %c0_12] : memref<40x64xf32, #tpu.memory_space<vmem>>, vector<40x64xf32>
      tpu.vector_store %arg7[%c0_11, %c0_12], %12 {strides = array<i32>} : memref<40x64xf32, #tpu.memory_space<vmem>>, vector<40x64xf32>,
    } else {
    }
    %c0 = arith.constant 0 : index
    %c0_1 = arith.constant 0 : index
    %3 = vector.load %arg7[%c0, %c0_1] : memref<40x64xf32, #tpu.memory_space<vmem>>, vector<40x64xf32>
    %c0_2 = arith.constant 0 : index
    %c0_3 = arith.constant 0 : index
    %4 = vector.load %arg3[%c0_2, %c0_3] : memref<40x32xbf16, #tpu.memory_space<vmem>>, vector<40x32xbf16>
    %c0_4 = arith.constant 0 : index
    %c0_5 = arith.constant 0 : index
    %5 = vector.load %arg4[%c0_4, %c0_5] : memref<32x64xbf16, #tpu.memory_space<vmem>>, vector<32x64xbf16>
    %cst = arith.constant dense<0.000000e+00> : vector<40x64xf32>
    %6 = tpu.matmul %4, %5, %cst {dimension_numbers = #tpu.dot_dimension_numbers<[1], [0], [0], [1], [0, 0, 1, 1], [], []>} : vector<40x32xbf16>, vector<32x64xbf16>, vector<40x64xf32> -> vector<40x64xf32>
    %7 = arith.addf %3, %6 : vector<40x64xf32>
    %c0_6 = arith.constant 0 : index
    %c0_7 = arith.constant 0 : index
    %8 = vector.load %arg7[%c0_6, %c0_7] : memref<40x64xf32, #tpu.memory_space<vmem>>, vector<40x64xf32>
    tpu.vector_store %arg7[%c0_6, %c0_7], %7 {strides = array<i32>} : memref<40x64xf32, #tpu.memory_space<vmem>>, vector<40x64xf32>,
    %c0_i32_8 = arith.constant 0 : i32
    %9 = arith.cmpi eq, %arg2, %c0_i32_8 : i32
    %10 = arith.extui %9 : i1 to i32
    %c0_i32_9 = arith.constant 0 : i32
    %11 = arith.cmpi ne, %10, %c0_i32_9 : i32
    scf.if %11 {
      %c0_10 = arith.constant 0 : index
      %c0_11 = arith.constant 0 : index
      %12 = vector.load %arg7[%c0_10, %c0_11] : memref<40x64xf32, #tpu.memory_space<vmem>>, vector<40x64xf32>
      %c0_12 = arith.constant 0 : index
      %c0_13 = arith.constant 0 : index
      %13 = vector.load %arg5[%c0_12, %c0_13] : memref<1x64xf32, #tpu.memory_space<vmem>>, vector<1x64xf32>
      %14 = vector.broadcast %13 : vector<1x64xf32> to vector<40x64xf32>
      %15 = arith.addf %12, %14 : vector<40x64xf32>
      %16 = arith.mulf %15, %15 : vector<40x64xf32>
      %17 = arith.mulf %15, %16 : vector<40x64xf32>
      %cst_14 = arith.constant 4.471500e-02 : f32
      %18 = vector.broadcast %cst_14 : f32 to vector<40x64xf32>
      %19 = arith.mulf %18, %17 : vector<40x64xf32>
      %20 = arith.addf %15, %19 : vector<40x64xf32>
      %cst_15 = arith.constant 0.797884583 : f32
      %21 = vector.broadcast %cst_15 : f32 to vector<40x64xf32>
      %22 = arith.mulf %21, %20 : vector<40x64xf32>
      %23 = math.tanh %22 : vector<40x64xf32>
      %cst_16 = arith.constant 1.000000e+00 : f32
      %24 = vector.broadcast %cst_16 : f32 to vector<40x64xf32>
      %25 = arith.addf %24, %23 : vector<40x64xf32>
      %cst_17 = arith.constant 5.000000e-01 : f32
      %26 = vector.broadcast %cst_17 : f32 to vector<40x64xf32>
      %27 = arith.mulf %26, %25 : vector<40x64xf32>
      %28 = arith.mulf %15, %27 : vector<40x64xf32>
      %29 = arith.truncf %28 : vector<40x64xf32> to vector<40x64xbf16>
      %c0_18 = arith.constant 0 : index
      %c0_19 = arith.constant 0 : index
      %30 = vector.load %arg6[%c0_18, %c0_19] : memref<40x64xbf16, #tpu.memory_space<vmem>>, vector<40x64xbf16>
      tpu.vector_store %arg6[%c0_18, %c0_19], %29 {strides = array<i32>} : memref<40x64xbf16, #tpu.memory_space<vmem>>, vector<40x64xbf16>,
    } else {
    }
    return
  }
  func.func @transform_0(%arg0: i32, %arg1: i32, %arg2: i32) -> (i32, i32) {
    %c0_i32 = arith.constant 0 : i32
    return %arg0, %arg2 : i32, i32
  }
  func.func @transform_1(%arg0: i32, %arg1: i32, %arg2: i32) -> (i32, i32) {
    %c0_i32 = arith.constant 0 : i32
    return %arg2, %arg1 : i32, i32
  }
  func.func @transform_2(%arg0: i32, %arg1: i32, %arg2: i32) -> (i32, i32) {
    %c0_i32 = arith.constant 0 : i32
    %c0_i32_0 = arith.constant 0 : i32
    return %c0_i32, %arg1 : i32, i32
  }
  func.func @transform_3(%arg0: i32, %arg1: i32, %arg2: i32) -> (i32, i32) {
    %c0_i32 = arith.constant 0 : i32
    return %arg0, %arg1 : i32, i32
  }
}

module attributes {stable_mosaic.version = 11 : i64} {
  func.func @_mm_kernel(%arg0: i32, %arg1: i32, %arg2: i32, %arg3: memref<40x32xbf16, #tpu.memory_space<vmem>>, %arg4: memref<32x32xbf16, #tpu.memory_space<vmem>>, %arg5: memref<1x32xf32, #tpu.memory_space<vmem>>, %arg6: memref<40x32xf32, #tpu.memory_space<vmem>>, %arg7: memref<1x32xf32, #tpu.memory_space<vmem>>, %arg8: memref<1x32xf32, #tpu.memory_space<vmem>>, %arg9: memref<40x32xf32, #tpu.memory_space<vmem>>, %arg10: memref<40x32xbf16, #tpu.memory_space<vmem>>, %arg11: memref<40x32xf32, #tpu.memory_space<vmem>>) attributes {dimension_semantics = [#tpu.dimension_semantics<parallel>, #tpu.dimension_semantics<parallel>, #tpu.dimension_semantics<arbitrary>], iteration_bounds = array<i64: 1, 1, 1>, scalar_prefetch = 0 : i64, scratch_operands = 1 : i64, tpu.core_type = #tpu.core_type<tc>, window_params = [{transform_indices = @transform_0, window_bounds = array<i64: 40, 32>}, {transform_indices = @transform_1, window_bounds = array<i64: 32, 32>}, {transform_indices = @transform_2, window_bounds = array<i64: 1, 32>}, {transform_indices = @transform_3, window_bounds = array<i64: 40, 32>}, {transform_indices = @transform_4, window_bounds = array<i64: 1, 32>}, {transform_indices = @transform_5, window_bounds = array<i64: 1, 32>}, {transform_indices = @transform_6, window_bounds = array<i64: 40, 32>}, {transform_indices = @transform_7, window_bounds = array<i64: 40, 32>}]} {
    %c0_i32 = arith.constant 0 : i32
    %0 = arith.cmpi eq, %arg2, %c0_i32 : i32
    %1 = arith.extui %0 : i1 to i32
    %c0_i32_0 = arith.constant 0 : i32
    %2 = arith.cmpi ne, %1, %c0_i32_0 : i32
    scf.if %2 {
      %cst_10 = arith.constant 0.000000e+00 : f32
      %12 = vector.broadcast %cst_10 : f32 to vector<40x32xf32>
      %c0_11 = arith.constant 0 : index
      %c0_12 = arith.constant 0 : index
      %13 = vector.load %arg11[%c0_11, %c0_12] : memref<40x32xf32, #tpu.memory_space<vmem>>, vector<40x32xf32>
      tpu.vector_store %arg11[%c0_11, %c0_12], %12 {strides = array<i32>} : memref<40x32xf32, #tpu.memory_space<vmem>>, vector<40x32xf32>,
    } else {
    }
    %c0 = arith.constant 0 : index
    %c0_1 = arith.constant 0 : index
    %3 = vector.load %arg11[%c0, %c0_1] : memref<40x32xf32, #tpu.memory_space<vmem>>, vector<40x32xf32>
    %c0_2 = arith.constant 0 : index
    %c0_3 = arith.constant 0 : index
    %4 = vector.load %arg3[%c0_2, %c0_3] : memref<40x32xbf16, #tpu.memory_space<vmem>>, vector<40x32xbf16>
    %c0_4 = arith.constant 0 : index
    %c0_5 = arith.constant 0 : index
    %5 = vector.load %arg4[%c0_4, %c0_5] : memref<32x32xbf16, #tpu.memory_space<vmem>>, vector<32x32xbf16>
    %cst = arith.constant dense<0.000000e+00> : vector<40x32xf32>
    %6 = tpu.matmul %4, %5, %cst {dimension_numbers = #tpu.dot_dimension_numbers<[1], [0], [0], [1], [0, 0, 1, 1], [], []>} : vector<40x32xbf16>, vector<32x32xbf16>, vector<40x32xf32> -> vector<40x32xf32>
    %7 = arith.addf %3, %6 : vector<40x32xf32>
    %c0_6 = arith.constant 0 : index
    %c0_7 = arith.constant 0 : index
    %8 = vector.load %arg11[%c0_6, %c0_7] : memref<40x32xf32, #tpu.memory_space<vmem>>, vector<40x32xf32>
    tpu.vector_store %arg11[%c0_6, %c0_7], %7 {strides = array<i32>} : memref<40x32xf32, #tpu.memory_space<vmem>>, vector<40x32xf32>,
    %c0_i32_8 = arith.constant 0 : i32
    %9 = arith.cmpi eq, %arg2, %c0_i32_8 : i32
    %10 = arith.extui %9 : i1 to i32
    %c0_i32_9 = arith.constant 0 : i32
    %11 = arith.cmpi ne, %10, %c0_i32_9 : i32
    scf.if %11 {
      %c0_10 = arith.constant 0 : index
      %c0_11 = arith.constant 0 : index
      %12 = vector.load %arg11[%c0_10, %c0_11] : memref<40x32xf32, #tpu.memory_space<vmem>>, vector<40x32xf32>
      %c0_12 = arith.constant 0 : index
      %c0_13 = arith.constant 0 : index
      %13 = vector.load %arg5[%c0_12, %c0_13] : memref<1x32xf32, #tpu.memory_space<vmem>>, vector<1x32xf32>
      %14 = vector.broadcast %13 : vector<1x32xf32> to vector<40x32xf32>
      %15 = arith.addf %12, %14 : vector<40x32xf32>
      %c0_14 = arith.constant 0 : index
      %c0_15 = arith.constant 0 : index
      %16 = vector.load %arg6[%c0_14, %c0_15] : memref<40x32xf32, #tpu.memory_space<vmem>>, vector<40x32xf32>
      %17 = arith.addf %15, %16 : vector<40x32xf32>
      %c0_16 = arith.constant 0 : index
      %c0_17 = arith.constant 0 : index
      %18 = vector.load %arg9[%c0_16, %c0_17] : memref<40x32xf32, #tpu.memory_space<vmem>>, vector<40x32xf32>
      tpu.vector_store %arg9[%c0_16, %c0_17], %17 {strides = array<i32>} : memref<40x32xf32, #tpu.memory_space<vmem>>, vector<40x32xf32>,
      %cst_18 = arith.constant dense<0.000000e+00> : vector<40xf32>
      %19 = vector.multi_reduction <add>, %17, %cst_18 [1] : vector<40x32xf32> to vector<40xf32>
      %20 = vector.shape_cast %19 : vector<40xf32> to vector<40x1xf32>
      %cst_19 = arith.constant 3.200000e+01 : f32
      %21 = vector.broadcast %cst_19 : f32 to vector<40x1xf32>
      %22 = arith.divf %20, %21 : vector<40x1xf32>
      %23 = vector.broadcast %22 : vector<40x1xf32> to vector<40x32xf32>
      %24 = arith.subf %17, %23 : vector<40x32xf32>
      %25 = arith.mulf %24, %24 : vector<40x32xf32>
      %cst_20 = arith.constant dense<0.000000e+00> : vector<40xf32>
      %26 = vector.multi_reduction <add>, %25, %cst_20 [1] : vector<40x32xf32> to vector<40xf32>
      %27 = vector.shape_cast %26 : vector<40xf32> to vector<40x1xf32>
      %cst_21 = arith.constant 3.200000e+01 : f32
      %28 = vector.broadcast %cst_21 : f32 to vector<40x1xf32>
      %29 = arith.divf %27, %28 : vector<40x1xf32>
      %cst_22 = arith.constant 9.99999974E-6 : f32
      %30 = vector.broadcast %cst_22 : f32 to vector<40x1xf32>
      %31 = arith.addf %29, %30 : vector<40x1xf32>
      %32 = math.rsqrt %31 : vector<40x1xf32>
      %33 = vector.broadcast %32 : vector<40x1xf32> to vector<40x32xf32>
      %34 = arith.mulf %24, %33 : vector<40x32xf32>
      %c0_23 = arith.constant 0 : index
      %c0_24 = arith.constant 0 : index
      %35 = vector.load %arg7[%c0_23, %c0_24] : memref<1x32xf32, #tpu.memory_space<vmem>>, vector<1x32xf32>
      %36 = vector.broadcast %35 : vector<1x32xf32> to vector<40x32xf32>
      %37 = arith.mulf %34, %36 : vector<40x32xf32>
      %c0_25 = arith.constant 0 : index
      %c0_26 = arith.constant 0 : index
      %38 = vector.load %arg8[%c0_25, %c0_26] : memref<1x32xf32, #tpu.memory_space<vmem>>, vector<1x32xf32>
      %39 = vector.broadcast %38 : vector<1x32xf32> to vector<40x32xf32>
      %40 = arith.addf %37, %39 : vector<40x32xf32>
      %41 = arith.truncf %40 : vector<40x32xf32> to vector<40x32xbf16>
      %c0_27 = arith.constant 0 : index
      %c0_28 = arith.constant 0 : index
      %42 = vector.load %arg10[%c0_27, %c0_28] : memref<40x32xbf16, #tpu.memory_space<vmem>>, vector<40x32xbf16>
      tpu.vector_store %arg10[%c0_27, %c0_28], %41 {strides = array<i32>} : memref<40x32xbf16, #tpu.memory_space<vmem>>, vector<40x32xbf16>,
    } else {
    }
    return
  }
  func.func @transform_0(%arg0: i32, %arg1: i32, %arg2: i32) -> (i32, i32) {
    %c0_i32 = arith.constant 0 : i32
    return %arg0, %arg2 : i32, i32
  }
  func.func @transform_1(%arg0: i32, %arg1: i32, %arg2: i32) -> (i32, i32) {
    %c0_i32 = arith.constant 0 : i32
    return %arg2, %arg1 : i32, i32
  }
  func.func @transform_2(%arg0: i32, %arg1: i32, %arg2: i32) -> (i32, i32) {
    %c0_i32 = arith.constant 0 : i32
    %c0_i32_0 = arith.constant 0 : i32
    return %c0_i32, %arg1 : i32, i32
  }
  func.func @transform_3(%arg0: i32, %arg1: i32, %arg2: i32) -> (i32, i32) {
    %c0_i32 = arith.constant 0 : i32
    return %arg0, %arg1 : i32, i32
  }
  func.func @transform_4(%arg0: i32, %arg1: i32, %arg2: i32) -> (i32, i32) {
    %c0_i32 = arith.constant 0 : i32
    %c0_i32_0 = arith.constant 0 : i32
    return %c0_i32, %arg1 : i32, i32
  }
  func.func @transform_5(%arg0: i32, %arg1: i32, %arg2: i32) -> (i32, i32) {
    %c0_i32 = arith.constant 0 : i32
    %c0_i32_0 = arith.constant 0 : i32
    return %c0_i32, %arg1 : i32, i32
  }
  func.func @transform_6(%arg0: i32, %arg1: i32, %arg2: i32) -> (i32, i32) {
    %c0_i32 = arith.constant 0 : i32
    return %arg0, %arg1 : i32, i32
  }
  func.func @transform_7(%arg0: i32, %arg1: i32, %arg2: i32) -> (i32, i32) {
    %c0_i32 = arith.constant 0 : i32
    return %arg0, %arg1 : i32, i32
  }
}

module attributes {stable_mosaic.version = 11 : i64} {
  func.func @_mm_kernel(%arg0: i32, %arg1: i32, %arg2: i32, %arg3: memref<40x64xbf16, #tpu.memory_space<vmem>>, %arg4: memref<64x32xbf16, #tpu.memory_space<vmem>>, %arg5: memref<1x32xf32, #tpu.memory_space<vmem>>, %arg6: memref<40x32xf32, #tpu.memory_space<vmem>>, %arg7: memref<1x32xf32, #tpu.memory_space<vmem>>, %arg8: memref<1x32xf32, #tpu.memory_space<vmem>>, %arg9: memref<40x32xf32, #tpu.memory_space<vmem>>, %arg10: memref<40x32xbf16, #tpu.memory_space<vmem>>, %arg11: memref<40x32xf32, #tpu.memory_space<vmem>>) attributes {dimension_semantics = [#tpu.dimension_semantics<parallel>, #tpu.dimension_semantics<parallel>, #tpu.dimension_semantics<arbitrary>], iteration_bounds = array<i64: 1, 1, 1>, scalar_prefetch = 0 : i64, scratch_operands = 1 : i64, tpu.core_type = #tpu.core_type<tc>, window_params = [{transform_indices = @transform_0, window_bounds = array<i64: 40, 64>}, {transform_indices = @transform_1, window_bounds = array<i64: 64, 32>}, {transform_indices = @transform_2, window_bounds = array<i64: 1, 32>}, {transform_indices = @transform_3, window_bounds = array<i64: 40, 32>}, {transform_indices = @transform_4, window_bounds = array<i64: 1, 32>}, {transform_indices = @transform_5, window_bounds = array<i64: 1, 32>}, {transform_indices = @transform_6, window_bounds = array<i64: 40, 32>}, {transform_indices = @transform_7, window_bounds = array<i64: 40, 32>}]} {
    %c0_i32 = arith.constant 0 : i32
    %0 = arith.cmpi eq, %arg2, %c0_i32 : i32
    %1 = arith.extui %0 : i1 to i32
    %c0_i32_0 = arith.constant 0 : i32
    %2 = arith.cmpi ne, %1, %c0_i32_0 : i32
    scf.if %2 {
      %cst_10 = arith.constant 0.000000e+00 : f32
      %12 = vector.broadcast %cst_10 : f32 to vector<40x32xf32>
      %c0_11 = arith.constant 0 : index
      %c0_12 = arith.constant 0 : index
      %13 = vector.load %arg11[%c0_11, %c0_12] : memref<40x32xf32, #tpu.memory_space<vmem>>, vector<40x32xf32>
      tpu.vector_store %arg11[%c0_11, %c0_12], %12 {strides = array<i32>} : memref<40x32xf32, #tpu.memory_space<vmem>>, vector<40x32xf32>,
    } else {
    }
    %c0 = arith.constant 0 : index
    %c0_1 = arith.constant 0 : index
    %3 = vector.load %arg11[%c0, %c0_1] : memref<40x32xf32, #tpu.memory_space<vmem>>, vector<40x32xf32>
    %c0_2 = arith.constant 0 : index
    %c0_3 = arith.constant 0 : index
    %4 = vector.load %arg3[%c0_2, %c0_3] : memref<40x64xbf16, #tpu.memory_space<vmem>>, vector<40x64xbf16>
    %c0_4 = arith.constant 0 : index
    %c0_5 = arith.constant 0 : index
    %5 = vector.load %arg4[%c0_4, %c0_5] : memref<64x32xbf16, #tpu.memory_space<vmem>>, vector<64x32xbf16>
    %cst = arith.constant dense<0.000000e+00> : vector<40x32xf32>
    %6 = tpu.matmul %4, %5, %cst {dimension_numbers = #tpu.dot_dimension_numbers<[1], [0], [0], [1], [0, 0, 1, 1], [], []>} : vector<40x64xbf16>, vector<64x32xbf16>, vector<40x32xf32> -> vector<40x32xf32>
    %7 = arith.addf %3, %6 : vector<40x32xf32>
    %c0_6 = arith.constant 0 : index
    %c0_7 = arith.constant 0 : index
    %8 = vector.load %arg11[%c0_6, %c0_7] : memref<40x32xf32, #tpu.memory_space<vmem>>, vector<40x32xf32>
    tpu.vector_store %arg11[%c0_6, %c0_7], %7 {strides = array<i32>} : memref<40x32xf32, #tpu.memory_space<vmem>>, vector<40x32xf32>,
    %c0_i32_8 = arith.constant 0 : i32
    %9 = arith.cmpi eq, %arg2, %c0_i32_8 : i32
    %10 = arith.extui %9 : i1 to i32
    %c0_i32_9 = arith.constant 0 : i32
    %11 = arith.cmpi ne, %10, %c0_i32_9 : i32
    scf.if %11 {
      %c0_10 = arith.constant 0 : index
      %c0_11 = arith.constant 0 : index
      %12 = vector.load %arg11[%c0_10, %c0_11] : memref<40x32xf32, #tpu.memory_space<vmem>>, vector<40x32xf32>
      %c0_12 = arith.constant 0 : index
      %c0_13 = arith.constant 0 : index
      %13 = vector.load %arg5[%c0_12, %c0_13] : memref<1x32xf32, #tpu.memory_space<vmem>>, vector<1x32xf32>
      %14 = vector.broadcast %13 : vector<1x32xf32> to vector<40x32xf32>
      %15 = arith.addf %12, %14 : vector<40x32xf32>
      %c0_14 = arith.constant 0 : index
      %c0_15 = arith.constant 0 : index
      %16 = vector.load %arg6[%c0_14, %c0_15] : memref<40x32xf32, #tpu.memory_space<vmem>>, vector<40x32xf32>
      %17 = arith.addf %15, %16 : vector<40x32xf32>
      %c0_16 = arith.constant 0 : index
      %c0_17 = arith.constant 0 : index
      %18 = vector.load %arg9[%c0_16, %c0_17] : memref<40x32xf32, #tpu.memory_space<vmem>>, vector<40x32xf32>
      tpu.vector_store %arg9[%c0_16, %c0_17], %17 {strides = array<i32>} : memref<40x32xf32, #tpu.memory_space<vmem>>, vector<40x32xf32>,
      %cst_18 = arith.constant dense<0.000000e+00> : vector<40xf32>
      %19 = vector.multi_reduction <add>, %17, %cst_18 [1] : vector<40x32xf32> to vector<40xf32>
      %20 = vector.shape_cast %19 : vector<40xf32> to vector<40x1xf32>
      %cst_19 = arith.constant 3.200000e+01 : f32
      %21 = vector.broadcast %cst_19 : f32 to vector<40x1xf32>
      %22 = arith.divf %20, %21 : vector<40x1xf32>
      %23 = vector.broadcast %22 : vector<40x1xf32> to vector<40x32xf32>
      %24 = arith.subf %17, %23 : vector<40x32xf32>
      %25 = arith.mulf %24, %24 : vector<40x32xf32>
      %cst_20 = arith.constant dense<0.000000e+00> : vector<40xf32>
      %26 = vector.multi_reduction <add>, %25, %cst_20 [1] : vector<40x32xf32> to vector<40xf32>
      %27 = vector.shape_cast %26 : vector<40xf32> to vector<40x1xf32>
      %cst_21 = arith.constant 3.200000e+01 : f32
      %28 = vector.broadcast %cst_21 : f32 to vector<40x1xf32>
      %29 = arith.divf %27, %28 : vector<40x1xf32>
      %cst_22 = arith.constant 9.99999974E-6 : f32
      %30 = vector.broadcast %cst_22 : f32 to vector<40x1xf32>
      %31 = arith.addf %29, %30 : vector<40x1xf32>
      %32 = math.rsqrt %31 : vector<40x1xf32>
      %33 = vector.broadcast %32 : vector<40x1xf32> to vector<40x32xf32>
      %34 = arith.mulf %24, %33 : vector<40x32xf32>
      %c0_23 = arith.constant 0 : index
      %c0_24 = arith.constant 0 : index
      %35 = vector.load %arg7[%c0_23, %c0_24] : memref<1x32xf32, #tpu.memory_space<vmem>>, vector<1x32xf32>
      %36 = vector.broadcast %35 : vector<1x32xf32> to vector<40x32xf32>
      %37 = arith.mulf %34, %36 : vector<40x32xf32>
      %c0_25 = arith.constant 0 : index
      %c0_26 = arith.constant 0 : index
      %38 = vector.load %arg8[%c0_25, %c0_26] : memref<1x32xf32, #tpu.memory_space<vmem>>, vector<1x32xf32>
      %39 = vector.broadcast %38 : vector<1x32xf32> to vector<40x32xf32>
      %40 = arith.addf %37, %39 : vector<40x32xf32>
      %41 = arith.truncf %40 : vector<40x32xf32> to vector<40x32xbf16>
      %c0_27 = arith.constant 0 : index
      %c0_28 = arith.constant 0 : index
      %42 = vector.load %arg10[%c0_27, %c0_28] : memref<40x32xbf16, #tpu.memory_space<vmem>>, vector<40x32xbf16>
      tpu.vector_store %arg10[%c0_27, %c0_28], %41 {strides = array<i32>} : memref<40x32xbf16, #tpu.memory_space<vmem>>, vector<40x32xbf16>,
    } else {
    }
    return
  }
  func.func @transform_0(%arg0: i32, %arg1: i32, %arg2: i32) -> (i32, i32) {
    %c0_i32 = arith.constant 0 : i32
    return %arg0, %arg2 : i32, i32
  }
  func.func @transform_1(%arg0: i32, %arg1: i32, %arg2: i32) -> (i32, i32) {
    %c0_i32 = arith.constant 0 : i32
    return %arg2, %arg1 : i32, i32
  }
  func.func @transform_2(%arg0: i32, %arg1: i32, %arg2: i32) -> (i32, i32) {
    %c0_i32 = arith.constant 0 : i32
    %c0_i32_0 = arith.constant 0 : i32
    return %c0_i32, %arg1 : i32, i32
  }
  func.func @transform_3(%arg0: i32, %arg1: i32, %arg2: i32) -> (i32, i32) {
    %c0_i32 = arith.constant 0 : i32
    return %arg0, %arg1 : i32, i32
  }
  func.func @transform_4(%arg0: i32, %arg1: i32, %arg2: i32) -> (i32, i32) {
    %c0_i32 = arith.constant 0 : i32
    %c0_i32_0 = arith.constant 0 : i32
    return %c0_i32, %arg1 : i32, i32
  }
  func.func @transform_5(%arg0: i32, %arg1: i32, %arg2: i32) -> (i32, i32) {
    %c0_i32 = arith.constant 0 : i32
    %c0_i32_0 = arith.constant 0 : i32
    return %c0_i32, %arg1 : i32, i32
  }
  func.func @transform_6(%arg0: i32, %arg1: i32, %arg2: i32) -> (i32, i32) {
    %c0_i32 = arith.constant 0 : i32
    return %arg0, %arg1 : i32, i32
  }
  func.func @transform_7(%arg0: i32, %arg1: i32, %arg2: i32) -> (i32, i32) {
    %c0_i32 = arith.constant 0 : i32
    return %arg0, %arg1 : i32, i32
  }
}

module attributes {stable_mosaic.version = 11 : i64} {
  func.func @_mm_kernel(%arg0: i32, %arg1: i32, %arg2: i32, %arg3: memref<8x32xbf16, #tpu.memory_space<vmem>>, %arg4: memref<32x32xbf16, #tpu.memory_space<vmem>>, %arg5: memref<1x32xf32, #tpu.memory_space<vmem>>, %arg6: memref<8x32xf32, #tpu.memory_space<vmem>>, %arg7: memref<8x32xf32, #tpu.memory_space<vmem>>) attributes {dimension_semantics = [#tpu.dimension_semantics<parallel>, #tpu.dimension_semantics<parallel>, #tpu.dimension_semantics<arbitrary>], iteration_bounds = array<i64: 1, 1, 1>, scalar_prefetch = 0 : i64, scratch_operands = 1 : i64, tpu.core_type = #tpu.core_type<tc>, window_params = [{transform_indices = @transform_0, window_bounds = array<i64: 8, 32>}, {transform_indices = @transform_1, window_bounds = array<i64: 32, 32>}, {transform_indices = @transform_2, window_bounds = array<i64: 1, 32>}, {transform_indices = @transform_3, window_bounds = array<i64: 8, 32>}]} {
    %c0_i32 = arith.constant 0 : i32
    %0 = arith.cmpi eq, %arg2, %c0_i32 : i32
    %1 = arith.extui %0 : i1 to i32
    %c0_i32_0 = arith.constant 0 : i32
    %2 = arith.cmpi ne, %1, %c0_i32_0 : i32
    scf.if %2 {
      %cst_10 = arith.constant 0.000000e+00 : f32
      %12 = vector.broadcast %cst_10 : f32 to vector<8x32xf32>
      %c0_11 = arith.constant 0 : index
      %c0_12 = arith.constant 0 : index
      %13 = vector.load %arg7[%c0_11, %c0_12] : memref<8x32xf32, #tpu.memory_space<vmem>>, vector<8x32xf32>
      tpu.vector_store %arg7[%c0_11, %c0_12], %12 {strides = array<i32>} : memref<8x32xf32, #tpu.memory_space<vmem>>, vector<8x32xf32>,
    } else {
    }
    %c0 = arith.constant 0 : index
    %c0_1 = arith.constant 0 : index
    %3 = vector.load %arg7[%c0, %c0_1] : memref<8x32xf32, #tpu.memory_space<vmem>>, vector<8x32xf32>
    %c0_2 = arith.constant 0 : index
    %c0_3 = arith.constant 0 : index
    %4 = vector.load %arg3[%c0_2, %c0_3] : memref<8x32xbf16, #tpu.memory_space<vmem>>, vector<8x32xbf16>
    %c0_4 = arith.constant 0 : index
    %c0_5 = arith.constant 0 : index
    %5 = vector.load %arg4[%c0_4, %c0_5] : memref<32x32xbf16, #tpu.memory_space<vmem>>, vector<32x32xbf16>
    %cst = arith.constant dense<0.000000e+00> : vector<8x32xf32>
    %6 = tpu.matmul %4, %5, %cst {dimension_numbers = #tpu.dot_dimension_numbers<[1], [0], [0], [1], [0, 0, 1, 1], [], []>} : vector<8x32xbf16>, vector<32x32xbf16>, vector<8x32xf32> -> vector<8x32xf32>
    %7 = arith.addf %3, %6 : vector<8x32xf32>
    %c0_6 = arith.constant 0 : index
    %c0_7 = arith.constant 0 : index
    %8 = vector.load %arg7[%c0_6, %c0_7] : memref<8x32xf32, #tpu.memory_space<vmem>>, vector<8x32xf32>
    tpu.vector_store %arg7[%c0_6, %c0_7], %7 {strides = array<i32>} : memref<8x32xf32, #tpu.memory_space<vmem>>, vector<8x32xf32>,
    %c0_i32_8 = arith.constant 0 : i32
    %9 = arith.cmpi eq, %arg2, %c0_i32_8 : i32
    %10 = arith.extui %9 : i1 to i32
    %c0_i32_9 = arith.constant 0 : i32
    %11 = arith.cmpi ne, %10, %c0_i32_9 : i32
    scf.if %11 {
      %c0_10 = arith.constant 0 : index
      %c0_11 = arith.constant 0 : index
      %12 = vector.load %arg7[%c0_10, %c0_11] : memref<8x32xf32, #tpu.memory_space<vmem>>, vector<8x32xf32>
      %c0_12 = arith.constant 0 : index
      %c0_13 = arith.constant 0 : index
      %13 = vector.load %arg5[%c0_12, %c0_13] : memref<1x32xf32, #tpu.memory_space<vmem>>, vector<1x32xf32>
      %14 = vector.broadcast %13 : vector<1x32xf32> to vector<8x32xf32>
      %15 = arith.addf %12, %14 : vector<8x32xf32>
      %c0_14 = arith.constant 0 : index
      %c0_15 = arith.constant 0 : index
      %16 = vector.load %arg6[%c0_14, %c0_15] : memref<8x32xf32, #tpu.memory_space<vmem>>, vector<8x32xf32>
      tpu.vector_store %arg6[%c0_14, %c0_15], %15 {strides = array<i32>} : memref<8x32xf32, #tpu.memory_space<vmem>>, vector<8x32xf32>,
    } else {
    }
    return
  }
  func.func @transform_0(%arg0: i32, %arg1: i32, %arg2: i32) -> (i32, i32) {
    %c0_i32 = arith.constant 0 : i32
    return %arg0, %arg2 : i32, i32
  }
  func.func @transform_1(%arg0: i32, %arg1: i32, %arg2: i32) -> (i32, i32) {
    %c0_i32 = arith.constant 0 : i32
    return %arg2, %arg1 : i32, i32
  }
  func.func @transform_2(%arg0: i32, %arg1: i32, %arg2: i32) -> (i32, i32) {
    %c0_i32 = arith.constant 0 : i32
    %c0_i32_0 = arith.constant 0 : i32
    return %c0_i32, %arg1 : i32, i32
  }
  func.func @transform_3(%arg0: i32, %arg1: i32, %arg2: i32) -> (i32, i32) {
    %c0_i32 = arith.constant 0 : i32
    return %arg0, %arg1 : i32, i32
  }
}

module attributes {stable_mosaic.version = 11 : i64} {
  func.func @_mask_logits_kernel(%arg0: i32, %arg1: i32, %arg2: memref<1x4x32xbf16, #tpu.memory_space<vmem>>, %arg3: memref<1x16x32xbf16, #tpu.memory_space<vmem>>, %arg4: memref<4x1xf32, #tpu.memory_space<vmem>>, %arg5: memref<4x1xf32, #tpu.memory_space<vmem>>, %arg6: memref<1x4x16xf32, #tpu.memory_space<vmem>>) attributes {dimension_semantics = [#tpu.dimension_semantics<parallel>, #tpu.dimension_semantics<parallel>], iteration_bounds = array<i64: 2, 1>, scalar_prefetch = 0 : i64, scratch_operands = 0 : i64, tpu.core_type = #tpu.core_type<tc>, window_params = [{transform_indices = @transform_0, window_bounds = array<i64: 1, 4, 32>}, {transform_indices = @transform_1, window_bounds = array<i64: 1, 16, 32>}, {pipeline_mode = #tpu.pipeline_mode<synchronous>, transform_indices = @transform_2, window_bounds = array<i64: 4, 1>}, {pipeline_mode = #tpu.pipeline_mode<synchronous>, transform_indices = @transform_3, window_bounds = array<i64: 4, 1>}, {transform_indices = @transform_4, window_bounds = array<i64: 1, 4, 16>}]} {
    %c0 = arith.constant 0 : index
    %c0_0 = arith.constant 0 : index
    %c0_1 = arith.constant 0 : index
    %0 = vector.load %arg2[%c0, %c0_0, %c0_1] : memref<1x4x32xbf16, #tpu.memory_space<vmem>>, vector<1x4x32xbf16>
    %1 = vector.shape_cast %0 : vector<1x4x32xbf16> to vector<4x32xbf16>
    %c0_2 = arith.constant 0 : index
    %c0_3 = arith.constant 0 : index
    %c0_4 = arith.constant 0 : index
    %2 = vector.load %arg3[%c0_2, %c0_3, %c0_4] : memref<1x16x32xbf16, #tpu.memory_space<vmem>>, vector<1x16x32xbf16>
    %3 = vector.shape_cast %2 : vector<1x16x32xbf16> to vector<16x32xbf16>
    %cst = arith.constant dense<0.000000e+00> : vector<4x16xf32>
    %4 = tpu.matmul %1, %3, %cst {dimension_numbers = #tpu.dot_dimension_numbers<[1], [1], [0], [0], [0, 0, 1, 0], [], []>} : vector<4x32xbf16>, vector<16x32xbf16>, vector<4x16xf32> -> vector<4x16xf32>
    %cst_5 = arith.constant dense<0.000000e+00> : vector<16xf32>
    %5 = vector.multi_reduction <add>, %4, %cst_5 [0] : vector<4x16xf32> to vector<16xf32>
    %6 = vector.shape_cast %5 : vector<16xf32> to vector<1x16xf32>
    %cst_6 = arith.constant 4.000000e+00 : f32
    %7 = vector.broadcast %cst_6 : f32 to vector<1x16xf32>
    %8 = arith.divf %6, %7 : vector<1x16xf32>
    %9 = vector.broadcast %8 : vector<1x16xf32> to vector<4x16xf32>
    %10 = arith.subf %4, %9 : vector<4x16xf32>
    %11 = arith.mulf %10, %10 : vector<4x16xf32>
    %cst_7 = arith.constant dense<0.000000e+00> : vector<16xf32>
    %12 = vector.multi_reduction <add>, %11, %cst_7 [0] : vector<4x16xf32> to vector<16xf32>
    %13 = vector.shape_cast %12 : vector<16xf32> to vector<1x16xf32>
    %cst_8 = arith.constant 4.000000e+00 : f32
    %14 = vector.broadcast %cst_8 : f32 to vector<1x16xf32>
    %15 = arith.divf %13, %14 : vector<1x16xf32>
    %cst_9 = arith.constant 9.99999974E-6 : f32
    %16 = vector.broadcast %cst_9 : f32 to vector<1x16xf32>
    %17 = arith.addf %15, %16 : vector<1x16xf32>
    %18 = math.rsqrt %17 : vector<1x16xf32>
    %19 = vector.broadcast %18 : vector<1x16xf32> to vector<4x16xf32>
    %20 = arith.mulf %10, %19 : vector<4x16xf32>
    %c0_10 = arith.constant 0 : index
    %c0_11 = arith.constant 0 : index
    %21 = vector.load %arg4[%c0_10, %c0_11] : memref<4x1xf32, #tpu.memory_space<vmem>>, vector<4x1xf32>
    %22 = vector.broadcast %21 : vector<4x1xf32> to vector<4x16xf32>
    %23 = arith.mulf %20, %22 : vector<4x16xf32>
    %c0_12 = arith.constant 0 : index
    %c0_13 = arith.constant 0 : index
    %24 = vector.load %arg5[%c0_12, %c0_13] : memref<4x1xf32, #tpu.memory_space<vmem>>, vector<4x1xf32>
    %25 = vector.broadcast %24 : vector<4x1xf32> to vector<4x16xf32>
    %26 = arith.addf %23, %25 : vector<4x16xf32>
    %c0_14 = arith.constant 0 : index
    %c0_15 = arith.constant 0 : index
    %c0_16 = arith.constant 0 : index
    %27 = vector.load %arg6[%c0_14, %c0_15, %c0_16] : memref<1x4x16xf32, #tpu.memory_space<vmem>>, vector<1x4x16xf32>
    %28 = vector.shape_cast %27 : vector<1x4x16xf32> to vector<4x16xf32>
    %29 = vector.shape_cast %26 : vector<4x16xf32> to vector<1x4x16xf32>
    tpu.vector_store %arg6[%c0_14, %c0_15, %c0_16], %29 {strides = array<i32>} : memref<1x4x16xf32, #tpu.memory_space<vmem>>, vector<1x4x16xf32>,
    return
  }
  func.func @transform_0(%arg0: i32, %arg1: i32) -> (i32, i32, i32) {
    %c0_i32 = arith.constant 0 : i32
    %c0_i32_0 = arith.constant 0 : i32
    %c0_i32_1 = arith.constant 0 : i32
    return %arg0, %c0_i32, %c0_i32_0 : i32, i32, i32
  }
  func.func @transform_1(%arg0: i32, %arg1: i32) -> (i32, i32, i32) {
    %c0_i32 = arith.constant 0 : i32
    %c0_i32_0 = arith.constant 0 : i32
    return %arg0, %arg1, %c0_i32 : i32, i32, i32
  }
  func.func @transform_2(%arg0: i32, %arg1: i32) -> (i32, i32) {
    %c0_i32 = arith.constant 0 : i32
    %c0_i32_0 = arith.constant 0 : i32
    %c0_i32_1 = arith.constant 0 : i32
    return %c0_i32, %c0_i32_0 : i32, i32
  }
  func.func @transform_3(%arg0: i32, %arg1: i32) -> (i32, i32) {
    %c0_i32 = arith.constant 0 : i32
    %c0_i32_0 = arith.constant 0 : i32
    %c0_i32_1 = arith.constant 0 : i32
    return %c0_i32, %c0_i32_0 : i32, i32
  }
  func.func @transform_4(%arg0: i32, %arg1: i32) -> (i32, i32, i32) {
    %c0_i32 = arith.constant 0 : i32
    %c0_i32_0 = arith.constant 0 : i32
    return %arg0, %c0_i32, %arg1 : i32, i32, i32
  }
}

module attributes {stable_mosaic.version = 11 : i64} {
  func.func @_mm_kernel(%arg0: i32, %arg1: i32, %arg2: i32, %arg3: memref<32x32xbf16, #tpu.memory_space<vmem>>, %arg4: memref<32x32xbf16, #tpu.memory_space<vmem>>, %arg5: memref<1x32xf32, #tpu.memory_space<vmem>>, %arg6: memref<32x32xbf16, #tpu.memory_space<vmem>>, %arg7: memref<32x32xf32, #tpu.memory_space<vmem>>) attributes {dimension_semantics = [#tpu.dimension_semantics<parallel>, #tpu.dimension_semantics<parallel>, #tpu.dimension_semantics<arbitrary>], iteration_bounds = array<i64: 1, 1, 1>, scalar_prefetch = 0 : i64, scratch_operands = 1 : i64, tpu.core_type = #tpu.core_type<tc>, window_params = [{transform_indices = @transform_0, window_bounds = array<i64: 32, 32>}, {transform_indices = @transform_1, window_bounds = array<i64: 32, 32>}, {transform_indices = @transform_2, window_bounds = array<i64: 1, 32>}, {transform_indices = @transform_3, window_bounds = array<i64: 32, 32>}]} {
    %c0_i32 = arith.constant 0 : i32
    %0 = arith.cmpi eq, %arg2, %c0_i32 : i32
    %1 = arith.extui %0 : i1 to i32
    %c0_i32_0 = arith.constant 0 : i32
    %2 = arith.cmpi ne, %1, %c0_i32_0 : i32
    scf.if %2 {
      %cst_10 = arith.constant 0.000000e+00 : f32
      %12 = vector.broadcast %cst_10 : f32 to vector<32x32xf32>
      %c0_11 = arith.constant 0 : index
      %c0_12 = arith.constant 0 : index
      %13 = vector.load %arg7[%c0_11, %c0_12] : memref<32x32xf32, #tpu.memory_space<vmem>>, vector<32x32xf32>
      tpu.vector_store %arg7[%c0_11, %c0_12], %12 {strides = array<i32>} : memref<32x32xf32, #tpu.memory_space<vmem>>, vector<32x32xf32>,
    } else {
    }
    %c0 = arith.constant 0 : index
    %c0_1 = arith.constant 0 : index
    %3 = vector.load %arg7[%c0, %c0_1] : memref<32x32xf32, #tpu.memory_space<vmem>>, vector<32x32xf32>
    %c0_2 = arith.constant 0 : index
    %c0_3 = arith.constant 0 : index
    %4 = vector.load %arg3[%c0_2, %c0_3] : memref<32x32xbf16, #tpu.memory_space<vmem>>, vector<32x32xbf16>
    %c0_4 = arith.constant 0 : index
    %c0_5 = arith.constant 0 : index
    %5 = vector.load %arg4[%c0_4, %c0_5] : memref<32x32xbf16, #tpu.memory_space<vmem>>, vector<32x32xbf16>
    %cst = arith.constant dense<0.000000e+00> : vector<32x32xf32>
    %6 = tpu.matmul %4, %5, %cst {dimension_numbers = #tpu.dot_dimension_numbers<[1], [0], [0], [1], [0, 0, 1, 1], [], []>} : vector<32x32xbf16>, vector<32x32xbf16>, vector<32x32xf32> -> vector<32x32xf32>
    %7 = arith.addf %3, %6 : vector<32x32xf32>
    %c0_6 = arith.constant 0 : index
    %c0_7 = arith.constant 0 : index
    %8 = vector.load %arg7[%c0_6, %c0_7] : memref<32x32xf32, #tpu.memory_space<vmem>>, vector<32x32xf32>
    tpu.vector_store %arg7[%c0_6, %c0_7], %7 {strides = array<i32>} : memref<32x32xf32, #tpu.memory_space<vmem>>, vector<32x32xf32>,
    %c0_i32_8 = arith.constant 0 : i32
    %9 = arith.cmpi eq, %arg2, %c0_i32_8 : i32
    %10 = arith.extui %9 : i1 to i32
    %c0_i32_9 = arith.constant 0 : i32
    %11 = arith.cmpi ne, %10, %c0_i32_9 : i32
    scf.if %11 {
      %c0_10 = arith.constant 0 : index
      %c0_11 = arith.constant 0 : index
      %12 = vector.load %arg7[%c0_10, %c0_11] : memref<32x32xf32, #tpu.memory_space<vmem>>, vector<32x32xf32>
      %c0_12 = arith.constant 0 : index
      %c0_13 = arith.constant 0 : index
      %13 = vector.load %arg5[%c0_12, %c0_13] : memref<1x32xf32, #tpu.memory_space<vmem>>, vector<1x32xf32>
      %14 = vector.broadcast %13 : vector<1x32xf32> to vector<32x32xf32>
      %15 = arith.addf %12, %14 : vector<32x32xf32>
      %cst_14 = arith.constant 0.000000e+00 : f32
      %16 = vector.broadcast %cst_14 : f32 to vector<32x32xf32>
      %17 = arith.maximumf %15, %16 : vector<32x32xf32>
      %18 = arith.truncf %17 : vector<32x32xf32> to vector<32x32xbf16>
      %c0_15 = arith.constant 0 : index
      %c0_16 = arith.constant 0 : index
      %19 = vector.load %arg6[%c0_15, %c0_16] : memref<32x32xbf16, #tpu.memory_space<vmem>>, vector<32x32xbf16>
      tpu.vector_store %arg6[%c0_15, %c0_16], %18 {strides = array<i32>} : memref<32x32xbf16, #tpu.memory_space<vmem>>, vector<32x32xbf16>,
    } else {
    }
    return
  }
  func.func @transform_0(%arg0: i32, %arg1: i32, %arg2: i32) -> (i32, i32) {
    %c0_i32 = arith.constant 0 : i32
    return %arg0, %arg2 : i32, i32
  }
  func.func @transform_1(%arg0: i32, %arg1: i32, %arg2: i32) -> (i32, i32) {
    %c0_i32 = arith.constant 0 : i32
    return %arg2, %arg1 : i32, i32
  }
  func.func @transform_2(%arg0: i32, %arg1: i32, %arg2: i32) -> (i32, i32) {
    %c0_i32 = arith.constant 0 : i32
    %c0_i32_0 = arith.constant 0 : i32
    return %c0_i32, %arg1 : i32, i32
  }
  func.func @transform_3(%arg0: i32, %arg1: i32, %arg2: i32) -> (i32, i32) {
    %c0_i32 = arith.constant 0 : i32
    return %arg0, %arg1 : i32, i32
  }
}

module attributes {stable_mosaic.version = 11 : i64} {
  func.func @_fuse_kernel(%arg0: i32, %arg1: i32, %arg2: memref<4x8xf32, #tpu.memory_space<vmem>>, %arg3: memref<4x1xf32, #tpu.memory_space<vmem>>, %arg4: memref<1x4x256xf32, #tpu.memory_space<vmem>>, %arg5: memref<1x4x256xf32, #tpu.memory_space<vmem>>, %arg6: memref<1x1x256xf32, #tpu.memory_space<vmem>>, %arg7: memref<1x4x256xf32, #tpu.memory_space<vmem>>) attributes {dimension_semantics = [#tpu.dimension_semantics<parallel>, #tpu.dimension_semantics<parallel>], iteration_bounds = array<i64: 2, 1>, scalar_prefetch = 0 : i64, scratch_operands = 0 : i64, tpu.core_type = #tpu.core_type<tc>, window_params = [{pipeline_mode = #tpu.pipeline_mode<synchronous>, transform_indices = @transform_0, window_bounds = array<i64: 4, 8>}, {pipeline_mode = #tpu.pipeline_mode<synchronous>, transform_indices = @transform_1, window_bounds = array<i64: 4, 1>}, {transform_indices = @transform_2, window_bounds = array<i64: 1, 4, 256>}, {transform_indices = @transform_3, window_bounds = array<i64: 1, 4, 256>}, {transform_indices = @transform_4, window_bounds = array<i64: 1, 1, 256>}, {transform_indices = @transform_5, window_bounds = array<i64: 1, 4, 256>}]} {
    %c0 = arith.constant 0 : index
    %c0_0 = arith.constant 0 : index
    %c0_1 = arith.constant 0 : index
    %0 = vector.load %arg6[%c0, %c0_0, %c0_1] : memref<1x1x256xf32, #tpu.memory_space<vmem>>, vector<1x1x256xf32>
    %1 = vector.shape_cast %0 : vector<1x1x256xf32> to vector<1x256xf32>
    %c0_2 = arith.constant 0 : index
    %c0_3 = arith.constant 0 : index
    %c0_4 = arith.constant 0 : index
    %2 = vector.load %arg4[%c0_2, %c0_3, %c0_4] : memref<1x4x256xf32, #tpu.memory_space<vmem>>, vector<1x4x256xf32>
    %3 = vector.shape_cast %2 : vector<1x4x256xf32> to vector<4x256xf32>
    %cst = arith.constant 1.000000e+00 : f32
    %4 = vector.broadcast %cst : f32 to vector<1x256xf32>
    %5 = arith.subf %4, %1 : vector<1x256xf32>
    %6 = vector.broadcast %5 : vector<1x256xf32> to vector<4x256xf32>
    %7 = arith.mulf %3, %6 : vector<4x256xf32>
    %c0_5 = arith.constant 0 : index
    %c0_6 = arith.constant 0 : index
    %c0_7 = arith.constant 0 : index
    %8 = vector.load %arg5[%c0_5, %c0_6, %c0_7] : memref<1x4x256xf32, #tpu.memory_space<vmem>>, vector<1x4x256xf32>
    %9 = vector.shape_cast %8 : vector<1x4x256xf32> to vector<4x256xf32>
    %10 = vector.broadcast %1 : vector<1x256xf32> to vector<4x256xf32>
    %11 = arith.mulf %9, %10 : vector<4x256xf32>
    %c0_8 = arith.constant 0 : index
    %c0_9 = arith.constant 0 : index
    %12 = vector.load %arg2[%c0_8, %c0_9] : memref<4x8xf32, #tpu.memory_space<vmem>>, vector<4x8xf32>
    %cst_10 = arith.constant 0.000000e+00 : f32
    %13 = vector.broadcast %cst_10 : f32 to vector<4x256xf32>
    %14 = vector.extract_strided_slice %12 {offsets = [0, 0], sizes = [4, 1], strides = [1, 1]} : vector<4x8xf32> to vector<4x1xf32>
    %15 = vector.extract_strided_slice %7 {offsets = [0, 0], sizes = [1, 256], strides = [1, 1]} : vector<4x256xf32> to vector<1x256xf32>
    %16 = vector.broadcast %14 : vector<4x1xf32> to vector<4x256xf32>
    %17 = vector.broadcast %15 : vector<1x256xf32> to vector<4x256xf32>
    %18 = arith.mulf %16, %17 : vector<4x256xf32>
    %19 = arith.addf %13, %18 : vector<4x256xf32>
    %20 = vector.extract_strided_slice %12 {offsets = [0, 4], sizes = [4, 1], strides = [1, 1]} : vector<4x8xf32> to vector<4x1xf32>
    %21 = vector.extract_strided_slice %11 {offsets = [0, 0], sizes = [1, 256], strides = [1, 1]} : vector<4x256xf32> to vector<1x256xf32>
    %22 = vector.broadcast %20 : vector<4x1xf32> to vector<4x256xf32>
    %23 = vector.broadcast %21 : vector<1x256xf32> to vector<4x256xf32>
    %24 = arith.mulf %22, %23 : vector<4x256xf32>
    %25 = arith.addf %19, %24 : vector<4x256xf32>
    %26 = vector.extract_strided_slice %12 {offsets = [0, 1], sizes = [4, 1], strides = [1, 1]} : vector<4x8xf32> to vector<4x1xf32>
    %27 = vector.extract_strided_slice %7 {offsets = [1, 0], sizes = [1, 256], strides = [1, 1]} : vector<4x256xf32> to vector<1x256xf32>
    %28 = vector.broadcast %26 : vector<4x1xf32> to vector<4x256xf32>
    %29 = vector.broadcast %27 : vector<1x256xf32> to vector<4x256xf32>
    %30 = arith.mulf %28, %29 : vector<4x256xf32>
    %31 = arith.addf %25, %30 : vector<4x256xf32>
    %32 = vector.extract_strided_slice %12 {offsets = [0, 5], sizes = [4, 1], strides = [1, 1]} : vector<4x8xf32> to vector<4x1xf32>
    %33 = vector.extract_strided_slice %11 {offsets = [1, 0], sizes = [1, 256], strides = [1, 1]} : vector<4x256xf32> to vector<1x256xf32>
    %34 = vector.broadcast %32 : vector<4x1xf32> to vector<4x256xf32>
    %35 = vector.broadcast %33 : vector<1x256xf32> to vector<4x256xf32>
    %36 = arith.mulf %34, %35 : vector<4x256xf32>
    %37 = arith.addf %31, %36 : vector<4x256xf32>
    %38 = vector.extract_strided_slice %12 {offsets = [0, 2], sizes = [4, 1], strides = [1, 1]} : vector<4x8xf32> to vector<4x1xf32>
    %39 = vector.extract_strided_slice %7 {offsets = [2, 0], sizes = [1, 256], strides = [1, 1]} : vector<4x256xf32> to vector<1x256xf32>
    %40 = vector.broadcast %38 : vector<4x1xf32> to vector<4x256xf32>
    %41 = vector.broadcast %39 : vector<1x256xf32> to vector<4x256xf32>
    %42 = arith.mulf %40, %41 : vector<4x256xf32>
    %43 = arith.addf %37, %42 : vector<4x256xf32>
    %44 = vector.extract_strided_slice %12 {offsets = [0, 6], sizes = [4, 1], strides = [1, 1]} : vector<4x8xf32> to vector<4x1xf32>
    %45 = vector.extract_strided_slice %11 {offsets = [2, 0], sizes = [1, 256], strides = [1, 1]} : vector<4x256xf32> to vector<1x256xf32>
    %46 = vector.broadcast %44 : vector<4x1xf32> to vector<4x256xf32>
    %47 = vector.broadcast %45 : vector<1x256xf32> to vector<4x256xf32>
    %48 = arith.mulf %46, %47 : vector<4x256xf32>
    %49 = arith.addf %43, %48 : vector<4x256xf32>
    %50 = vector.extract_strided_slice %12 {offsets = [0, 3], sizes = [4, 1], strides = [1, 1]} : vector<4x8xf32> to vector<4x1xf32>
    %51 = vector.extract_strided_slice %7 {offsets = [3, 0], sizes = [1, 256], strides = [1, 1]} : vector<4x256xf32> to vector<1x256xf32>
    %52 = vector.broadcast %50 : vector<4x1xf32> to vector<4x256xf32>
    %53 = vector.broadcast %51 : vector<1x256xf32> to vector<4x256xf32>
    %54 = arith.mulf %52, %53 : vector<4x256xf32>
    %55 = arith.addf %49, %54 : vector<4x256xf32>
    %56 = vector.extract_strided_slice %12 {offsets = [0, 7], sizes = [4, 1], strides = [1, 1]} : vector<4x8xf32> to vector<4x1xf32>
    %57 = vector.extract_strided_slice %11 {offsets = [3, 0], sizes = [1, 256], strides = [1, 1]} : vector<4x256xf32> to vector<1x256xf32>
    %58 = vector.broadcast %56 : vector<4x1xf32> to vector<4x256xf32>
    %59 = vector.broadcast %57 : vector<1x256xf32> to vector<4x256xf32>
    %60 = arith.mulf %58, %59 : vector<4x256xf32>
    %61 = arith.addf %55, %60 : vector<4x256xf32>
    %c0_11 = arith.constant 0 : index
    %c0_12 = arith.constant 0 : index
    %62 = vector.load %arg3[%c0_11, %c0_12] : memref<4x1xf32, #tpu.memory_space<vmem>>, vector<4x1xf32>
    %63 = vector.broadcast %62 : vector<4x1xf32> to vector<4x256xf32>
    %64 = arith.addf %61, %63 : vector<4x256xf32>
    %c0_13 = arith.constant 0 : index
    %c0_14 = arith.constant 0 : index
    %c0_15 = arith.constant 0 : index
    %65 = vector.load %arg7[%c0_13, %c0_14, %c0_15] : memref<1x4x256xf32, #tpu.memory_space<vmem>>, vector<1x4x256xf32>
    %66 = vector.shape_cast %65 : vector<1x4x256xf32> to vector<4x256xf32>
    %67 = vector.shape_cast %64 : vector<4x256xf32> to vector<1x4x256xf32>
    tpu.vector_store %arg7[%c0_13, %c0_14, %c0_15], %67 {strides = array<i32>} : memref<1x4x256xf32, #tpu.memory_space<vmem>>, vector<1x4x256xf32>,
    return
  }
  func.func @transform_0(%arg0: i32, %arg1: i32) -> (i32, i32) {
    %c0_i32 = arith.constant 0 : i32
    %c0_i32_0 = arith.constant 0 : i32
    %c0_i32_1 = arith.constant 0 : i32
    return %c0_i32, %c0_i32_0 : i32, i32
  }
  func.func @transform_1(%arg0: i32, %arg1: i32) -> (i32, i32) {
    %c0_i32 = arith.constant 0 : i32
    %c0_i32_0 = arith.constant 0 : i32
    %c0_i32_1 = arith.constant 0 : i32
    return %c0_i32, %c0_i32_0 : i32, i32
  }
  func.func @transform_2(%arg0: i32, %arg1: i32) -> (i32, i32, i32) {
    %c0_i32 = arith.constant 0 : i32
    %c0_i32_0 = arith.constant 0 : i32
    return %arg0, %c0_i32, %arg1 : i32, i32, i32
  }
  func.func @transform_3(%arg0: i32, %arg1: i32) -> (i32, i32, i32) {
    %c0_i32 = arith.constant 0 : i32
    %c0_i32_0 = arith.constant 0 : i32
    return %arg0, %c0_i32, %arg1 : i32, i32, i32
  }
  func.func @transform_4(%arg0: i32, %arg1: i32) -> (i32, i32, i32) {
    %c0_i32 = arith.constant 0 : i32
    %c0_i32_0 = arith.constant 0 : i32
    return %arg0, %c0_i32, %arg1 : i32, i32, i32
  }
  func.func @transform_5(%arg0: i32, %arg1: i32) -> (i32, i32, i32) {
    %c0_i32 = arith.constant 0 : i32
    %c0_i32_0 = arith.constant 0 : i32
    return %arg0, %c0_i32, %arg1 : i32, i32, i32
  }
}

</mosaic_0001>

<llo_original>
// kernel: transformer_forward.25
$region0: #{transformer_forward.25}
  #allocation0 [shape = 'u32[]', space=smem, size = 0x4, offset = 0x4, fixed_abs, tag = 'smem constant byte address 0x4 - core index']
  #allocation1 [shape = 'u32[144,128]{1,0:T(1,128)}', space=vmem, size = 0x12000, scoped, tag = 'internal scratch']
  %s0 = inlined_call_operand.vmem [shape: f32[34,32], index: 0, kind: input, shape index: {}]
  %s1 = inlined_call_operand.vmem [shape: f32[1,32], index: 1, kind: input, shape index: {}]
  %s2 = inlined_call_operand.vmem [shape: f32[1,32], index: 2, kind: input, shape index: {}]
  %s3 = inlined_call_operand.vmem [shape: bf16[34,32], index: 3, kind: output, shape index: {}]
  %s4 = sld [smem:[#allocation0]]
  $region22: #{transformer_forward.25} parent=0
    _
  %s6 = ssub.s32 1, %s4
  %s7 = scalar_select 0, %s6, %s4
  // Predicated region
  $region2: #{transformer_forward.25} parent=0 // pred_check
    _
  $region3: #{transformer_forward.25} parent=0 // pred_check_branch
    %9 = sbr.rel (0) target = $region5
  $region4: #{transformer_forward.25} parent=0 // pred_region
    _
  $region5: #{transformer_forward.25} parent=0 // pred_fallthru
    _
  // Predicated region
  $region6: #{transformer_forward.25} parent=0 // pred_check
    _
  $region7: #{transformer_forward.25} parent=0 // pred_check_branch
    %11 = sbr.rel (0) target = $region9
  $region8: #{transformer_forward.25} parent=0 // pred_region
    _
  $region9: #{transformer_forward.25} parent=0 // pred_fallthru
    _
  // Predicated region
  $region10: #{transformer_forward.25} parent=0 // pred_check
    _
  $region11: #{transformer_forward.25} parent=0 // pred_check_branch
    %13 = sbr.rel (0) target = $region13
  $region12: #{transformer_forward.25} parent=0 // pred_region
    _
  $region13: #{transformer_forward.25} parent=0 // pred_fallthru
    _
  %v14 = vld [vmem:[%s0] sm:$0xff]
  %v15 = vld [vmem:[%s0 + $0x8] sm:$0xff]
  %v16 = vld [vmem:[%s0 + $0x10] sm:$0xff]
  %v17 = vld [vmem:[%s0 + $0x18] sm:$0xff]
  %v18 = vld [vmem:[%s0 + $0x20] sm:$0x3]
  %vm19 = vcmask 261120
  %v20 = vsel %vm19, %v14, 0.0
  %21 = vadd.xlane.f32.xlu0 %v20
  %v22 = vpop.xlane.xlu0 %21
  %v23 = vsel %vm19, %v15, 0.0
  %24 = vadd.xlane.f32.xlu0 %v23
  %v25 = vpop.xlane.xlu0 %24
  %v26 = vsel %vm19, %v16, 0.0
  %27 = vadd.xlane.f32.xlu0 %v26
  %v28 = vpop.xlane.xlu0 %27
  %v29 = vsel %vm19, %v17, 0.0
  %30 = vadd.xlane.f32.xlu0 %v29
  %v31 = vpop.xlane.xlu0 %30
  %vm32 = vcmask 254976
  %v33 = vsel %vm32, %v18, 0.0
  %34 = vadd.xlane.f32.xlu0 %v33
  %v35 = vpop.xlane.xlu0 %34
  %v36 = vrcp.pop 32.0
  %v37 = vmul.f32 %v22, %v36
  %v38 = vmul.f32 %v25, %v36
  %v39 = vmul.f32 %v28, %v36
  %v40 = vmul.f32 %v31, %v36
  %v41 = vmul.f32 %v35, %v36
  %v42 = vsub.f32 %v14, %v37
  %v43 = vsub.f32 %v15, %v38
  %v44 = vsub.f32 %v16, %v39
  %v45 = vsub.f32 %v17, %v40
  %v46 = vsub.f32 %v18, %v41
  %v47 = vmul.f32 %v42, %v42
  %v48 = vmul.f32 %v43, %v43
  %v49 = vmul.f32 %v44, %v44
  %v50 = vmul.f32 %v45, %v45
  %v51 = vmul.f32 %v46, %v46
  %v52 = vsel %vm19, %v47, 0.0
  %53 = vadd.xlane.f32.xlu0 %v52
  %v54 = vpop.xlane.xlu0 %53
  %v55 = vsel %vm19, %v48, 0.0
  %56 = vadd.xlane.f32.xlu0 %v55
  %v57 = vpop.xlane.xlu0 %56
  %v58 = vsel %vm19, %v49, 0.0
  %59 = vadd.xlane.f32.xlu0 %v58
  %v60 = vpop.xlane.xlu0 %59
  %v61 = vsel %vm19, %v50, 0.0
  %62 = vadd.xlane.f32.xlu0 %v61
  %v63 = vpop.xlane.xlu0 %62
  %v64 = vsel %vm32, %v51, 0.0
  %65 = vadd.xlane.f32.xlu0 %v64
  %v66 = vpop.xlane.xlu0 %65
  %v67 = vmul.f32 %v54, %v36
  %v68 = vmul.f32 %v57, %v36
  %v69 = vmul.f32 %v60, %v36
  %v70 = vmul.f32 %v63, %v36
  %v71 = vmul.f32 %v66, %v36
  %v72 = vadd.f32 %v67, 1e-05
  %v73 = vadd.f32 %v68, 1e-05
  %v74 = vadd.f32 %v69, 1e-05
  %v75 = vadd.f32 %v70, 1e-05
  %v76 = vadd.f32 %v71, 1e-05
  %v77 = vrsqrt.pop %v72
  %v78 = vrsqrt.pop %v73
  %v79 = vrsqrt.pop %v74
  %v80 = vrsqrt.pop %v75
  %v81 = vrsqrt.pop %v76
  %v82 = vmul.f32 %v42, %v77
  %v83 = vmul.f32 %v43, %v78
  %v84 = vmul.f32 %v44, %v79
  %v85 = vmul.f32 %v45, %v80
  %v86 = vmul.f32 %v46, %v81
  %v87 = vld [vmem:[%s1] sm:$0x1]
  %v89 = vlaneseq
  %v90 = vshrl.u32 %v89, 7
  %v91 = vsub.s32 0, %v90
  %v92 = vrot.slane %v87, %v91
  %v94 = vmul.f32 %v82, %v92
  %v95 = vmul.f32 %v83, %v92
  %v96 = vmul.f32 %v84, %v92
  %v97 = vmul.f32 %v85, %v92
  %v98 = vmul.f32 %v86, %v92
  %v99 = vld [vmem:[%s2] sm:$0x1]
  %v101 = vlaneseq
  %v102 = vshrl.u32 %v101, 7
  %v103 = vsub.s32 0, %v102
  %v104 = vrot.slane %v99, %v103
  %v106 = vadd.f32 %v94, %v104
  %v107 = vadd.f32 %v95, %v104
  %v108 = vadd.f32 %v96, %v104
  %v109 = vadd.f32 %v97, %v104
  %v110 = vadd.f32 %v98, %v104
  %v111 = vpack.c.bf16 %v107, %v106
  %v112 = vpack.c.bf16 %v109, %v108
  %v113 = vpack.c.bf16 %v110, %v110
  %v117 = vunpack.c.l.b16 %v111
  %v118 = vunpack.c.h.b16 %v111
  %v119 = vunpack.c.l.b16 %v112
  %v120 = vunpack.c.h.b16 %v112
  %v121 = vunpack.c.l.b16 %v113
  %v122 = vpack.c.b16 %v117, %v117
  %v123 = vpack.c.b16 %v118, %v118
  %v124 = vpack.c.b16 %v119, %v119
  %v125 = vpack.c.b16 %v120, %v120
  %v126 = vpack.c.b16 %v121, %v121
  %vm132 = vcmask 257024
  %133 = vst.msk [vmem:[%s3] sm:$0xf] %vm132, %v122
  %134 = vst.msk [vmem:[%s3 + $0x4] sm:$0xf] %vm132, %v123
  %135 = vst.msk [vmem:[%s3 + $0x8] sm:$0xf] %vm132, %v124
  %136 = vst.msk [vmem:[%s3 + $0xc] sm:$0xf] %vm132, %v125
  %vm137 = vcmask 253952
  %138 = vst.msk [vmem:[%s3 + $0x10] sm:$0x1] %vm137, %v126
  // Predicated region
  $region14: #{transformer_forward.25} parent=0 // pred_check
    _
  $region15: #{transformer_forward.25} parent=0 // pred_check_branch
    %140 = sbr.rel (0) target = $region17
  $region16: #{transformer_forward.25} parent=0 // pred_region
    _
  $region17: #{transformer_forward.25} parent=0 // pred_fallthru
    _
  // Predicated region
  $region18: #{transformer_forward.25} parent=0 // pred_check
    _
  $region19: #{transformer_forward.25} parent=0 // pred_check_branch
    %142 = sbr.rel (0) target = $region21
  $region20: #{transformer_forward.25} parent=0 // pred_region
    _
  $region21: #{transformer_forward.25} parent=0 // pred_fallthru
    _

// kernel: transformer_forward.24
$region0: #{transformer_forward.24}
  #allocation0 [shape = 'u32[]', space=smem, size = 0x4, offset = 0x4, fixed_abs, tag = 'smem constant byte address 0x4 - core index']
  #allocation1 [shape = 'u32[144,128]{1,0:T(1,128)}', space=vmem, size = 0x12000, scoped, tag = 'internal scratch']
  #allocation2 [shape = 'f32[32,32]{1,0:T(8,128)}', space=vmem, size = 0x4000, scoped, tag = 'scratch operand']
  %s0 = inlined_call_operand.vmem [shape: bf16[32,48], index: 0, kind: input, shape index: {}]
  %s1 = inlined_call_operand.vmem [shape: bf16[48,32], index: 1, kind: input, shape index: {}]
  %s2 = inlined_call_operand.vmem [shape: f32[1,32], index: 2, kind: input, shape index: {}]
  %s3 = inlined_call_operand.vmem [shape: f32[32,32], index: 3, kind: output, shape index: {}]
  %s4 = sld [smem:[#allocation0]]
  $region30: #{transformer_forward.24} parent=0
    _
  %s6 = ssub.s32 1, %s4
  %s7 = scalar_select 0, %s6, %s4
  // Predicated region
  $region2: #{transformer_forward.24} parent=0 // pred_check
    _
  $region3: #{transformer_forward.24} parent=0 // pred_check_branch
    %9 = sbr.rel (0) target = $region5
  $region4: #{transformer_forward.24} parent=0 // pred_region
    _
  $region5: #{transformer_forward.24} parent=0 // pred_fallthru
    _
  // Predicated region
  $region6: #{transformer_forward.24} parent=0 // pred_check
    _
  $region7: #{transformer_forward.24} parent=0 // pred_check_branch
    %11 = sbr.rel (0) target = $region9
  $region8: #{transformer_forward.24} parent=0 // pred_region
    _
  $region9: #{transformer_forward.24} parent=0 // pred_fallthru
    _
  // Predicated region
  $region10: #{transformer_forward.24} parent=0 // pred_check
    _
  $region11: #{transformer_forward.24} parent=0 // pred_check_branch
    %13 = sbr.rel (0) target = $region13
  $region12: #{transformer_forward.24} parent=0 // pred_region
    _
  $region13: #{transformer_forward.24} parent=0 // pred_fallthru
    _
  %p15 = scmp.eq.s32.totalorder 0, 0
  // Predicated region
  $region14: #{transformer_forward.24} parent=0 // pred_check
    %p16 = pneg %p15
  $region15: #{transformer_forward.24} parent=0 // pred_check_branch
    %18 = sbr.rel (%p16) target = $region17
  $region16: #{transformer_forward.24} parent=0 // pred_region
    %vm19 = vcmask 261120
    %20 = vst.msk [vmem:[#allocation2] sm:$0xff] %vm19, 0.0
    %21 = vst.msk [vmem:[#allocation2 + $0x8] sm:$0xff] %vm19, 0.0
    %22 = vst.msk [vmem:[#allocation2 + $0x10] sm:$0xff] %vm19, 0.0
    %23 = vst.msk [vmem:[#allocation2 + $0x18] sm:$0xff] %vm19, 0.0
  $region17: #{transformer_forward.24} parent=0 // pred_fallthru
    _
  %v24 = vld [vmem:[#allocation2] sm:$0xff]
  %v25 = vld [vmem:[#allocation2 + $0x8] sm:$0xff]
  %v26 = vld [vmem:[#allocation2 + $0x10] sm:$0xff]
  %v27 = vld [vmem:[#allocation2 + $0x18] sm:$0xff]
  %v28 = vld [vmem:[%s0] sm:$0xf]
  %v29 = vld [vmem:[%s0 + $0x4] sm:$0xf]
  %v30 = vld [vmem:[%s0 + $0x8] sm:$0xf]
  %v31 = vld [vmem:[%s0 + $0xc] sm:$0xf]
  %v32 = vld [vmem:[%s1] sm:$0xf]
  %v33 = vld [vmem:[%s1 + $0x4] sm:$0xf]
  %v34 = vld [vmem:[%s1 + $0x8] sm:$0xf]
  %v35 = vld [vmem:[%s1 + $0xc] sm:$0xf]
  %v36 = vld [vmem:[%s1 + $0x10] sm:$0xf]
  %v37 = vld [vmem:[%s1 + $0x14] sm:$0xf]
  %v42 = vunpack.c.l.b16 %v28
  %v43 = vunpack.c.l.b16 %v29
  %v44 = vunpack.c.l.b16 %v30
  %v45 = vunpack.c.l.b16 %v31
  %v46 = vpack.c.b16 %v43, %v42
  %v47 = vpack.c.b16 %v45, %v44
  %v54 = vunpack.c.l.b16 %v32
  %v55 = vunpack.c.l.b16 %v33
  %v56 = vunpack.c.l.b16 %v34
  %v57 = vunpack.c.l.b16 %v35
  %v58 = vunpack.c.l.b16 %v36
  %v59 = vunpack.c.l.b16 %v37
  %v60 = vpack.c.b16 %v55, %v54
  %v61 = vpack.c.b16 %v57, %v56
  %v62 = vpack.c.b16 %v59, %v58
  %vm66 = vcmask 392192
  %v68 = vsel %vm66, %v46, 0
  %v71 = vsel %vm66, %v47, 0
  %73 = vmatprep.subr.bf16.mxu0 0
  %74 = vmatpush1.bf16.msra.mxu0 %v60
  %75 = vmatprep.subr.bf16.mxu0 0
  %76 = vmatpush1.bf16.msra.mxu0 %v61
  %77 = vmatprep.subr.bf16.mxu0 0
  %78 = vmatpush1.bf16.msra.mxu0 %v62
  %79 = vmatprep.subr.bf16.mxu0 0
  %80 = vmatpush1.bf16.msra.mxu0 0
  %81 = vmatprep.subr.bf16.mxu0 0
  %82 = vmatpush1.bf16.msra.mxu0 0
  %83 = vmatprep.subr.bf16.mxu0 0
  %84 = vmatpush1.bf16.msra.mxu0 0
  %85 = vmatprep.subr.bf16.mxu0 0
  %86 = vmatpush1.bf16.msra.mxu0 0
  %87 = vmatprep.subr.bf16.mxu0 0
  %88 = vmatpush1.bf16.msra.mxu0 0
  %89 = vmatprep.subr.bf16.mxu0 0
  %90 = vmatpush1.bf16.msra.mxu0 0
  %91 = vmatprep.subr.bf16.mxu0 0
  %92 = vmatpush1.bf16.msra.mxu0 0
  %93 = vmatprep.subr.bf16.mxu0 0
  %94 = vmatpush1.bf16.msra.mxu0 0
  %95 = vmatprep.subr.bf16.mxu0 0
  %96 = vmatpush1.bf16.msra.mxu0 0
  %97 = vmatprep.subr.bf16.mxu0 0
  %98 = vmatpush1.bf16.msra.mxu0 0
  %99 = vmatprep.subr.bf16.mxu0 0
  %100 = vmatpush1.bf16.msra.mxu0 0
  %101 = vmatprep.subr.bf16.mxu0 0
  %102 = vmatpush1.bf16.msra.mxu0 0
  %103 = vmatprep.subr.bf16.mxu0 0
  %104 = vmatpush1.bf16.msra.mxu0 0
  %105 = vmatprep.mubr.bf16.mxu0 0
  %106 = vmatmul.mubr.bf16.gmra.mrb[0].mxu0 %v68
  %v107 = vpop.f32.mrb[0].mxu0
  %v108 = vadd.f32 0.0, %v107
  %v109 = vpop.f32.mrb[0].mxu0
  %v110 = vpop.f32.mrb[0].mxu0
  %v111 = vadd.f32 0.0, %v110
  %v112 = vpop.f32.mrb[0].mxu0
  %113 = vmatprep.mubr.bf16.mxu0 0
  %114 = vmatmul.mubr.bf16.gmra.mrb[0].mxu0 %v71
  %v115 = vpop.f32.mrb[0].mxu0
  %v116 = vadd.f32 0.0, %v115
  %v117 = vpop.f32.mrb[0].mxu0
  %v118 = vpop.f32.mrb[0].mxu0
  %v119 = vadd.f32 0.0, %v118
  %v120 = vpop.f32.mrb[0].mxu0
  %121 = vdwg.mxu0
  %v122 = vadd.f32 %v24, %v108
  %v123 = vadd.f32 %v25, %v111
  %v124 = vadd.f32 %v26, %v116
  %v125 = vadd.f32 %v27, %v119
  %vm126 = vcmask 261120
  %127 = vst.msk [vmem:[#allocation2] sm:$0xff] %vm126, %v122
  %128 = vst.msk [vmem:[#allocation2 + $0x8] sm:$0xff] %vm126, %v123
  %129 = vst.msk [vmem:[#allocation2 + $0x10] sm:$0xff] %vm126, %v124
  %130 = vst.msk [vmem:[#allocation2 + $0x18] sm:$0xff] %vm126, %v125
  // Predicated region
  $region18: #{transformer_forward.24} parent=0 // pred_check
    %p131 = pneg %p15
  $region19: #{transformer_forward.24} parent=0 // pred_check_branch
    %133 = sbr.rel (%p131) target = $region21
  $region20: #{transformer_forward.24} parent=0 // pred_region
    %v134 = vld [vmem:[#allocation2] sm:$0xff]
    %v135 = vld [vmem:[#allocation2 + $0x8] sm:$0xff]
    %v136 = vld [vmem:[#allocation2 + $0x10] sm:$0xff]
    %v137 = vld [vmem:[#allocation2 + $0x18] sm:$0xff]
    %v138 = vld [vmem:[%s2] sm:$0x1]
    %v140 = vlaneseq
    %v141 = vshrl.u32 %v140, 7
    %v142 = vsub.s32 0, %v141
    %v143 = vrot.slane %v138, %v142
    %v145 = vadd.f32 %v134, %v143
    %v146 = vadd.f32 %v135, %v143
    %v147 = vadd.f32 %v136, %v143
    %v148 = vadd.f32 %v137, %v143
    %149 = vst.msk [vmem:[%s3] sm:$0xff] %vm126, %v145
    %150 = vst.msk [vmem:[%s3 + $0x8] sm:$0xff] %vm126, %v146
    %151 = vst.msk [vmem:[%s3 + $0x10] sm:$0xff] %vm126, %v147
    %152 = vst.msk [vmem:[%s3 + $0x18] sm:$0xff] %vm126, %v148
  $region21: #{transformer_forward.24} parent=0 // pred_fallthru
    _
  // Predicated region
  $region22: #{transformer_forward.24} parent=0 // pred_check
    _
  $region23: #{transformer_forward.24} parent=0 // pred_check_branch
    %154 = sbr.rel (0) target = $region25
  $region24: #{transformer_forward.24} parent=0 // pred_region
    _
  $region25: #{transformer_forward.24} parent=0 // pred_fallthru
    _
  // Predicated region
  $region26: #{transformer_forward.24} parent=0 // pred_check
    _
  $region27: #{transformer_forward.24} parent=0 // pred_check_branch
    %156 = sbr.rel (0) target = $region29
  $region28: #{transformer_forward.24} parent=0 // pred_region
    _
  $region29: #{transformer_forward.24} parent=0 // pred_fallthru
    _

// kernel: transformer_forward.26
$region0: #{transformer_forward.26}
  #allocation0 [shape = 'u32[]', space=smem, size = 0x4, offset = 0x4, fixed_abs, tag = 'smem constant byte address 0x4 - core index']
  #allocation1 [shape = 'u32[144,128]{1,0:T(1,128)}', space=vmem, size = 0x12000, scoped, tag = 'internal scratch']
  #allocation2 [shape = 'f32[34,96]{1,0:T(8,128)}', space=vmem, size = 0x5000, scoped, tag = 'scratch operand']
  %s0 = inlined_call_operand.vmem [shape: bf16[34,32], index: 0, kind: input, shape index: {}]
  %s1 = inlined_call_operand.vmem [shape: bf16[32,96], index: 1, kind: input, shape index: {}]
  %s2 = inlined_call_operand.vmem [shape: f32[1,96], index: 2, kind: input, shape index: {}]
  %s3 = inlined_call_operand.vmem [shape: bf16[34,96], index: 3, kind: output, shape index: {}]
  %s4 = sld [smem:[#allocation0]]
  $region30: #{transformer_forward.26} parent=0
    _
  %s6 = ssub.s32 1, %s4
  %s7 = scalar_select 0, %s6, %s4
  // Predicated region
  $region2: #{transformer_forward.26} parent=0 // pred_check
    _
  $region3: #{transformer_forward.26} parent=0 // pred_check_branch
    %9 = sbr.rel (0) target = $region5
  $region4: #{transformer_forward.26} parent=0 // pred_region
    _
  $region5: #{transformer_forward.26} parent=0 // pred_fallthru
    _
  // Predicated region
  $region6: #{transformer_forward.26} parent=0 // pred_check
    _
  $region7: #{transformer_forward.26} parent=0 // pred_check_branch
    %11 = sbr.rel (0) target = $region9
  $region8: #{transformer_forward.26} parent=0 // pred_region
    _
  $region9: #{transformer_forward.26} parent=0 // pred_fallthru
    _
  // Predicated region
  $region10: #{transformer_forward.26} parent=0 // pred_check
    _
  $region11: #{transformer_forward.26} parent=0 // pred_check_branch
    %13 = sbr.rel (0) target = $region13
  $region12: #{transformer_forward.26} parent=0 // pred_region
    _
  $region13: #{transformer_forward.26} parent=0 // pred_fallthru
    _
  %p15 = scmp.eq.s32.totalorder 0, 0
  // Predicated region
  $region14: #{transformer_forward.26} parent=0 // pred_check
    %p16 = pneg %p15
  $region15: #{transformer_forward.26} parent=0 // pred_check_branch
    %18 = sbr.rel (%p16) target = $region17
  $region16: #{transformer_forward.26} parent=0 // pred_region
    %vm19 = vcmask 785408
    %20 = vst.msk [vmem:[#allocation2] sm:$0xff] %vm19, 0.0
    %21 = vst.msk [vmem:[#allocation2 + $0x8] sm:$0xff] %vm19, 0.0
    %22 = vst.msk [vmem:[#allocation2 + $0x10] sm:$0xff] %vm19, 0.0
    %23 = vst.msk [vmem:[#allocation2 + $0x18] sm:$0xff] %vm19, 0.0
    %vm24 = vcmask 779264
    %25 = vst.msk [vmem:[#allocation2 + $0x20] sm:$0x3] %vm24, 0.0
  $region17: #{transformer_forward.26} parent=0 // pred_fallthru
    _
  %v26 = vld [vmem:[#allocation2] sm:$0xff]
  %v27 = vld [vmem:[#allocation2 + $0x8] sm:$0xff]
  %v28 = vld [vmem:[#allocation2 + $0x10] sm:$0xff]
  %v29 = vld [vmem:[#allocation2 + $0x18] sm:$0xff]
  %v30 = vld [vmem:[#allocation2 + $0x20] sm:$0x3]
  %v31 = vld [vmem:[%s0] sm:$0xf]
  %v32 = vld [vmem:[%s0 + $0x4] sm:$0xf]
  %v33 = vld [vmem:[%s0 + $0x8] sm:$0xf]
  %v34 = vld [vmem:[%s0 + $0xc] sm:$0xf]
  %v35 = vld [vmem:[%s0 + $0x10] sm:$0x1]
  %v36 = vld [vmem:[%s1] sm:$0xf]
  %v37 = vld [vmem:[%s1 + $0x4] sm:$0xf]
  %v38 = vld [vmem:[%s1 + $0x8] sm:$0xf]
  %v39 = vld [vmem:[%s1 + $0xc] sm:$0xf]
  %v45 = vunpack.c.l.b16 %v31
  %v46 = vunpack.c.l.b16 %v32
  %v47 = vunpack.c.l.b16 %v33
  %v48 = vunpack.c.l.b16 %v34
  %v49 = vunpack.c.l.b16 %v35
  %v50 = vpack.c.b16 %v46, %v45
  %v51 = vpack.c.b16 %v48, %v47
  %v52 = vpack.c.b16 %v49, %v49
  %v57 = vunpack.c.l.b16 %v36
  %v58 = vunpack.c.l.b16 %v37
  %v59 = vunpack.c.l.b16 %v38
  %v60 = vunpack.c.l.b16 %v39
  %v61 = vpack.c.b16 %v58, %v57
  %v62 = vpack.c.b16 %v60, %v59
  %vm65 = vcmask 261120
  %v67 = vsel %vm65, %v50, 0
  %v70 = vsel %vm65, %v51, 0
  %v73 = vsel %vm65, %v52, 0
  %75 = vmatprep.subr.bf16.mxu0 0
  %76 = vmatpush1.bf16.msra.mxu0 %v61
  %77 = vmatprep.subr.bf16.mxu0 0
  %78 = vmatpush1.bf16.msra.mxu0 %v62
  %79 = vmatprep.subr.bf16.mxu0 0
  %80 = vmatpush1.bf16.msra.mxu0 0
  %81 = vmatprep.subr.bf16.mxu0 0
  %82 = vmatpush1.bf16.msra.mxu0 0
  %83 = vmatprep.subr.bf16.mxu0 0
  %84 = vmatpush1.bf16.msra.mxu0 0
  %85 = vmatprep.subr.bf16.mxu0 0
  %86 = vmatpush1.bf16.msra.mxu0 0
  %87 = vmatprep.subr.bf16.mxu0 0
  %88 = vmatpush1.bf16.msra.mxu0 0
  %89 = vmatprep.subr.bf16.mxu0 0
  %90 = vmatpush1.bf16.msra.mxu0 0
  %91 = vmatprep.subr.bf16.mxu0 0
  %92 = vmatpush1.bf16.msra.mxu0 0
  %93 = vmatprep.subr.bf16.mxu0 0
  %94 = vmatpush1.bf16.msra.mxu0 0
  %95 = vmatprep.subr.bf16.mxu0 0
  %96 = vmatpush1.bf16.msra.mxu0 0
  %97 = vmatprep.subr.bf16.mxu0 0
  %98 = vmatpush1.bf16.msra.mxu0 0
  %99 = vmatprep.subr.bf16.mxu0 0
  %100 = vmatpush1.bf16.msra.mxu0 0
  %101 = vmatprep.subr.bf16.mxu0 0
  %102 = vmatpush1.bf16.msra.mxu0 0
  %103 = vmatprep.subr.bf16.mxu0 0
  %104 = vmatpush1.bf16.msra.mxu0 0
  %105 = vmatprep.subr.bf16.mxu0 0
  %106 = vmatpush1.bf16.msra.mxu0 0
  %107 = vmatprep.mubr.bf16.mxu0 0
  %108 = vmatmul.mubr.bf16.gmra.mrb[0].mxu0 %v67
  %v109 = vpop.f32.mrb[0].mxu0
  %v110 = vadd.f32 0.0, %v109
  %v111 = vpop.f32.mrb[0].mxu0
  %v112 = vpop.f32.mrb[0].mxu0
  %v113 = vadd.f32 0.0, %v112
  %v114 = vpop.f32.mrb[0].mxu0
  %115 = vmatprep.mubr.bf16.mxu0 0
  %116 = vmatmul.mubr.bf16.gmra.mrb[0].mxu0 %v70
  %v117 = vpop.f32.mrb[0].mxu0
  %v118 = vadd.f32 0.0, %v117
  %v119 = vpop.f32.mrb[0].mxu0
  %v120 = vpop.f32.mrb[0].mxu0
  %v121 = vadd.f32 0.0, %v120
  %v122 = vpop.f32.mrb[0].mxu0
  %123 = vmatprep.mubr.bf16.mxu0 0
  %124 = vmatmul.mubr.bf16.gmra.mrb[0].mxu0 %v73
  %v125 = vpop.f32.mrb[0].mxu0
  %v126 = vadd.f32 0.0, %v125
  %v127 = vpop.f32.mrb[0].mxu0
  %v128 = vpop.f32.mrb[0].mxu0
  %v129 = vpop.f32.mrb[0].mxu0
  %130 = vdwg.mxu0
  %v131 = vadd.f32 %v26, %v110
  %v132 = vadd.f32 %v27, %v113
  %v133 = vadd.f32 %v28, %v118
  %v134 = vadd.f32 %v29, %v121
  %v135 = vadd.f32 %v30, %v126
  %vm136 = vcmask 785408
  %137 = vst.msk [vmem:[#allocation2] sm:$0xff] %vm136, %v131
  %138 = vst.msk [vmem:[#allocation2 + $0x8] sm:$0xff] %vm136, %v132
  %139 = vst.msk [vmem:[#allocation2 + $0x10] sm:$0xff] %vm136, %v133
  %140 = vst.msk [vmem:[#allocation2 + $0x18] sm:$0xff] %vm136, %v134
  %vm141 = vcmask 779264
  %142 = vst.msk [vmem:[#allocation2 + $0x20] sm:$0x3] %vm141, %v135
  // Predicated region
  $region18: #{transformer_forward.26} parent=0 // pred_check
    %p143 = pneg %p15
  $region19: #{transformer_forward.26} parent=0 // pred_check_branch
    %145 = sbr.rel (%p143) target = $region21
  $region20: #{transformer_forward.26} parent=0 // pred_region
    %v146 = vld [vmem:[#allocation2] sm:$0xff]
    %v147 = vld [vmem:[#allocation2 + $0x8] sm:$0xff]
    %v148 = vld [vmem:[#allocation2 + $0x10] sm:$0xff]
    %v149 = vld [vmem:[#allocation2 + $0x18] sm:$0xff]
    %v150 = vld [vmem:[#allocation2 + $0x20] sm:$0x3]
    %v151 = vld [vmem:[%s2] sm:$0x1]
    %v153 = vlaneseq
    %v154 = vshrl.u32 %v153, 7
    %v155 = vsub.s32 0, %v154
    %v156 = vrot.slane %v151, %v155
    %v158 = vadd.f32 %v146, %v156
    %v159 = vadd.f32 %v147, %v156
    %v160 = vadd.f32 %v148, %v156
    %v161 = vadd.f32 %v149, %v156
    %v162 = vadd.f32 %v150, %v156
    %v163 = vpack.c.bf16 %v159, %v158
    %v164 = vpack.c.bf16 %v161, %v160
    %v165 = vpack.c.bf16 %v162, %v162
    %v169 = vunpack.c.l.b16 %v163
    %v170 = vunpack.c.h.b16 %v163
    %v171 = vunpack.c.l.b16 %v164
    %v172 = vunpack.c.h.b16 %v164
    %v173 = vunpack.c.l.b16 %v165
    %v174 = vpack.c.b16 %v169, %v169
    %v175 = vpack.c.b16 %v170, %v170
    %v176 = vpack.c.b16 %v171, %v171
    %v177 = vpack.c.b16 %v172, %v172
    %v178 = vpack.c.b16 %v173, %v173
    %vm184 = vcmask 781312
    %185 = vst.msk [vmem:[%s3] sm:$0xf] %vm184, %v174
    %186 = vst.msk [vmem:[%s3 + $0x4] sm:$0xf] %vm184, %v175
    %187 = vst.msk [vmem:[%s3 + $0x8] sm:$0xf] %vm184, %v176
    %188 = vst.msk [vmem:[%s3 + $0xc] sm:$0xf] %vm184, %v177
    %vm189 = vcmask 778240
    %190 = vst.msk [vmem:[%s3 + $0x10] sm:$0x1] %vm189, %v178
  $region21: #{transformer_forward.26} parent=0 // pred_fallthru
    _
  // Predicated region
  $region22: #{transformer_forward.26} parent=0 // pred_check
    _
  $region23: #{transformer_forward.26} parent=0 // pred_check_branch
    %192 = sbr.rel (0) target = $region25
  $region24: #{transformer_forward.26} parent=0 // pred_region
    _
  $region25: #{transformer_forward.26} parent=0 // pred_fallthru
    _
  // Predicated region
  $region26: #{transformer_forward.26} parent=0 // pred_check
    _
  $region27: #{transformer_forward.26} parent=0 // pred_check_branch
    %194 = sbr.rel (0) target = $region29
  $region28: #{transformer_forward.26} parent=0 // pred_region
    _
  $region29: #{transformer_forward.26} parent=0 // pred_fallthru
    _

// kernel: transformer_forward.27
$region0: #{transformer_forward.27}
  #allocation0 [shape = 'u32[]', space=smem, size = 0x4, offset = 0x4, fixed_abs, tag = 'smem constant byte address 0x4 - core index']
  #allocation1 [shape = 'u32[144,128]{1,0:T(1,128)}', space=vmem, size = 0x12000, scoped, tag = 'internal scratch']
  %s0 = inlined_call_operand.vmem [shape: bf16[2,17,96], index: 0, kind: input, shape index: {}]
  %s1 = inlined_call_operand.vmem [shape: bf16[2,17,32], index: 1, kind: output, shape index: {}]
  %s2 = sld [smem:[#allocation0]]
  $region37: #{transformer_forward.27} parent=0
    _
  %s4 = ssub.s32 1, %s2
  %s5 = scalar_select 0, %s4, %s2
  loop: start=0, step=1, limit=4
  $region2: #{transformer_forward.27} parent=0 // loop_pre_header
    _
  $region3: #{transformer_forward.27} parent=0 // loop_header
    %s7 = sphi 0, %s11
    %p8 = scmp.ge.s32.totalorder %s7, 4
    %s17 = sphi 0, %s19
    %s20 = sphi 0, %s17
    %s21 = sphi 0, %s20
    %s37 = sphi 0, %s21
    %s43 = sphi 0, %s45
    %s46 = sphi 0, %s43
    %s47 = sphi 0, %s46
    %s63 = sphi 0, %s47
  $region4: #{transformer_forward.27} parent=0 // loop_header_branch
    %10 = sbr.rel (%p8) target = $region8
  $region5: #{transformer_forward.27} parent=0 // loop_body
    %s12 = ssub.s32 %s7, 1
    %s13 = ssub.s32 %s7, 2
    %s14 = sadd.s32 %s7, 1
    %s15 = ssub.s32 %s7, %s14
    %p16 = scmp.eq.s32.totalorder %s15, 0
    %s18 = sadd.s32 %s17, 1
    %s19 = scalar_select %p16, %s17, %s18
    %p22 = pneg %p16
    %p23 = scmp.eq.s32.totalorder %s7, 1
    %p24 = por %p22, %p23
    %p25 = scmp.ne.s32.totalorder %s17, %s20
    %p26 = scmp.eq.s32.totalorder %s7, 0
    %p27 = por %p25, %p26
    %p28 = scmp.ne.s32.totalorder %s17, %s20
    %p29 = scmp.eq.s32.totalorder %s12, 1
    %p30 = por %p28, %p29
    %p31 = scmp.ne.s32.totalorder %s20, %s21
    %p32 = scmp.eq.s32.totalorder %s12, 0
    %p33 = por %p31, %p32
    %p34 = scmp.ne.s32.totalorder %s20, %s21
    %p35 = scmp.eq.s32.totalorder %s13, 1
    %p36 = por %p34, %p35
    %p38 = scmp.ne.s32.totalorder %s21, %s37
    %p39 = scmp.eq.s32.totalorder %s13, 0
    %p40 = por %p38, %p39
    %s41 = ssub.s32 %s7, %s14
    %p42 = scmp.eq.s32.totalorder %s41, 0
    %s44 = sadd.s32 %s43, 1
    %s45 = scalar_select %p42, %s43, %s44
    %p48 = pneg %p42
    %p49 = scmp.eq.s32.totalorder %s7, 1
    %p50 = por %p48, %p49
    %p51 = scmp.ne.s32.totalorder %s43, %s46
    %p52 = scmp.eq.s32.totalorder %s7, 0
    %p53 = por %p51, %p52
    %p54 = scmp.ne.s32.totalorder %s43, %s46
    %p55 = scmp.eq.s32.totalorder %s12, 1
    %p56 = por %p54, %p55
    %p57 = scmp.ne.s32.totalorder %s46, %s47
    %p58 = scmp.eq.s32.totalorder %s12, 0
    %p59 = por %p57, %p58
    %p60 = scmp.ne.s32.totalorder %s46, %s47
    %p61 = scmp.eq.s32.totalorder %s13, 1
    %p62 = por %p60, %p61
    %p64 = scmp.ne.s32.totalorder %s47, %s63
    %p65 = scmp.eq.s32.totalorder %s13, 0
    %p66 = por %p64, %p65
    %p67 = scmp.le.s32.totalorder 1, %s7
    %p68 = scmp.lt.s32.totalorder %s7, 3
    %p69 = pnand %p67, %p68
    %p70 = pneg %p69
    // Predicated region
    $region9: #{transformer_forward.27} parent=5 // pred_check
      _
    $region10: #{transformer_forward.27} parent=5 // pred_check_branch
      %72 = sbr.rel (%p69) target = $region12
    $region11: #{transformer_forward.27} parent=5 // pred_region
      %s73 = ssub.s32 %s7, 1
    $region12: #{transformer_forward.27} parent=5 // pred_fallthru
      _
    %p74 = scmp.lt.s32.totalorder %s7, 2
    // Predicated region
    $region13: #{transformer_forward.27} parent=5 // pred_check
      %p75 = pneg %p74
    $region14: #{transformer_forward.27} parent=5 // pred_check_branch
      %77 = sbr.rel (%p75) target = $region16
    $region15: #{transformer_forward.27} parent=5 // pred_region
      // Predicated region
      $region17: #{transformer_forward.27} parent=15 // pred_check
        %p78 = pneg %p27
      $region18: #{transformer_forward.27} parent=15 // pred_check_branch
        %80 = sbr.rel (%p78) target = $region20
      $region19: #{transformer_forward.27} parent=15 // pred_region
        %p81 = scmp.lt.s32.totalorder %s7, 1
        %s82 = scalar_select %p81, %s7, 1
        %s83 = smul.addr %s82, 3
        %s84 = smul.addr %s83, 4
        %s85 = scalar_lea.vmem %s0, %s84
      $region20: #{transformer_forward.27} parent=15 // pred_fallthru
        _
    $region16: #{transformer_forward.27} parent=5 // pred_fallthru
      _
    %p86 = scmp.le.s32.totalorder 1, %s7
    %p87 = scmp.lt.s32.totalorder %s7, 3
    %p88 = pnand %p86, %p87
    %p89 = pneg %p88
    // Predicated region
    $region21: #{transformer_forward.27} parent=5 // pred_check
      _
    $region22: #{transformer_forward.27} parent=5 // pred_check_branch
      %91 = sbr.rel (%p88) target = $region24
    $region23: #{transformer_forward.27} parent=5 // pred_region
      %s92 = ssub.s32 %s7, 1
      %p93 = scmp.lt.s32.totalorder %s12, 1
      %s94 = scalar_select %p93, %s12, 1
      %s95 = smul.addr %s94, 3
      %s96 = smul.addr %s95, 4
      %s97 = scalar_lea.vmem %s0, %s96
      %p98 = pneg %p33
      %p99 = pneg %p30
      %p100 = pneg %p59
      %p101 = pneg %p56
      %p102 = scmp.lt.s32.totalorder %s12, 1
      %s103 = scalar_select %p102, %s12, 1
      %s104 = smul.addr %s103, 3
      %s105 = smul.addr %s104, 4
      %s106 = scalar_lea.vmem %s1, %s105
      %p107 = scmp.lt.s32.totalorder %s12, 1
      %s108 = scalar_select %p107, %s12, 1
      %s109 = smul.addr %s108, 3
      %s110 = smul.addr %s109, 4
      %s111 = scalar_lea.vmem %s0, %s110
      %p112 = scmp.lt.s32.totalorder %s12, 1
      %s113 = scalar_select %p112, %s12, 1
      %s114 = smul.addr %s113, 3
      %s115 = smul.addr %s114, 4
      %s116 = scalar_lea.vmem %s1, %s115
      %v118 = vld [vmem:[%s111] sm:$0xf]
      %v119 = vld [vmem:[%s111 + $0x4] sm:$0xf]
      %v120 = vld [vmem:[%s111 + $0x8] sm:$0x1]
      %v124 = vunpack.c.l.b16 %v118
      %v125 = vunpack.c.l.b16 %v119
      %v126 = vunpack.c.l.b16 %v120
      %v127 = vpack.c.b16 %v125, %v124
      %v128 = vpack.c.b16 %v126, %v126
      %129 = vrot.lane.b32.xlu0 %v127, 96
      %v130 = vpop.permute.xlu0 %129
      %131 = vrot.lane.b32.xlu0 %v128, 96
      %v132 = vpop.permute.xlu0 %131
      %vm133 = vcmask 64512
      %v135 = vsel %vm133, %v127, 0
      %v138 = vsel %vm133, %v128, 0
      %v141 = vsel %vm133, %v130, 0
      %v144 = vsel %vm133, %v132, 0
      %146 = vmatprep.subr.bf16.mxu0 0
      %147 = vmatpush1.bf16.xpose.msra.mxu0 %v141
      %148 = vmatprep.subr.bf16.mxu0 0
      %149 = vmatpush1.bf16.xpose.msra.mxu0 %v144
      %150 = vmatprep.subr.bf16.mxu0 0
      %151 = vmatpush1.bf16.xpose.msra.mxu0 0
      %152 = vmatprep.subr.bf16.mxu0 0
      %153 = vmatpush1.bf16.xpose.msra.mxu0 0
      %154 = vmatprep.subr.bf16.mxu0 0
      %155 = vmatpush1.bf16.xpose.msra.mxu0 0
      %156 = vmatprep.subr.bf16.mxu0 0
      %157 = vmatpush1.bf16.xpose.msra.mxu0 0
      %158 = vmatprep.subr.bf16.mxu0 0
      %159 = vmatpush1.bf16.xpose.msra.mxu0 0
      %160 = vmatprep.subr.bf16.mxu0 0
      %161 = vmatpush1.bf16.xpose.msra.mxu0 0
      %162 = vmatprep.subr.bf16.mxu0 0
      %163 = vmatpush1.bf16.xpose.msra.mxu0 0
      %164 = vmatprep.subr.bf16.mxu0 0
      %165 = vmatpush1.bf16.xpose.msra.mxu0 0
      %166 = vmatprep.subr.bf16.mxu0 0
      %167 = vmatpush1.bf16.xpose.msra.mxu0 0
      %168 = vmatprep.subr.bf16.mxu0 0
      %169 = vmatpush1.bf16.xpose.msra.mxu0 0
      %170 = vmatprep.subr.bf16.mxu0 0
      %171 = vmatpush1.bf16.xpose.msra.mxu0 0
      %172 = vmatprep.subr.bf16.mxu0 0
      %173 = vmatpush1.bf16.xpose.msra.mxu0 0
      %174 = vmatprep.subr.bf16.mxu0 0
      %175 = vmatpush1.bf16.xpose.msra.mxu0 0
      %176 = vmatprep.subr.bf16.mxu0 0
      %177 = vmatpush1.bf16.xpose.msra.mxu0 0
      %178 = vmatprep.mubr.bf16.mxu0 0
      %179 = vmatmul.mubr.bf16.gmra.mrb[0].mxu0 %v135
      %v180 = vpop.f32.mrb[0].mxu0
      %v181 = vadd.f32 0.0, %v180
      %v182 = vpop.f32.mrb[0].mxu0
      %v183 = vpop.f32.mrb[0].mxu0
      %v184 = vadd.f32 0.0, %v183
      %v185 = vpop.f32.mrb[0].mxu0
      %186 = vmatprep.mubr.bf16.mxu0 0
      %187 = vmatmul.mubr.bf16.gmra.mrb[0].mxu0 %v138
      %v188 = vpop.f32.mrb[0].mxu0
      %v189 = vadd.f32 0.0, %v188
      %v190 = vpop.f32.mrb[0].mxu0
      %v191 = vpop.f32.mrb[0].mxu0
      %v192 = vpop.f32.mrb[0].mxu0
      %193 = vdwg.mxu0
      %v194 = vmul.f32 %v181, 0.35355338
      %v195 = vmul.f32 %v184, 0.35355338
      %v196 = vmul.f32 %v189, 0.35355338
      %vm197 = vcmask 138240
      %v198 = vsel %vm197, %v194, -inf
      %199 = vmax.xlane.f32.xlu0 %v198
      %v200 = vpop.xlane.xlu0 %199
      %v201 = vsel %vm197, %v195, -inf
      %202 = vmax.xlane.f32.xlu0 %v201
      %v203 = vpop.xlane.xlu0 %202
      %vm204 = vcmask 131072
      %v205 = vsel %vm204, %v196, -inf
      %206 = vmax.xlane.f32.xlu0 %v205
      %v207 = vpop.xlane.xlu0 %206
      %v208 = vsub.f32 %v194, %v200
      %v209 = vsub.f32 %v195, %v203
      %v210 = vsub.f32 %v196, %v207
      %v211 = vmul.f32 %v208, 1.442695
      %v212 = vpow.pop %v211
      %v213 = vmul.f32 %v209, 1.442695
      %v214 = vpow.pop %v213
      %v215 = vmul.f32 %v210, 1.442695
      %v216 = vpow.pop %v215
      %v217 = vsel %vm197, %v212, 0.0
      %218 = vadd.xlane.f32.xlu0 %v217
      %v219 = vpop.xlane.xlu0 %218
      %v220 = vsel %vm197, %v214, 0.0
      %221 = vadd.xlane.f32.xlu0 %v220
      %v222 = vpop.xlane.xlu0 %221
      %v223 = vsel %vm204, %v216, 0.0
      %224 = vadd.xlane.f32.xlu0 %v223
      %v225 = vpop.xlane.xlu0 %224
      %v226 = vpack.c.bf16 %v214, %v212
      %v227 = vpack.c.bf16 %v216, %v216
      %228 = vrot.lane.b32.xlu0 %v127, 64
      %v229 = vpop.permute.xlu0 %228
      %230 = vrot.lane.b32.xlu0 %v128, 64
      %v231 = vpop.permute.xlu0 %230
      %v234 = vsel %vm197, %v226, 0
      %v237 = vsel %vm197, %v227, 0
      %vm239 = vcmask 1040384
      %v240 = vsel 0, 4294967295, 65535
      %v241 = vsel %vm239, %v240, 0
      %v243 = vand.u32 %v231, %v241
      %245 = vmatprep.subr.bf16.mxu0 0
      %246 = vmatpush1.bf16.msra.mxu0 %v229
      %247 = vmatprep.subr.bf16.mxu0 0
      %248 = vmatpush1.bf16.msra.mxu0 %v243
      %249 = vmatprep.subr.bf16.mxu0 0
      %250 = vmatpush1.bf16.msra.mxu0 0
      %251 = vmatprep.subr.bf16.mxu0 0
      %252 = vmatpush1.bf16.msra.mxu0 0
      %253 = vmatprep.subr.bf16.mxu0 0
      %254 = vmatpush1.bf16.msra.mxu0 0
      %255 = vmatprep.subr.bf16.mxu0 0
      %256 = vmatpush1.bf16.msra.mxu0 0
      %257 = vmatprep.subr.bf16.mxu0 0
      %258 = vmatpush1.bf16.msra.mxu0 0
      %259 = vmatprep.subr.bf16.mxu0 0
      %260 = vmatpush1.bf16.msra.mxu0 0
      %261 = vmatprep.subr.bf16.mxu0 0
      %262 = vmatpush1.bf16.msra.mxu0 0
      %263 = vmatprep.subr.bf16.mxu0 0
      %264 = vmatpush1.bf16.msra.mxu0 0
      %265 = vmatprep.subr.bf16.mxu0 0
      %266 = vmatpush1.bf16.msra.mxu0 0
      %267 = vmatprep.subr.bf16.mxu0 0
      %268 = vmatpush1.bf16.msra.mxu0 0
      %269 = vmatprep.subr.bf16.mxu0 0
      %270 = vmatpush1.bf16.msra.mxu0 0
      %271 = vmatprep.subr.bf16.mxu0 0
      %272 = vmatpush1.bf16.msra.mxu0 0
      %273 = vmatprep.subr.bf16.mxu0 0
      %274 = vmatpush1.bf16.msra.mxu0 0
      %275 = vmatprep.subr.bf16.mxu0 0
      %276 = vmatpush1.bf16.msra.mxu0 0
      %277 = vmatprep.mubr.bf16.mxu0 0
      %278 = vmatmul.mubr.bf16.gmra.mrb[0].mxu0 %v234
      %v279 = vpop.f32.mrb[0].mxu0
      %v280 = vadd.f32 0.0, %v279
      %v281 = vpop.f32.mrb[0].mxu0
      %v282 = vpop.f32.mrb[0].mxu0
      %v283 = vadd.f32 0.0, %v282
      %v284 = vpop.f32.mrb[0].mxu0
      %285 = vmatprep.mubr.bf16.mxu0 0
      %286 = vmatmul.mubr.bf16.gmra.mrb[0].mxu0 %v237
      %v287 = vpop.f32.mrb[0].mxu0
      %v288 = vadd.f32 0.0, %v287
      %v289 = vpop.f32.mrb[0].mxu0
      %v290 = vpop.f32.mrb[0].mxu0
      %v291 = vpop.f32.mrb[0].mxu0
      %292 = vdwg.mxu0
      %v293 = vrcp.pop %v219
      %v294 = vrcp.pop %v222
      %v295 = vrcp.pop %v225
      %v296 = vmul.f32 %v280, %v293
      %v297 = vmul.f32 %v283, %v294
      %v298 = vmul.f32 %v288, %v295
      %v299 = vpack.c.bf16 %v297, %v296
      %v300 = vpack.c.bf16 %v298, %v298
      %v303 = vunpack.c.l.b16 %v299
      %v304 = vunpack.c.h.b16 %v299
      %v305 = vunpack.c.l.b16 %v300
      %v306 = vpack.c.b16 %v303, %v303
      %v307 = vpack.c.b16 %v304, %v304
      %v308 = vpack.c.b16 %v305, %v305
      %vm312 = vcmask 60416
      %313 = vst.msk [vmem:[%s116] sm:$0xf] %vm312, %v306
      %314 = vst.msk [vmem:[%s116 + $0x4] sm:$0xf] %vm312, %v307
      %vm315 = vcmask 57344
      %vm316 = vsmask.f32 256
      %vm317 = vmand %vm315, %vm316
      %v318 = vld [vmem:[%s116 + $0x8] sm:$0x1]
      %v319 = vsel %vm317, %v308, %v318
      %320 = vst [vmem:[%s116 + $0x8] sm:$0x1] %v319
      %v321 = vld [vmem:[%s111] sm:$0xf]
      %v322 = vld [vmem:[%s111 + $0x4] sm:$0xf]
      %v323 = vld [vmem:[%s111 + $0x8] sm:$0x1]
      %v327 = vunpack.c.l.b16 %v321
      %v328 = vunpack.c.l.b16 %v322
      %v329 = vunpack.c.l.b16 %v323
      %v330 = vpack.c.b16 %v328, %v327
      %v331 = vpack.c.b16 %v329, %v329
      %332 = vrot.lane.b32.xlu0 %v330, 120
      %v333 = vpop.permute.xlu0 %332
      %334 = vrot.lane.b32.xlu0 %v331, 120
      %v335 = vpop.permute.xlu0 %334
      %336 = vrot.lane.b32.xlu0 %v330, 88
      %v337 = vpop.permute.xlu0 %336
      %338 = vrot.lane.b32.xlu0 %v331, 88
      %v339 = vpop.permute.xlu0 %338
      %v341 = vsel %vm133, %v333, 0
      %v344 = vsel %vm133, %v335, 0
      %v347 = vsel %vm133, %v337, 0
      %v350 = vsel %vm133, %v339, 0
      %352 = vmatprep.subr.bf16.mxu0 0
      %353 = vmatpush1.bf16.xpose.msra.mxu0 %v347
      %354 = vmatprep.subr.bf16.mxu0 0
      %355 = vmatpush1.bf16.xpose.msra.mxu0 %v350
      %356 = vmatprep.subr.bf16.mxu0 0
      %357 = vmatpush1.bf16.xpose.msra.mxu0 0
      %358 = vmatprep.subr.bf16.mxu0 0
      %359 = vmatpush1.bf16.xpose.msra.mxu0 0
      %360 = vmatprep.subr.bf16.mxu0 0
      %361 = vmatpush1.bf16.xpose.msra.mxu0 0
      %362 = vmatprep.subr.bf16.mxu0 0
      %363 = vmatpush1.bf16.xpose.msra.mxu0 0
      %364 = vmatprep.subr.bf16.mxu0 0
      %365 = vmatpush1.bf16.xpose.msra.mxu0 0
      %366 = vmatprep.subr.bf16.mxu0 0
      %367 = vmatpush1.bf16.xpose.msra.mxu0 0
      %368 = vmatprep.subr.bf16.mxu0 0
      %369 = vmatpush1.bf16.xpose.msra.mxu0 0
      %370 = vmatprep.subr.bf16.mxu0 0
      %371 = vmatpush1.bf16.xpose.msra.mxu0 0
      %372 = vmatprep.subr.bf16.mxu0 0
      %373 = vmatpush1.bf16.xpose.msra.mxu0 0
      %374 = vmatprep.subr.bf16.mxu0 0
      %375 = vmatpush1.bf16.xpose.msra.mxu0 0
      %376 = vmatprep.subr.bf16.mxu0 0
      %377 = vmatpush1.bf16.xpose.msra.mxu0 0
      %378 = vmatprep.subr.bf16.mxu0 0
      %379 = vmatpush1.bf16.xpose.msra.mxu0 0
      %380 = vmatprep.subr.bf16.mxu0 0
      %381 = vmatpush1.bf16.xpose.msra.mxu0 0
      %382 = vmatprep.subr.bf16.mxu0 0
      %383 = vmatpush1.bf16.xpose.msra.mxu0 0
      %384 = vmatprep.mubr.bf16.mxu0 0
      %385 = vmatmul.mubr.bf16.gmra.mrb[0].mxu0 %v341
      %v386 = vpop.f32.mrb[0].mxu0
      %v387 = vadd.f32 0.0, %v386
      %v388 = vpop.f32.mrb[0].mxu0
      %v389 = vpop.f32.mrb[0].mxu0
      %v390 = vadd.f32 0.0, %v389
      %v391 = vpop.f32.mrb[0].mxu0
      %392 = vmatprep.mubr.bf16.mxu0 0
      %393 = vmatmul.mubr.bf16.gmra.mrb[0].mxu0 %v344
      %v394 = vpop.f32.mrb[0].mxu0
      %v395 = vadd.f32 0.0, %v394
      %v396 = vpop.f32.mrb[0].mxu0
      %v397 = vpop.f32.mrb[0].mxu0
      %v398 = vpop.f32.mrb[0].mxu0
      %399 = vdwg.mxu0
      %v400 = vmul.f32 %v387, 0.35355338
      %v401 = vmul.f32 %v390, 0.35355338
      %v402 = vmul.f32 %v395, 0.35355338
      %v403 = vsel %vm197, %v400, -inf
      %404 = vmax.xlane.f32.xlu0 %v403
      %v405 = vpop.xlane.xlu0 %404
      %v406 = vsel %vm197, %v401, -inf
      %407 = vmax.xlane.f32.xlu0 %v406
      %v408 = vpop.xlane.xlu0 %407
      %v409 = vsel %vm204, %v402, -inf
      %410 = vmax.xlane.f32.xlu0 %v409
      %v411 = vpop.xlane.xlu0 %410
      %v412 = vsub.f32 %v400, %v405
      %v413 = vsub.f32 %v401, %v408
      %v414 = vsub.f32 %v402, %v411
      %v415 = vmul.f32 %v412, 1.442695
      %v416 = vpow.pop %v415
      %v417 = vmul.f32 %v413, 1.442695
      %v418 = vpow.pop %v417
      %v419 = vmul.f32 %v414, 1.442695
      %v420 = vpow.pop %v419
      %v421 = vsel %vm197, %v416, 0.0
      %422 = vadd.xlane.f32.xlu0 %v421
      %v423 = vpop.xlane.xlu0 %422
      %v424 = vsel %vm197, %v418, 0.0
      %425 = vadd.xlane.f32.xlu0 %v424
      %v426 = vpop.xlane.xlu0 %425
      %v427 = vsel %vm204, %v420, 0.0
      %428 = vadd.xlane.f32.xlu0 %v427
      %v429 = vpop.xlane.xlu0 %428
      %v430 = vpack.c.bf16 %v418, %v416
      %v431 = vpack.c.bf16 %v420, %v420
      %432 = vrot.lane.b32.xlu0 %v330, 56
      %v433 = vpop.permute.xlu0 %432
      %434 = vrot.lane.b32.xlu0 %v331, 56
      %v435 = vpop.permute.xlu0 %434
      %v438 = vsel %vm197, %v430, 0
      %v441 = vsel %vm197, %v431, 0
      %v444 = vand.u32 %v435, %v241
      %446 = vmatprep.subr.bf16.mxu0 0
      %447 = vmatpush1.bf16.msra.mxu0 %v433
      %448 = vmatprep.subr.bf16.mxu0 0
      %449 = vmatpush1.bf16.msra.mxu0 %v444
      %450 = vmatprep.subr.bf16.mxu0 0
      %451 = vmatpush1.bf16.msra.mxu0 0
      %452 = vmatprep.subr.bf16.mxu0 0
      %453 = vmatpush1.bf16.msra.mxu0 0
      %454 = vmatprep.subr.bf16.mxu0 0
      %455 = vmatpush1.bf16.msra.mxu0 0
      %456 = vmatprep.subr.bf16.mxu0 0
      %457 = vmatpush1.bf16.msra.mxu0 0
      %458 = vmatprep.subr.bf16.mxu0 0
      %459 = vmatpush1.bf16.msra.mxu0 0
      %460 = vmatprep.subr.bf16.mxu0 0
      %461 = vmatpush1.bf16.msra.mxu0 0
      %462 = vmatprep.subr.bf16.mxu0 0
      %463 = vmatpush1.bf16.msra.mxu0 0
      %464 = vmatprep.subr.bf16.mxu0 0
      %465 = vmatpush1.bf16.msra.mxu0 0
      %466 = vmatprep.subr.bf16.mxu0 0
      %467 = vmatpush1.bf16.msra.mxu0 0
      %468 = vmatprep.subr.bf16.mxu0 0
      %469 = vmatpush1.bf16.msra.mxu0 0
      %470 = vmatprep.subr.bf16.mxu0 0
      %471 = vmatpush1.bf16.msra.mxu0 0
      %472 = vmatprep.subr.bf16.mxu0 0
      %473 = vmatpush1.bf16.msra.mxu0 0
      %474 = vmatprep.subr.bf16.mxu0 0
      %475 = vmatpush1.bf16.msra.mxu0 0
      %476 = vmatprep.subr.bf16.mxu0 0
      %477 = vmatpush1.bf16.msra.mxu0 0
      %478 = vmatprep.mubr.bf16.mxu0 0
      %479 = vmatmul.mubr.bf16.gmra.mrb[0].mxu0 %v438
      %v480 = vpop.f32.mrb[0].mxu0
      %v481 = vadd.f32 0.0, %v480
      %v482 = vpop.f32.mrb[0].mxu0
      %v483 = vpop.f32.mrb[0].mxu0
      %v484 = vadd.f32 0.0, %v483
      %v485 = vpop.f32.mrb[0].mxu0
      %486 = vmatprep.mubr.bf16.mxu0 0
      %487 = vmatmul.mubr.bf16.gmra.mrb[0].mxu0 %v441
      %v488 = vpop.f32.mrb[0].mxu0
      %v489 = vadd.f32 0.0, %v488
      %v490 = vpop.f32.mrb[0].mxu0
      %v491 = vpop.f32.mrb[0].mxu0
      %v492 = vpop.f32.mrb[0].mxu0
      %493 = vdwg.mxu0
      %v494 = vrcp.pop %v423
      %v495 = vrcp.pop %v426
      %v496 = vrcp.pop %v429
      %v497 = vmul.f32 %v481, %v494
      %v498 = vmul.f32 %v484, %v495
      %v499 = vmul.f32 %v489, %v496
      %v500 = vpack.c.bf16 %v498, %v497
      %v501 = vpack.c.bf16 %v499, %v499
      %v504 = vunpack.c.l.b16 %v500
      %v505 = vunpack.c.h.b16 %v500
      %v506 = vunpack.c.l.b16 %v501
      %v507 = vpack.c.b16 %v504, %v504
      %v508 = vpack.c.b16 %v505, %v505
      %v509 = vpack.c.b16 %v506, %v506
      %510 = vrot.lane.b32.xlu0 %v507, 8
      %v511 = vpop.permute.xlu0 %510
      %512 = vrot.lane.b32.xlu0 %v508, 8
      %v513 = vpop.permute.xlu0 %512
      %514 = vrot.lane.b32.xlu0 %v509, 8
      %v515 = vpop.permute.xlu0 %514
      %vm519 = vcmask 126016
      %520 = vst.msk [vmem:[%s116] sm:$0xf] %vm519, %v511
      %521 = vst.msk [vmem:[%s116 + $0x4] sm:$0xf] %vm519, %v513
      %vm522 = vcmask 122944
      %vm523 = vmand %vm522, %vm316
      %v524 = vld [vmem:[%s116 + $0x8] sm:$0x1]
      %v525 = vsel %vm523, %v515, %v524
      %526 = vst [vmem:[%s116 + $0x8] sm:$0x1] %v525
      %v527 = vld [vmem:[%s111] sm:$0xf]
      %v528 = vld [vmem:[%s111 + $0x4] sm:$0xf]
      %v529 = vld [vmem:[%s111 + $0x8] sm:$0x1]
      %v533 = vunpack.c.l.b16 %v527
      %v534 = vunpack.c.l.b16 %v528
      %v535 = vunpack.c.l.b16 %v529
      %v536 = vpack.c.b16 %v534, %v533
      %v537 = vpack.c.b16 %v535, %v535
      %538 = vrot.lane.b32.xlu0 %v536, 112
      %v539 = vpop.permute.xlu0 %538
      %540 = vrot.lane.b32.xlu0 %v537, 112
      %v541 = vpop.permute.xlu0 %540
      %542 = vrot.lane.b32.xlu0 %v536, 80
      %v543 = vpop.permute.xlu0 %542
      %544 = vrot.lane.b32.xlu0 %v537, 80
      %v545 = vpop.permute.xlu0 %544
      %v547 = vsel %vm133, %v539, 0
      %v550 = vsel %vm133, %v541, 0
      %v553 = vsel %vm133, %v543, 0
      %v556 = vsel %vm133, %v545, 0
      %558 = vmatprep.subr.bf16.mxu0 0
      %559 = vmatpush1.bf16.xpose.msra.mxu0 %v553
      %560 = vmatprep.subr.bf16.mxu0 0
      %561 = vmatpush1.bf16.xpose.msra.mxu0 %v556
      %562 = vmatprep.subr.bf16.mxu0 0
      %563 = vmatpush1.bf16.xpose.msra.mxu0 0
      %564 = vmatprep.subr.bf16.mxu0 0
      %565 = vmatpush1.bf16.xpose.msra.mxu0 0
      %566 = vmatprep.subr.bf16.mxu0 0
      %567 = vmatpush1.bf16.xpose.msra.mxu0 0
      %568 = vmatprep.subr.bf16.mxu0 0
      %569 = vmatpush1.bf16.xpose.msra.mxu0 0
      %570 = vmatprep.subr.bf16.mxu0 0
      %571 = vmatpush1.bf16.xpose.msra.mxu0 0
      %572 = vmatprep.subr.bf16.mxu0 0
      %573 = vmatpush1.bf16.xpose.msra.mxu0 0
      %574 = vmatprep.subr.bf16.mxu0 0
      %575 = vmatpush1.bf16.xpose.msra.mxu0 0
      %576 = vmatprep.subr.bf16.mxu0 0
      %577 = vmatpush1.bf16.xpose.msra.mxu0 0
      %578 = vmatprep.subr.bf16.mxu0 0
      %579 = vmatpush1.bf16.xpose.msra.mxu0 0
      %580 = vmatprep.subr.bf16.mxu0 0
      %581 = vmatpush1.bf16.xpose.msra.mxu0 0
      %582 = vmatprep.subr.bf16.mxu0 0
      %583 = vmatpush1.bf16.xpose.msra.mxu0 0
      %584 = vmatprep.subr.bf16.mxu0 0
      %585 = vmatpush1.bf16.xpose.msra.mxu0 0
      %586 = vmatprep.subr.bf16.mxu0 0
      %587 = vmatpush1.bf16.xpose.msra.mxu0 0
      %588 = vmatprep.subr.bf16.mxu0 0
      %589 = vmatpush1.bf16.xpose.msra.mxu0 0
      %590 = vmatprep.mubr.bf16.mxu0 0
      %591 = vmatmul.mubr.bf16.gmra.mrb[0].mxu0 %v547
      %v592 = vpop.f32.mrb[0].mxu0
      %v593 = vadd.f32 0.0, %v592
      %v594 = vpop.f32.mrb[0].mxu0
      %v595 = vpop.f32.mrb[0].mxu0
      %v596 = vadd.f32 0.0, %v595
      %v597 = vpop.f32.mrb[0].mxu0
      %598 = vmatprep.mubr.bf16.mxu0 0
      %599 = vmatmul.mubr.bf16.gmra.mrb[0].mxu0 %v550
      %v600 = vpop.f32.mrb[0].mxu0
      %v601 = vadd.f32 0.0, %v600
      %v602 = vpop.f32.mrb[0].mxu0
      %v603 = vpop.f32.mrb[0].mxu0
      %v604 = vpop.f32.mrb[0].mxu0
      %605 = vdwg.mxu0
      %v606 = vmul.f32 %v593, 0.35355338
      %v607 = vmul.f32 %v596, 0.35355338
      %v608 = vmul.f32 %v601, 0.35355338
      %v609 = vsel %vm197, %v606, -inf
      %610 = vmax.xlane.f32.xlu0 %v609
      %v611 = vpop.xlane.xlu0 %610
      %v612 = vsel %vm197, %v607, -inf
      %613 = vmax.xlane.f32.xlu0 %v612
      %v614 = vpop.xlane.xlu0 %613
      %v615 = vsel %vm204, %v608, -inf
      %616 = vmax.xlane.f32.xlu0 %v615
      %v617 = vpop.xlane.xlu0 %616
      %v618 = vsub.f32 %v606, %v611
      %v619 = vsub.f32 %v607, %v614
      %v620 = vsub.f32 %v608, %v617
      %v621 = vmul.f32 %v618, 1.442695
      %v622 = vpow.pop %v621
      %v623 = vmul.f32 %v619, 1.442695
      %v624 = vpow.pop %v623
      %v625 = vmul.f32 %v620, 1.442695
      %v626 = vpow.pop %v625
      %v627 = vsel %vm197, %v622, 0.0
      %628 = vadd.xlane.f32.xlu0 %v627
      %v629 = vpop.xlane.xlu0 %628
      %v630 = vsel %vm197, %v624, 0.0
      %631 = vadd.xlane.f32.xlu0 %v630
      %v632 = vpop.xlane.xlu0 %631
      %v633 = vsel %vm204, %v626, 0.0
      %634 = vadd.xlane.f32.xlu0 %v633
      %v635 = vpop.xlane.xlu0 %634
      %v636 = vpack.c.bf16 %v624, %v622
      %v637 = vpack.c.bf16 %v626, %v626
      %638 = vrot.lane.b32.xlu0 %v536, 48
      %v639 = vpop.permute.xlu0 %638
      %640 = vrot.lane.b32.xlu0 %v537, 48
      %v641 = vpop.permute.xlu0 %640
      %v644 = vsel %vm197, %v636, 0
      %v647 = vsel %vm197, %v637, 0
      %v650 = vand.u32 %v641, %v241
      %652 = vmatprep.subr.bf16.mxu0 0
      %653 = vmatpush1.bf16.msra.mxu0 %v639
      %654 = vmatprep.subr.bf16.mxu0 0
      %655 = vmatpush1.bf16.msra.mxu0 %v650
      %656 = vmatprep.subr.bf16.mxu0 0
      %657 = vmatpush1.bf16.msra.mxu0 0
      %658 = vmatprep.subr.bf16.mxu0 0
      %659 = vmatpush1.bf16.msra.mxu0 0
      %660 = vmatprep.subr.bf16.mxu0 0
      %661 = vmatpush1.bf16.msra.mxu0 0
      %662 = vmatprep.subr.bf16.mxu0 0
      %663 = vmatpush1.bf16.msra.mxu0 0
      %664 = vmatprep.subr.bf16.mxu0 0
      %665 = vmatpush1.bf16.msra.mxu0 0
      %666 = vmatprep.subr.bf16.mxu0 0
      %667 = vmatpush1.bf16.msra.mxu0 0
      %668 = vmatprep.subr.bf16.mxu0 0
      %669 = vmatpush1.bf16.msra.mxu0 0
      %670 = vmatprep.subr.bf16.mxu0 0
      %671 = vmatpush1.bf16.msra.mxu0 0
      %672 = vmatprep.subr.bf16.mxu0 0
      %673 = vmatpush1.bf16.msra.mxu0 0
      %674 = vmatprep.subr.bf16.mxu0 0
      %675 = vmatpush1.bf16.msra.mxu0 0
      %676 = vmatprep.subr.bf16.mxu0 0
      %677 = vmatpush1.bf16.msra.mxu0 0
      %678 = vmatprep.subr.bf16.mxu0 0
      %679 = vmatpush1.bf16.msra.mxu0 0
      %680 = vmatprep.subr.bf16.mxu0 0
      %681 = vmatpush1.bf16.msra.mxu0 0
      %682 = vmatprep.subr.bf16.mxu0 0
      %683 = vmatpush1.bf16.msra.mxu0 0
      %684 = vmatprep.mubr.bf16.mxu0 0
      %685 = vmatmul.mubr.bf16.gmra.mrb[0].mxu0 %v644
      %v686 = vpop.f32.mrb[0].mxu0
      %v687 = vadd.f32 0.0, %v686
      %v688 = vpop.f32.mrb[0].mxu0
      %v689 = vpop.f32.mrb[0].mxu0
      %v690 = vadd.f32 0.0, %v689
      %v691 = vpop.f32.mrb[0].mxu0
      %692 = vmatprep.mubr.bf16.mxu0 0
      %693 = vmatmul.mubr.bf16.gmra.mrb[0].mxu0 %v647
      %v694 = vpop.f32.mrb[0].mxu0
      %v695 = vadd.f32 0.0, %v694
      %v696 = vpop.f32.mrb[0].mxu0
      %v697 = vpop.f32.mrb[0].mxu0
      %v698 = vpop.f32.mrb[0].mxu0
      %699 = vdwg.mxu0
      %v700 = vrcp.pop %v629
      %v701 = vrcp.pop %v632
      %v702 = vrcp.pop %v635
      %v703 = vmul.f32 %v687, %v700
      %v704 = vmul.f32 %v690, %v701
      %v705 = vmul.f32 %v695, %v702
      %v706 = vpack.c.bf16 %v704, %v703
      %v707 = vpack.c.bf16 %v705, %v705
      %v710 = vunpack.c.l.b16 %v706
      %v711 = vunpack.c.h.b16 %v706
      %v712 = vunpack.c.l.b16 %v707
      %v713 = vpack.c.b16 %v710, %v710
      %v714 = vpack.c.b16 %v711, %v711
      %v715 = vpack.c.b16 %v712, %v712
      %716 = vrot.lane.b32.xlu0 %v713, 16
      %v717 = vpop.permute.xlu0 %716
      %718 = vrot.lane.b32.xlu0 %v714, 16
      %v719 = vpop.permute.xlu0 %718
      %720 = vrot.lane.b32.xlu0 %v715, 16
      %v721 = vpop.permute.xlu0 %720
      %vm725 = vcmask 191616
      %726 = vst.msk [vmem:[%s116] sm:$0xf] %vm725, %v717
      %727 = vst.msk [vmem:[%s116 + $0x4] sm:$0xf] %vm725, %v719
      %vm728 = vcmask 188544
      %vm729 = vmand %vm728, %vm316
      %v730 = vld [vmem:[%s116 + $0x8] sm:$0x1]
      %v731 = vsel %vm729, %v721, %v730
      %732 = vst [vmem:[%s116 + $0x8] sm:$0x1] %v731
      %v733 = vld [vmem:[%s111] sm:$0xf]
      %v734 = vld [vmem:[%s111 + $0x4] sm:$0xf]
      %v735 = vld [vmem:[%s111 + $0x8] sm:$0x1]
      %v739 = vunpack.c.l.b16 %v733
      %v740 = vunpack.c.l.b16 %v734
      %v741 = vunpack.c.l.b16 %v735
      %v742 = vpack.c.b16 %v740, %v739
      %v743 = vpack.c.b16 %v741, %v741
      %744 = vrot.lane.b32.xlu0 %v742, 104
      %v745 = vpop.permute.xlu0 %744
      %746 = vrot.lane.b32.xlu0 %v743, 104
      %v747 = vpop.permute.xlu0 %746
      %748 = vrot.lane.b32.xlu0 %v742, 72
      %v749 = vpop.permute.xlu0 %748
      %750 = vrot.lane.b32.xlu0 %v743, 72
      %v751 = vpop.permute.xlu0 %750
      %v753 = vsel %vm133, %v745, 0
      %v756 = vsel %vm133, %v747, 0
      %v759 = vsel %vm133, %v749, 0
      %v762 = vsel %vm133, %v751, 0
      %764 = vmatprep.subr.bf16.mxu0 0
      %765 = vmatpush1.bf16.xpose.msra.mxu0 %v759
      %766 = vmatprep.subr.bf16.mxu0 0
      %767 = vmatpush1.bf16.xpose.msra.mxu0 %v762
      %768 = vmatprep.subr.bf16.mxu0 0
      %769 = vmatpush1.bf16.xpose.msra.mxu0 0
      %770 = vmatprep.subr.bf16.mxu0 0
      %771 = vmatpush1.bf16.xpose.msra.mxu0 0
      %772 = vmatprep.subr.bf16.mxu0 0
      %773 = vmatpush1.bf16.xpose.msra.mxu0 0
      %774 = vmatprep.subr.bf16.mxu0 0
      %775 = vmatpush1.bf16.xpose.msra.mxu0 0
      %776 = vmatprep.subr.bf16.mxu0 0
      %777 = vmatpush1.bf16.xpose.msra.mxu0 0
      %778 = vmatprep.subr.bf16.mxu0 0
      %779 = vmatpush1.bf16.xpose.msra.mxu0 0
      %780 = vmatprep.subr.bf16.mxu0 0
      %781 = vmatpush1.bf16.xpose.msra.mxu0 0
      %782 = vmatprep.subr.bf16.mxu0 0
      %783 = vmatpush1.bf16.xpose.msra.mxu0 0
      %784 = vmatprep.subr.bf16.mxu0 0
      %785 = vmatpush1.bf16.xpose.msra.mxu0 0
      %786 = vmatprep.subr.bf16.mxu0 0
      %787 = vmatpush1.bf16.xpose.msra.mxu0 0
      %788 = vmatprep.subr.bf16.mxu0 0
      %789 = vmatpush1.bf16.xpose.msra.mxu0 0
      %790 = vmatprep.subr.bf16.mxu0 0
      %791 = vmatpush1.bf16.xpose.msra.mxu0 0
      %792 = vmatprep.subr.bf16.mxu0 0
      %793 = vmatpush1.bf16.xpose.msra.mxu0 0
      %794 = vmatprep.subr.bf16.mxu0 0
      %795 = vmatpush1.bf16.xpose.msra.mxu0 0
      %796 = vmatprep.mubr.bf16.mxu0 0
      %797 = vmatmul.mubr.bf16.gmra.mrb[0].mxu0 %v753
      %v798 = vpop.f32.mrb[0].mxu0
      %v799 = vadd.f32 0.0, %v798
      %v800 = vpop.f32.mrb[0].mxu0
      %v801 = vpop.f32.mrb[0].mxu0
      %v802 = vadd.f32 0.0, %v801
      %v803 = vpop.f32.mrb[0].mxu0
      %804 = vmatprep.mubr.bf16.mxu0 0
      %805 = vmatmul.mubr.bf16.gmra.mrb[0].mxu0 %v756
      %v806 = vpop.f32.mrb[0].mxu0
      %v807 = vadd.f32 0.0, %v806
      %v808 = vpop.f32.mrb[0].mxu0
      %v809 = vpop.f32.mrb[0].mxu0
      %v810 = vpop.f32.mrb[0].mxu0
      %811 = vdwg.mxu0
      %v812 = vmul.f32 %v799, 0.35355338
      %v813 = vmul.f32 %v802, 0.35355338
      %v814 = vmul.f32 %v807, 0.35355338
      %v815 = vsel %vm197, %v812, -inf
      %816 = vmax.xlane.f32.xlu0 %v815
      %v817 = vpop.xlane.xlu0 %816
      %v818 = vsel %vm197, %v813, -inf
      %819 = vmax.xlane.f32.xlu0 %v818
      %v820 = vpop.xlane.xlu0 %819
      %v821 = vsel %vm204, %v814, -inf
      %822 = vmax.xlane.f32.xlu0 %v821
      %v823 = vpop.xlane.xlu0 %822
      %v824 = vsub.f32 %v812, %v817
      %v825 = vsub.f32 %v813, %v820
      %v826 = vsub.f32 %v814, %v823
      %v827 = vmul.f32 %v824, 1.442695
      %v828 = vpow.pop %v827
      %v829 = vmul.f32 %v825, 1.442695
      %v830 = vpow.pop %v829
      %v831 = vmul.f32 %v826, 1.442695
      %v832 = vpow.pop %v831
      %v833 = vsel %vm197, %v828, 0.0
      %834 = vadd.xlane.f32.xlu0 %v833
      %v835 = vpop.xlane.xlu0 %834
      %v836 = vsel %vm197, %v830, 0.0
      %837 = vadd.xlane.f32.xlu0 %v836
      %v838 = vpop.xlane.xlu0 %837
      %v839 = vsel %vm204, %v832, 0.0
      %840 = vadd.xlane.f32.xlu0 %v839
      %v841 = vpop.xlane.xlu0 %840
      %v842 = vpack.c.bf16 %v830, %v828
      %v843 = vpack.c.bf16 %v832, %v832
      %844 = vrot.lane.b32.xlu0 %v742, 40
      %v845 = vpop.permute.xlu0 %844
      %846 = vrot.lane.b32.xlu0 %v743, 40
      %v847 = vpop.permute.xlu0 %846
      %v850 = vsel %vm197, %v842, 0
      %v853 = vsel %vm197, %v843, 0
      %v856 = vand.u32 %v847, %v241
      %858 = vmatprep.subr.bf16.mxu0 0
      %859 = vmatpush1.bf16.msra.mxu0 %v845
      %860 = vmatprep.subr.bf16.mxu0 0
      %861 = vmatpush1.bf16.msra.mxu0 %v856
      %862 = vmatprep.subr.bf16.mxu0 0
      %863 = vmatpush1.bf16.msra.mxu0 0
      %864 = vmatprep.subr.bf16.mxu0 0
      %865 = vmatpush1.bf16.msra.mxu0 0
      %866 = vmatprep.subr.bf16.mxu0 0
      %867 = vmatpush1.bf16.msra.mxu0 0
      %868 = vmatprep.subr.bf16.mxu0 0
      %869 = vmatpush1.bf16.msra.mxu0 0
      %870 = vmatprep.subr.bf16.mxu0 0
      %871 = vmatpush1.bf16.msra.mxu0 0
      %872 = vmatprep.subr.bf16.mxu0 0
      %873 = vmatpush1.bf16.msra.mxu0 0
      %874 = vmatprep.subr.bf16.mxu0 0
      %875 = vmatpush1.bf16.msra.mxu0 0
      %876 = vmatprep.subr.bf16.mxu0 0
      %877 = vmatpush1.bf16.msra.mxu0 0
      %878 = vmatprep.subr.bf16.mxu0 0
      %879 = vmatpush1.bf16.msra.mxu0 0
      %880 = vmatprep.subr.bf16.mxu0 0
      %881 = vmatpush1.bf16.msra.mxu0 0
      %882 = vmatprep.subr.bf16.mxu0 0
      %883 = vmatpush1.bf16.msra.mxu0 0
      %884 = vmatprep.subr.bf16.mxu0 0
      %885 = vmatpush1.bf16.msra.mxu0 0
      %886 = vmatprep.subr.bf16.mxu0 0
      %887 = vmatpush1.bf16.msra.mxu0 0
      %888 = vmatprep.subr.bf16.mxu0 0
      %889 = vmatpush1.bf16.msra.mxu0 0
      %890 = vmatprep.mubr.bf16.mxu0 0
      %891 = vmatmul.mubr.bf16.gmra.mrb[0].mxu0 %v850
      %v892 = vpop.f32.mrb[0].mxu0
      %v893 = vadd.f32 0.0, %v892
      %v894 = vpop.f32.mrb[0].mxu0
      %v895 = vpop.f32.mrb[0].mxu0
      %v896 = vadd.f32 0.0, %v895
      %v897 = vpop.f32.mrb[0].mxu0
      %898 = vmatprep.mubr.bf16.mxu0 0
      %899 = vmatmul.mubr.bf16.gmra.mrb[0].mxu0 %v853
      %v900 = vpop.f32.mrb[0].mxu0
      %v901 = vadd.f32 0.0, %v900
      %v902 = vpop.f32.mrb[0].mxu0
      %v903 = vpop.f32.mrb[0].mxu0
      %v904 = vpop.f32.mrb[0].mxu0
      %905 = vdwg.mxu0
      %v906 = vrcp.pop %v835
      %v907 = vrcp.pop %v838
      %v908 = vrcp.pop %v841
      %v909 = vmul.f32 %v893, %v906
      %v910 = vmul.f32 %v896, %v907
      %v911 = vmul.f32 %v901, %v908
      %v912 = vpack.c.bf16 %v910, %v909
      %v913 = vpack.c.bf16 %v911, %v911
      %v916 = vunpack.c.l.b16 %v912
      %v917 = vunpack.c.h.b16 %v912
      %v918 = vunpack.c.l.b16 %v913
      %v919 = vpack.c.b16 %v916, %v916
      %v920 = vpack.c.b16 %v917, %v917
      %v921 = vpack.c.b16 %v918, %v918
      %922 = vrot.lane.b32.xlu0 %v919, 24
      %v923 = vpop.permute.xlu0 %922
      %924 = vrot.lane.b32.xlu0 %v920, 24
      %v925 = vpop.permute.xlu0 %924
      %926 = vrot.lane.b32.xlu0 %v921, 24
      %v927 = vpop.permute.xlu0 %926
      %vm931 = vcmask 257216
      %932 = vst.msk [vmem:[%s116] sm:$0xf] %vm931, %v923
      %933 = vst.msk [vmem:[%s116 + $0x4] sm:$0xf] %vm931, %v925
      %vm934 = vcmask 254144
      %vm935 = vmand %vm934, %vm316
      %v936 = vld [vmem:[%s116 + $0x8] sm:$0x1]
      %v937 = vsel %vm935, %v927, %v936
      %938 = vst [vmem:[%s116 + $0x8] sm:$0x1] %v937
      %p939 = scmp.lt.s32.totalorder %s12, 1
      %s940 = scalar_select %p939, %s12, 1
      %s941 = smul.addr %s940, 3
      %s942 = smul.addr %s941, 4
      %s943 = scalar_lea.vmem %s1, %s942
      // Predicated region
      $region25: #{transformer_forward.27} parent=23 // pred_check
        %p944 = pneg %p56
      $region26: #{transformer_forward.27} parent=23 // pred_check_branch
        %946 = sbr.rel (%p944) target = $region28
      $region27: #{transformer_forward.27} parent=23 // pred_region
        _
      $region28: #{transformer_forward.27} parent=23 // pred_fallthru
        _
    $region24: #{transformer_forward.27} parent=5 // pred_fallthru
      _
    %p947 = scmp.le.s32.totalorder 2, %s7
    // Predicated region
    $region29: #{transformer_forward.27} parent=5 // pred_check
      %p948 = pneg %p947
    $region30: #{transformer_forward.27} parent=5 // pred_check_branch
      %950 = sbr.rel (%p948) target = $region32
    $region31: #{transformer_forward.27} parent=5 // pred_region
      %s951 = ssub.s32 %s7, 2
      // Predicated region
      $region33: #{transformer_forward.27} parent=31 // pred_check
        %p952 = pneg %p62
      $region34: #{transformer_forward.27} parent=31 // pred_check_branch
        %954 = sbr.rel (%p952) target = $region36
      $region35: #{transformer_forward.27} parent=31 // pred_region
        %p955 = scmp.lt.s32.totalorder %s13, 1
        %s956 = scalar_select %p955, %s13, 1
        %s957 = smul.addr %s956, 3
        %s958 = smul.addr %s957, 4
        %s959 = scalar_lea.vmem %s1, %s958
      $region36: #{transformer_forward.27} parent=31 // pred_fallthru
        _
    $region32: #{transformer_forward.27} parent=5 // pred_fallthru
      _
  $region6: #{transformer_forward.27} parent=0 // loop_footer
    %s11 = sadd.s32 1, %s7
  $region7: #{transformer_forward.27} parent=0 // loop_footer_branch
    %6 = sbr.rel target = $region3
  $region8: #{transformer_forward.27} parent=0 // loop_exit
    _

// kernel: transformer_forward.29
$region0: #{transformer_forward.29}
  #allocation0 [shape = 'u32[]', space=smem, size = 0x4, offset = 0x4, fixed_abs, tag = 'smem constant byte address 0x4 - core index']
  #allocation1 [shape = 'u32[144,128]{1,0:T(1,128)}', space=vmem, size = 0x12000, scoped, tag = 'internal scratch']
  #allocation2 [shape = 'f32[34,64]{1,0:T(8,128)}', space=vmem, size = 0x5000, scoped, tag = 'scratch operand']
  %s0 = inlined_call_operand.vmem [shape: bf16[34,32], index: 0, kind: input, shape index: {}]
  %s1 = inlined_call_operand.vmem [shape: bf16[32,64], index: 1, kind: input, shape index: {}]
  %s2 = inlined_call_operand.vmem [shape: f32[1,64], index: 2, kind: input, shape index: {}]
  %s3 = inlined_call_operand.vmem [shape: bf16[34,64], index: 3, kind: output, shape index: {}]
  %s4 = sld [smem:[#allocation0]]
  $region30: #{transformer_forward.29} parent=0
    _
  %s6 = ssub.s32 1, %s4
  %s7 = scalar_select 0, %s6, %s4
  // Predicated region
  $region2: #{transformer_forward.29} parent=0 // pred_check
    _
  $region3: #{transformer_forward.29} parent=0 // pred_check_branch
    %9 = sbr.rel (0) target = $region5
  $region4: #{transformer_forward.29} parent=0 // pred_region
    _
  $region5: #{transformer_forward.29} parent=0 // pred_fallthru
    _
  // Predicated region
  $region6: #{transformer_forward.29} parent=0 // pred_check
    _
  $region7: #{transformer_forward.29} parent=0 // pred_check_branch
    %11 = sbr.rel (0) target = $region9
  $region8: #{transformer_forward.29} parent=0 // pred_region
    _
  $region9: #{transformer_forward.29} parent=0 // pred_fallthru
    _
  // Predicated region
  $region10: #{transformer_forward.29} parent=0 // pred_check
    _
  $region11: #{transformer_forward.29} parent=0 // pred_check_branch
    %13 = sbr.rel (0) target = $region13
  $region12: #{transformer_forward.29} parent=0 // pred_region
    _
  $region13: #{transformer_forward.29} parent=0 // pred_fallthru
    _
  %p15 = scmp.eq.s32.totalorder 0, 0
  // Predicated region
  $region14: #{transformer_forward.29} parent=0 // pred_check
    %p16 = pneg %p15
  $region15: #{transformer_forward.29} parent=0 // pred_check_branch
    %18 = sbr.rel (%p16) target = $region17
  $region16: #{transformer_forward.29} parent=0 // pred_region
    %vm19 = vcmask 523264
    %20 = vst.msk [vmem:[#allocation2] sm:$0xff] %vm19, 0.0
    %21 = vst.msk [vmem:[#allocation2 + $0x8] sm:$0xff] %vm19, 0.0
    %22 = vst.msk [vmem:[#allocation2 + $0x10] sm:$0xff] %vm19, 0.0
    %23 = vst.msk [vmem:[#allocation2 + $0x18] sm:$0xff] %vm19, 0.0
    %vm24 = vcmask 517120
    %25 = vst.msk [vmem:[#allocation2 + $0x20] sm:$0x3] %vm24, 0.0
  $region17: #{transformer_forward.29} parent=0 // pred_fallthru
    _
  %v26 = vld [vmem:[#allocation2] sm:$0xff]
  %v27 = vld [vmem:[#allocation2 + $0x8] sm:$0xff]
  %v28 = vld [vmem:[#allocation2 + $0x10] sm:$0xff]
  %v29 = vld [vmem:[#allocation2 + $0x18] sm:$0xff]
  %v30 = vld [vmem:[#allocation2 + $0x20] sm:$0x3]
  %v31 = vld [vmem:[%s0] sm:$0xf]
  %v32 = vld [vmem:[%s0 + $0x4] sm:$0xf]
  %v33 = vld [vmem:[%s0 + $0x8] sm:$0xf]
  %v34 = vld [vmem:[%s0 + $0xc] sm:$0xf]
  %v35 = vld [vmem:[%s0 + $0x10] sm:$0x1]
  %v36 = vld [vmem:[%s1] sm:$0xf]
  %v37 = vld [vmem:[%s1 + $0x4] sm:$0xf]
  %v38 = vld [vmem:[%s1 + $0x8] sm:$0xf]
  %v39 = vld [vmem:[%s1 + $0xc] sm:$0xf]
  %v45 = vunpack.c.l.b16 %v31
  %v46 = vunpack.c.l.b16 %v32
  %v47 = vunpack.c.l.b16 %v33
  %v48 = vunpack.c.l.b16 %v34
  %v49 = vunpack.c.l.b16 %v35
  %v50 = vpack.c.b16 %v46, %v45
  %v51 = vpack.c.b16 %v48, %v47
  %v52 = vpack.c.b16 %v49, %v49
  %v57 = vunpack.c.l.b16 %v36
  %v58 = vunpack.c.l.b16 %v37
  %v59 = vunpack.c.l.b16 %v38
  %v60 = vunpack.c.l.b16 %v39
  %v61 = vpack.c.b16 %v58, %v57
  %v62 = vpack.c.b16 %v60, %v59
  %vm65 = vcmask 261120
  %v67 = vsel %vm65, %v50, 0
  %v70 = vsel %vm65, %v51, 0
  %v73 = vsel %vm65, %v52, 0
  %75 = vmatprep.subr.bf16.mxu0 0
  %76 = vmatpush1.bf16.msra.mxu0 %v61
  %77 = vmatprep.subr.bf16.mxu0 0
  %78 = vmatpush1.bf16.msra.mxu0 %v62
  %79 = vmatprep.subr.bf16.mxu0 0
  %80 = vmatpush1.bf16.msra.mxu0 0
  %81 = vmatprep.subr.bf16.mxu0 0
  %82 = vmatpush1.bf16.msra.mxu0 0
  %83 = vmatprep.subr.bf16.mxu0 0
  %84 = vmatpush1.bf16.msra.mxu0 0
  %85 = vmatprep.subr.bf16.mxu0 0
  %86 = vmatpush1.bf16.msra.mxu0 0
  %87 = vmatprep.subr.bf16.mxu0 0
  %88 = vmatpush1.bf16.msra.mxu0 0
  %89 = vmatprep.subr.bf16.mxu0 0
  %90 = vmatpush1.bf16.msra.mxu0 0
  %91 = vmatprep.subr.bf16.mxu0 0
  %92 = vmatpush1.bf16.msra.mxu0 0
  %93 = vmatprep.subr.bf16.mxu0 0
  %94 = vmatpush1.bf16.msra.mxu0 0
  %95 = vmatprep.subr.bf16.mxu0 0
  %96 = vmatpush1.bf16.msra.mxu0 0
  %97 = vmatprep.subr.bf16.mxu0 0
  %98 = vmatpush1.bf16.msra.mxu0 0
  %99 = vmatprep.subr.bf16.mxu0 0
  %100 = vmatpush1.bf16.msra.mxu0 0
  %101 = vmatprep.subr.bf16.mxu0 0
  %102 = vmatpush1.bf16.msra.mxu0 0
  %103 = vmatprep.subr.bf16.mxu0 0
  %104 = vmatpush1.bf16.msra.mxu0 0
  %105 = vmatprep.subr.bf16.mxu0 0
  %106 = vmatpush1.bf16.msra.mxu0 0
  %107 = vmatprep.mubr.bf16.mxu0 0
  %108 = vmatmul.mubr.bf16.gmra.mrb[0].mxu0 %v67
  %v109 = vpop.f32.mrb[0].mxu0
  %v110 = vadd.f32 0.0, %v109
  %v111 = vpop.f32.mrb[0].mxu0
  %v112 = vpop.f32.mrb[0].mxu0
  %v113 = vadd.f32 0.0, %v112
  %v114 = vpop.f32.mrb[0].mxu0
  %115 = vmatprep.mubr.bf16.mxu0 0
  %116 = vmatmul.mubr.bf16.gmra.mrb[0].mxu0 %v70
  %v117 = vpop.f32.mrb[0].mxu0
  %v118 = vadd.f32 0.0, %v117
  %v119 = vpop.f32.mrb[0].mxu0
  %v120 = vpop.f32.mrb[0].mxu0
  %v121 = vadd.f32 0.0, %v120
  %v122 = vpop.f32.mrb[0].mxu0
  %123 = vmatprep.mubr.bf16.mxu0 0
  %124 = vmatmul.mubr.bf16.gmra.mrb[0].mxu0 %v73
  %v125 = vpop.f32.mrb[0].mxu0
  %v126 = vadd.f32 0.0, %v125
  %v127 = vpop.f32.mrb[0].mxu0
  %v128 = vpop.f32.mrb[0].mxu0
  %v129 = vpop.f32.mrb[0].mxu0
  %130 = vdwg.mxu0
  %v131 = vadd.f32 %v26, %v110
  %v132 = vadd.f32 %v27, %v113
  %v133 = vadd.f32 %v28, %v118
  %v134 = vadd.f32 %v29, %v121
  %v135 = vadd.f32 %v30, %v126
  %vm136 = vcmask 523264
  %137 = vst.msk [vmem:[#allocation2] sm:$0xff] %vm136, %v131
  %138 = vst.msk [vmem:[#allocation2 + $0x8] sm:$0xff] %vm136, %v132
  %139 = vst.msk [vmem:[#allocation2 + $0x10] sm:$0xff] %vm136, %v133
  %140 = vst.msk [vmem:[#allocation2 + $0x18] sm:$0xff] %vm136, %v134
  %vm141 = vcmask 517120
  %142 = vst.msk [vmem:[#allocation2 + $0x20] sm:$0x3] %vm141, %v135
  // Predicated region
  $region18: #{transformer_forward.29} parent=0 // pred_check
    %p143 = pneg %p15
  $region19: #{transformer_forward.29} parent=0 // pred_check_branch
    %145 = sbr.rel (%p143) target = $region21
  $region20: #{transformer_forward.29} parent=0 // pred_region
    %v146 = vld [vmem:[#allocation2] sm:$0xff]
    %v147 = vld [vmem:[#allocation2 + $0x8] sm:$0xff]
    %v148 = vld [vmem:[#allocation2 + $0x10] sm:$0xff]
    %v149 = vld [vmem:[#allocation2 + $0x18] sm:$0xff]
    %v150 = vld [vmem:[#allocation2 + $0x20] sm:$0x3]
    %v151 = vld [vmem:[%s2] sm:$0x1]
    %v153 = vlaneseq
    %v154 = vshrl.u32 %v153, 7
    %v155 = vsub.s32 0, %v154
    %v156 = vrot.slane %v151, %v155
    %v158 = vadd.f32 %v146, %v156
    %v159 = vadd.f32 %v147, %v156
    %v160 = vadd.f32 %v148, %v156
    %v161 = vadd.f32 %v149, %v156
    %v162 = vadd.f32 %v150, %v156
    %v163 = vmul.f32 %v158, %v158
    %v164 = vmul.f32 %v159, %v159
    %v165 = vmul.f32 %v160, %v160
    %v166 = vmul.f32 %v161, %v161
    %v167 = vmul.f32 %v162, %v162
    %v168 = vmul.f32 %v158, %v163
    %v169 = vmul.f32 %v159, %v164
    %v170 = vmul.f32 %v160, %v165
    %v171 = vmul.f32 %v161, %v166
    %v172 = vmul.f32 %v162, %v167
    %v173 = vmul.f32 %v168, 0.044715
    %v174 = vmul.f32 %v169, 0.044715
    %v175 = vmul.f32 %v170, 0.044715
    %v176 = vmul.f32 %v171, 0.044715
    %v177 = vmul.f32 %v172, 0.044715
    %v178 = vadd.f32 %v158, %v173
    %v179 = vadd.f32 %v159, %v174
    %v180 = vadd.f32 %v160, %v175
    %v181 = vadd.f32 %v161, %v176
    %v182 = vadd.f32 %v162, %v177
    %v183 = vmul.f32 %v178, 0.7978846
    %v184 = vmul.f32 %v179, 0.7978846
    %v185 = vmul.f32 %v180, 0.7978846
    %v186 = vmul.f32 %v181, 0.7978846
    %v187 = vmul.f32 %v182, 0.7978846
    %v188 = vtanh.pop %v183
    %v189 = vtanh.pop %v184
    %v190 = vtanh.pop %v185
    %v191 = vtanh.pop %v186
    %v192 = vtanh.pop %v187
    %v193 = vadd.f32 %v188, 1.0
    %v194 = vadd.f32 %v189, 1.0
    %v195 = vadd.f32 %v190, 1.0
    %v196 = vadd.f32 %v191, 1.0
    %v197 = vadd.f32 %v192, 1.0
    %v198 = vmul.f32 %v193, 0.5
    %v199 = vmul.f32 %v194, 0.5
    %v200 = vmul.f32 %v195, 0.5
    %v201 = vmul.f32 %v196, 0.5
    %v202 = vmul.f32 %v197, 0.5
    %v203 = vmul.f32 %v158, %v198
    %v204 = vmul.f32 %v159, %v199
    %v205 = vmul.f32 %v160, %v200
    %v206 = vmul.f32 %v161, %v201
    %v207 = vmul.f32 %v162, %v202
    %v208 = vpack.c.bf16 %v204, %v203
    %v209 = vpack.c.bf16 %v206, %v205
    %v210 = vpack.c.bf16 %v207, %v207
    %v214 = vunpack.c.l.b16 %v208
    %v215 = vunpack.c.h.b16 %v208
    %v216 = vunpack.c.l.b16 %v209
    %v217 = vunpack.c.h.b16 %v209
    %v218 = vunpack.c.l.b16 %v210
    %v219 = vpack.c.b16 %v214, %v214
    %v220 = vpack.c.b16 %v215, %v215
    %v221 = vpack.c.b16 %v216, %v216
    %v222 = vpack.c.b16 %v217, %v217
    %v223 = vpack.c.b16 %v218, %v218
    %vm229 = vcmask 519168
    %230 = vst.msk [vmem:[%s3] sm:$0xf] %vm229, %v219
    %231 = vst.msk [vmem:[%s3 + $0x4] sm:$0xf] %vm229, %v220
    %232 = vst.msk [vmem:[%s3 + $0x8] sm:$0xf] %vm229, %v221
    %233 = vst.msk [vmem:[%s3 + $0xc] sm:$0xf] %vm229, %v222
    %vm234 = vcmask 516096
    %235 = vst.msk [vmem:[%s3 + $0x10] sm:$0x1] %vm234, %v223
  $region21: #{transformer_forward.29} parent=0 // pred_fallthru
    _
  // Predicated region
  $region22: #{transformer_forward.29} parent=0 // pred_check
    _
  $region23: #{transformer_forward.29} parent=0 // pred_check_branch
    %237 = sbr.rel (0) target = $region25
  $region24: #{transformer_forward.29} parent=0 // pred_region
    _
  $region25: #{transformer_forward.29} parent=0 // pred_fallthru
    _
  // Predicated region
  $region26: #{transformer_forward.29} parent=0 // pred_check
    _
  $region27: #{transformer_forward.29} parent=0 // pred_check_branch
    %239 = sbr.rel (0) target = $region29
  $region28: #{transformer_forward.29} parent=0 // pred_region
    _
  $region29: #{transformer_forward.29} parent=0 // pred_fallthru
    _

// kernel: transformer_forward.28
$region0: #{transformer_forward.28}
  #allocation0 [shape = 'u32[]', space=smem, size = 0x4, offset = 0x4, fixed_abs, tag = 'smem constant byte address 0x4 - core index']
  #allocation1 [shape = 'u32[144,128]{1,0:T(1,128)}', space=vmem, size = 0x12000, scoped, tag = 'internal scratch']
  #allocation2 [shape = 'f32[34,32]{1,0:T(8,128)}', space=vmem, size = 0x5000, scoped, tag = 'scratch operand']
  %s0 = inlined_call_operand.vmem [shape: bf16[34,32], index: 0, kind: input, shape index: {}]
  %s1 = inlined_call_operand.vmem [shape: bf16[32,32], index: 1, kind: input, shape index: {}]
  %s2 = inlined_call_operand.vmem [shape: f32[1,32], index: 2, kind: input, shape index: {}]
  %s3 = inlined_call_operand.vmem [shape: f32[34,32], index: 3, kind: input, shape index: {}]
  %s4 = inlined_call_operand.vmem [shape: f32[1,32], index: 4, kind: input, shape index: {}]
  %s5 = inlined_call_operand.vmem [shape: f32[1,32], index: 5, kind: input, shape index: {}]
  %s6 = inlined_call_operand.vmem [shape: f32[34,32], index: 6, kind: output, shape index: {0}]
  %s7 = inlined_call_operand.vmem [shape: bf16[34,32], index: 7, kind: output, shape index: {1}]
  %8 = xla_tuple %s6, %s7
  %s9 = sld [smem:[#allocation0]]
  $region50: #{transformer_forward.28} parent=0
    _
  %s11 = ssub.s32 1, %s9
  %s12 = scalar_select 0, %s11, %s9
  // Predicated region
  $region2: #{transformer_forward.28} parent=0 // pred_check
    _
  $region3: #{transformer_forward.28} parent=0 // pred_check_branch
    %14 = sbr.rel (0) target = $region5
  $region4: #{transformer_forward.28} parent=0 // pred_region
    _
  $region5: #{transformer_forward.28} parent=0 // pred_fallthru
    _
  // Predicated region
  $region6: #{transformer_forward.28} parent=0 // pred_check
    _
  $region7: #{transformer_forward.28} parent=0 // pred_check_branch
    %16 = sbr.rel (0) target = $region9
  $region8: #{transformer_forward.28} parent=0 // pred_region
    _
  $region9: #{transformer_forward.28} parent=0 // pred_fallthru
    _
  // Predicated region
  $region10: #{transformer_forward.28} parent=0 // pred_check
    _
  $region11: #{transformer_forward.28} parent=0 // pred_check_branch
    %18 = sbr.rel (0) target = $region13
  $region12: #{transformer_forward.28} parent=0 // pred_region
    _
  $region13: #{transformer_forward.28} parent=0 // pred_fallthru
    _
  // Predicated region
  $region14: #{transformer_forward.28} parent=0 // pred_check
    _
  $region15: #{transformer_forward.28} parent=0 // pred_check_branch
    %20 = sbr.rel (0) target = $region17
  $region16: #{transformer_forward.28} parent=0 // pred_region
    _
  $region17: #{transformer_forward.28} parent=0 // pred_fallthru
    _
  // Predicated region
  $region18: #{transformer_forward.28} parent=0 // pred_check
    _
  $region19: #{transformer_forward.28} parent=0 // pred_check_branch
    %22 = sbr.rel (0) target = $region21
  $region20: #{transformer_forward.28} parent=0 // pred_region
    _
  $region21: #{transformer_forward.28} parent=0 // pred_fallthru
    _
  // Predicated region
  $region22: #{transformer_forward.28} parent=0 // pred_check
    _
  $region23: #{transformer_forward.28} parent=0 // pred_check_branch
    %24 = sbr.rel (0) target = $region25
  $region24: #{transformer_forward.28} parent=0 // pred_region
    _
  $region25: #{transformer_forward.28} parent=0 // pred_fallthru
    _
  %p26 = scmp.eq.s32.totalorder 0, 0
  // Predicated region
  $region26: #{transformer_forward.28} parent=0 // pred_check
    %p27 = pneg %p26
  $region27: #{transformer_forward.28} parent=0 // pred_check_branch
    %29 = sbr.rel (%p27) target = $region29
  $region28: #{transformer_forward.28} parent=0 // pred_region
    %vm30 = vcmask 261120
    %31 = vst.msk [vmem:[#allocation2] sm:$0xff] %vm30, 0.0
    %32 = vst.msk [vmem:[#allocation2 + $0x8] sm:$0xff] %vm30, 0.0
    %33 = vst.msk [vmem:[#allocation2 + $0x10] sm:$0xff] %vm30, 0.0
    %34 = vst.msk [vmem:[#allocation2 + $0x18] sm:$0xff] %vm30, 0.0
    %vm35 = vcmask 254976
    %36 = vst.msk [vmem:[#allocation2 + $0x20] sm:$0x3] %vm35, 0.0
  $region29: #{transformer_forward.28} parent=0 // pred_fallthru
    _
  %v37 = vld [vmem:[#allocation2] sm:$0xff]
  %v38 = vld [vmem:[#allocation2 + $0x8] sm:$0xff]
  %v39 = vld [vmem:[#allocation2 + $0x10] sm:$0xff]
  %v40 = vld [vmem:[#allocation2 + $0x18] sm:$0xff]
  %v41 = vld [vmem:[#allocation2 + $0x20] sm:$0x3]
  %v42 = vld [vmem:[%s0] sm:$0xf]
  %v43 = vld [vmem:[%s0 + $0x4] sm:$0xf]
  %v44 = vld [vmem:[%s0 + $0x8] sm:$0xf]
  %v45 = vld [vmem:[%s0 + $0xc] sm:$0xf]
  %v46 = vld [vmem:[%s0 + $0x10] sm:$0x1]
  %v47 = vld [vmem:[%s1] sm:$0xf]
  %v48 = vld [vmem:[%s1 + $0x4] sm:$0xf]
  %v49 = vld [vmem:[%s1 + $0x8] sm:$0xf]
  %v50 = vld [vmem:[%s1 + $0xc] sm:$0xf]
  %v56 = vunpack.c.l.b16 %v42
  %v57 = vunpack.c.l.b16 %v43
  %v58 = vunpack.c.l.b16 %v44
  %v59 = vunpack.c.l.b16 %v45
  %v60 = vunpack.c.l.b16 %v46
  %v61 = vpack.c.b16 %v57, %v56
  %v62 = vpack.c.b16 %v59, %v58
  %v63 = vpack.c.b16 %v60, %v60
  %v68 = vunpack.c.l.b16 %v47
  %v69 = vunpack.c.l.b16 %v48
  %v70 = vunpack.c.l.b16 %v49
  %v71 = vunpack.c.l.b16 %v50
  %v72 = vpack.c.b16 %v69, %v68
  %v73 = vpack.c.b16 %v71, %v70
  %vm76 = vcmask 261120
  %v78 = vsel %vm76, %v61, 0
  %v81 = vsel %vm76, %v62, 0
  %v84 = vsel %vm76, %v63, 0
  %86 = vmatprep.subr.bf16.mxu0 0
  %87 = vmatpush1.bf16.msra.mxu0 %v72
  %88 = vmatprep.subr.bf16.mxu0 0
  %89 = vmatpush1.bf16.msra.mxu0 %v73
  %90 = vmatprep.subr.bf16.mxu0 0
  %91 = vmatpush1.bf16.msra.mxu0 0
  %92 = vmatprep.subr.bf16.mxu0 0
  %93 = vmatpush1.bf16.msra.mxu0 0
  %94 = vmatprep.subr.bf16.mxu0 0
  %95 = vmatpush1.bf16.msra.mxu0 0
  %96 = vmatprep.subr.bf16.mxu0 0
  %97 = vmatpush1.bf16.msra.mxu0 0
  %98 = vmatprep.subr.bf16.mxu0 0
  %99 = vmatpush1.bf16.msra.mxu0 0
  %100 = vmatprep.subr.bf16.mxu0 0
  %101 = vmatpush1.bf16.msra.mxu0 0
  %102 = vmatprep.subr.bf16.mxu0 0
  %103 = vmatpush1.bf16.msra.mxu0 0
  %104 = vmatprep.subr.bf16.mxu0 0
  %105 = vmatpush1.bf16.msra.mxu0 0
  %106 = vmatprep.subr.bf16.mxu0 0
  %107 = vmatpush1.bf16.msra.mxu0 0
  %108 = vmatprep.subr.bf16.mxu0 0
  %109 = vmatpush1.bf16.msra.mxu0 0
  %110 = vmatprep.subr.bf16.mxu0 0
  %111 = vmatpush1.bf16.msra.mxu0 0
  %112 = vmatprep.subr.bf16.mxu0 0
  %113 = vmatpush1.bf16.msra.mxu0 0
  %114 = vmatprep.subr.bf16.mxu0 0
  %115 = vmatpush1.bf16.msra.mxu0 0
  %116 = vmatprep.subr.bf16.mxu0 0
  %117 = vmatpush1.bf16.msra.mxu0 0
  %118 = vmatprep.mubr.bf16.mxu0 0
  %119 = vmatmul.mubr.bf16.gmra.mrb[0].mxu0 %v78
  %v120 = vpop.f32.mrb[0].mxu0
  %v121 = vadd.f32 0.0, %v120
  %v122 = vpop.f32.mrb[0].mxu0
  %v123 = vpop.f32.mrb[0].mxu0
  %v124 = vadd.f32 0.0, %v123
  %v125 = vpop.f32.mrb[0].mxu0
  %126 = vmatprep.mubr.bf16.mxu0 0
  %127 = vmatmul.mubr.bf16.gmra.mrb[0].mxu0 %v81
  %v128 = vpop.f32.mrb[0].mxu0
  %v129 = vadd.f32 0.0, %v128
  %v130 = vpop.f32.mrb[0].mxu0
  %v131 = vpop.f32.mrb[0].mxu0
  %v132 = vadd.f32 0.0, %v131
  %v133 = vpop.f32.mrb[0].mxu0
  %134 = vmatprep.mubr.bf16.mxu0 0
  %135 = vmatmul.mubr.bf16.gmra.mrb[0].mxu0 %v84
  %v136 = vpop.f32.mrb[0].mxu0
  %v137 = vadd.f32 0.0, %v136
  %v138 = vpop.f32.mrb[0].mxu0
  %v139 = vpop.f32.mrb[0].mxu0
  %v140 = vpop.f32.mrb[0].mxu0
  %141 = vdwg.mxu0
  %v142 = vadd.f32 %v37, %v121
  %v143 = vadd.f32 %v38, %v124
  %v144 = vadd.f32 %v39, %v129
  %v145 = vadd.f32 %v40, %v132
  %v146 = vadd.f32 %v41, %v137
  %147 = vst.msk [vmem:[#allocation2] sm:$0xff] %vm76, %v142
  %148 = vst.msk [vmem:[#allocation2 + $0x8] sm:$0xff] %vm76, %v143
  %149 = vst.msk [vmem:[#allocation2 + $0x10] sm:$0xff] %vm76, %v144
  %150 = vst.msk [vmem:[#allocation2 + $0x18] sm:$0xff] %vm76, %v145
  %vm151 = vcmask 254976
  %152 = vst.msk [vmem:[#allocation2 + $0x20] sm:$0x3] %vm151, %v146
  // Predicated region
  $region30: #{transformer_forward.28} parent=0 // pred_check
    %p153 = pneg %p26
  $region31: #{transformer_forward.28} parent=0 // pred_check_branch
    %155 = sbr.rel (%p153) target = $region33
  $region32: #{transformer_forward.28} parent=0 // pred_region
    %v156 = vld [vmem:[#allocation2] sm:$0xff]
    %v157 = vld [vmem:[#allocation2 + $0x8] sm:$0xff]
    %v158 = vld [vmem:[#allocation2 + $0x10] sm:$0xff]
    %v159 = vld [vmem:[#allocation2 + $0x18] sm:$0xff]
    %v160 = vld [vmem:[#allocation2 + $0x20] sm:$0x3]
    %v161 = vld [vmem:[%s2] sm:$0x1]
    %v163 = vlaneseq
    %v164 = vshrl.u32 %v163, 7
    %v165 = vsub.s32 0, %v164
    %v166 = vrot.slane %v161, %v165
    %v168 = vadd.f32 %v156, %v166
    %v169 = vadd.f32 %v157, %v166
    %v170 = vadd.f32 %v158, %v166
    %v171 = vadd.f32 %v159, %v166
    %v172 = vadd.f32 %v160, %v166
    %v173 = vld [vmem:[%s3] sm:$0xff]
    %v174 = vld [vmem:[%s3 + $0x8] sm:$0xff]
    %v175 = vld [vmem:[%s3 + $0x10] sm:$0xff]
    %v176 = vld [vmem:[%s3 + $0x18] sm:$0xff]
    %v177 = vld [vmem:[%s3 + $0x20] sm:$0x3]
    %v178 = vadd.f32 %v168, %v173
    %v179 = vadd.f32 %v169, %v174
    %v180 = vadd.f32 %v170, %v175
    %v181 = vadd.f32 %v171, %v176
    %v182 = vadd.f32 %v172, %v177
    %183 = vst.msk [vmem:[%s6] sm:$0xff] %vm76, %v178
    %184 = vst.msk [vmem:[%s6 + $0x8] sm:$0xff] %vm76, %v179
    %185 = vst.msk [vmem:[%s6 + $0x10] sm:$0xff] %vm76, %v180
    %186 = vst.msk [vmem:[%s6 + $0x18] sm:$0xff] %vm76, %v181
    %187 = vst.msk [vmem:[%s6 + $0x20] sm:$0x3] %vm151, %v182
    %v188 = vsel %vm76, %v178, 0.0
    %189 = vadd.xlane.f32.xlu0 %v188
    %v190 = vpop.xlane.xlu0 %189
    %v191 = vsel %vm76, %v179, 0.0
    %192 = vadd.xlane.f32.xlu0 %v191
    %v193 = vpop.xlane.xlu0 %192
    %v194 = vsel %vm76, %v180, 0.0
    %195 = vadd.xlane.f32.xlu0 %v194
    %v196 = vpop.xlane.xlu0 %195
    %v197 = vsel %vm76, %v181, 0.0
    %198 = vadd.xlane.f32.xlu0 %v197
    %v199 = vpop.xlane.xlu0 %198
    %v200 = vsel %vm151, %v182, 0.0
    %201 = vadd.xlane.f32.xlu0 %v200
    %v202 = vpop.xlane.xlu0 %201
    %v203 = vrcp.pop 32.0
    %v204 = vmul.f32 %v190, %v203
    %v205 = vmul.f32 %v193, %v203
    %v206 = vmul.f32 %v196, %v203
    %v207 = vmul.f32 %v199, %v203
    %v208 = vmul.f32 %v202, %v203
    %v209 = vsub.f32 %v178, %v204
    %v210 = vsub.f32 %v179, %v205
    %v211 = vsub.f32 %v180, %v206
    %v212 = vsub.f32 %v181, %v207
    %v213 = vsub.f32 %v182, %v208
    %v214 = vmul.f32 %v209, %v209
    %v215 = vmul.f32 %v210, %v210
    %v216 = vmul.f32 %v211, %v211
    %v217 = vmul.f32 %v212, %v212
    %v218 = vmul.f32 %v213, %v213
    %v219 = vsel %vm76, %v214, 0.0
    %220 = vadd.xlane.f32.xlu0 %v219
    %v221 = vpop.xlane.xlu0 %220
    %v222 = vsel %vm76, %v215, 0.0
    %223 = vadd.xlane.f32.xlu0 %v222
    %v224 = vpop.xlane.xlu0 %223
    %v225 = vsel %vm76, %v216, 0.0
    %226 = vadd.xlane.f32.xlu0 %v225
    %v227 = vpop.xlane.xlu0 %226
    %v228 = vsel %vm76, %v217, 0.0
    %229 = vadd.xlane.f32.xlu0 %v228
    %v230 = vpop.xlane.xlu0 %229
    %v231 = vsel %vm151, %v218, 0.0
    %232 = vadd.xlane.f32.xlu0 %v231
    %v233 = vpop.xlane.xlu0 %232
    %v234 = vmul.f32 %v221, %v203
    %v235 = vmul.f32 %v224, %v203
    %v236 = vmul.f32 %v227, %v203
    %v237 = vmul.f32 %v230, %v203
    %v238 = vmul.f32 %v233, %v203
    %v239 = vadd.f32 %v234, 1e-05
    %v240 = vadd.f32 %v235, 1e-05
    %v241 = vadd.f32 %v236, 1e-05
    %v242 = vadd.f32 %v237, 1e-05
    %v243 = vadd.f32 %v238, 1e-05
    %v244 = vrsqrt.pop %v239
    %v245 = vrsqrt.pop %v240
    %v246 = vrsqrt.pop %v241
    %v247 = vrsqrt.pop %v242
    %v248 = vrsqrt.pop %v243
    %v249 = vmul.f32 %v209, %v244
    %v250 = vmul.f32 %v210, %v245
    %v251 = vmul.f32 %v211, %v246
    %v252 = vmul.f32 %v212, %v247
    %v253 = vmul.f32 %v213, %v248
    %v254 = vld [vmem:[%s4] sm:$0x1]
    %v256 = vlaneseq
    %v257 = vshrl.u32 %v256, 7
    %v258 = vsub.s32 0, %v257
    %v259 = vrot.slane %v254, %v258
    %v261 = vmul.f32 %v249, %v259
    %v262 = vmul.f32 %v250, %v259
    %v263 = vmul.f32 %v251, %v259
    %v264 = vmul.f32 %v252, %v259
    %v265 = vmul.f32 %v253, %v259
    %v266 = vld [vmem:[%s5] sm:$0x1]
    %v268 = vlaneseq
    %v269 = vshrl.u32 %v268, 7
    %v270 = vsub.s32 0, %v269
    %v271 = vrot.slane %v266, %v270
    %v273 = vadd.f32 %v261, %v271
    %v274 = vadd.f32 %v262, %v271
    %v275 = vadd.f32 %v263, %v271
    %v276 = vadd.f32 %v264, %v271
    %v277 = vadd.f32 %v265, %v271
    %v278 = vpack.c.bf16 %v274, %v273
    %v279 = vpack.c.bf16 %v276, %v275
    %v280 = vpack.c.bf16 %v277, %v277
    %v284 = vunpack.c.l.b16 %v278
    %v285 = vunpack.c.h.b16 %v278
    %v286 = vunpack.c.l.b16 %v279
    %v287 = vunpack.c.h.b16 %v279
    %v288 = vunpack.c.l.b16 %v280
    %v289 = vpack.c.b16 %v284, %v284
    %v290 = vpack.c.b16 %v285, %v285
    %v291 = vpack.c.b16 %v286, %v286
    %v292 = vpack.c.b16 %v287, %v287
    %v293 = vpack.c.b16 %v288, %v288
    %vm299 = vcmask 257024
    %300 = vst.msk [vmem:[%s7] sm:$0xf] %vm299, %v289
    %301 = vst.msk [vmem:[%s7 + $0x4] sm:$0xf] %vm299, %v290
    %302 = vst.msk [vmem:[%s7 + $0x8] sm:$0xf] %vm299, %v291
    %303 = vst.msk [vmem:[%s7 + $0xc] sm:$0xf] %vm299, %v292
    %vm304 = vcmask 253952
    %305 = vst.msk [vmem:[%s7 + $0x10] sm:$0x1] %vm304, %v293
  $region33: #{transformer_forward.28} parent=0 // pred_fallthru
    _
  // Predicated region
  $region34: #{transformer_forward.28} parent=0 // pred_check
    _
  $region35: #{transformer_forward.28} parent=0 // pred_check_branch
    %307 = sbr.rel (0) target = $region37
  $region36: #{transformer_forward.28} parent=0 // pred_region
    _
  $region37: #{transformer_forward.28} parent=0 // pred_fallthru
    _
  // Predicated region
  $region38: #{transformer_forward.28} parent=0 // pred_check
    _
  $region39: #{transformer_forward.28} parent=0 // pred_check_branch
    %309 = sbr.rel (0) target = $region41
  $region40: #{transformer_forward.28} parent=0 // pred_region
    _
  $region41: #{transformer_forward.28} parent=0 // pred_fallthru
    _
  // Predicated region
  $region42: #{transformer_forward.28} parent=0 // pred_check
    _
  $region43: #{transformer_forward.28} parent=0 // pred_check_branch
    %311 = sbr.rel (0) target = $region45
  $region44: #{transformer_forward.28} parent=0 // pred_region
    _
  $region45: #{transformer_forward.28} parent=0 // pred_fallthru
    _
  // Predicated region
  $region46: #{transformer_forward.28} parent=0 // pred_check
    _
  $region47: #{transformer_forward.28} parent=0 // pred_check_branch
    %313 = sbr.rel (0) target = $region49
  $region48: #{transformer_forward.28} parent=0 // pred_region
    _
  $region49: #{transformer_forward.28} parent=0 // pred_fallthru
    _

// kernel: transformer_forward.30
$region0: #{transformer_forward.30}
  #allocation0 [shape = 'u32[]', space=smem, size = 0x4, offset = 0x4, fixed_abs, tag = 'smem constant byte address 0x4 - core index']
  #allocation1 [shape = 'u32[144,128]{1,0:T(1,128)}', space=vmem, size = 0x12000, scoped, tag = 'internal scratch']
  #allocation2 [shape = 'f32[34,32]{1,0:T(8,128)}', space=vmem, size = 0x5000, scoped, tag = 'scratch operand']
  %s0 = inlined_call_operand.vmem [shape: bf16[34,64], index: 0, kind: input, shape index: {}]
  %s1 = inlined_call_operand.vmem [shape: bf16[64,32], index: 1, kind: input, shape index: {}]
  %s2 = inlined_call_operand.vmem [shape: f32[1,32], index: 2, kind: input, shape index: {}]
  %s3 = inlined_call_operand.vmem [shape: f32[34,32], index: 3, kind: input, shape index: {}]
  %s4 = inlined_call_operand.vmem [shape: f32[1,32], index: 4, kind: input, shape index: {}]
  %s5 = inlined_call_operand.vmem [shape: f32[1,32], index: 5, kind: input, shape index: {}]
  %s6 = inlined_call_operand.vmem [shape: f32[34,32], index: 6, kind: output, shape index: {0}]
  %s7 = inlined_call_operand.vmem [shape: bf16[34,32], index: 7, kind: output, shape index: {1}]
  %8 = xla_tuple %s6, %s7
  %s9 = sld [smem:[#allocation0]]
  $region50: #{transformer_forward.30} parent=0
    _
  %s11 = ssub.s32 1, %s9
  %s12 = scalar_select 0, %s11, %s9
  // Predicated region
  $region2: #{transformer_forward.30} parent=0 // pred_check
    _
  $region3: #{transformer_forward.30} parent=0 // pred_check_branch
    %14 = sbr.rel (0) target = $region5
  $region4: #{transformer_forward.30} parent=0 // pred_region
    _
  $region5: #{transformer_forward.30} parent=0 // pred_fallthru
    _
  // Predicated region
  $region6: #{transformer_forward.30} parent=0 // pred_check
    _
  $region7: #{transformer_forward.30} parent=0 // pred_check_branch
    %16 = sbr.rel (0) target = $region9
  $region8: #{transformer_forward.30} parent=0 // pred_region
    _
  $region9: #{transformer_forward.30} parent=0 // pred_fallthru
    _
  // Predicated region
  $region10: #{transformer_forward.30} parent=0 // pred_check
    _
  $region11: #{transformer_forward.30} parent=0 // pred_check_branch
    %18 = sbr.rel (0) target = $region13
  $region12: #{transformer_forward.30} parent=0 // pred_region
    _
  $region13: #{transformer_forward.30} parent=0 // pred_fallthru
    _
  // Predicated region
  $region14: #{transformer_forward.30} parent=0 // pred_check
    _
  $region15: #{transformer_forward.30} parent=0 // pred_check_branch
    %20 = sbr.rel (0) target = $region17
  $region16: #{transformer_forward.30} parent=0 // pred_region
    _
  $region17: #{transformer_forward.30} parent=0 // pred_fallthru
    _
  // Predicated region
  $region18: #{transformer_forward.30} parent=0 // pred_check
    _
  $region19: #{transformer_forward.30} parent=0 // pred_check_branch
    %22 = sbr.rel (0) target = $region21
  $region20: #{transformer_forward.30} parent=0 // pred_region
    _
  $region21: #{transformer_forward.30} parent=0 // pred_fallthru
    _
  // Predicated region
  $region22: #{transformer_forward.30} parent=0 // pred_check
    _
  $region23: #{transformer_forward.30} parent=0 // pred_check_branch
    %24 = sbr.rel (0) target = $region25
  $region24: #{transformer_forward.30} parent=0 // pred_region
    _
  $region25: #{transformer_forward.30} parent=0 // pred_fallthru
    _
  %p26 = scmp.eq.s32.totalorder 0, 0
  // Predicated region
  $region26: #{transformer_forward.30} parent=0 // pred_check
    %p27 = pneg %p26
  $region27: #{transformer_forward.30} parent=0 // pred_check_branch
    %29 = sbr.rel (%p27) target = $region29
  $region28: #{transformer_forward.30} parent=0 // pred_region
    %vm30 = vcmask 261120
    %31 = vst.msk [vmem:[#allocation2] sm:$0xff] %vm30, 0.0
    %32 = vst.msk [vmem:[#allocation2 + $0x8] sm:$0xff] %vm30, 0.0
    %33 = vst.msk [vmem:[#allocation2 + $0x10] sm:$0xff] %vm30, 0.0
    %34 = vst.msk [vmem:[#allocation2 + $0x18] sm:$0xff] %vm30, 0.0
    %vm35 = vcmask 254976
    %36 = vst.msk [vmem:[#allocation2 + $0x20] sm:$0x3] %vm35, 0.0
  $region29: #{transformer_forward.30} parent=0 // pred_fallthru
    _
  %v37 = vld [vmem:[#allocation2] sm:$0xff]
  %v38 = vld [vmem:[#allocation2 + $0x8] sm:$0xff]
  %v39 = vld [vmem:[#allocation2 + $0x10] sm:$0xff]
  %v40 = vld [vmem:[#allocation2 + $0x18] sm:$0xff]
  %v41 = vld [vmem:[#allocation2 + $0x20] sm:$0x3]
  %v42 = vld [vmem:[%s0] sm:$0xf]
  %v43 = vld [vmem:[%s0 + $0x4] sm:$0xf]
  %v44 = vld [vmem:[%s0 + $0x8] sm:$0xf]
  %v45 = vld [vmem:[%s0 + $0xc] sm:$0xf]
  %v46 = vld [vmem:[%s0 + $0x10] sm:$0x1]
  %v47 = vld [vmem:[%s1] sm:$0xf]
  %v48 = vld [vmem:[%s1 + $0x4] sm:$0xf]
  %v49 = vld [vmem:[%s1 + $0x8] sm:$0xf]
  %v50 = vld [vmem:[%s1 + $0xc] sm:$0xf]
  %v51 = vld [vmem:[%s1 + $0x10] sm:$0xf]
  %v52 = vld [vmem:[%s1 + $0x14] sm:$0xf]
  %v53 = vld [vmem:[%s1 + $0x18] sm:$0xf]
  %v54 = vld [vmem:[%s1 + $0x1c] sm:$0xf]
  %v60 = vunpack.c.l.b16 %v42
  %v61 = vunpack.c.l.b16 %v43
  %v62 = vunpack.c.l.b16 %v44
  %v63 = vunpack.c.l.b16 %v45
  %v64 = vunpack.c.l.b16 %v46
  %v65 = vpack.c.b16 %v61, %v60
  %v66 = vpack.c.b16 %v63, %v62
  %v67 = vpack.c.b16 %v64, %v64
  %v76 = vunpack.c.l.b16 %v47
  %v77 = vunpack.c.l.b16 %v48
  %v78 = vunpack.c.l.b16 %v49
  %v79 = vunpack.c.l.b16 %v50
  %v80 = vunpack.c.l.b16 %v51
  %v81 = vunpack.c.l.b16 %v52
  %v82 = vunpack.c.l.b16 %v53
  %v83 = vunpack.c.l.b16 %v54
  %v84 = vpack.c.b16 %v77, %v76
  %v85 = vpack.c.b16 %v79, %v78
  %v86 = vpack.c.b16 %v81, %v80
  %v87 = vpack.c.b16 %v83, %v82
  %vm92 = vcmask 523264
  %v94 = vsel %vm92, %v65, 0
  %v97 = vsel %vm92, %v66, 0
  %v100 = vsel %vm92, %v67, 0
  %102 = vmatprep.subr.bf16.mxu0 0
  %103 = vmatpush1.bf16.msra.mxu0 %v84
  %104 = vmatprep.subr.bf16.mxu0 0
  %105 = vmatpush1.bf16.msra.mxu0 %v85
  %106 = vmatprep.subr.bf16.mxu0 0
  %107 = vmatpush1.bf16.msra.mxu0 %v86
  %108 = vmatprep.subr.bf16.mxu0 0
  %109 = vmatpush1.bf16.msra.mxu0 %v87
  %110 = vmatprep.subr.bf16.mxu0 0
  %111 = vmatpush1.bf16.msra.mxu0 0
  %112 = vmatprep.subr.bf16.mxu0 0
  %113 = vmatpush1.bf16.msra.mxu0 0
  %114 = vmatprep.subr.bf16.mxu0 0
  %115 = vmatpush1.bf16.msra.mxu0 0
  %116 = vmatprep.subr.bf16.mxu0 0
  %117 = vmatpush1.bf16.msra.mxu0 0
  %118 = vmatprep.subr.bf16.mxu0 0
  %119 = vmatpush1.bf16.msra.mxu0 0
  %120 = vmatprep.subr.bf16.mxu0 0
  %121 = vmatpush1.bf16.msra.mxu0 0
  %122 = vmatprep.subr.bf16.mxu0 0
  %123 = vmatpush1.bf16.msra.mxu0 0
  %124 = vmatprep.subr.bf16.mxu0 0
  %125 = vmatpush1.bf16.msra.mxu0 0
  %126 = vmatprep.subr.bf16.mxu0 0
  %127 = vmatpush1.bf16.msra.mxu0 0
  %128 = vmatprep.subr.bf16.mxu0 0
  %129 = vmatpush1.bf16.msra.mxu0 0
  %130 = vmatprep.subr.bf16.mxu0 0
  %131 = vmatpush1.bf16.msra.mxu0 0
  %132 = vmatprep.subr.bf16.mxu0 0
  %133 = vmatpush1.bf16.msra.mxu0 0
  %134 = vmatprep.mubr.bf16.mxu0 0
  %135 = vmatmul.mubr.bf16.gmra.mrb[0].mxu0 %v94
  %v136 = vpop.f32.mrb[0].mxu0
  %v137 = vadd.f32 0.0, %v136
  %v138 = vpop.f32.mrb[0].mxu0
  %v139 = vpop.f32.mrb[0].mxu0
  %v140 = vadd.f32 0.0, %v139
  %v141 = vpop.f32.mrb[0].mxu0
  %142 = vmatprep.mubr.bf16.mxu0 0
  %143 = vmatmul.mubr.bf16.gmra.mrb[0].mxu0 %v97
  %v144 = vpop.f32.mrb[0].mxu0
  %v145 = vadd.f32 0.0, %v144
  %v146 = vpop.f32.mrb[0].mxu0
  %v147 = vpop.f32.mrb[0].mxu0
  %v148 = vadd.f32 0.0, %v147
  %v149 = vpop.f32.mrb[0].mxu0
  %150 = vmatprep.mubr.bf16.mxu0 0
  %151 = vmatmul.mubr.bf16.gmra.mrb[0].mxu0 %v100
  %v152 = vpop.f32.mrb[0].mxu0
  %v153 = vadd.f32 0.0, %v152
  %v154 = vpop.f32.mrb[0].mxu0
  %v155 = vpop.f32.mrb[0].mxu0
  %v156 = vpop.f32.mrb[0].mxu0
  %157 = vdwg.mxu0
  %v158 = vadd.f32 %v37, %v137
  %v159 = vadd.f32 %v38, %v140
  %v160 = vadd.f32 %v39, %v145
  %v161 = vadd.f32 %v40, %v148
  %v162 = vadd.f32 %v41, %v153
  %vm163 = vcmask 261120
  %164 = vst.msk [vmem:[#allocation2] sm:$0xff] %vm163, %v158
  %165 = vst.msk [vmem:[#allocation2 + $0x8] sm:$0xff] %vm163, %v159
  %166 = vst.msk [vmem:[#allocation2 + $0x10] sm:$0xff] %vm163, %v160
  %167 = vst.msk [vmem:[#allocation2 + $0x18] sm:$0xff] %vm163, %v161
  %vm168 = vcmask 254976
  %169 = vst.msk [vmem:[#allocation2 + $0x20] sm:$0x3] %vm168, %v162
  // Predicated region
  $region30: #{transformer_forward.30} parent=0 // pred_check
    %p170 = pneg %p26
  $region31: #{transformer_forward.30} parent=0 // pred_check_branch
    %172 = sbr.rel (%p170) target = $region33
  $region32: #{transformer_forward.30} parent=0 // pred_region
    %v173 = vld [vmem:[#allocation2] sm:$0xff]
    %v174 = vld [vmem:[#allocation2 + $0x8] sm:$0xff]
    %v175 = vld [vmem:[#allocation2 + $0x10] sm:$0xff]
    %v176 = vld [vmem:[#allocation2 + $0x18] sm:$0xff]
    %v177 = vld [vmem:[#allocation2 + $0x20] sm:$0x3]
    %v178 = vld [vmem:[%s2] sm:$0x1]
    %v180 = vlaneseq
    %v181 = vshrl.u32 %v180, 7
    %v182 = vsub.s32 0, %v181
    %v183 = vrot.slane %v178, %v182
    %v185 = vadd.f32 %v173, %v183
    %v186 = vadd.f32 %v174, %v183
    %v187 = vadd.f32 %v175, %v183
    %v188 = vadd.f32 %v176, %v183
    %v189 = vadd.f32 %v177, %v183
    %v190 = vld [vmem:[%s3] sm:$0xff]
    %v191 = vld [vmem:[%s3 + $0x8] sm:$0xff]
    %v192 = vld [vmem:[%s3 + $0x10] sm:$0xff]
    %v193 = vld [vmem:[%s3 + $0x18] sm:$0xff]
    %v194 = vld [vmem:[%s3 + $0x20] sm:$0x3]
    %v195 = vadd.f32 %v185, %v190
    %v196 = vadd.f32 %v186, %v191
    %v197 = vadd.f32 %v187, %v192
    %v198 = vadd.f32 %v188, %v193
    %v199 = vadd.f32 %v189, %v194
    %200 = vst.msk [vmem:[%s6] sm:$0xff] %vm163, %v195
    %201 = vst.msk [vmem:[%s6 + $0x8] sm:$0xff] %vm163, %v196
    %202 = vst.msk [vmem:[%s6 + $0x10] sm:$0xff] %vm163, %v197
    %203 = vst.msk [vmem:[%s6 + $0x18] sm:$0xff] %vm163, %v198
    %204 = vst.msk [vmem:[%s6 + $0x20] sm:$0x3] %vm168, %v199
    %v205 = vsel %vm163, %v195, 0.0
    %206 = vadd.xlane.f32.xlu0 %v205
    %v207 = vpop.xlane.xlu0 %206
    %v208 = vsel %vm163, %v196, 0.0
    %209 = vadd.xlane.f32.xlu0 %v208
    %v210 = vpop.xlane.xlu0 %209
    %v211 = vsel %vm163, %v197, 0.0
    %212 = vadd.xlane.f32.xlu0 %v211
    %v213 = vpop.xlane.xlu0 %212
    %v214 = vsel %vm163, %v198, 0.0
    %215 = vadd.xlane.f32.xlu0 %v214
    %v216 = vpop.xlane.xlu0 %215
    %v217 = vsel %vm168, %v199, 0.0
    %218 = vadd.xlane.f32.xlu0 %v217
    %v219 = vpop.xlane.xlu0 %218
    %v220 = vrcp.pop 32.0
    %v221 = vmul.f32 %v207, %v220
    %v222 = vmul.f32 %v210, %v220
    %v223 = vmul.f32 %v213, %v220
    %v224 = vmul.f32 %v216, %v220
    %v225 = vmul.f32 %v219, %v220
    %v226 = vsub.f32 %v195, %v221
    %v227 = vsub.f32 %v196, %v222
    %v228 = vsub.f32 %v197, %v223
    %v229 = vsub.f32 %v198, %v224
    %v230 = vsub.f32 %v199, %v225
    %v231 = vmul.f32 %v226, %v226
    %v232 = vmul.f32 %v227, %v227
    %v233 = vmul.f32 %v228, %v228
    %v234 = vmul.f32 %v229, %v229
    %v235 = vmul.f32 %v230, %v230
    %v236 = vsel %vm163, %v231, 0.0
    %237 = vadd.xlane.f32.xlu0 %v236
    %v238 = vpop.xlane.xlu0 %237
    %v239 = vsel %vm163, %v232, 0.0
    %240 = vadd.xlane.f32.xlu0 %v239
    %v241 = vpop.xlane.xlu0 %240
    %v242 = vsel %vm163, %v233, 0.0
    %243 = vadd.xlane.f32.xlu0 %v242
    %v244 = vpop.xlane.xlu0 %243
    %v245 = vsel %vm163, %v234, 0.0
    %246 = vadd.xlane.f32.xlu0 %v245
    %v247 = vpop.xlane.xlu0 %246
    %v248 = vsel %vm168, %v235, 0.0
    %249 = vadd.xlane.f32.xlu0 %v248
    %v250 = vpop.xlane.xlu0 %249
    %v251 = vmul.f32 %v238, %v220
    %v252 = vmul.f32 %v241, %v220
    %v253 = vmul.f32 %v244, %v220
    %v254 = vmul.f32 %v247, %v220
    %v255 = vmul.f32 %v250, %v220
    %v256 = vadd.f32 %v251, 1e-05
    %v257 = vadd.f32 %v252, 1e-05
    %v258 = vadd.f32 %v253, 1e-05
    %v259 = vadd.f32 %v254, 1e-05
    %v260 = vadd.f32 %v255, 1e-05
    %v261 = vrsqrt.pop %v256
    %v262 = vrsqrt.pop %v257
    %v263 = vrsqrt.pop %v258
    %v264 = vrsqrt.pop %v259
    %v265 = vrsqrt.pop %v260
    %v266 = vmul.f32 %v226, %v261
    %v267 = vmul.f32 %v227, %v262
    %v268 = vmul.f32 %v228, %v263
    %v269 = vmul.f32 %v229, %v264
    %v270 = vmul.f32 %v230, %v265
    %v271 = vld [vmem:[%s4] sm:$0x1]
    %v273 = vlaneseq
    %v274 = vshrl.u32 %v273, 7
    %v275 = vsub.s32 0, %v274
    %v276 = vrot.slane %v271, %v275
    %v278 = vmul.f32 %v266, %v276
    %v279 = vmul.f32 %v267, %v276
    %v280 = vmul.f32 %v268, %v276
    %v281 = vmul.f32 %v269, %v276
    %v282 = vmul.f32 %v270, %v276
    %v283 = vld [vmem:[%s5] sm:$0x1]
    %v285 = vlaneseq
    %v286 = vshrl.u32 %v285, 7
    %v287 = vsub.s32 0, %v286
    %v288 = vrot.slane %v283, %v287
    %v290 = vadd.f32 %v278, %v288
    %v291 = vadd.f32 %v279, %v288
    %v292 = vadd.f32 %v280, %v288
    %v293 = vadd.f32 %v281, %v288
    %v294 = vadd.f32 %v282, %v288
    %v295 = vpack.c.bf16 %v291, %v290
    %v296 = vpack.c.bf16 %v293, %v292
    %v297 = vpack.c.bf16 %v294, %v294
    %v301 = vunpack.c.l.b16 %v295
    %v302 = vunpack.c.h.b16 %v295
    %v303 = vunpack.c.l.b16 %v296
    %v304 = vunpack.c.h.b16 %v296
    %v305 = vunpack.c.l.b16 %v297
    %v306 = vpack.c.b16 %v301, %v301
    %v307 = vpack.c.b16 %v302, %v302
    %v308 = vpack.c.b16 %v303, %v303
    %v309 = vpack.c.b16 %v304, %v304
    %v310 = vpack.c.b16 %v305, %v305
    %vm316 = vcmask 257024
    %317 = vst.msk [vmem:[%s7] sm:$0xf] %vm316, %v306
    %318 = vst.msk [vmem:[%s7 + $0x4] sm:$0xf] %vm316, %v307
    %319 = vst.msk [vmem:[%s7 + $0x8] sm:$0xf] %vm316, %v308
    %320 = vst.msk [vmem:[%s7 + $0xc] sm:$0xf] %vm316, %v309
    %vm321 = vcmask 253952
    %322 = vst.msk [vmem:[%s7 + $0x10] sm:$0x1] %vm321, %v310
  $region33: #{transformer_forward.30} parent=0 // pred_fallthru
    _
  // Predicated region
  $region34: #{transformer_forward.30} parent=0 // pred_check
    _
  $region35: #{transformer_forward.30} parent=0 // pred_check_branch
    %324 = sbr.rel (0) target = $region37
  $region36: #{transformer_forward.30} parent=0 // pred_region
    _
  $region37: #{transformer_forward.30} parent=0 // pred_fallthru
    _
  // Predicated region
  $region38: #{transformer_forward.30} parent=0 // pred_check
    _
  $region39: #{transformer_forward.30} parent=0 // pred_check_branch
    %326 = sbr.rel (0) target = $region41
  $region40: #{transformer_forward.30} parent=0 // pred_region
    _
  $region41: #{transformer_forward.30} parent=0 // pred_fallthru
    _
  // Predicated region
  $region42: #{transformer_forward.30} parent=0 // pred_check
    _
  $region43: #{transformer_forward.30} parent=0 // pred_check_branch
    %328 = sbr.rel (0) target = $region45
  $region44: #{transformer_forward.30} parent=0 // pred_region
    _
  $region45: #{transformer_forward.30} parent=0 // pred_fallthru
    _
  // Predicated region
  $region46: #{transformer_forward.30} parent=0 // pred_check
    _
  $region47: #{transformer_forward.30} parent=0 // pred_check_branch
    %330 = sbr.rel (0) target = $region49
  $region48: #{transformer_forward.30} parent=0 // pred_region
    _
  $region49: #{transformer_forward.30} parent=0 // pred_fallthru
    _

// kernel: transformer_forward.36
$region0: #{transformer_forward.36}
  #allocation0 [shape = 'u32[]', space=smem, size = 0x4, offset = 0x4, fixed_abs, tag = 'smem constant byte address 0x4 - core index']
  #allocation1 [shape = 'u32[144,128]{1,0:T(1,128)}', space=vmem, size = 0x12000, scoped, tag = 'internal scratch']
  #allocation2 [shape = 'f32[32,32]{1,0:T(8,128)}', space=vmem, size = 0x4000, scoped, tag = 'scratch operand']
  %s0 = inlined_call_operand.vmem [shape: bf16[32,32], index: 0, kind: input, shape index: {}]
  %s1 = inlined_call_operand.vmem [shape: bf16[32,32], index: 1, kind: input, shape index: {}]
  %s2 = inlined_call_operand.vmem [shape: f32[1,32], index: 2, kind: input, shape index: {}]
  %s3 = inlined_call_operand.vmem [shape: f32[32,32], index: 3, kind: output, shape index: {}]
  %s4 = sld [smem:[#allocation0]]
  $region30: #{transformer_forward.36} parent=0
    _
  %s6 = ssub.s32 1, %s4
  %s7 = scalar_select 0, %s6, %s4
  // Predicated region
  $region2: #{transformer_forward.36} parent=0 // pred_check
    _
  $region3: #{transformer_forward.36} parent=0 // pred_check_branch
    %9 = sbr.rel (0) target = $region5
  $region4: #{transformer_forward.36} parent=0 // pred_region
    _
  $region5: #{transformer_forward.36} parent=0 // pred_fallthru
    _
  // Predicated region
  $region6: #{transformer_forward.36} parent=0 // pred_check
    _
  $region7: #{transformer_forward.36} parent=0 // pred_check_branch
    %11 = sbr.rel (0) target = $region9
  $region8: #{transformer_forward.36} parent=0 // pred_region
    _
  $region9: #{transformer_forward.36} parent=0 // pred_fallthru
    _
  // Predicated region
  $region10: #{transformer_forward.36} parent=0 // pred_check
    _
  $region11: #{transformer_forward.36} parent=0 // pred_check_branch
    %13 = sbr.rel (0) target = $region13
  $region12: #{transformer_forward.36} parent=0 // pred_region
    _
  $region13: #{transformer_forward.36} parent=0 // pred_fallthru
    _
  %p15 = scmp.eq.s32.totalorder 0, 0
  // Predicated region
  $region14: #{transformer_forward.36} parent=0 // pred_check
    %p16 = pneg %p15
  $region15: #{transformer_forward.36} parent=0 // pred_check_branch
    %18 = sbr.rel (%p16) target = $region17
  $region16: #{transformer_forward.36} parent=0 // pred_region
    %vm19 = vcmask 261120
    %20 = vst.msk [vmem:[#allocation2] sm:$0xff] %vm19, 0.0
    %21 = vst.msk [vmem:[#allocation2 + $0x8] sm:$0xff] %vm19, 0.0
    %22 = vst.msk [vmem:[#allocation2 + $0x10] sm:$0xff] %vm19, 0.0
    %23 = vst.msk [vmem:[#allocation2 + $0x18] sm:$0xff] %vm19, 0.0
  $region17: #{transformer_forward.36} parent=0 // pred_fallthru
    _
  %v24 = vld [vmem:[#allocation2] sm:$0xff]
  %v25 = vld [vmem:[#allocation2 + $0x8] sm:$0xff]
  %v26 = vld [vmem:[#allocation2 + $0x10] sm:$0xff]
  %v27 = vld [vmem:[#allocation2 + $0x18] sm:$0xff]
  %v28 = vld [vmem:[%s0] sm:$0xf]
  %v29 = vld [vmem:[%s0 + $0x4] sm:$0xf]
  %v30 = vld [vmem:[%s0 + $0x8] sm:$0xf]
  %v31 = vld [vmem:[%s0 + $0xc] sm:$0xf]
  %v32 = vld [vmem:[%s1] sm:$0xf]
  %v33 = vld [vmem:[%s1 + $0x4] sm:$0xf]
  %v34 = vld [vmem:[%s1 + $0x8] sm:$0xf]
  %v35 = vld [vmem:[%s1 + $0xc] sm:$0xf]
  %v40 = vunpack.c.l.b16 %v28
  %v41 = vunpack.c.l.b16 %v29
  %v42 = vunpack.c.l.b16 %v30
  %v43 = vunpack.c.l.b16 %v31
  %v44 = vpack.c.b16 %v41, %v40
  %v45 = vpack.c.b16 %v43, %v42
  %v50 = vunpack.c.l.b16 %v32
  %v51 = vunpack.c.l.b16 %v33
  %v52 = vunpack.c.l.b16 %v34
  %v53 = vunpack.c.l.b16 %v35
  %v54 = vpack.c.b16 %v51, %v50
  %v55 = vpack.c.b16 %v53, %v52
  %vm58 = vcmask 261120
  %v60 = vsel %vm58, %v44, 0
  %v63 = vsel %vm58, %v45, 0
  %65 = vmatprep.subr.bf16.mxu0 0
  %66 = vmatpush1.bf16.msra.mxu0 %v54
  %67 = vmatprep.subr.bf16.mxu0 0
  %68 = vmatpush1.bf16.msra.mxu0 %v55
  %69 = vmatprep.subr.bf16.mxu0 0
  %70 = vmatpush1.bf16.msra.mxu0 0
  %71 = vmatprep.subr.bf16.mxu0 0
  %72 = vmatpush1.bf16.msra.mxu0 0
  %73 = vmatprep.subr.bf16.mxu0 0
  %74 = vmatpush1.bf16.msra.mxu0 0
  %75 = vmatprep.subr.bf16.mxu0 0
  %76 = vmatpush1.bf16.msra.mxu0 0
  %77 = vmatprep.subr.bf16.mxu0 0
  %78 = vmatpush1.bf16.msra.mxu0 0
  %79 = vmatprep.subr.bf16.mxu0 0
  %80 = vmatpush1.bf16.msra.mxu0 0
  %81 = vmatprep.subr.bf16.mxu0 0
  %82 = vmatpush1.bf16.msra.mxu0 0
  %83 = vmatprep.subr.bf16.mxu0 0
  %84 = vmatpush1.bf16.msra.mxu0 0
  %85 = vmatprep.subr.bf16.mxu0 0
  %86 = vmatpush1.bf16.msra.mxu0 0
  %87 = vmatprep.subr.bf16.mxu0 0
  %88 = vmatpush1.bf16.msra.mxu0 0
  %89 = vmatprep.subr.bf16.mxu0 0
  %90 = vmatpush1.bf16.msra.mxu0 0
  %91 = vmatprep.subr.bf16.mxu0 0
  %92 = vmatpush1.bf16.msra.mxu0 0
  %93 = vmatprep.subr.bf16.mxu0 0
  %94 = vmatpush1.bf16.msra.mxu0 0
  %95 = vmatprep.subr.bf16.mxu0 0
  %96 = vmatpush1.bf16.msra.mxu0 0
  %97 = vmatprep.mubr.bf16.mxu0 0
  %98 = vmatmul.mubr.bf16.gmra.mrb[0].mxu0 %v60
  %v99 = vpop.f32.mrb[0].mxu0
  %v100 = vadd.f32 0.0, %v99
  %v101 = vpop.f32.mrb[0].mxu0
  %v102 = vpop.f32.mrb[0].mxu0
  %v103 = vadd.f32 0.0, %v102
  %v104 = vpop.f32.mrb[0].mxu0
  %105 = vmatprep.mubr.bf16.mxu0 0
  %106 = vmatmul.mubr.bf16.gmra.mrb[0].mxu0 %v63
  %v107 = vpop.f32.mrb[0].mxu0
  %v108 = vadd.f32 0.0, %v107
  %v109 = vpop.f32.mrb[0].mxu0
  %v110 = vpop.f32.mrb[0].mxu0
  %v111 = vadd.f32 0.0, %v110
  %v112 = vpop.f32.mrb[0].mxu0
  %113 = vdwg.mxu0
  %v114 = vadd.f32 %v24, %v100
  %v115 = vadd.f32 %v25, %v103
  %v116 = vadd.f32 %v26, %v108
  %v117 = vadd.f32 %v27, %v111
  %118 = vst.msk [vmem:[#allocation2] sm:$0xff] %vm58, %v114
  %119 = vst.msk [vmem:[#allocation2 + $0x8] sm:$0xff] %vm58, %v115
  %120 = vst.msk [vmem:[#allocation2 + $0x10] sm:$0xff] %vm58, %v116
  %121 = vst.msk [vmem:[#allocation2 + $0x18] sm:$0xff] %vm58, %v117
  // Predicated region
  $region18: #{transformer_forward.36} parent=0 // pred_check
    %p122 = pneg %p15
  $region19: #{transformer_forward.36} parent=0 // pred_check_branch
    %124 = sbr.rel (%p122) target = $region21
  $region20: #{transformer_forward.36} parent=0 // pred_region
    %v125 = vld [vmem:[#allocation2] sm:$0xff]
    %v126 = vld [vmem:[#allocation2 + $0x8] sm:$0xff]
    %v127 = vld [vmem:[#allocation2 + $0x10] sm:$0xff]
    %v128 = vld [vmem:[#allocation2 + $0x18] sm:$0xff]
    %v129 = vld [vmem:[%s2] sm:$0x1]
    %v131 = vlaneseq
    %v132 = vshrl.u32 %v131, 7
    %v133 = vsub.s32 0, %v132
    %v134 = vrot.slane %v129, %v133
    %v136 = vadd.f32 %v125, %v134
    %v137 = vadd.f32 %v126, %v134
    %v138 = vadd.f32 %v127, %v134
    %v139 = vadd.f32 %v128, %v134
    %140 = vst.msk [vmem:[%s3] sm:$0xff] %vm58, %v136
    %141 = vst.msk [vmem:[%s3 + $0x8] sm:$0xff] %vm58, %v137
    %142 = vst.msk [vmem:[%s3 + $0x10] sm:$0xff] %vm58, %v138
    %143 = vst.msk [vmem:[%s3 + $0x18] sm:$0xff] %vm58, %v139
  $region21: #{transformer_forward.36} parent=0 // pred_fallthru
    _
  // Predicated region
  $region22: #{transformer_forward.36} parent=0 // pred_check
    _
  $region23: #{transformer_forward.36} parent=0 // pred_check_branch
    %145 = sbr.rel (0) target = $region25
  $region24: #{transformer_forward.36} parent=0 // pred_region
    _
  $region25: #{transformer_forward.36} parent=0 // pred_fallthru
    _
  // Predicated region
  $region26: #{transformer_forward.36} parent=0 // pred_check
    _
  $region27: #{transformer_forward.36} parent=0 // pred_check_branch
    %147 = sbr.rel (0) target = $region29
  $region28: #{transformer_forward.36} parent=0 // pred_region
    _
  $region29: #{transformer_forward.36} parent=0 // pred_fallthru
    _

// kernel: transformer_forward.38
$region0: #{transformer_forward.38}
  #allocation0 [shape = 'u32[]', space=smem, size = 0x4, offset = 0x4, fixed_abs, tag = 'smem constant byte address 0x4 - core index']
  #allocation1 [shape = 'u32[144,128]{1,0:T(1,128)}', space=vmem, size = 0x12000, scoped, tag = 'internal scratch']
  #allocation2 [shape = 'f32[40,96]{1,0:T(8,128)}', space=vmem, size = 0x5000, scoped, tag = 'scratch operand']
  %s0 = inlined_call_operand.vmem [shape: bf16[40,32], index: 0, kind: input, shape index: {}]
  %s1 = inlined_call_operand.vmem [shape: bf16[32,96], index: 1, kind: input, shape index: {}]
  %s2 = inlined_call_operand.vmem [shape: f32[1,96], index: 2, kind: input, shape index: {}]
  %s3 = inlined_call_operand.vmem [shape: bf16[40,96], index: 3, kind: output, shape index: {}]
  %s4 = sld [smem:[#allocation0]]
  $region30: #{transformer_forward.38} parent=0
    _
  %s6 = ssub.s32 1, %s4
  %s7 = scalar_select 0, %s6, %s4
  // Predicated region
  $region2: #{transformer_forward.38} parent=0 // pred_check
    _
  $region3: #{transformer_forward.38} parent=0 // pred_check_branch
    %9 = sbr.rel (0) target = $region5
  $region4: #{transformer_forward.38} parent=0 // pred_region
    _
  $region5: #{transformer_forward.38} parent=0 // pred_fallthru
    _
  // Predicated region
  $region6: #{transformer_forward.38} parent=0 // pred_check
    _
  $region7: #{transformer_forward.38} parent=0 // pred_check_branch
    %11 = sbr.rel (0) target = $region9
  $region8: #{transformer_forward.38} parent=0 // pred_region
    _
  $region9: #{transformer_forward.38} parent=0 // pred_fallthru
    _
  // Predicated region
  $region10: #{transformer_forward.38} parent=0 // pred_check
    _
  $region11: #{transformer_forward.38} parent=0 // pred_check_branch
    %13 = sbr.rel (0) target = $region13
  $region12: #{transformer_forward.38} parent=0 // pred_region
    _
  $region13: #{transformer_forward.38} parent=0 // pred_fallthru
    _
  %p15 = scmp.eq.s32.totalorder 0, 0
  // Predicated region
  $region14: #{transformer_forward.38} parent=0 // pred_check
    %p16 = pneg %p15
  $region15: #{transformer_forward.38} parent=0 // pred_check_branch
    %18 = sbr.rel (%p16) target = $region17
  $region16: #{transformer_forward.38} parent=0 // pred_region
    %vm19 = vcmask 785408
    %20 = vst.msk [vmem:[#allocation2] sm:$0xff] %vm19, 0.0
    %21 = vst.msk [vmem:[#allocation2 + $0x8] sm:$0xff] %vm19, 0.0
    %22 = vst.msk [vmem:[#allocation2 + $0x10] sm:$0xff] %vm19, 0.0
    %23 = vst.msk [vmem:[#allocation2 + $0x18] sm:$0xff] %vm19, 0.0
    %24 = vst.msk [vmem:[#allocation2 + $0x20] sm:$0xff] %vm19, 0.0
  $region17: #{transformer_forward.38} parent=0 // pred_fallthru
    _
  %v25 = vld [vmem:[#allocation2] sm:$0xff]
  %v26 = vld [vmem:[#allocation2 + $0x8] sm:$0xff]
  %v27 = vld [vmem:[#allocation2 + $0x10] sm:$0xff]
  %v28 = vld [vmem:[#allocation2 + $0x18] sm:$0xff]
  %v29 = vld [vmem:[#allocation2 + $0x20] sm:$0xff]
  %v30 = vld [vmem:[%s0] sm:$0xf]
  %v31 = vld [vmem:[%s0 + $0x4] sm:$0xf]
  %v32 = vld [vmem:[%s0 + $0x8] sm:$0xf]
  %v33 = vld [vmem:[%s0 + $0xc] sm:$0xf]
  %v34 = vld [vmem:[%s0 + $0x10] sm:$0xf]
  %v35 = vld [vmem:[%s1] sm:$0xf]
  %v36 = vld [vmem:[%s1 + $0x4] sm:$0xf]
  %v37 = vld [vmem:[%s1 + $0x8] sm:$0xf]
  %v38 = vld [vmem:[%s1 + $0xc] sm:$0xf]
  %v44 = vunpack.c.l.b16 %v30
  %v45 = vunpack.c.l.b16 %v31
  %v46 = vunpack.c.l.b16 %v32
  %v47 = vunpack.c.l.b16 %v33
  %v48 = vunpack.c.l.b16 %v34
  %v49 = vpack.c.b16 %v45, %v44
  %v50 = vpack.c.b16 %v47, %v46
  %v51 = vpack.c.b16 %v48, %v48
  %v56 = vunpack.c.l.b16 %v35
  %v57 = vunpack.c.l.b16 %v36
  %v58 = vunpack.c.l.b16 %v37
  %v59 = vunpack.c.l.b16 %v38
  %v60 = vpack.c.b16 %v57, %v56
  %v61 = vpack.c.b16 %v59, %v58
  %vm64 = vcmask 261120
  %v66 = vsel %vm64, %v49, 0
  %v69 = vsel %vm64, %v50, 0
  %v72 = vsel %vm64, %v51, 0
  %74 = vmatprep.subr.bf16.mxu0 0
  %75 = vmatpush1.bf16.msra.mxu0 %v60
  %76 = vmatprep.subr.bf16.mxu0 0
  %77 = vmatpush1.bf16.msra.mxu0 %v61
  %78 = vmatprep.subr.bf16.mxu0 0
  %79 = vmatpush1.bf16.msra.mxu0 0
  %80 = vmatprep.subr.bf16.mxu0 0
  %81 = vmatpush1.bf16.msra.mxu0 0
  %82 = vmatprep.subr.bf16.mxu0 0
  %83 = vmatpush1.bf16.msra.mxu0 0
  %84 = vmatprep.subr.bf16.mxu0 0
  %85 = vmatpush1.bf16.msra.mxu0 0
  %86 = vmatprep.subr.bf16.mxu0 0
  %87 = vmatpush1.bf16.msra.mxu0 0
  %88 = vmatprep.subr.bf16.mxu0 0
  %89 = vmatpush1.bf16.msra.mxu0 0
  %90 = vmatprep.subr.bf16.mxu0 0
  %91 = vmatpush1.bf16.msra.mxu0 0
  %92 = vmatprep.subr.bf16.mxu0 0
  %93 = vmatpush1.bf16.msra.mxu0 0
  %94 = vmatprep.subr.bf16.mxu0 0
  %95 = vmatpush1.bf16.msra.mxu0 0
  %96 = vmatprep.subr.bf16.mxu0 0
  %97 = vmatpush1.bf16.msra.mxu0 0
  %98 = vmatprep.subr.bf16.mxu0 0
  %99 = vmatpush1.bf16.msra.mxu0 0
  %100 = vmatprep.subr.bf16.mxu0 0
  %101 = vmatpush1.bf16.msra.mxu0 0
  %102 = vmatprep.subr.bf16.mxu0 0
  %103 = vmatpush1.bf16.msra.mxu0 0
  %104 = vmatprep.subr.bf16.mxu0 0
  %105 = vmatpush1.bf16.msra.mxu0 0
  %106 = vmatprep.mubr.bf16.mxu0 0
  %107 = vmatmul.mubr.bf16.gmra.mrb[0].mxu0 %v66
  %v108 = vpop.f32.mrb[0].mxu0
  %v109 = vadd.f32 0.0, %v108
  %v110 = vpop.f32.mrb[0].mxu0
  %v111 = vpop.f32.mrb[0].mxu0
  %v112 = vadd.f32 0.0, %v111
  %v113 = vpop.f32.mrb[0].mxu0
  %114 = vmatprep.mubr.bf16.mxu0 0
  %115 = vmatmul.mubr.bf16.gmra.mrb[0].mxu0 %v69
  %v116 = vpop.f32.mrb[0].mxu0
  %v117 = vadd.f32 0.0, %v116
  %v118 = vpop.f32.mrb[0].mxu0
  %v119 = vpop.f32.mrb[0].mxu0
  %v120 = vadd.f32 0.0, %v119
  %v121 = vpop.f32.mrb[0].mxu0
  %122 = vmatprep.mubr.bf16.mxu0 0
  %123 = vmatmul.mubr.bf16.gmra.mrb[0].mxu0 %v72
  %v124 = vpop.f32.mrb[0].mxu0
  %v125 = vadd.f32 0.0, %v124
  %v126 = vpop.f32.mrb[0].mxu0
  %v127 = vpop.f32.mrb[0].mxu0
  %v128 = vpop.f32.mrb[0].mxu0
  %129 = vdwg.mxu0
  %v130 = vadd.f32 %v25, %v109
  %v131 = vadd.f32 %v26, %v112
  %v132 = vadd.f32 %v27, %v117
  %v133 = vadd.f32 %v28, %v120
  %v134 = vadd.f32 %v29, %v125
  %vm135 = vcmask 785408
  %136 = vst.msk [vmem:[#allocation2] sm:$0xff] %vm135, %v130
  %137 = vst.msk [vmem:[#allocation2 + $0x8] sm:$0xff] %vm135, %v131
  %138 = vst.msk [vmem:[#allocation2 + $0x10] sm:$0xff] %vm135, %v132
  %139 = vst.msk [vmem:[#allocation2 + $0x18] sm:$0xff] %vm135, %v133
  %140 = vst.msk [vmem:[#allocation2 + $0x20] sm:$0xff] %vm135, %v134
  // Predicated region
  $region18: #{transformer_forward.38} parent=0 // pred_check
    %p141 = pneg %p15
  $region19: #{transformer_forward.38} parent=0 // pred_check_branch
    %143 = sbr.rel (%p141) target = $region21
  $region20: #{transformer_forward.38} parent=0 // pred_region
    %v144 = vld [vmem:[#allocation2] sm:$0xff]
    %v145 = vld [vmem:[#allocation2 + $0x8] sm:$0xff]
    %v146 = vld [vmem:[#allocation2 + $0x10] sm:$0xff]
    %v147 = vld [vmem:[#allocation2 + $0x18] sm:$0xff]
    %v148 = vld [vmem:[#allocation2 + $0x20] sm:$0xff]
    %v149 = vld [vmem:[%s2] sm:$0x1]
    %v151 = vlaneseq
    %v152 = vshrl.u32 %v151, 7
    %v153 = vsub.s32 0, %v152
    %v154 = vrot.slane %v149, %v153
    %v156 = vadd.f32 %v144, %v154
    %v157 = vadd.f32 %v145, %v154
    %v158 = vadd.f32 %v146, %v154
    %v159 = vadd.f32 %v147, %v154
    %v160 = vadd.f32 %v148, %v154
    %v161 = vpack.c.bf16 %v157, %v156
    %v162 = vpack.c.bf16 %v159, %v158
    %v163 = vpack.c.bf16 %v160, %v160
    %v167 = vunpack.c.l.b16 %v161
    %v168 = vunpack.c.h.b16 %v161
    %v169 = vunpack.c.l.b16 %v162
    %v170 = vunpack.c.h.b16 %v162
    %v171 = vunpack.c.l.b16 %v163
    %v172 = vpack.c.b16 %v167, %v167
    %v173 = vpack.c.b16 %v168, %v168
    %v174 = vpack.c.b16 %v169, %v169
    %v175 = vpack.c.b16 %v170, %v170
    %v176 = vpack.c.b16 %v171, %v171
    %vm182 = vcmask 781312
    %183 = vst.msk [vmem:[%s3] sm:$0xf] %vm182, %v172
    %184 = vst.msk [vmem:[%s3 + $0x4] sm:$0xf] %vm182, %v173
    %185 = vst.msk [vmem:[%s3 + $0x8] sm:$0xf] %vm182, %v174
    %186 = vst.msk [vmem:[%s3 + $0xc] sm:$0xf] %vm182, %v175
    %187 = vst.msk [vmem:[%s3 + $0x10] sm:$0xf] %vm182, %v176
  $region21: #{transformer_forward.38} parent=0 // pred_fallthru
    _
  // Predicated region
  $region22: #{transformer_forward.38} parent=0 // pred_check
    _
  $region23: #{transformer_forward.38} parent=0 // pred_check_branch
    %189 = sbr.rel (0) target = $region25
  $region24: #{transformer_forward.38} parent=0 // pred_region
    _
  $region25: #{transformer_forward.38} parent=0 // pred_fallthru
    _
  // Predicated region
  $region26: #{transformer_forward.38} parent=0 // pred_check
    _
  $region27: #{transformer_forward.38} parent=0 // pred_check_branch
    %191 = sbr.rel (0) target = $region29
  $region28: #{transformer_forward.38} parent=0 // pred_region
    _
  $region29: #{transformer_forward.38} parent=0 // pred_fallthru
    _

// kernel: transformer_forward.37
$region0: #{transformer_forward.37}
  #allocation0 [shape = 'u32[]', space=smem, size = 0x4, offset = 0x4, fixed_abs, tag = 'smem constant byte address 0x4 - core index']
  #allocation1 [shape = 'u32[144,128]{1,0:T(1,128)}', space=vmem, size = 0x12000, scoped, tag = 'internal scratch']
  %s0 = inlined_call_operand.vmem [shape: f32[40,32], index: 0, kind: input, shape index: {}]
  %s1 = inlined_call_operand.vmem [shape: f32[1,32], index: 1, kind: input, shape index: {}]
  %s2 = inlined_call_operand.vmem [shape: f32[1,32], index: 2, kind: input, shape index: {}]
  %s3 = inlined_call_operand.vmem [shape: bf16[40,32], index: 3, kind: output, shape index: {}]
  %s4 = sld [smem:[#allocation0]]
  $region22: #{transformer_forward.37} parent=0
    _
  %s6 = ssub.s32 1, %s4
  %s7 = scalar_select 0, %s6, %s4
  // Predicated region
  $region2: #{transformer_forward.37} parent=0 // pred_check
    _
  $region3: #{transformer_forward.37} parent=0 // pred_check_branch
    %9 = sbr.rel (0) target = $region5
  $region4: #{transformer_forward.37} parent=0 // pred_region
    _
  $region5: #{transformer_forward.37} parent=0 // pred_fallthru
    _
  // Predicated region
  $region6: #{transformer_forward.37} parent=0 // pred_check
    _
  $region7: #{transformer_forward.37} parent=0 // pred_check_branch
    %11 = sbr.rel (0) target = $region9
  $region8: #{transformer_forward.37} parent=0 // pred_region
    _
  $region9: #{transformer_forward.37} parent=0 // pred_fallthru
    _
  // Predicated region
  $region10: #{transformer_forward.37} parent=0 // pred_check
    _
  $region11: #{transformer_forward.37} parent=0 // pred_check_branch
    %13 = sbr.rel (0) target = $region13
  $region12: #{transformer_forward.37} parent=0 // pred_region
    _
  $region13: #{transformer_forward.37} parent=0 // pred_fallthru
    _
  %v14 = vld [vmem:[%s0] sm:$0xff]
  %v15 = vld [vmem:[%s0 + $0x8] sm:$0xff]
  %v16 = vld [vmem:[%s0 + $0x10] sm:$0xff]
  %v17 = vld [vmem:[%s0 + $0x18] sm:$0xff]
  %v18 = vld [vmem:[%s0 + $0x20] sm:$0xff]
  %vm19 = vcmask 261120
  %v20 = vsel %vm19, %v14, 0.0
  %21 = vadd.xlane.f32.xlu0 %v20
  %v22 = vpop.xlane.xlu0 %21
  %v23 = vsel %vm19, %v15, 0.0
  %24 = vadd.xlane.f32.xlu0 %v23
  %v25 = vpop.xlane.xlu0 %24
  %v26 = vsel %vm19, %v16, 0.0
  %27 = vadd.xlane.f32.xlu0 %v26
  %v28 = vpop.xlane.xlu0 %27
  %v29 = vsel %vm19, %v17, 0.0
  %30 = vadd.xlane.f32.xlu0 %v29
  %v31 = vpop.xlane.xlu0 %30
  %v32 = vsel %vm19, %v18, 0.0
  %33 = vadd.xlane.f32.xlu0 %v32
  %v34 = vpop.xlane.xlu0 %33
  %v35 = vrcp.pop 32.0
  %v36 = vmul.f32 %v22, %v35
  %v37 = vmul.f32 %v25, %v35
  %v38 = vmul.f32 %v28, %v35
  %v39 = vmul.f32 %v31, %v35
  %v40 = vmul.f32 %v34, %v35
  %v41 = vsub.f32 %v14, %v36
  %v42 = vsub.f32 %v15, %v37
  %v43 = vsub.f32 %v16, %v38
  %v44 = vsub.f32 %v17, %v39
  %v45 = vsub.f32 %v18, %v40
  %v46 = vmul.f32 %v41, %v41
  %v47 = vmul.f32 %v42, %v42
  %v48 = vmul.f32 %v43, %v43
  %v49 = vmul.f32 %v44, %v44
  %v50 = vmul.f32 %v45, %v45
  %v51 = vsel %vm19, %v46, 0.0
  %52 = vadd.xlane.f32.xlu0 %v51
  %v53 = vpop.xlane.xlu0 %52
  %v54 = vsel %vm19, %v47, 0.0
  %55 = vadd.xlane.f32.xlu0 %v54
  %v56 = vpop.xlane.xlu0 %55
  %v57 = vsel %vm19, %v48, 0.0
  %58 = vadd.xlane.f32.xlu0 %v57
  %v59 = vpop.xlane.xlu0 %58
  %v60 = vsel %vm19, %v49, 0.0
  %61 = vadd.xlane.f32.xlu0 %v60
  %v62 = vpop.xlane.xlu0 %61
  %v63 = vsel %vm19, %v50, 0.0
  %64 = vadd.xlane.f32.xlu0 %v63
  %v65 = vpop.xlane.xlu0 %64
  %v66 = vmul.f32 %v53, %v35
  %v67 = vmul.f32 %v56, %v35
  %v68 = vmul.f32 %v59, %v35
  %v69 = vmul.f32 %v62, %v35
  %v70 = vmul.f32 %v65, %v35
  %v71 = vadd.f32 %v66, 1e-05
  %v72 = vadd.f32 %v67, 1e-05
  %v73 = vadd.f32 %v68, 1e-05
  %v74 = vadd.f32 %v69, 1e-05
  %v75 = vadd.f32 %v70, 1e-05
  %v76 = vrsqrt.pop %v71
  %v77 = vrsqrt.pop %v72
  %v78 = vrsqrt.pop %v73
  %v79 = vrsqrt.pop %v74
  %v80 = vrsqrt.pop %v75
  %v81 = vmul.f32 %v41, %v76
  %v82 = vmul.f32 %v42, %v77
  %v83 = vmul.f32 %v43, %v78
  %v84 = vmul.f32 %v44, %v79
  %v85 = vmul.f32 %v45, %v80
  %v86 = vld [vmem:[%s1] sm:$0x1]
  %v88 = vlaneseq
  %v89 = vshrl.u32 %v88, 7
  %v90 = vsub.s32 0, %v89
  %v91 = vrot.slane %v86, %v90
  %v93 = vmul.f32 %v81, %v91
  %v94 = vmul.f32 %v82, %v91
  %v95 = vmul.f32 %v83, %v91
  %v96 = vmul.f32 %v84, %v91
  %v97 = vmul.f32 %v85, %v91
  %v98 = vld [vmem:[%s2] sm:$0x1]
  %v100 = vlaneseq
  %v101 = vshrl.u32 %v100, 7
  %v102 = vsub.s32 0, %v101
  %v103 = vrot.slane %v98, %v102
  %v105 = vadd.f32 %v93, %v103
  %v106 = vadd.f32 %v94, %v103
  %v107 = vadd.f32 %v95, %v103
  %v108 = vadd.f32 %v96, %v103
  %v109 = vadd.f32 %v97, %v103
  %v110 = vpack.c.bf16 %v106, %v105
  %v111 = vpack.c.bf16 %v108, %v107
  %v112 = vpack.c.bf16 %v109, %v109
  %v116 = vunpack.c.l.b16 %v110
  %v117 = vunpack.c.h.b16 %v110
  %v118 = vunpack.c.l.b16 %v111
  %v119 = vunpack.c.h.b16 %v111
  %v120 = vunpack.c.l.b16 %v112
  %v121 = vpack.c.b16 %v116, %v116
  %v122 = vpack.c.b16 %v117, %v117
  %v123 = vpack.c.b16 %v118, %v118
  %v124 = vpack.c.b16 %v119, %v119
  %v125 = vpack.c.b16 %v120, %v120
  %vm131 = vcmask 257024
  %132 = vst.msk [vmem:[%s3] sm:$0xf] %vm131, %v121
  %133 = vst.msk [vmem:[%s3 + $0x4] sm:$0xf] %vm131, %v122
  %134 = vst.msk [vmem:[%s3 + $0x8] sm:$0xf] %vm131, %v123
  %135 = vst.msk [vmem:[%s3 + $0xc] sm:$0xf] %vm131, %v124
  %136 = vst.msk [vmem:[%s3 + $0x10] sm:$0xf] %vm131, %v125
  // Predicated region
  $region14: #{transformer_forward.37} parent=0 // pred_check
    _
  $region15: #{transformer_forward.37} parent=0 // pred_check_branch
    %138 = sbr.rel (0) target = $region17
  $region16: #{transformer_forward.37} parent=0 // pred_region
    _
  $region17: #{transformer_forward.37} parent=0 // pred_fallthru
    _
  // Predicated region
  $region18: #{transformer_forward.37} parent=0 // pred_check
    _
  $region19: #{transformer_forward.37} parent=0 // pred_check_branch
    %140 = sbr.rel (0) target = $region21
  $region20: #{transformer_forward.37} parent=0 // pred_region
    _
  $region21: #{transformer_forward.37} parent=0 // pred_fallthru
    _

// kernel: transformer_forward.35
$region0: #{transformer_forward.35}
  #allocation0 [shape = 'u32[]', space=smem, size = 0x4, offset = 0x4, fixed_abs, tag = 'smem constant byte address 0x4 - core index']
  #allocation1 [shape = 'u32[144,128]{1,0:T(1,128)}', space=vmem, size = 0x12000, scoped, tag = 'internal scratch']
  #allocation2 [shape = 'f32[34,32]{1,0:T(8,128)}', space=vmem, size = 0x5000, scoped, tag = 'scratch operand']
  %s0 = inlined_call_operand.vmem [shape: bf16[34,64], index: 0, kind: input, shape index: {}]
  %s1 = inlined_call_operand.vmem [shape: bf16[64,32], index: 1, kind: input, shape index: {}]
  %s2 = inlined_call_operand.vmem [shape: f32[1,32], index: 2, kind: input, shape index: {}]
  %s3 = inlined_call_operand.vmem [shape: f32[34,32], index: 3, kind: input, shape index: {}]
  %s4 = inlined_call_operand.vmem [shape: f32[1,32], index: 4, kind: input, shape index: {}]
  %s5 = inlined_call_operand.vmem [shape: f32[1,32], index: 5, kind: input, shape index: {}]
  %s6 = inlined_call_operand.hbm [shape: f32[34,32], index: 6, kind: output, shape index: {0}]
  %s7 = inlined_call_operand.vmem [shape: bf16[34,32], index: 7, kind: output, shape index: {1}]
  %8 = xla_tuple %s6, %s7
  %s9 = sld [smem:[#allocation0]]
  $region50: #{transformer_forward.35} parent=0
    _
  %s11 = ssub.s32 1, %s9
  %s12 = scalar_select 0, %s11, %s9
  $region1: #{transformer_forward.35} parent=0
    #allocation3 [shape = 'u8[20480]{0}', space=vmem, size = 0x5000, scoped, tag = 'output window, operand 0, single buffered']
    #allocation4 [shape = 's32[1]{0}', space=sflag, size = 0x4, scoped, tag = 'scoped memory for transformer_forward.35']
    %13 = vsyncpa [#allocation4], 0
    // Predicated region
    $region2: #{transformer_forward.35} parent=1 // pred_check
      _
    $region3: #{transformer_forward.35} parent=1 // pred_check_branch
      %15 = sbr.rel (0) target = $region5
    $region4: #{transformer_forward.35} parent=1 // pred_region
      _
    $region5: #{transformer_forward.35} parent=1 // pred_fallthru
      _
    // Predicated region
    $region6: #{transformer_forward.35} parent=1 // pred_check
      _
    $region7: #{transformer_forward.35} parent=1 // pred_check_branch
      %17 = sbr.rel (0) target = $region9
    $region8: #{transformer_forward.35} parent=1 // pred_region
      _
    $region9: #{transformer_forward.35} parent=1 // pred_fallthru
      _
    // Predicated region
    $region10: #{transformer_forward.35} parent=1 // pred_check
      _
    $region11: #{transformer_forward.35} parent=1 // pred_check_branch
      %19 = sbr.rel (0) target = $region13
    $region12: #{transformer_forward.35} parent=1 // pred_region
      _
    $region13: #{transformer_forward.35} parent=1 // pred_fallthru
      _
    // Predicated region
    $region14: #{transformer_forward.35} parent=1 // pred_check
      _
    $region15: #{transformer_forward.35} parent=1 // pred_check_branch
      %21 = sbr.rel (0) target = $region17
    $region16: #{transformer_forward.35} parent=1 // pred_region
      _
    $region17: #{transformer_forward.35} parent=1 // pred_fallthru
      _
    // Predicated region
    $region18: #{transformer_forward.35} parent=1 // pred_check
      _
    $region19: #{transformer_forward.35} parent=1 // pred_check_branch
      %23 = sbr.rel (0) target = $region21
    $region20: #{transformer_forward.35} parent=1 // pred_region
      _
    $region21: #{transformer_forward.35} parent=1 // pred_fallthru
      _
    // Predicated region
    $region22: #{transformer_forward.35} parent=1 // pred_check
      _
    $region23: #{transformer_forward.35} parent=1 // pred_check_branch
      %25 = sbr.rel (0) target = $region25
    $region24: #{transformer_forward.35} parent=1 // pred_region
      _
    $region25: #{transformer_forward.35} parent=1 // pred_fallthru
      _
    %p27 = scmp.eq.s32.totalorder 0, 0
    // Predicated region
    $region26: #{transformer_forward.35} parent=1 // pred_check
      %p28 = pneg %p27
    $region27: #{transformer_forward.35} parent=1 // pred_check_branch
      %30 = sbr.rel (%p28) target = $region29
    $region28: #{transformer_forward.35} parent=1 // pred_region
      %vm31 = vcmask 261120
      %32 = vst.msk [vmem:[#allocation2] sm:$0xff] %vm31, 0.0
      %33 = vst.msk [vmem:[#allocation2 + $0x8] sm:$0xff] %vm31, 0.0
      %34 = vst.msk [vmem:[#allocation2 + $0x10] sm:$0xff] %vm31, 0.0
      %35 = vst.msk [vmem:[#allocation2 + $0x18] sm:$0xff] %vm31, 0.0
      %vm36 = vcmask 254976
      %37 = vst.msk [vmem:[#allocation2 + $0x20] sm:$0x3] %vm36, 0.0
    $region29: #{transformer_forward.35} parent=1 // pred_fallthru
      _
    %v38 = vld [vmem:[#allocation2] sm:$0xff]
    %v39 = vld [vmem:[#allocation2 + $0x8] sm:$0xff]
    %v40 = vld [vmem:[#allocation2 + $0x10] sm:$0xff]
    %v41 = vld [vmem:[#allocation2 + $0x18] sm:$0xff]
    %v42 = vld [vmem:[#allocation2 + $0x20] sm:$0x3]
    %v43 = vld [vmem:[%s0] sm:$0xf]
    %v44 = vld [vmem:[%s0 + $0x4] sm:$0xf]
    %v45 = vld [vmem:[%s0 + $0x8] sm:$0xf]
    %v46 = vld [vmem:[%s0 + $0xc] sm:$0xf]
    %v47 = vld [vmem:[%s0 + $0x10] sm:$0x1]
    %v48 = vld [vmem:[%s1] sm:$0xf]
    %v49 = vld [vmem:[%s1 + $0x4] sm:$0xf]
    %v50 = vld [vmem:[%s1 + $0x8] sm:$0xf]
    %v51 = vld [vmem:[%s1 + $0xc] sm:$0xf]
    %v52 = vld [vmem:[%s1 + $0x10] sm:$0xf]
    %v53 = vld [vmem:[%s1 + $0x14] sm:$0xf]
    %v54 = vld [vmem:[%s1 + $0x18] sm:$0xf]
    %v55 = vld [vmem:[%s1 + $0x1c] sm:$0xf]
    %v61 = vunpack.c.l.b16 %v43
    %v62 = vunpack.c.l.b16 %v44
    %v63 = vunpack.c.l.b16 %v45
    %v64 = vunpack.c.l.b16 %v46
    %v65 = vunpack.c.l.b16 %v47
    %v66 = vpack.c.b16 %v62, %v61
    %v67 = vpack.c.b16 %v64, %v63
    %v68 = vpack.c.b16 %v65, %v65
    %v77 = vunpack.c.l.b16 %v48
    %v78 = vunpack.c.l.b16 %v49
    %v79 = vunpack.c.l.b16 %v50
    %v80 = vunpack.c.l.b16 %v51
    %v81 = vunpack.c.l.b16 %v52
    %v82 = vunpack.c.l.b16 %v53
    %v83 = vunpack.c.l.b16 %v54
    %v84 = vunpack.c.l.b16 %v55
    %v85 = vpack.c.b16 %v78, %v77
    %v86 = vpack.c.b16 %v80, %v79
    %v87 = vpack.c.b16 %v82, %v81
    %v88 = vpack.c.b16 %v84, %v83
    %vm93 = vcmask 523264
    %v95 = vsel %vm93, %v66, 0
    %v98 = vsel %vm93, %v67, 0
    %v101 = vsel %vm93, %v68, 0
    %103 = vmatprep.subr.bf16.mxu0 0
    %104 = vmatpush1.bf16.msra.mxu0 %v85
    %105 = vmatprep.subr.bf16.mxu0 0
    %106 = vmatpush1.bf16.msra.mxu0 %v86
    %107 = vmatprep.subr.bf16.mxu0 0
    %108 = vmatpush1.bf16.msra.mxu0 %v87
    %109 = vmatprep.subr.bf16.mxu0 0
    %110 = vmatpush1.bf16.msra.mxu0 %v88
    %111 = vmatprep.subr.bf16.mxu0 0
    %112 = vmatpush1.bf16.msra.mxu0 0
    %113 = vmatprep.subr.bf16.mxu0 0
    %114 = vmatpush1.bf16.msra.mxu0 0
    %115 = vmatprep.subr.bf16.mxu0 0
    %116 = vmatpush1.bf16.msra.mxu0 0
    %117 = vmatprep.subr.bf16.mxu0 0
    %118 = vmatpush1.bf16.msra.mxu0 0
    %119 = vmatprep.subr.bf16.mxu0 0
    %120 = vmatpush1.bf16.msra.mxu0 0
    %121 = vmatprep.subr.bf16.mxu0 0
    %122 = vmatpush1.bf16.msra.mxu0 0
    %123 = vmatprep.subr.bf16.mxu0 0
    %124 = vmatpush1.bf16.msra.mxu0 0
    %125 = vmatprep.subr.bf16.mxu0 0
    %126 = vmatpush1.bf16.msra.mxu0 0
    %127 = vmatprep.subr.bf16.mxu0 0
    %128 = vmatpush1.bf16.msra.mxu0 0
    %129 = vmatprep.subr.bf16.mxu0 0
    %130 = vmatpush1.bf16.msra.mxu0 0
    %131 = vmatprep.subr.bf16.mxu0 0
    %132 = vmatpush1.bf16.msra.mxu0 0
    %133 = vmatprep.subr.bf16.mxu0 0
    %134 = vmatpush1.bf16.msra.mxu0 0
    %135 = vmatprep.mubr.bf16.mxu0 0
    %136 = vmatmul.mubr.bf16.gmra.mrb[0].mxu0 %v95
    %v137 = vpop.f32.mrb[0].mxu0
    %v138 = vadd.f32 0.0, %v137
    %v139 = vpop.f32.mrb[0].mxu0
    %v140 = vpop.f32.mrb[0].mxu0
    %v141 = vadd.f32 0.0, %v140
    %v142 = vpop.f32.mrb[0].mxu0
    %143 = vmatprep.mubr.bf16.mxu0 0
    %144 = vmatmul.mubr.bf16.gmra.mrb[0].mxu0 %v98
    %v145 = vpop.f32.mrb[0].mxu0
    %v146 = vadd.f32 0.0, %v145
    %v147 = vpop.f32.mrb[0].mxu0
    %v148 = vpop.f32.mrb[0].mxu0
    %v149 = vadd.f32 0.0, %v148
    %v150 = vpop.f32.mrb[0].mxu0
    %151 = vmatprep.mubr.bf16.mxu0 0
    %152 = vmatmul.mubr.bf16.gmra.mrb[0].mxu0 %v101
    %v153 = vpop.f32.mrb[0].mxu0
    %v154 = vadd.f32 0.0, %v153
    %v155 = vpop.f32.mrb[0].mxu0
    %v156 = vpop.f32.mrb[0].mxu0
    %v157 = vpop.f32.mrb[0].mxu0
    %158 = vdwg.mxu0
    %v159 = vadd.f32 %v38, %v138
    %v160 = vadd.f32 %v39, %v141
    %v161 = vadd.f32 %v40, %v146
    %v162 = vadd.f32 %v41, %v149
    %v163 = vadd.f32 %v42, %v154
    %vm164 = vcmask 261120
    %165 = vst.msk [vmem:[#allocation2] sm:$0xff] %vm164, %v159
    %166 = vst.msk [vmem:[#allocation2 + $0x8] sm:$0xff] %vm164, %v160
    %167 = vst.msk [vmem:[#allocation2 + $0x10] sm:$0xff] %vm164, %v161
    %168 = vst.msk [vmem:[#allocation2 + $0x18] sm:$0xff] %vm164, %v162
    %vm169 = vcmask 254976
    %170 = vst.msk [vmem:[#allocation2 + $0x20] sm:$0x3] %vm169, %v163
    // Predicated region
    $region30: #{transformer_forward.35} parent=1 // pred_check
      %p171 = pneg %p27
    $region31: #{transformer_forward.35} parent=1 // pred_check_branch
      %173 = sbr.rel (%p171) target = $region33
    $region32: #{transformer_forward.35} parent=1 // pred_region
      %v174 = vld [vmem:[#allocation2] sm:$0xff]
      %v175 = vld [vmem:[#allocation2 + $0x8] sm:$0xff]
      %v176 = vld [vmem:[#allocation2 + $0x10] sm:$0xff]
      %v177 = vld [vmem:[#allocation2 + $0x18] sm:$0xff]
      %v178 = vld [vmem:[#allocation2 + $0x20] sm:$0x3]
      %v179 = vld [vmem:[%s2] sm:$0x1]
      %v181 = vlaneseq
      %v182 = vshrl.u32 %v181, 7
      %v183 = vsub.s32 0, %v182
      %v184 = vrot.slane %v179, %v183
      %v186 = vadd.f32 %v174, %v184
      %v187 = vadd.f32 %v175, %v184
      %v188 = vadd.f32 %v176, %v184
      %v189 = vadd.f32 %v177, %v184
      %v190 = vadd.f32 %v178, %v184
      %v191 = vld [vmem:[%s3] sm:$0xff]
      %v192 = vld [vmem:[%s3 + $0x8] sm:$0xff]
      %v193 = vld [vmem:[%s3 + $0x10] sm:$0xff]
      %v194 = vld [vmem:[%s3 + $0x18] sm:$0xff]
      %v195 = vld [vmem:[%s3 + $0x20] sm:$0x3]
      %v196 = vadd.f32 %v186, %v191
      %v197 = vadd.f32 %v187, %v192
      %v198 = vadd.f32 %v188, %v193
      %v199 = vadd.f32 %v189, %v194
      %v200 = vadd.f32 %v190, %v195
      %201 = vst.msk [vmem:[#allocation3] sm:$0xff] %vm164, %v196
      %202 = vst.msk [vmem:[#allocation3 + $0x8] sm:$0xff] %vm164, %v197
      %203 = vst.msk [vmem:[#allocation3 + $0x10] sm:$0xff] %vm164, %v198
      %204 = vst.msk [vmem:[#allocation3 + $0x18] sm:$0xff] %vm164, %v199
      %205 = vst.msk [vmem:[#allocation3 + $0x20] sm:$0x3] %vm169, %v200
      %v206 = vsel %vm164, %v196, 0.0
      %207 = vadd.xlane.f32.xlu0 %v206
      %v208 = vpop.xlane.xlu0 %207
      %v209 = vsel %vm164, %v197, 0.0
      %210 = vadd.xlane.f32.xlu0 %v209
      %v211 = vpop.xlane.xlu0 %210
      %v212 = vsel %vm164, %v198, 0.0
      %213 = vadd.xlane.f32.xlu0 %v212
      %v214 = vpop.xlane.xlu0 %213
      %v215 = vsel %vm164, %v199, 0.0
      %216 = vadd.xlane.f32.xlu0 %v215
      %v217 = vpop.xlane.xlu0 %216
      %v218 = vsel %vm169, %v200, 0.0
      %219 = vadd.xlane.f32.xlu0 %v218
      %v220 = vpop.xlane.xlu0 %219
      %v221 = vrcp.pop 32.0
      %v222 = vmul.f32 %v208, %v221
      %v223 = vmul.f32 %v211, %v221
      %v224 = vmul.f32 %v214, %v221
      %v225 = vmul.f32 %v217, %v221
      %v226 = vmul.f32 %v220, %v221
      %v227 = vsub.f32 %v196, %v222
      %v228 = vsub.f32 %v197, %v223
      %v229 = vsub.f32 %v198, %v224
      %v230 = vsub.f32 %v199, %v225
      %v231 = vsub.f32 %v200, %v226
      %v232 = vmul.f32 %v227, %v227
      %v233 = vmul.f32 %v228, %v228
      %v234 = vmul.f32 %v229, %v229
      %v235 = vmul.f32 %v230, %v230
      %v236 = vmul.f32 %v231, %v231
      %v237 = vsel %vm164, %v232, 0.0
      %238 = vadd.xlane.f32.xlu0 %v237
      %v239 = vpop.xlane.xlu0 %238
      %v240 = vsel %vm164, %v233, 0.0
      %241 = vadd.xlane.f32.xlu0 %v240
      %v242 = vpop.xlane.xlu0 %241
      %v243 = vsel %vm164, %v234, 0.0
      %244 = vadd.xlane.f32.xlu0 %v243
      %v245 = vpop.xlane.xlu0 %244
      %v246 = vsel %vm164, %v235, 0.0
      %247 = vadd.xlane.f32.xlu0 %v246
      %v248 = vpop.xlane.xlu0 %247
      %v249 = vsel %vm169, %v236, 0.0
      %250 = vadd.xlane.f32.xlu0 %v249
      %v251 = vpop.xlane.xlu0 %250
      %v252 = vmul.f32 %v239, %v221
      %v253 = vmul.f32 %v242, %v221
      %v254 = vmul.f32 %v245, %v221
      %v255 = vmul.f32 %v248, %v221
      %v256 = vmul.f32 %v251, %v221
      %v257 = vadd.f32 %v252, 1e-05
      %v258 = vadd.f32 %v253, 1e-05
      %v259 = vadd.f32 %v254, 1e-05
      %v260 = vadd.f32 %v255, 1e-05
      %v261 = vadd.f32 %v256, 1e-05
      %v262 = vrsqrt.pop %v257
      %v263 = vrsqrt.pop %v258
      %v264 = vrsqrt.pop %v259
      %v265 = vrsqrt.pop %v260
      %v266 = vrsqrt.pop %v261
      %v267 = vmul.f32 %v227, %v262
      %v268 = vmul.f32 %v228, %v263
      %v269 = vmul.f32 %v229, %v264
      %v270 = vmul.f32 %v230, %v265
      %v271 = vmul.f32 %v231, %v266
      %v272 = vld [vmem:[%s4] sm:$0x1]
      %v274 = vlaneseq
      %v275 = vshrl.u32 %v274, 7
      %v276 = vsub.s32 0, %v275
      %v277 = vrot.slane %v272, %v276
      %v279 = vmul.f32 %v267, %v277
      %v280 = vmul.f32 %v268, %v277
      %v281 = vmul.f32 %v269, %v277
      %v282 = vmul.f32 %v270, %v277
      %v283 = vmul.f32 %v271, %v277
      %v284 = vld [vmem:[%s5] sm:$0x1]
      %v286 = vlaneseq
      %v287 = vshrl.u32 %v286, 7
      %v288 = vsub.s32 0, %v287
      %v289 = vrot.slane %v284, %v288
      %v291 = vadd.f32 %v279, %v289
      %v292 = vadd.f32 %v280, %v289
      %v293 = vadd.f32 %v281, %v289
      %v294 = vadd.f32 %v282, %v289
      %v295 = vadd.f32 %v283, %v289
      %v296 = vpack.c.bf16 %v292, %v291
      %v297 = vpack.c.bf16 %v294, %v293
      %v298 = vpack.c.bf16 %v295, %v295
      %v302 = vunpack.c.l.b16 %v296
      %v303 = vunpack.c.h.b16 %v296
      %v304 = vunpack.c.l.b16 %v297
      %v305 = vunpack.c.h.b16 %v297
      %v306 = vunpack.c.l.b16 %v298
      %v307 = vpack.c.b16 %v302, %v302
      %v308 = vpack.c.b16 %v303, %v303
      %v309 = vpack.c.b16 %v304, %v304
      %v310 = vpack.c.b16 %v305, %v305
      %v311 = vpack.c.b16 %v306, %v306
      %vm317 = vcmask 257024
      %318 = vst.msk [vmem:[%s7] sm:$0xf] %vm317, %v307
      %319 = vst.msk [vmem:[%s7 + $0x4] sm:$0xf] %vm317, %v308
      %320 = vst.msk [vmem:[%s7 + $0x8] sm:$0xf] %vm317, %v309
      %321 = vst.msk [vmem:[%s7 + $0xc] sm:$0xf] %vm317, %v310
      %vm322 = vcmask 253952
      %323 = vst.msk [vmem:[%s7 + $0x10] sm:$0x1] %vm322, %v311
    $region33: #{transformer_forward.35} parent=1 // pred_fallthru
      _
    // Predicated region
    $region34: #{transformer_forward.35} parent=1 // pred_check
      _
    $region35: #{transformer_forward.35} parent=1 // pred_check_branch
      %325 = sbr.rel (0) target = $region37
    $region36: #{transformer_forward.35} parent=1 // pred_region
      %s327 = ssub.s32 640, 640
      %328 = vsyncadd [#allocation4], %s327
      %s329 = sshll.u32 [#allocation3], 4
      %s330 = int_to_ptr.vmem [resolvable:$true] %s329
      %335 = dma.vmem_to_hbm [thread:$0]  %s330, 640, %s6, [#allocation4], 128, 128, 8
    $region37: #{transformer_forward.35} parent=1 // pred_fallthru
      _
    // Predicated region
    $region38: #{transformer_forward.35} parent=1 // pred_check
      _
    $region39: #{transformer_forward.35} parent=1 // pred_check_branch
      %337 = sbr.rel (0) target = $region41
    $region40: #{transformer_forward.35} parent=1 // pred_region
      _
    $region41: #{transformer_forward.35} parent=1 // pred_fallthru
      _
    // Predicated region
    $region42: #{transformer_forward.35} parent=1 // pred_check
      _
    $region43: #{transformer_forward.35} parent=1 // pred_check_branch
      %339 = sbr.rel (0) target = $region45
    $region44: #{transformer_forward.35} parent=1 // pred_region
      %340 = dma.done [#allocation4], 640
    $region45: #{transformer_forward.35} parent=1 // pred_fallthru
      _
    // Predicated region
    $region46: #{transformer_forward.35} parent=1 // pred_check
      _
    $region47: #{transformer_forward.35} parent=1 // pred_check_branch
      %342 = sbr.rel (0) target = $region49
    $region48: #{transformer_forward.35} parent=1 // pred_region
      _
    $region49: #{transformer_forward.35} parent=1 // pred_fallthru
      _
    %343 = vsyncpa [#allocation4], 1

// kernel: transformer_forward.41
$region0: #{transformer_forward.41}
  #allocation0 [shape = 'u32[]', space=smem, size = 0x4, offset = 0x4, fixed_abs, tag = 'smem constant byte address 0x4 - core index']
  #allocation1 [shape = 'u32[144,128]{1,0:T(1,128)}', space=vmem, size = 0x12000, scoped, tag = 'internal scratch']
  #allocation2 [shape = 'f32[40,64]{1,0:T(8,128)}', space=vmem, size = 0x5000, scoped, tag = 'scratch operand']
  %s0 = inlined_call_operand.vmem [shape: bf16[40,32], index: 0, kind: input, shape index: {}]
  %s1 = inlined_call_operand.vmem [shape: bf16[32,64], index: 1, kind: input, shape index: {}]
  %s2 = inlined_call_operand.vmem [shape: f32[1,64], index: 2, kind: input, shape index: {}]
  %s3 = inlined_call_operand.vmem [shape: bf16[40,64], index: 3, kind: output, shape index: {}]
  %s4 = sld [smem:[#allocation0]]
  $region30: #{transformer_forward.41} parent=0
    _
  %s6 = ssub.s32 1, %s4
  %s7 = scalar_select 0, %s6, %s4
  // Predicated region
  $region2: #{transformer_forward.41} parent=0 // pred_check
    _
  $region3: #{transformer_forward.41} parent=0 // pred_check_branch
    %9 = sbr.rel (0) target = $region5
  $region4: #{transformer_forward.41} parent=0 // pred_region
    _
  $region5: #{transformer_forward.41} parent=0 // pred_fallthru
    _
  // Predicated region
  $region6: #{transformer_forward.41} parent=0 // pred_check
    _
  $region7: #{transformer_forward.41} parent=0 // pred_check_branch
    %11 = sbr.rel (0) target = $region9
  $region8: #{transformer_forward.41} parent=0 // pred_region
    _
  $region9: #{transformer_forward.41} parent=0 // pred_fallthru
    _
  // Predicated region
  $region10: #{transformer_forward.41} parent=0 // pred_check
    _
  $region11: #{transformer_forward.41} parent=0 // pred_check_branch
    %13 = sbr.rel (0) target = $region13
  $region12: #{transformer_forward.41} parent=0 // pred_region
    _
  $region13: #{transformer_forward.41} parent=0 // pred_fallthru
    _
  %p15 = scmp.eq.s32.totalorder 0, 0
  // Predicated region
  $region14: #{transformer_forward.41} parent=0 // pred_check
    %p16 = pneg %p15
  $region15: #{transformer_forward.41} parent=0 // pred_check_branch
    %18 = sbr.rel (%p16) target = $region17
  $region16: #{transformer_forward.41} parent=0 // pred_region
    %vm19 = vcmask 523264
    %20 = vst.msk [vmem:[#allocation2] sm:$0xff] %vm19, 0.0
    %21 = vst.msk [vmem:[#allocation2 + $0x8] sm:$0xff] %vm19, 0.0
    %22 = vst.msk [vmem:[#allocation2 + $0x10] sm:$0xff] %vm19, 0.0
    %23 = vst.msk [vmem:[#allocation2 + $0x18] sm:$0xff] %vm19, 0.0
    %24 = vst.msk [vmem:[#allocation2 + $0x20] sm:$0xff] %vm19, 0.0
  $region17: #{transformer_forward.41} parent=0 // pred_fallthru
    _
  %v25 = vld [vmem:[#allocation2] sm:$0xff]
  %v26 = vld [vmem:[#allocation2 + $0x8] sm:$0xff]
  %v27 = vld [vmem:[#allocation2 + $0x10] sm:$0xff]
  %v28 = vld [vmem:[#allocation2 + $0x18] sm:$0xff]
  %v29 = vld [vmem:[#allocation2 + $0x20] sm:$0xff]
  %v30 = vld [vmem:[%s0] sm:$0xf]
  %v31 = vld [vmem:[%s0 + $0x4] sm:$0xf]
  %v32 = vld [vmem:[%s0 + $0x8] sm:$0xf]
  %v33 = vld [vmem:[%s0 + $0xc] sm:$0xf]
  %v34 = vld [vmem:[%s0 + $0x10] sm:$0xf]
  %v35 = vld [vmem:[%s1] sm:$0xf]
  %v36 = vld [vmem:[%s1 + $0x4] sm:$0xf]
  %v37 = vld [vmem:[%s1 + $0x8] sm:$0xf]
  %v38 = vld [vmem:[%s1 + $0xc] sm:$0xf]
  %v44 = vunpack.c.l.b16 %v30
  %v45 = vunpack.c.l.b16 %v31
  %v46 = vunpack.c.l.b16 %v32
  %v47 = vunpack.c.l.b16 %v33
  %v48 = vunpack.c.l.b16 %v34
  %v49 = vpack.c.b16 %v45, %v44
  %v50 = vpack.c.b16 %v47, %v46
  %v51 = vpack.c.b16 %v48, %v48
  %v56 = vunpack.c.l.b16 %v35
  %v57 = vunpack.c.l.b16 %v36
  %v58 = vunpack.c.l.b16 %v37
  %v59 = vunpack.c.l.b16 %v38
  %v60 = vpack.c.b16 %v57, %v56
  %v61 = vpack.c.b16 %v59, %v58
  %vm64 = vcmask 261120
  %v66 = vsel %vm64, %v49, 0
  %v69 = vsel %vm64, %v50, 0
  %v72 = vsel %vm64, %v51, 0
  %74 = vmatprep.subr.bf16.mxu0 0
  %75 = vmatpush1.bf16.msra.mxu0 %v60
  %76 = vmatprep.subr.bf16.mxu0 0
  %77 = vmatpush1.bf16.msra.mxu0 %v61
  %78 = vmatprep.subr.bf16.mxu0 0
  %79 = vmatpush1.bf16.msra.mxu0 0
  %80 = vmatprep.subr.bf16.mxu0 0
  %81 = vmatpush1.bf16.msra.mxu0 0
  %82 = vmatprep.subr.bf16.mxu0 0
  %83 = vmatpush1.bf16.msra.mxu0 0
  %84 = vmatprep.subr.bf16.mxu0 0
  %85 = vmatpush1.bf16.msra.mxu0 0
  %86 = vmatprep.subr.bf16.mxu0 0
  %87 = vmatpush1.bf16.msra.mxu0 0
  %88 = vmatprep.subr.bf16.mxu0 0
  %89 = vmatpush1.bf16.msra.mxu0 0
  %90 = vmatprep.subr.bf16.mxu0 0
  %91 = vmatpush1.bf16.msra.mxu0 0
  %92 = vmatprep.subr.bf16.mxu0 0
  %93 = vmatpush1.bf16.msra.mxu0 0
  %94 = vmatprep.subr.bf16.mxu0 0
  %95 = vmatpush1.bf16.msra.mxu0 0
  %96 = vmatprep.subr.bf16.mxu0 0
  %97 = vmatpush1.bf16.msra.mxu0 0
  %98 = vmatprep.subr.bf16.mxu0 0
  %99 = vmatpush1.bf16.msra.mxu0 0
  %100 = vmatprep.subr.bf16.mxu0 0
  %101 = vmatpush1.bf16.msra.mxu0 0
  %102 = vmatprep.subr.bf16.mxu0 0
  %103 = vmatpush1.bf16.msra.mxu0 0
  %104 = vmatprep.subr.bf16.mxu0 0
  %105 = vmatpush1.bf16.msra.mxu0 0
  %106 = vmatprep.mubr.bf16.mxu0 0
  %107 = vmatmul.mubr.bf16.gmra.mrb[0].mxu0 %v66
  %v108 = vpop.f32.mrb[0].mxu0
  %v109 = vadd.f32 0.0, %v108
  %v110 = vpop.f32.mrb[0].mxu0
  %v111 = vpop.f32.mrb[0].mxu0
  %v112 = vadd.f32 0.0, %v111
  %v113 = vpop.f32.mrb[0].mxu0
  %114 = vmatprep.mubr.bf16.mxu0 0
  %115 = vmatmul.mubr.bf16.gmra.mrb[0].mxu0 %v69
  %v116 = vpop.f32.mrb[0].mxu0
  %v117 = vadd.f32 0.0, %v116
  %v118 = vpop.f32.mrb[0].mxu0
  %v119 = vpop.f32.mrb[0].mxu0
  %v120 = vadd.f32 0.0, %v119
  %v121 = vpop.f32.mrb[0].mxu0
  %122 = vmatprep.mubr.bf16.mxu0 0
  %123 = vmatmul.mubr.bf16.gmra.mrb[0].mxu0 %v72
  %v124 = vpop.f32.mrb[0].mxu0
  %v125 = vadd.f32 0.0, %v124
  %v126 = vpop.f32.mrb[0].mxu0
  %v127 = vpop.f32.mrb[0].mxu0
  %v128 = vpop.f32.mrb[0].mxu0
  %129 = vdwg.mxu0
  %v130 = vadd.f32 %v25, %v109
  %v131 = vadd.f32 %v26, %v112
  %v132 = vadd.f32 %v27, %v117
  %v133 = vadd.f32 %v28, %v120
  %v134 = vadd.f32 %v29, %v125
  %vm135 = vcmask 523264
  %136 = vst.msk [vmem:[#allocation2] sm:$0xff] %vm135, %v130
  %137 = vst.msk [vmem:[#allocation2 + $0x8] sm:$0xff] %vm135, %v131
  %138 = vst.msk [vmem:[#allocation2 + $0x10] sm:$0xff] %vm135, %v132
  %139 = vst.msk [vmem:[#allocation2 + $0x18] sm:$0xff] %vm135, %v133
  %140 = vst.msk [vmem:[#allocation2 + $0x20] sm:$0xff] %vm135, %v134
  // Predicated region
  $region18: #{transformer_forward.41} parent=0 // pred_check
    %p141 = pneg %p15
  $region19: #{transformer_forward.41} parent=0 // pred_check_branch
    %143 = sbr.rel (%p141) target = $region21
  $region20: #{transformer_forward.41} parent=0 // pred_region
    %v144 = vld [vmem:[#allocation2] sm:$0xff]
    %v145 = vld [vmem:[#allocation2 + $0x8] sm:$0xff]
    %v146 = vld [vmem:[#allocation2 + $0x10] sm:$0xff]
    %v147 = vld [vmem:[#allocation2 + $0x18] sm:$0xff]
    %v148 = vld [vmem:[#allocation2 + $0x20] sm:$0xff]
    %v149 = vld [vmem:[%s2] sm:$0x1]
    %v151 = vlaneseq
    %v152 = vshrl.u32 %v151, 7
    %v153 = vsub.s32 0, %v152
    %v154 = vrot.slane %v149, %v153
    %v156 = vadd.f32 %v144, %v154
    %v157 = vadd.f32 %v145, %v154
    %v158 = vadd.f32 %v146, %v154
    %v159 = vadd.f32 %v147, %v154
    %v160 = vadd.f32 %v148, %v154
    %v161 = vmul.f32 %v156, %v156
    %v162 = vmul.f32 %v157, %v157
    %v163 = vmul.f32 %v158, %v158
    %v164 = vmul.f32 %v159, %v159
    %v165 = vmul.f32 %v160, %v160
    %v166 = vmul.f32 %v156, %v161
    %v167 = vmul.f32 %v157, %v162
    %v168 = vmul.f32 %v158, %v163
    %v169 = vmul.f32 %v159, %v164
    %v170 = vmul.f32 %v160, %v165
    %v171 = vmul.f32 %v166, 0.044715
    %v172 = vmul.f32 %v167, 0.044715
    %v173 = vmul.f32 %v168, 0.044715
    %v174 = vmul.f32 %v169, 0.044715
    %v175 = vmul.f32 %v170, 0.044715
    %v176 = vadd.f32 %v156, %v171
    %v177 = vadd.f32 %v157, %v172
    %v178 = vadd.f32 %v158, %v173
    %v179 = vadd.f32 %v159, %v174
    %v180 = vadd.f32 %v160, %v175
    %v181 = vmul.f32 %v176, 0.7978846
    %v182 = vmul.f32 %v177, 0.7978846
    %v183 = vmul.f32 %v178, 0.7978846
    %v184 = vmul.f32 %v179, 0.7978846
    %v185 = vmul.f32 %v180, 0.7978846
    %v186 = vtanh.pop %v181
    %v187 = vtanh.pop %v182
    %v188 = vtanh.pop %v183
    %v189 = vtanh.pop %v184
    %v190 = vtanh.pop %v185
    %v191 = vadd.f32 %v186, 1.0
    %v192 = vadd.f32 %v187, 1.0
    %v193 = vadd.f32 %v188, 1.0
    %v194 = vadd.f32 %v189, 1.0
    %v195 = vadd.f32 %v190, 1.0
    %v196 = vmul.f32 %v191, 0.5
    %v197 = vmul.f32 %v192, 0.5
    %v198 = vmul.f32 %v193, 0.5
    %v199 = vmul.f32 %v194, 0.5
    %v200 = vmul.f32 %v195, 0.5
    %v201 = vmul.f32 %v156, %v196
    %v202 = vmul.f32 %v157, %v197
    %v203 = vmul.f32 %v158, %v198
    %v204 = vmul.f32 %v159, %v199
    %v205 = vmul.f32 %v160, %v200
    %v206 = vpack.c.bf16 %v202, %v201
    %v207 = vpack.c.bf16 %v204, %v203
    %v208 = vpack.c.bf16 %v205, %v205
    %v212 = vunpack.c.l.b16 %v206
    %v213 = vunpack.c.h.b16 %v206
    %v214 = vunpack.c.l.b16 %v207
    %v215 = vunpack.c.h.b16 %v207
    %v216 = vunpack.c.l.b16 %v208
    %v217 = vpack.c.b16 %v212, %v212
    %v218 = vpack.c.b16 %v213, %v213
    %v219 = vpack.c.b16 %v214, %v214
    %v220 = vpack.c.b16 %v215, %v215
    %v221 = vpack.c.b16 %v216, %v216
    %vm227 = vcmask 519168
    %228 = vst.msk [vmem:[%s3] sm:$0xf] %vm227, %v217
    %229 = vst.msk [vmem:[%s3 + $0x4] sm:$0xf] %vm227, %v218
    %230 = vst.msk [vmem:[%s3 + $0x8] sm:$0xf] %vm227, %v219
    %231 = vst.msk [vmem:[%s3 + $0xc] sm:$0xf] %vm227, %v220
    %232 = vst.msk [vmem:[%s3 + $0x10] sm:$0xf] %vm227, %v221
  $region21: #{transformer_forward.41} parent=0 // pred_fallthru
    _
  // Predicated region
  $region22: #{transformer_forward.41} parent=0 // pred_check
    _
  $region23: #{transformer_forward.41} parent=0 // pred_check_branch
    %234 = sbr.rel (0) target = $region25
  $region24: #{transformer_forward.41} parent=0 // pred_region
    _
  $region25: #{transformer_forward.41} parent=0 // pred_fallthru
    _
  // Predicated region
  $region26: #{transformer_forward.41} parent=0 // pred_check
    _
  $region27: #{transformer_forward.41} parent=0 // pred_check_branch
    %236 = sbr.rel (0) target = $region29
  $region28: #{transformer_forward.41} parent=0 // pred_region
    _
  $region29: #{transformer_forward.41} parent=0 // pred_fallthru
    _

// kernel: transformer_forward.40
$region0: #{transformer_forward.40}
  #allocation0 [shape = 'u32[]', space=smem, size = 0x4, offset = 0x4, fixed_abs, tag = 'smem constant byte address 0x4 - core index']
  #allocation1 [shape = 'u32[144,128]{1,0:T(1,128)}', space=vmem, size = 0x12000, scoped, tag = 'internal scratch']
  #allocation2 [shape = 'f32[40,32]{1,0:T(8,128)}', space=vmem, size = 0x5000, scoped, tag = 'scratch operand']
  %s0 = inlined_call_operand.vmem [shape: bf16[40,32], index: 0, kind: input, shape index: {}]
  %s1 = inlined_call_operand.vmem [shape: bf16[32,32], index: 1, kind: input, shape index: {}]
  %s2 = inlined_call_operand.vmem [shape: f32[1,32], index: 2, kind: input, shape index: {}]
  %s3 = inlined_call_operand.vmem [shape: f32[40,32], index: 3, kind: input, shape index: {}]
  %s4 = inlined_call_operand.vmem [shape: f32[1,32], index: 4, kind: input, shape index: {}]
  %s5 = inlined_call_operand.vmem [shape: f32[1,32], index: 5, kind: input, shape index: {}]
  %s6 = inlined_call_operand.vmem [shape: f32[40,32], index: 6, kind: output, shape index: {0}]
  %s7 = inlined_call_operand.vmem [shape: bf16[40,32], index: 7, kind: output, shape index: {1}]
  %8 = xla_tuple %s6, %s7
  %s9 = sld [smem:[#allocation0]]
  $region50: #{transformer_forward.40} parent=0
    _
  %s11 = ssub.s32 1, %s9
  %s12 = scalar_select 0, %s11, %s9
  // Predicated region
  $region2: #{transformer_forward.40} parent=0 // pred_check
    _
  $region3: #{transformer_forward.40} parent=0 // pred_check_branch
    %14 = sbr.rel (0) target = $region5
  $region4: #{transformer_forward.40} parent=0 // pred_region
    _
  $region5: #{transformer_forward.40} parent=0 // pred_fallthru
    _
  // Predicated region
  $region6: #{transformer_forward.40} parent=0 // pred_check
    _
  $region7: #{transformer_forward.40} parent=0 // pred_check_branch
    %16 = sbr.rel (0) target = $region9
  $region8: #{transformer_forward.40} parent=0 // pred_region
    _
  $region9: #{transformer_forward.40} parent=0 // pred_fallthru
    _
  // Predicated region
  $region10: #{transformer_forward.40} parent=0 // pred_check
    _
  $region11: #{transformer_forward.40} parent=0 // pred_check_branch
    %18 = sbr.rel (0) target = $region13
  $region12: #{transformer_forward.40} parent=0 // pred_region
    _
  $region13: #{transformer_forward.40} parent=0 // pred_fallthru
    _
  // Predicated region
  $region14: #{transformer_forward.40} parent=0 // pred_check
    _
  $region15: #{transformer_forward.40} parent=0 // pred_check_branch
    %20 = sbr.rel (0) target = $region17
  $region16: #{transformer_forward.40} parent=0 // pred_region
    _
  $region17: #{transformer_forward.40} parent=0 // pred_fallthru
    _
  // Predicated region
  $region18: #{transformer_forward.40} parent=0 // pred_check
    _
  $region19: #{transformer_forward.40} parent=0 // pred_check_branch
    %22 = sbr.rel (0) target = $region21
  $region20: #{transformer_forward.40} parent=0 // pred_region
    _
  $region21: #{transformer_forward.40} parent=0 // pred_fallthru
    _
  // Predicated region
  $region22: #{transformer_forward.40} parent=0 // pred_check
    _
  $region23: #{transformer_forward.40} parent=0 // pred_check_branch
    %24 = sbr.rel (0) target = $region25
  $region24: #{transformer_forward.40} parent=0 // pred_region
    _
  $region25: #{transformer_forward.40} parent=0 // pred_fallthru
    _
  %p26 = scmp.eq.s32.totalorder 0, 0
  // Predicated region
  $region26: #{transformer_forward.40} parent=0 // pred_check
    %p27 = pneg %p26
  $region27: #{transformer_forward.40} parent=0 // pred_check_branch
    %29 = sbr.rel (%p27) target = $region29
  $region28: #{transformer_forward.40} parent=0 // pred_region
    %vm30 = vcmask 261120
    %31 = vst.msk [vmem:[#allocation2] sm:$0xff] %vm30, 0.0
    %32 = vst.msk [vmem:[#allocation2 + $0x8] sm:$0xff] %vm30, 0.0
    %33 = vst.msk [vmem:[#allocation2 + $0x10] sm:$0xff] %vm30, 0.0
    %34 = vst.msk [vmem:[#allocation2 + $0x18] sm:$0xff] %vm30, 0.0
    %35 = vst.msk [vmem:[#allocation2 + $0x20] sm:$0xff] %vm30, 0.0
  $region29: #{transformer_forward.40} parent=0 // pred_fallthru
    _
  %v36 = vld [vmem:[#allocation2] sm:$0xff]
  %v37 = vld [vmem:[#allocation2 + $0x8] sm:$0xff]
  %v38 = vld [vmem:[#allocation2 + $0x10] sm:$0xff]
  %v39 = vld [vmem:[#allocation2 + $0x18] sm:$0xff]
  %v40 = vld [vmem:[#allocation2 + $0x20] sm:$0xff]
  %v41 = vld [vmem:[%s0] sm:$0xf]
  %v42 = vld [vmem:[%s0 + $0x4] sm:$0xf]
  %v43 = vld [vmem:[%s0 + $0x8] sm:$0xf]
  %v44 = vld [vmem:[%s0 + $0xc] sm:$0xf]
  %v45 = vld [vmem:[%s0 + $0x10] sm:$0xf]
  %v46 = vld [vmem:[%s1] sm:$0xf]
  %v47 = vld [vmem:[%s1 + $0x4] sm:$0xf]
  %v48 = vld [vmem:[%s1 + $0x8] sm:$0xf]
  %v49 = vld [vmem:[%s1 + $0xc] sm:$0xf]
  %v55 = vunpack.c.l.b16 %v41
  %v56 = vunpack.c.l.b16 %v42
  %v57 = vunpack.c.l.b16 %v43
  %v58 = vunpack.c.l.b16 %v44
  %v59 = vunpack.c.l.b16 %v45
  %v60 = vpack.c.b16 %v56, %v55
  %v61 = vpack.c.b16 %v58, %v57
  %v62 = vpack.c.b16 %v59, %v59
  %v67 = vunpack.c.l.b16 %v46
  %v68 = vunpack.c.l.b16 %v47
  %v69 = vunpack.c.l.b16 %v48
  %v70 = vunpack.c.l.b16 %v49
  %v71 = vpack.c.b16 %v68, %v67
  %v72 = vpack.c.b16 %v70, %v69
  %vm75 = vcmask 261120
  %v77 = vsel %vm75, %v60, 0
  %v80 = vsel %vm75, %v61, 0
  %v83 = vsel %vm75, %v62, 0
  %85 = vmatprep.subr.bf16.mxu0 0
  %86 = vmatpush1.bf16.msra.mxu0 %v71
  %87 = vmatprep.subr.bf16.mxu0 0
  %88 = vmatpush1.bf16.msra.mxu0 %v72
  %89 = vmatprep.subr.bf16.mxu0 0
  %90 = vmatpush1.bf16.msra.mxu0 0
  %91 = vmatprep.subr.bf16.mxu0 0
  %92 = vmatpush1.bf16.msra.mxu0 0
  %93 = vmatprep.subr.bf16.mxu0 0
  %94 = vmatpush1.bf16.msra.mxu0 0
  %95 = vmatprep.subr.bf16.mxu0 0
  %96 = vmatpush1.bf16.msra.mxu0 0
  %97 = vmatprep.subr.bf16.mxu0 0
  %98 = vmatpush1.bf16.msra.mxu0 0
  %99 = vmatprep.subr.bf16.mxu0 0
  %100 = vmatpush1.bf16.msra.mxu0 0
  %101 = vmatprep.subr.bf16.mxu0 0
  %102 = vmatpush1.bf16.msra.mxu0 0
  %103 = vmatprep.subr.bf16.mxu0 0
  %104 = vmatpush1.bf16.msra.mxu0 0
  %105 = vmatprep.subr.bf16.mxu0 0
  %106 = vmatpush1.bf16.msra.mxu0 0
  %107 = vmatprep.subr.bf16.mxu0 0
  %108 = vmatpush1.bf16.msra.mxu0 0
  %109 = vmatprep.subr.bf16.mxu0 0
  %110 = vmatpush1.bf16.msra.mxu0 0
  %111 = vmatprep.subr.bf16.mxu0 0
  %112 = vmatpush1.bf16.msra.mxu0 0
  %113 = vmatprep.subr.bf16.mxu0 0
  %114 = vmatpush1.bf16.msra.mxu0 0
  %115 = vmatprep.subr.bf16.mxu0 0
  %116 = vmatpush1.bf16.msra.mxu0 0
  %117 = vmatprep.mubr.bf16.mxu0 0
  %118 = vmatmul.mubr.bf16.gmra.mrb[0].mxu0 %v77
  %v119 = vpop.f32.mrb[0].mxu0
  %v120 = vadd.f32 0.0, %v119
  %v121 = vpop.f32.mrb[0].mxu0
  %v122 = vpop.f32.mrb[0].mxu0
  %v123 = vadd.f32 0.0, %v122
  %v124 = vpop.f32.mrb[0].mxu0
  %125 = vmatprep.mubr.bf16.mxu0 0
  %126 = vmatmul.mubr.bf16.gmra.mrb[0].mxu0 %v80
  %v127 = vpop.f32.mrb[0].mxu0
  %v128 = vadd.f32 0.0, %v127
  %v129 = vpop.f32.mrb[0].mxu0
  %v130 = vpop.f32.mrb[0].mxu0
  %v131 = vadd.f32 0.0, %v130
  %v132 = vpop.f32.mrb[0].mxu0
  %133 = vmatprep.mubr.bf16.mxu0 0
  %134 = vmatmul.mubr.bf16.gmra.mrb[0].mxu0 %v83
  %v135 = vpop.f32.mrb[0].mxu0
  %v136 = vadd.f32 0.0, %v135
  %v137 = vpop.f32.mrb[0].mxu0
  %v138 = vpop.f32.mrb[0].mxu0
  %v139 = vpop.f32.mrb[0].mxu0
  %140 = vdwg.mxu0
  %v141 = vadd.f32 %v36, %v120
  %v142 = vadd.f32 %v37, %v123
  %v143 = vadd.f32 %v38, %v128
  %v144 = vadd.f32 %v39, %v131
  %v145 = vadd.f32 %v40, %v136
  %146 = vst.msk [vmem:[#allocation2] sm:$0xff] %vm75, %v141
  %147 = vst.msk [vmem:[#allocation2 + $0x8] sm:$0xff] %vm75, %v142
  %148 = vst.msk [vmem:[#allocation2 + $0x10] sm:$0xff] %vm75, %v143
  %149 = vst.msk [vmem:[#allocation2 + $0x18] sm:$0xff] %vm75, %v144
  %150 = vst.msk [vmem:[#allocation2 + $0x20] sm:$0xff] %vm75, %v145
  // Predicated region
  $region30: #{transformer_forward.40} parent=0 // pred_check
    %p151 = pneg %p26
  $region31: #{transformer_forward.40} parent=0 // pred_check_branch
    %153 = sbr.rel (%p151) target = $region33
  $region32: #{transformer_forward.40} parent=0 // pred_region
    %v154 = vld [vmem:[#allocation2] sm:$0xff]
    %v155 = vld [vmem:[#allocation2 + $0x8] sm:$0xff]
    %v156 = vld [vmem:[#allocation2 + $0x10] sm:$0xff]
    %v157 = vld [vmem:[#allocation2 + $0x18] sm:$0xff]
    %v158 = vld [vmem:[#allocation2 + $0x20] sm:$0xff]
    %v159 = vld [vmem:[%s2] sm:$0x1]
    %v161 = vlaneseq
    %v162 = vshrl.u32 %v161, 7
    %v163 = vsub.s32 0, %v162
    %v164 = vrot.slane %v159, %v163
    %v166 = vadd.f32 %v154, %v164
    %v167 = vadd.f32 %v155, %v164
    %v168 = vadd.f32 %v156, %v164
    %v169 = vadd.f32 %v157, %v164
    %v170 = vadd.f32 %v158, %v164
    %v171 = vld [vmem:[%s3] sm:$0xff]
    %v172 = vld [vmem:[%s3 + $0x8] sm:$0xff]
    %v173 = vld [vmem:[%s3 + $0x10] sm:$0xff]
    %v174 = vld [vmem:[%s3 + $0x18] sm:$0xff]
    %v175 = vld [vmem:[%s3 + $0x20] sm:$0xff]
    %v176 = vadd.f32 %v166, %v171
    %v177 = vadd.f32 %v167, %v172
    %v178 = vadd.f32 %v168, %v173
    %v179 = vadd.f32 %v169, %v174
    %v180 = vadd.f32 %v170, %v175
    %181 = vst.msk [vmem:[%s6] sm:$0xff] %vm75, %v176
    %182 = vst.msk [vmem:[%s6 + $0x8] sm:$0xff] %vm75, %v177
    %183 = vst.msk [vmem:[%s6 + $0x10] sm:$0xff] %vm75, %v178
    %184 = vst.msk [vmem:[%s6 + $0x18] sm:$0xff] %vm75, %v179
    %185 = vst.msk [vmem:[%s6 + $0x20] sm:$0xff] %vm75, %v180
    %v186 = vsel %vm75, %v176, 0.0
    %187 = vadd.xlane.f32.xlu0 %v186
    %v188 = vpop.xlane.xlu0 %187
    %v189 = vsel %vm75, %v177, 0.0
    %190 = vadd.xlane.f32.xlu0 %v189
    %v191 = vpop.xlane.xlu0 %190
    %v192 = vsel %vm75, %v178, 0.0
    %193 = vadd.xlane.f32.xlu0 %v192
    %v194 = vpop.xlane.xlu0 %193
    %v195 = vsel %vm75, %v179, 0.0
    %196 = vadd.xlane.f32.xlu0 %v195
    %v197 = vpop.xlane.xlu0 %196
    %v198 = vsel %vm75, %v180, 0.0
    %199 = vadd.xlane.f32.xlu0 %v198
    %v200 = vpop.xlane.xlu0 %199
    %v201 = vrcp.pop 32.0
    %v202 = vmul.f32 %v188, %v201
    %v203 = vmul.f32 %v191, %v201
    %v204 = vmul.f32 %v194, %v201
    %v205 = vmul.f32 %v197, %v201
    %v206 = vmul.f32 %v200, %v201
    %v207 = vsub.f32 %v176, %v202
    %v208 = vsub.f32 %v177, %v203
    %v209 = vsub.f32 %v178, %v204
    %v210 = vsub.f32 %v179, %v205
    %v211 = vsub.f32 %v180, %v206
    %v212 = vmul.f32 %v207, %v207
    %v213 = vmul.f32 %v208, %v208
    %v214 = vmul.f32 %v209, %v209
    %v215 = vmul.f32 %v210, %v210
    %v216 = vmul.f32 %v211, %v211
    %v217 = vsel %vm75, %v212, 0.0
    %218 = vadd.xlane.f32.xlu0 %v217
    %v219 = vpop.xlane.xlu0 %218
    %v220 = vsel %vm75, %v213, 0.0
    %221 = vadd.xlane.f32.xlu0 %v220
    %v222 = vpop.xlane.xlu0 %221
    %v223 = vsel %vm75, %v214, 0.0
    %224 = vadd.xlane.f32.xlu0 %v223
    %v225 = vpop.xlane.xlu0 %224
    %v226 = vsel %vm75, %v215, 0.0
    %227 = vadd.xlane.f32.xlu0 %v226
    %v228 = vpop.xlane.xlu0 %227
    %v229 = vsel %vm75, %v216, 0.0
    %230 = vadd.xlane.f32.xlu0 %v229
    %v231 = vpop.xlane.xlu0 %230
    %v232 = vmul.f32 %v219, %v201
    %v233 = vmul.f32 %v222, %v201
    %v234 = vmul.f32 %v225, %v201
    %v235 = vmul.f32 %v228, %v201
    %v236 = vmul.f32 %v231, %v201
    %v237 = vadd.f32 %v232, 1e-05
    %v238 = vadd.f32 %v233, 1e-05
    %v239 = vadd.f32 %v234, 1e-05
    %v240 = vadd.f32 %v235, 1e-05
    %v241 = vadd.f32 %v236, 1e-05
    %v242 = vrsqrt.pop %v237
    %v243 = vrsqrt.pop %v238
    %v244 = vrsqrt.pop %v239
    %v245 = vrsqrt.pop %v240
    %v246 = vrsqrt.pop %v241
    %v247 = vmul.f32 %v207, %v242
    %v248 = vmul.f32 %v208, %v243
    %v249 = vmul.f32 %v209, %v244
    %v250 = vmul.f32 %v210, %v245
    %v251 = vmul.f32 %v211, %v246
    %v252 = vld [vmem:[%s4] sm:$0x1]
    %v254 = vlaneseq
    %v255 = vshrl.u32 %v254, 7
    %v256 = vsub.s32 0, %v255
    %v257 = vrot.slane %v252, %v256
    %v259 = vmul.f32 %v247, %v257
    %v260 = vmul.f32 %v248, %v257
    %v261 = vmul.f32 %v249, %v257
    %v262 = vmul.f32 %v250, %v257
    %v263 = vmul.f32 %v251, %v257
    %v264 = vld [vmem:[%s5] sm:$0x1]
    %v266 = vlaneseq
    %v267 = vshrl.u32 %v266, 7
    %v268 = vsub.s32 0, %v267
    %v269 = vrot.slane %v264, %v268
    %v271 = vadd.f32 %v259, %v269
    %v272 = vadd.f32 %v260, %v269
    %v273 = vadd.f32 %v261, %v269
    %v274 = vadd.f32 %v262, %v269
    %v275 = vadd.f32 %v263, %v269
    %v276 = vpack.c.bf16 %v272, %v271
    %v277 = vpack.c.bf16 %v274, %v273
    %v278 = vpack.c.bf16 %v275, %v275
    %v282 = vunpack.c.l.b16 %v276
    %v283 = vunpack.c.h.b16 %v276
    %v284 = vunpack.c.l.b16 %v277
    %v285 = vunpack.c.h.b16 %v277
    %v286 = vunpack.c.l.b16 %v278
    %v287 = vpack.c.b16 %v282, %v282
    %v288 = vpack.c.b16 %v283, %v283
    %v289 = vpack.c.b16 %v284, %v284
    %v290 = vpack.c.b16 %v285, %v285
    %v291 = vpack.c.b16 %v286, %v286
    %vm297 = vcmask 257024
    %298 = vst.msk [vmem:[%s7] sm:$0xf] %vm297, %v287
    %299 = vst.msk [vmem:[%s7 + $0x4] sm:$0xf] %vm297, %v288
    %300 = vst.msk [vmem:[%s7 + $0x8] sm:$0xf] %vm297, %v289
    %301 = vst.msk [vmem:[%s7 + $0xc] sm:$0xf] %vm297, %v290
    %302 = vst.msk [vmem:[%s7 + $0x10] sm:$0xf] %vm297, %v291
  $region33: #{transformer_forward.40} parent=0 // pred_fallthru
    _
  // Predicated region
  $region34: #{transformer_forward.40} parent=0 // pred_check
    _
  $region35: #{transformer_forward.40} parent=0 // pred_check_branch
    %304 = sbr.rel (0) target = $region37
  $region36: #{transformer_forward.40} parent=0 // pred_region
    _
  $region37: #{transformer_forward.40} parent=0 // pred_fallthru
    _
  // Predicated region
  $region38: #{transformer_forward.40} parent=0 // pred_check
    _
  $region39: #{transformer_forward.40} parent=0 // pred_check_branch
    %306 = sbr.rel (0) target = $region41
  $region40: #{transformer_forward.40} parent=0 // pred_region
    _
  $region41: #{transformer_forward.40} parent=0 // pred_fallthru
    _
  // Predicated region
  $region42: #{transformer_forward.40} parent=0 // pred_check
    _
  $region43: #{transformer_forward.40} parent=0 // pred_check_branch
    %308 = sbr.rel (0) target = $region45
  $region44: #{transformer_forward.40} parent=0 // pred_region
    _
  $region45: #{transformer_forward.40} parent=0 // pred_fallthru
    _
  // Predicated region
  $region46: #{transformer_forward.40} parent=0 // pred_check
    _
  $region47: #{transformer_forward.40} parent=0 // pred_check_branch
    %310 = sbr.rel (0) target = $region49
  $region48: #{transformer_forward.40} parent=0 // pred_region
    _
  $region49: #{transformer_forward.40} parent=0 // pred_fallthru
    _

// kernel: transformer_forward.39
$region0: #{transformer_forward.39}
  #allocation0 [shape = 'u32[]', space=smem, size = 0x4, offset = 0x4, fixed_abs, tag = 'smem constant byte address 0x4 - core index']
  #allocation1 [shape = 'u32[144,128]{1,0:T(1,128)}', space=vmem, size = 0x12000, scoped, tag = 'internal scratch']
  %s0 = inlined_call_operand.vmem [shape: bf16[2,20,96], index: 0, kind: input, shape index: {}]
  %s1 = inlined_call_operand.vmem [shape: bf16[2,20,32], index: 1, kind: output, shape index: {}]
  %s2 = sld [smem:[#allocation0]]
  $region37: #{transformer_forward.39} parent=0
    _
  %s4 = ssub.s32 1, %s2
  %s5 = scalar_select 0, %s4, %s2
  loop: start=0, step=1, limit=4
  $region2: #{transformer_forward.39} parent=0 // loop_pre_header
    _
  $region3: #{transformer_forward.39} parent=0 // loop_header
    %s7 = sphi 0, %s11
    %p8 = scmp.ge.s32.totalorder %s7, 4
    %s17 = sphi 0, %s19
    %s20 = sphi 0, %s17
    %s21 = sphi 0, %s20
    %s37 = sphi 0, %s21
    %s43 = sphi 0, %s45
    %s46 = sphi 0, %s43
    %s47 = sphi 0, %s46
    %s63 = sphi 0, %s47
  $region4: #{transformer_forward.39} parent=0 // loop_header_branch
    %10 = sbr.rel (%p8) target = $region8
  $region5: #{transformer_forward.39} parent=0 // loop_body
    %s12 = ssub.s32 %s7, 1
    %s13 = ssub.s32 %s7, 2
    %s14 = sadd.s32 %s7, 1
    %s15 = ssub.s32 %s7, %s14
    %p16 = scmp.eq.s32.totalorder %s15, 0
    %s18 = sadd.s32 %s17, 1
    %s19 = scalar_select %p16, %s17, %s18
    %p22 = pneg %p16
    %p23 = scmp.eq.s32.totalorder %s7, 1
    %p24 = por %p22, %p23
    %p25 = scmp.ne.s32.totalorder %s17, %s20
    %p26 = scmp.eq.s32.totalorder %s7, 0
    %p27 = por %p25, %p26
    %p28 = scmp.ne.s32.totalorder %s17, %s20
    %p29 = scmp.eq.s32.totalorder %s12, 1
    %p30 = por %p28, %p29
    %p31 = scmp.ne.s32.totalorder %s20, %s21
    %p32 = scmp.eq.s32.totalorder %s12, 0
    %p33 = por %p31, %p32
    %p34 = scmp.ne.s32.totalorder %s20, %s21
    %p35 = scmp.eq.s32.totalorder %s13, 1
    %p36 = por %p34, %p35
    %p38 = scmp.ne.s32.totalorder %s21, %s37
    %p39 = scmp.eq.s32.totalorder %s13, 0
    %p40 = por %p38, %p39
    %s41 = ssub.s32 %s7, %s14
    %p42 = scmp.eq.s32.totalorder %s41, 0
    %s44 = sadd.s32 %s43, 1
    %s45 = scalar_select %p42, %s43, %s44
    %p48 = pneg %p42
    %p49 = scmp.eq.s32.totalorder %s7, 1
    %p50 = por %p48, %p49
    %p51 = scmp.ne.s32.totalorder %s43, %s46
    %p52 = scmp.eq.s32.totalorder %s7, 0
    %p53 = por %p51, %p52
    %p54 = scmp.ne.s32.totalorder %s43, %s46
    %p55 = scmp.eq.s32.totalorder %s12, 1
    %p56 = por %p54, %p55
    %p57 = scmp.ne.s32.totalorder %s46, %s47
    %p58 = scmp.eq.s32.totalorder %s12, 0
    %p59 = por %p57, %p58
    %p60 = scmp.ne.s32.totalorder %s46, %s47
    %p61 = scmp.eq.s32.totalorder %s13, 1
    %p62 = por %p60, %p61
    %p64 = scmp.ne.s32.totalorder %s47, %s63
    %p65 = scmp.eq.s32.totalorder %s13, 0
    %p66 = por %p64, %p65
    %p67 = scmp.le.s32.totalorder 1, %s7
    %p68 = scmp.lt.s32.totalorder %s7, 3
    %p69 = pnand %p67, %p68
    %p70 = pneg %p69
    // Predicated region
    $region9: #{transformer_forward.39} parent=5 // pred_check
      _
    $region10: #{transformer_forward.39} parent=5 // pred_check_branch
      %72 = sbr.rel (%p69) target = $region12
    $region11: #{transformer_forward.39} parent=5 // pred_region
      %s73 = ssub.s32 %s7, 1
    $region12: #{transformer_forward.39} parent=5 // pred_fallthru
      _
    %p74 = scmp.lt.s32.totalorder %s7, 2
    // Predicated region
    $region13: #{transformer_forward.39} parent=5 // pred_check
      %p75 = pneg %p74
    $region14: #{transformer_forward.39} parent=5 // pred_check_branch
      %77 = sbr.rel (%p75) target = $region16
    $region15: #{transformer_forward.39} parent=5 // pred_region
      // Predicated region
      $region17: #{transformer_forward.39} parent=15 // pred_check
        %p78 = pneg %p27
      $region18: #{transformer_forward.39} parent=15 // pred_check_branch
        %80 = sbr.rel (%p78) target = $region20
      $region19: #{transformer_forward.39} parent=15 // pred_region
        %p81 = scmp.lt.s32.totalorder %s7, 1
        %s82 = scalar_select %p81, %s7, 1
        %s83 = smul.addr %s82, 3
        %s84 = smul.addr %s83, 4
        %s85 = scalar_lea.vmem %s0, %s84
      $region20: #{transformer_forward.39} parent=15 // pred_fallthru
        _
    $region16: #{transformer_forward.39} parent=5 // pred_fallthru
      _
    %p86 = scmp.le.s32.totalorder 1, %s7
    %p87 = scmp.lt.s32.totalorder %s7, 3
    %p88 = pnand %p86, %p87
    %p89 = pneg %p88
    // Predicated region
    $region21: #{transformer_forward.39} parent=5 // pred_check
      _
    $region22: #{transformer_forward.39} parent=5 // pred_check_branch
      %91 = sbr.rel (%p88) target = $region24
    $region23: #{transformer_forward.39} parent=5 // pred_region
      %s92 = ssub.s32 %s7, 1
      %p93 = scmp.lt.s32.totalorder %s12, 1
      %s94 = scalar_select %p93, %s12, 1
      %s95 = smul.addr %s94, 3
      %s96 = smul.addr %s95, 4
      %s97 = scalar_lea.vmem %s0, %s96
      %p98 = pneg %p33
      %p99 = pneg %p30
      %p100 = pneg %p59
      %p101 = pneg %p56
      %p102 = scmp.lt.s32.totalorder %s12, 1
      %s103 = scalar_select %p102, %s12, 1
      %s104 = smul.addr %s103, 3
      %s105 = smul.addr %s104, 4
      %s106 = scalar_lea.vmem %s1, %s105
      %p107 = scmp.lt.s32.totalorder %s12, 1
      %s108 = scalar_select %p107, %s12, 1
      %s109 = smul.addr %s108, 3
      %s110 = smul.addr %s109, 4
      %s111 = scalar_lea.vmem %s0, %s110
      %p112 = scmp.lt.s32.totalorder %s12, 1
      %s113 = scalar_select %p112, %s12, 1
      %s114 = smul.addr %s113, 3
      %s115 = smul.addr %s114, 4
      %s116 = scalar_lea.vmem %s1, %s115
      %v118 = vld [vmem:[%s111] sm:$0xf]
      %v119 = vld [vmem:[%s111 + $0x4] sm:$0xf]
      %v120 = vld [vmem:[%s111 + $0x8] sm:$0x3]
      %v124 = vunpack.c.l.b16 %v118
      %v125 = vunpack.c.l.b16 %v119
      %v126 = vunpack.c.l.b16 %v120
      %v127 = vpack.c.b16 %v125, %v124
      %v128 = vpack.c.b16 %v126, %v126
      %129 = vrot.lane.b32.xlu0 %v127, 96
      %v130 = vpop.permute.xlu0 %129
      %131 = vrot.lane.b32.xlu0 %v128, 96
      %v132 = vpop.permute.xlu0 %131
      %vm133 = vcmask 64512
      %v135 = vsel %vm133, %v127, 0
      %v138 = vsel %vm133, %v128, 0
      %v141 = vsel %vm133, %v130, 0
      %v144 = vsel %vm133, %v132, 0
      %146 = vmatprep.subr.bf16.mxu0 0
      %147 = vmatpush1.bf16.xpose.msra.mxu0 %v141
      %148 = vmatprep.subr.bf16.mxu0 0
      %149 = vmatpush1.bf16.xpose.msra.mxu0 %v144
      %150 = vmatprep.subr.bf16.mxu0 0
      %151 = vmatpush1.bf16.xpose.msra.mxu0 0
      %152 = vmatprep.subr.bf16.mxu0 0
      %153 = vmatpush1.bf16.xpose.msra.mxu0 0
      %154 = vmatprep.subr.bf16.mxu0 0
      %155 = vmatpush1.bf16.xpose.msra.mxu0 0
      %156 = vmatprep.subr.bf16.mxu0 0
      %157 = vmatpush1.bf16.xpose.msra.mxu0 0
      %158 = vmatprep.subr.bf16.mxu0 0
      %159 = vmatpush1.bf16.xpose.msra.mxu0 0
      %160 = vmatprep.subr.bf16.mxu0 0
      %161 = vmatpush1.bf16.xpose.msra.mxu0 0
      %162 = vmatprep.subr.bf16.mxu0 0
      %163 = vmatpush1.bf16.xpose.msra.mxu0 0
      %164 = vmatprep.subr.bf16.mxu0 0
      %165 = vmatpush1.bf16.xpose.msra.mxu0 0
      %166 = vmatprep.subr.bf16.mxu0 0
      %167 = vmatpush1.bf16.xpose.msra.mxu0 0
      %168 = vmatprep.subr.bf16.mxu0 0
      %169 = vmatpush1.bf16.xpose.msra.mxu0 0
      %170 = vmatprep.subr.bf16.mxu0 0
      %171 = vmatpush1.bf16.xpose.msra.mxu0 0
      %172 = vmatprep.subr.bf16.mxu0 0
      %173 = vmatpush1.bf16.xpose.msra.mxu0 0
      %174 = vmatprep.subr.bf16.mxu0 0
      %175 = vmatpush1.bf16.xpose.msra.mxu0 0
      %176 = vmatprep.subr.bf16.mxu0 0
      %177 = vmatpush1.bf16.xpose.msra.mxu0 0
      %178 = vmatprep.mubr.bf16.mxu0 0
      %179 = vmatmul.mubr.bf16.gmra.mrb[0].mxu0 %v135
      %v180 = vpop.f32.mrb[0].mxu0
      %v181 = vadd.f32 0.0, %v180
      %v182 = vpop.f32.mrb[0].mxu0
      %v183 = vpop.f32.mrb[0].mxu0
      %v184 = vadd.f32 0.0, %v183
      %v185 = vpop.f32.mrb[0].mxu0
      %186 = vmatprep.mubr.bf16.mxu0 0
      %187 = vmatmul.mubr.bf16.gmra.mrb[0].mxu0 %v138
      %v188 = vpop.f32.mrb[0].mxu0
      %v189 = vadd.f32 0.0, %v188
      %v190 = vpop.f32.mrb[0].mxu0
      %v191 = vpop.f32.mrb[0].mxu0
      %v192 = vpop.f32.mrb[0].mxu0
      %193 = vdwg.mxu0
      %v194 = vmul.f32 %v181, 0.35355338
      %v195 = vmul.f32 %v184, 0.35355338
      %v196 = vmul.f32 %v189, 0.35355338
      %vm197 = vcmask 162816
      %v198 = vsel %vm197, %v194, -inf
      %199 = vmax.xlane.f32.xlu0 %v198
      %v200 = vpop.xlane.xlu0 %199
      %v201 = vsel %vm197, %v195, -inf
      %202 = vmax.xlane.f32.xlu0 %v201
      %v203 = vpop.xlane.xlu0 %202
      %vm204 = vcmask 158720
      %v205 = vsel %vm204, %v196, -inf
      %206 = vmax.xlane.f32.xlu0 %v205
      %v207 = vpop.xlane.xlu0 %206
      %v208 = vsub.f32 %v194, %v200
      %v209 = vsub.f32 %v195, %v203
      %v210 = vsub.f32 %v196, %v207
      %v211 = vmul.f32 %v208, 1.442695
      %v212 = vpow.pop %v211
      %v213 = vmul.f32 %v209, 1.442695
      %v214 = vpow.pop %v213
      %v215 = vmul.f32 %v210, 1.442695
      %v216 = vpow.pop %v215
      %v217 = vsel %vm197, %v212, 0.0
      %218 = vadd.xlane.f32.xlu0 %v217
      %v219 = vpop.xlane.xlu0 %218
      %v220 = vsel %vm197, %v214, 0.0
      %221 = vadd.xlane.f32.xlu0 %v220
      %v222 = vpop.xlane.xlu0 %221
      %v223 = vsel %vm204, %v216, 0.0
      %224 = vadd.xlane.f32.xlu0 %v223
      %v225 = vpop.xlane.xlu0 %224
      %v226 = vpack.c.bf16 %v214, %v212
      %v227 = vpack.c.bf16 %v216, %v216
      %228 = vrot.lane.b32.xlu0 %v127, 64
      %v229 = vpop.permute.xlu0 %228
      %230 = vrot.lane.b32.xlu0 %v128, 64
      %v231 = vpop.permute.xlu0 %230
      %v234 = vsel %vm197, %v226, 0
      %v237 = vsel %vm197, %v227, 0
      %vm239 = vcmask 1041408
      %v241 = vsel %vm239, %v231, 0
      %243 = vmatprep.subr.bf16.mxu0 0
      %244 = vmatpush1.bf16.msra.mxu0 %v229
      %245 = vmatprep.subr.bf16.mxu0 0
      %246 = vmatpush1.bf16.msra.mxu0 %v241
      %247 = vmatprep.subr.bf16.mxu0 0
      %248 = vmatpush1.bf16.msra.mxu0 0
      %249 = vmatprep.subr.bf16.mxu0 0
      %250 = vmatpush1.bf16.msra.mxu0 0
      %251 = vmatprep.subr.bf16.mxu0 0
      %252 = vmatpush1.bf16.msra.mxu0 0
      %253 = vmatprep.subr.bf16.mxu0 0
      %254 = vmatpush1.bf16.msra.mxu0 0
      %255 = vmatprep.subr.bf16.mxu0 0
      %256 = vmatpush1.bf16.msra.mxu0 0
      %257 = vmatprep.subr.bf16.mxu0 0
      %258 = vmatpush1.bf16.msra.mxu0 0
      %259 = vmatprep.subr.bf16.mxu0 0
      %260 = vmatpush1.bf16.msra.mxu0 0
      %261 = vmatprep.subr.bf16.mxu0 0
      %262 = vmatpush1.bf16.msra.mxu0 0
      %263 = vmatprep.subr.bf16.mxu0 0
      %264 = vmatpush1.bf16.msra.mxu0 0
      %265 = vmatprep.subr.bf16.mxu0 0
      %266 = vmatpush1.bf16.msra.mxu0 0
      %267 = vmatprep.subr.bf16.mxu0 0
      %268 = vmatpush1.bf16.msra.mxu0 0
      %269 = vmatprep.subr.bf16.mxu0 0
      %270 = vmatpush1.bf16.msra.mxu0 0
      %271 = vmatprep.subr.bf16.mxu0 0
      %272 = vmatpush1.bf16.msra.mxu0 0
      %273 = vmatprep.subr.bf16.mxu0 0
      %274 = vmatpush1.bf16.msra.mxu0 0
      %275 = vmatprep.mubr.bf16.mxu0 0
      %276 = vmatmul.mubr.bf16.gmra.mrb[0].mxu0 %v234
      %v277 = vpop.f32.mrb[0].mxu0
      %v278 = vadd.f32 0.0, %v277
      %v279 = vpop.f32.mrb[0].mxu0
      %v280 = vpop.f32.mrb[0].mxu0
      %v281 = vadd.f32 0.0, %v280
      %v282 = vpop.f32.mrb[0].mxu0
      %283 = vmatprep.mubr.bf16.mxu0 0
      %284 = vmatmul.mubr.bf16.gmra.mrb[0].mxu0 %v237
      %v285 = vpop.f32.mrb[0].mxu0
      %v286 = vadd.f32 0.0, %v285
      %v287 = vpop.f32.mrb[0].mxu0
      %v288 = vpop.f32.mrb[0].mxu0
      %v289 = vpop.f32.mrb[0].mxu0
      %290 = vdwg.mxu0
      %v291 = vrcp.pop %v219
      %v292 = vrcp.pop %v222
      %v293 = vrcp.pop %v225
      %v294 = vmul.f32 %v278, %v291
      %v295 = vmul.f32 %v281, %v292
      %v296 = vmul.f32 %v286, %v293
      %v297 = vpack.c.bf16 %v295, %v294
      %v298 = vpack.c.bf16 %v296, %v296
      %v301 = vunpack.c.l.b16 %v297
      %v302 = vunpack.c.h.b16 %v297
      %v303 = vunpack.c.l.b16 %v298
      %v304 = vpack.c.b16 %v301, %v301
      %v305 = vpack.c.b16 %v302, %v302
      %v306 = vpack.c.b16 %v303, %v303
      %vm310 = vcmask 60416
      %311 = vst.msk [vmem:[%s116] sm:$0xf] %vm310, %v304
      %312 = vst.msk [vmem:[%s116 + $0x4] sm:$0xf] %vm310, %v305
      %vm313 = vcmask 58368
      %314 = vst.msk [vmem:[%s116 + $0x8] sm:$0x3] %vm313, %v306
      %v315 = vld [vmem:[%s111] sm:$0xf]
      %v316 = vld [vmem:[%s111 + $0x4] sm:$0xf]
      %v317 = vld [vmem:[%s111 + $0x8] sm:$0x3]
      %v321 = vunpack.c.l.b16 %v315
      %v322 = vunpack.c.l.b16 %v316
      %v323 = vunpack.c.l.b16 %v317
      %v324 = vpack.c.b16 %v322, %v321
      %v325 = vpack.c.b16 %v323, %v323
      %326 = vrot.lane.b32.xlu0 %v324, 120
      %v327 = vpop.permute.xlu0 %326
      %328 = vrot.lane.b32.xlu0 %v325, 120
      %v329 = vpop.permute.xlu0 %328
      %330 = vrot.lane.b32.xlu0 %v324, 88
      %v331 = vpop.permute.xlu0 %330
      %332 = vrot.lane.b32.xlu0 %v325, 88
      %v333 = vpop.permute.xlu0 %332
      %v335 = vsel %vm133, %v327, 0
      %v338 = vsel %vm133, %v329, 0
      %v341 = vsel %vm133, %v331, 0
      %v344 = vsel %vm133, %v333, 0
      %346 = vmatprep.subr.bf16.mxu0 0
      %347 = vmatpush1.bf16.xpose.msra.mxu0 %v341
      %348 = vmatprep.subr.bf16.mxu0 0
      %349 = vmatpush1.bf16.xpose.msra.mxu0 %v344
      %350 = vmatprep.subr.bf16.mxu0 0
      %351 = vmatpush1.bf16.xpose.msra.mxu0 0
      %352 = vmatprep.subr.bf16.mxu0 0
      %353 = vmatpush1.bf16.xpose.msra.mxu0 0
      %354 = vmatprep.subr.bf16.mxu0 0
      %355 = vmatpush1.bf16.xpose.msra.mxu0 0
      %356 = vmatprep.subr.bf16.mxu0 0
      %357 = vmatpush1.bf16.xpose.msra.mxu0 0
      %358 = vmatprep.subr.bf16.mxu0 0
      %359 = vmatpush1.bf16.xpose.msra.mxu0 0
      %360 = vmatprep.subr.bf16.mxu0 0
      %361 = vmatpush1.bf16.xpose.msra.mxu0 0
      %362 = vmatprep.subr.bf16.mxu0 0
      %363 = vmatpush1.bf16.xpose.msra.mxu0 0
      %364 = vmatprep.subr.bf16.mxu0 0
      %365 = vmatpush1.bf16.xpose.msra.mxu0 0
      %366 = vmatprep.subr.bf16.mxu0 0
      %367 = vmatpush1.bf16.xpose.msra.mxu0 0
      %368 = vmatprep.subr.bf16.mxu0 0
      %369 = vmatpush1.bf16.xpose.msra.mxu0 0
      %370 = vmatprep.subr.bf16.mxu0 0
      %371 = vmatpush1.bf16.xpose.msra.mxu0 0
      %372 = vmatprep.subr.bf16.mxu0 0
      %373 = vmatpush1.bf16.xpose.msra.mxu0 0
      %374 = vmatprep.subr.bf16.mxu0 0
      %375 = vmatpush1.bf16.xpose.msra.mxu0 0
      %376 = vmatprep.subr.bf16.mxu0 0
      %377 = vmatpush1.bf16.xpose.msra.mxu0 0
      %378 = vmatprep.mubr.bf16.mxu0 0
      %379 = vmatmul.mubr.bf16.gmra.mrb[0].mxu0 %v335
      %v380 = vpop.f32.mrb[0].mxu0
      %v381 = vadd.f32 0.0, %v380
      %v382 = vpop.f32.mrb[0].mxu0
      %v383 = vpop.f32.mrb[0].mxu0
      %v384 = vadd.f32 0.0, %v383
      %v385 = vpop.f32.mrb[0].mxu0
      %386 = vmatprep.mubr.bf16.mxu0 0
      %387 = vmatmul.mubr.bf16.gmra.mrb[0].mxu0 %v338
      %v388 = vpop.f32.mrb[0].mxu0
      %v389 = vadd.f32 0.0, %v388
      %v390 = vpop.f32.mrb[0].mxu0
      %v391 = vpop.f32.mrb[0].mxu0
      %v392 = vpop.f32.mrb[0].mxu0
      %393 = vdwg.mxu0
      %v394 = vmul.f32 %v381, 0.35355338
      %v395 = vmul.f32 %v384, 0.35355338
      %v396 = vmul.f32 %v389, 0.35355338
      %v397 = vsel %vm197, %v394, -inf
      %398 = vmax.xlane.f32.xlu0 %v397
      %v399 = vpop.xlane.xlu0 %398
      %v400 = vsel %vm197, %v395, -inf
      %401 = vmax.xlane.f32.xlu0 %v400
      %v402 = vpop.xlane.xlu0 %401
      %v403 = vsel %vm204, %v396, -inf
      %404 = vmax.xlane.f32.xlu0 %v403
      %v405 = vpop.xlane.xlu0 %404
      %v406 = vsub.f32 %v394, %v399
      %v407 = vsub.f32 %v395, %v402
      %v408 = vsub.f32 %v396, %v405
      %v409 = vmul.f32 %v406, 1.442695
      %v410 = vpow.pop %v409
      %v411 = vmul.f32 %v407, 1.442695
      %v412 = vpow.pop %v411
      %v413 = vmul.f32 %v408, 1.442695
      %v414 = vpow.pop %v413
      %v415 = vsel %vm197, %v410, 0.0
      %416 = vadd.xlane.f32.xlu0 %v415
      %v417 = vpop.xlane.xlu0 %416
      %v418 = vsel %vm197, %v412, 0.0
      %419 = vadd.xlane.f32.xlu0 %v418
      %v420 = vpop.xlane.xlu0 %419
      %v421 = vsel %vm204, %v414, 0.0
      %422 = vadd.xlane.f32.xlu0 %v421
      %v423 = vpop.xlane.xlu0 %422
      %v424 = vpack.c.bf16 %v412, %v410
      %v425 = vpack.c.bf16 %v414, %v414
      %426 = vrot.lane.b32.xlu0 %v324, 56
      %v427 = vpop.permute.xlu0 %426
      %428 = vrot.lane.b32.xlu0 %v325, 56
      %v429 = vpop.permute.xlu0 %428
      %v432 = vsel %vm197, %v424, 0
      %v435 = vsel %vm197, %v425, 0
      %v438 = vsel %vm239, %v429, 0
      %440 = vmatprep.subr.bf16.mxu0 0
      %441 = vmatpush1.bf16.msra.mxu0 %v427
      %442 = vmatprep.subr.bf16.mxu0 0
      %443 = vmatpush1.bf16.msra.mxu0 %v438
      %444 = vmatprep.subr.bf16.mxu0 0
      %445 = vmatpush1.bf16.msra.mxu0 0
      %446 = vmatprep.subr.bf16.mxu0 0
      %447 = vmatpush1.bf16.msra.mxu0 0
      %448 = vmatprep.subr.bf16.mxu0 0
      %449 = vmatpush1.bf16.msra.mxu0 0
      %450 = vmatprep.subr.bf16.mxu0 0
      %451 = vmatpush1.bf16.msra.mxu0 0
      %452 = vmatprep.subr.bf16.mxu0 0
      %453 = vmatpush1.bf16.msra.mxu0 0
      %454 = vmatprep.subr.bf16.mxu0 0
      %455 = vmatpush1.bf16.msra.mxu0 0
      %456 = vmatprep.subr.bf16.mxu0 0
      %457 = vmatpush1.bf16.msra.mxu0 0
      %458 = vmatprep.subr.bf16.mxu0 0
      %459 = vmatpush1.bf16.msra.mxu0 0
      %460 = vmatprep.subr.bf16.mxu0 0
      %461 = vmatpush1.bf16.msra.mxu0 0
      %462 = vmatprep.subr.bf16.mxu0 0
      %463 = vmatpush1.bf16.msra.mxu0 0
      %464 = vmatprep.subr.bf16.mxu0 0
      %465 = vmatpush1.bf16.msra.mxu0 0
      %466 = vmatprep.subr.bf16.mxu0 0
      %467 = vmatpush1.bf16.msra.mxu0 0
      %468 = vmatprep.subr.bf16.mxu0 0
      %469 = vmatpush1.bf16.msra.mxu0 0
      %470 = vmatprep.subr.bf16.mxu0 0
      %471 = vmatpush1.bf16.msra.mxu0 0
      %472 = vmatprep.mubr.bf16.mxu0 0
      %473 = vmatmul.mubr.bf16.gmra.mrb[0].mxu0 %v432
      %v474 = vpop.f32.mrb[0].mxu0
      %v475 = vadd.f32 0.0, %v474
      %v476 = vpop.f32.mrb[0].mxu0
      %v477 = vpop.f32.mrb[0].mxu0
      %v478 = vadd.f32 0.0, %v477
      %v479 = vpop.f32.mrb[0].mxu0
      %480 = vmatprep.mubr.bf16.mxu0 0
      %481 = vmatmul.mubr.bf16.gmra.mrb[0].mxu0 %v435
      %v482 = vpop.f32.mrb[0].mxu0
      %v483 = vadd.f32 0.0, %v482
      %v484 = vpop.f32.mrb[0].mxu0
      %v485 = vpop.f32.mrb[0].mxu0
      %v486 = vpop.f32.mrb[0].mxu0
      %487 = vdwg.mxu0
      %v488 = vrcp.pop %v417
      %v489 = vrcp.pop %v420
      %v490 = vrcp.pop %v423
      %v491 = vmul.f32 %v475, %v488
      %v492 = vmul.f32 %v478, %v489
      %v493 = vmul.f32 %v483, %v490
      %v494 = vpack.c.bf16 %v492, %v491
      %v495 = vpack.c.bf16 %v493, %v493
      %v498 = vunpack.c.l.b16 %v494
      %v499 = vunpack.c.h.b16 %v494
      %v500 = vunpack.c.l.b16 %v495
      %v501 = vpack.c.b16 %v498, %v498
      %v502 = vpack.c.b16 %v499, %v499
      %v503 = vpack.c.b16 %v500, %v500
      %504 = vrot.lane.b32.xlu0 %v501, 8
      %v505 = vpop.permute.xlu0 %504
      %506 = vrot.lane.b32.xlu0 %v502, 8
      %v507 = vpop.permute.xlu0 %506
      %508 = vrot.lane.b32.xlu0 %v503, 8
      %v509 = vpop.permute.xlu0 %508
      %vm513 = vcmask 126016
      %514 = vst.msk [vmem:[%s116] sm:$0xf] %vm513, %v505
      %515 = vst.msk [vmem:[%s116 + $0x4] sm:$0xf] %vm513, %v507
      %vm516 = vcmask 123968
      %517 = vst.msk [vmem:[%s116 + $0x8] sm:$0x3] %vm516, %v509
      %v518 = vld [vmem:[%s111] sm:$0xf]
      %v519 = vld [vmem:[%s111 + $0x4] sm:$0xf]
      %v520 = vld [vmem:[%s111 + $0x8] sm:$0x3]
      %v524 = vunpack.c.l.b16 %v518
      %v525 = vunpack.c.l.b16 %v519
      %v526 = vunpack.c.l.b16 %v520
      %v527 = vpack.c.b16 %v525, %v524
      %v528 = vpack.c.b16 %v526, %v526
      %529 = vrot.lane.b32.xlu0 %v527, 112
      %v530 = vpop.permute.xlu0 %529
      %531 = vrot.lane.b32.xlu0 %v528, 112
      %v532 = vpop.permute.xlu0 %531
      %533 = vrot.lane.b32.xlu0 %v527, 80
      %v534 = vpop.permute.xlu0 %533
      %535 = vrot.lane.b32.xlu0 %v528, 80
      %v536 = vpop.permute.xlu0 %535
      %v538 = vsel %vm133, %v530, 0
      %v541 = vsel %vm133, %v532, 0
      %v544 = vsel %vm133, %v534, 0
      %v547 = vsel %vm133, %v536, 0
      %549 = vmatprep.subr.bf16.mxu0 0
      %550 = vmatpush1.bf16.xpose.msra.mxu0 %v544
      %551 = vmatprep.subr.bf16.mxu0 0
      %552 = vmatpush1.bf16.xpose.msra.mxu0 %v547
      %553 = vmatprep.subr.bf16.mxu0 0
      %554 = vmatpush1.bf16.xpose.msra.mxu0 0
      %555 = vmatprep.subr.bf16.mxu0 0
      %556 = vmatpush1.bf16.xpose.msra.mxu0 0
      %557 = vmatprep.subr.bf16.mxu0 0
      %558 = vmatpush1.bf16.xpose.msra.mxu0 0
      %559 = vmatprep.subr.bf16.mxu0 0
      %560 = vmatpush1.bf16.xpose.msra.mxu0 0
      %561 = vmatprep.subr.bf16.mxu0 0
      %562 = vmatpush1.bf16.xpose.msra.mxu0 0
      %563 = vmatprep.subr.bf16.mxu0 0
      %564 = vmatpush1.bf16.xpose.msra.mxu0 0
      %565 = vmatprep.subr.bf16.mxu0 0
      %566 = vmatpush1.bf16.xpose.msra.mxu0 0
      %567 = vmatprep.subr.bf16.mxu0 0
      %568 = vmatpush1.bf16.xpose.msra.mxu0 0
      %569 = vmatprep.subr.bf16.mxu0 0
      %570 = vmatpush1.bf16.xpose.msra.mxu0 0
      %571 = vmatprep.subr.bf16.mxu0 0
      %572 = vmatpush1.bf16.xpose.msra.mxu0 0
      %573 = vmatprep.subr.bf16.mxu0 0
      %574 = vmatpush1.bf16.xpose.msra.mxu0 0
      %575 = vmatprep.subr.bf16.mxu0 0
      %576 = vmatpush1.bf16.xpose.msra.mxu0 0
      %577 = vmatprep.subr.bf16.mxu0 0
      %578 = vmatpush1.bf16.xpose.msra.mxu0 0
      %579 = vmatprep.subr.bf16.mxu0 0
      %580 = vmatpush1.bf16.xpose.msra.mxu0 0
      %581 = vmatprep.mubr.bf16.mxu0 0
      %582 = vmatmul.mubr.bf16.gmra.mrb[0].mxu0 %v538
      %v583 = vpop.f32.mrb[0].mxu0
      %v584 = vadd.f32 0.0, %v583
      %v585 = vpop.f32.mrb[0].mxu0
      %v586 = vpop.f32.mrb[0].mxu0
      %v587 = vadd.f32 0.0, %v586
      %v588 = vpop.f32.mrb[0].mxu0
      %589 = vmatprep.mubr.bf16.mxu0 0
      %590 = vmatmul.mubr.bf16.gmra.mrb[0].mxu0 %v541
      %v591 = vpop.f32.mrb[0].mxu0
      %v592 = vadd.f32 0.0, %v591
      %v593 = vpop.f32.mrb[0].mxu0
      %v594 = vpop.f32.mrb[0].mxu0
      %v595 = vpop.f32.mrb[0].mxu0
      %596 = vdwg.mxu0
      %v597 = vmul.f32 %v584, 0.35355338
      %v598 = vmul.f32 %v587, 0.35355338
      %v599 = vmul.f32 %v592, 0.35355338
      %v600 = vsel %vm197, %v597, -inf
      %601 = vmax.xlane.f32.xlu0 %v600
      %v602 = vpop.xlane.xlu0 %601
      %v603 = vsel %vm197, %v598, -inf
      %604 = vmax.xlane.f32.xlu0 %v603
      %v605 = vpop.xlane.xlu0 %604
      %v606 = vsel %vm204, %v599, -inf
      %607 = vmax.xlane.f32.xlu0 %v606
      %v608 = vpop.xlane.xlu0 %607
      %v609 = vsub.f32 %v597, %v602
      %v610 = vsub.f32 %v598, %v605
      %v611 = vsub.f32 %v599, %v608
      %v612 = vmul.f32 %v609, 1.442695
      %v613 = vpow.pop %v612
      %v614 = vmul.f32 %v610, 1.442695
      %v615 = vpow.pop %v614
      %v616 = vmul.f32 %v611, 1.442695
      %v617 = vpow.pop %v616
      %v618 = vsel %vm197, %v613, 0.0
      %619 = vadd.xlane.f32.xlu0 %v618
      %v620 = vpop.xlane.xlu0 %619
      %v621 = vsel %vm197, %v615, 0.0
      %622 = vadd.xlane.f32.xlu0 %v621
      %v623 = vpop.xlane.xlu0 %622
      %v624 = vsel %vm204, %v617, 0.0
      %625 = vadd.xlane.f32.xlu0 %v624
      %v626 = vpop.xlane.xlu0 %625
      %v627 = vpack.c.bf16 %v615, %v613
      %v628 = vpack.c.bf16 %v617, %v617
      %629 = vrot.lane.b32.xlu0 %v527, 48
      %v630 = vpop.permute.xlu0 %629
      %631 = vrot.lane.b32.xlu0 %v528, 48
      %v632 = vpop.permute.xlu0 %631
      %v635 = vsel %vm197, %v627, 0
      %v638 = vsel %vm197, %v628, 0
      %v641 = vsel %vm239, %v632, 0
      %643 = vmatprep.subr.bf16.mxu0 0
      %644 = vmatpush1.bf16.msra.mxu0 %v630
      %645 = vmatprep.subr.bf16.mxu0 0
      %646 = vmatpush1.bf16.msra.mxu0 %v641
      %647 = vmatprep.subr.bf16.mxu0 0
      %648 = vmatpush1.bf16.msra.mxu0 0
      %649 = vmatprep.subr.bf16.mxu0 0
      %650 = vmatpush1.bf16.msra.mxu0 0
      %651 = vmatprep.subr.bf16.mxu0 0
      %652 = vmatpush1.bf16.msra.mxu0 0
      %653 = vmatprep.subr.bf16.mxu0 0
      %654 = vmatpush1.bf16.msra.mxu0 0
      %655 = vmatprep.subr.bf16.mxu0 0
      %656 = vmatpush1.bf16.msra.mxu0 0
      %657 = vmatprep.subr.bf16.mxu0 0
      %658 = vmatpush1.bf16.msra.mxu0 0
      %659 = vmatprep.subr.bf16.mxu0 0
      %660 = vmatpush1.bf16.msra.mxu0 0
      %661 = vmatprep.subr.bf16.mxu0 0
      %662 = vmatpush1.bf16.msra.mxu0 0
      %663 = vmatprep.subr.bf16.mxu0 0
      %664 = vmatpush1.bf16.msra.mxu0 0
      %665 = vmatprep.subr.bf16.mxu0 0
      %666 = vmatpush1.bf16.msra.mxu0 0
      %667 = vmatprep.subr.bf16.mxu0 0
      %668 = vmatpush1.bf16.msra.mxu0 0
      %669 = vmatprep.subr.bf16.mxu0 0
      %670 = vmatpush1.bf16.msra.mxu0 0
      %671 = vmatprep.subr.bf16.mxu0 0
      %672 = vmatpush1.bf16.msra.mxu0 0
      %673 = vmatprep.subr.bf16.mxu0 0
      %674 = vmatpush1.bf16.msra.mxu0 0
      %675 = vmatprep.mubr.bf16.mxu0 0
      %676 = vmatmul.mubr.bf16.gmra.mrb[0].mxu0 %v635
      %v677 = vpop.f32.mrb[0].mxu0
      %v678 = vadd.f32 0.0, %v677
      %v679 = vpop.f32.mrb[0].mxu0
      %v680 = vpop.f32.mrb[0].mxu0
      %v681 = vadd.f32 0.0, %v680
      %v682 = vpop.f32.mrb[0].mxu0
      %683 = vmatprep.mubr.bf16.mxu0 0
      %684 = vmatmul.mubr.bf16.gmra.mrb[0].mxu0 %v638
      %v685 = vpop.f32.mrb[0].mxu0
      %v686 = vadd.f32 0.0, %v685
      %v687 = vpop.f32.mrb[0].mxu0
      %v688 = vpop.f32.mrb[0].mxu0
      %v689 = vpop.f32.mrb[0].mxu0
      %690 = vdwg.mxu0
      %v691 = vrcp.pop %v620
      %v692 = vrcp.pop %v623
      %v693 = vrcp.pop %v626
      %v694 = vmul.f32 %v678, %v691
      %v695 = vmul.f32 %v681, %v692
      %v696 = vmul.f32 %v686, %v693
      %v697 = vpack.c.bf16 %v695, %v694
      %v698 = vpack.c.bf16 %v696, %v696
      %v701 = vunpack.c.l.b16 %v697
      %v702 = vunpack.c.h.b16 %v697
      %v703 = vunpack.c.l.b16 %v698
      %v704 = vpack.c.b16 %v701, %v701
      %v705 = vpack.c.b16 %v702, %v702
      %v706 = vpack.c.b16 %v703, %v703
      %707 = vrot.lane.b32.xlu0 %v704, 16
      %v708 = vpop.permute.xlu0 %707
      %709 = vrot.lane.b32.xlu0 %v705, 16
      %v710 = vpop.permute.xlu0 %709
      %711 = vrot.lane.b32.xlu0 %v706, 16
      %v712 = vpop.permute.xlu0 %711
      %vm716 = vcmask 191616
      %717 = vst.msk [vmem:[%s116] sm:$0xf] %vm716, %v708
      %718 = vst.msk [vmem:[%s116 + $0x4] sm:$0xf] %vm716, %v710
      %vm719 = vcmask 189568
      %720 = vst.msk [vmem:[%s116 + $0x8] sm:$0x3] %vm719, %v712
      %v721 = vld [vmem:[%s111] sm:$0xf]
      %v722 = vld [vmem:[%s111 + $0x4] sm:$0xf]
      %v723 = vld [vmem:[%s111 + $0x8] sm:$0x3]
      %v727 = vunpack.c.l.b16 %v721
      %v728 = vunpack.c.l.b16 %v722
      %v729 = vunpack.c.l.b16 %v723
      %v730 = vpack.c.b16 %v728, %v727
      %v731 = vpack.c.b16 %v729, %v729
      %732 = vrot.lane.b32.xlu0 %v730, 104
      %v733 = vpop.permute.xlu0 %732
      %734 = vrot.lane.b32.xlu0 %v731, 104
      %v735 = vpop.permute.xlu0 %734
      %736 = vrot.lane.b32.xlu0 %v730, 72
      %v737 = vpop.permute.xlu0 %736
      %738 = vrot.lane.b32.xlu0 %v731, 72
      %v739 = vpop.permute.xlu0 %738
      %v741 = vsel %vm133, %v733, 0
      %v744 = vsel %vm133, %v735, 0
      %v747 = vsel %vm133, %v737, 0
      %v750 = vsel %vm133, %v739, 0
      %752 = vmatprep.subr.bf16.mxu0 0
      %753 = vmatpush1.bf16.xpose.msra.mxu0 %v747
      %754 = vmatprep.subr.bf16.mxu0 0
      %755 = vmatpush1.bf16.xpose.msra.mxu0 %v750
      %756 = vmatprep.subr.bf16.mxu0 0
      %757 = vmatpush1.bf16.xpose.msra.mxu0 0
      %758 = vmatprep.subr.bf16.mxu0 0
      %759 = vmatpush1.bf16.xpose.msra.mxu0 0
      %760 = vmatprep.subr.bf16.mxu0 0
      %761 = vmatpush1.bf16.xpose.msra.mxu0 0
      %762 = vmatprep.subr.bf16.mxu0 0
      %763 = vmatpush1.bf16.xpose.msra.mxu0 0
      %764 = vmatprep.subr.bf16.mxu0 0
      %765 = vmatpush1.bf16.xpose.msra.mxu0 0
      %766 = vmatprep.subr.bf16.mxu0 0
      %767 = vmatpush1.bf16.xpose.msra.mxu0 0
      %768 = vmatprep.subr.bf16.mxu0 0
      %769 = vmatpush1.bf16.xpose.msra.mxu0 0
      %770 = vmatprep.subr.bf16.mxu0 0
      %771 = vmatpush1.bf16.xpose.msra.mxu0 0
      %772 = vmatprep.subr.bf16.mxu0 0
      %773 = vmatpush1.bf16.xpose.msra.mxu0 0
      %774 = vmatprep.subr.bf16.mxu0 0
      %775 = vmatpush1.bf16.xpose.msra.mxu0 0
      %776 = vmatprep.subr.bf16.mxu0 0
      %777 = vmatpush1.bf16.xpose.msra.mxu0 0
      %778 = vmatprep.subr.bf16.mxu0 0
      %779 = vmatpush1.bf16.xpose.msra.mxu0 0
      %780 = vmatprep.subr.bf16.mxu0 0
      %781 = vmatpush1.bf16.xpose.msra.mxu0 0
      %782 = vmatprep.subr.bf16.mxu0 0
      %783 = vmatpush1.bf16.xpose.msra.mxu0 0
      %784 = vmatprep.mubr.bf16.mxu0 0
      %785 = vmatmul.mubr.bf16.gmra.mrb[0].mxu0 %v741
      %v786 = vpop.f32.mrb[0].mxu0
      %v787 = vadd.f32 0.0, %v786
      %v788 = vpop.f32.mrb[0].mxu0
      %v789 = vpop.f32.mrb[0].mxu0
      %v790 = vadd.f32 0.0, %v789
      %v791 = vpop.f32.mrb[0].mxu0
      %792 = vmatprep.mubr.bf16.mxu0 0
      %793 = vmatmul.mubr.bf16.gmra.mrb[0].mxu0 %v744
      %v794 = vpop.f32.mrb[0].mxu0
      %v795 = vadd.f32 0.0, %v794
      %v796 = vpop.f32.mrb[0].mxu0
      %v797 = vpop.f32.mrb[0].mxu0
      %v798 = vpop.f32.mrb[0].mxu0
      %799 = vdwg.mxu0
      %v800 = vmul.f32 %v787, 0.35355338
      %v801 = vmul.f32 %v790, 0.35355338
      %v802 = vmul.f32 %v795, 0.35355338
      %v803 = vsel %vm197, %v800, -inf
      %804 = vmax.xlane.f32.xlu0 %v803
      %v805 = vpop.xlane.xlu0 %804
      %v806 = vsel %vm197, %v801, -inf
      %807 = vmax.xlane.f32.xlu0 %v806
      %v808 = vpop.xlane.xlu0 %807
      %v809 = vsel %vm204, %v802, -inf
      %810 = vmax.xlane.f32.xlu0 %v809
      %v811 = vpop.xlane.xlu0 %810
      %v812 = vsub.f32 %v800, %v805
      %v813 = vsub.f32 %v801, %v808
      %v814 = vsub.f32 %v802, %v811
      %v815 = vmul.f32 %v812, 1.442695
      %v816 = vpow.pop %v815
      %v817 = vmul.f32 %v813, 1.442695
      %v818 = vpow.pop %v817
      %v819 = vmul.f32 %v814, 1.442695
      %v820 = vpow.pop %v819
      %v821 = vsel %vm197, %v816, 0.0
      %822 = vadd.xlane.f32.xlu0 %v821
      %v823 = vpop.xlane.xlu0 %822
      %v824 = vsel %vm197, %v818, 0.0
      %825 = vadd.xlane.f32.xlu0 %v824
      %v826 = vpop.xlane.xlu0 %825
      %v827 = vsel %vm204, %v820, 0.0
      %828 = vadd.xlane.f32.xlu0 %v827
      %v829 = vpop.xlane.xlu0 %828
      %v830 = vpack.c.bf16 %v818, %v816
      %v831 = vpack.c.bf16 %v820, %v820
      %832 = vrot.lane.b32.xlu0 %v730, 40
      %v833 = vpop.permute.xlu0 %832
      %834 = vrot.lane.b32.xlu0 %v731, 40
      %v835 = vpop.permute.xlu0 %834
      %v838 = vsel %vm197, %v830, 0
      %v841 = vsel %vm197, %v831, 0
      %v844 = vsel %vm239, %v835, 0
      %846 = vmatprep.subr.bf16.mxu0 0
      %847 = vmatpush1.bf16.msra.mxu0 %v833
      %848 = vmatprep.subr.bf16.mxu0 0
      %849 = vmatpush1.bf16.msra.mxu0 %v844
      %850 = vmatprep.subr.bf16.mxu0 0
      %851 = vmatpush1.bf16.msra.mxu0 0
      %852 = vmatprep.subr.bf16.mxu0 0
      %853 = vmatpush1.bf16.msra.mxu0 0
      %854 = vmatprep.subr.bf16.mxu0 0
      %855 = vmatpush1.bf16.msra.mxu0 0
      %856 = vmatprep.subr.bf16.mxu0 0
      %857 = vmatpush1.bf16.msra.mxu0 0
      %858 = vmatprep.subr.bf16.mxu0 0
      %859 = vmatpush1.bf16.msra.mxu0 0
      %860 = vmatprep.subr.bf16.mxu0 0
      %861 = vmatpush1.bf16.msra.mxu0 0
      %862 = vmatprep.subr.bf16.mxu0 0
      %863 = vmatpush1.bf16.msra.mxu0 0
      %864 = vmatprep.subr.bf16.mxu0 0
      %865 = vmatpush1.bf16.msra.mxu0 0
      %866 = vmatprep.subr.bf16.mxu0 0
      %867 = vmatpush1.bf16.msra.mxu0 0
      %868 = vmatprep.subr.bf16.mxu0 0
      %869 = vmatpush1.bf16.msra.mxu0 0
      %870 = vmatprep.subr.bf16.mxu0 0
      %871 = vmatpush1.bf16.msra.mxu0 0
      %872 = vmatprep.subr.bf16.mxu0 0
      %873 = vmatpush1.bf16.msra.mxu0 0
      %874 = vmatprep.subr.bf16.mxu0 0
      %875 = vmatpush1.bf16.msra.mxu0 0
      %876 = vmatprep.subr.bf16.mxu0 0
      %877 = vmatpush1.bf16.msra.mxu0 0
      %878 = vmatprep.mubr.bf16.mxu0 0
      %879 = vmatmul.mubr.bf16.gmra.mrb[0].mxu0 %v838
      %v880 = vpop.f32.mrb[0].mxu0
      %v881 = vadd.f32 0.0, %v880
      %v882 = vpop.f32.mrb[0].mxu0
      %v883 = vpop.f32.mrb[0].mxu0
      %v884 = vadd.f32 0.0, %v883
      %v885 = vpop.f32.mrb[0].mxu0
      %886 = vmatprep.mubr.bf16.mxu0 0
      %887 = vmatmul.mubr.bf16.gmra.mrb[0].mxu0 %v841
      %v888 = vpop.f32.mrb[0].mxu0
      %v889 = vadd.f32 0.0, %v888
      %v890 = vpop.f32.mrb[0].mxu0
      %v891 = vpop.f32.mrb[0].mxu0
      %v892 = vpop.f32.mrb[0].mxu0
      %893 = vdwg.mxu0
      %v894 = vrcp.pop %v823
      %v895 = vrcp.pop %v826
      %v896 = vrcp.pop %v829
      %v897 = vmul.f32 %v881, %v894
      %v898 = vmul.f32 %v884, %v895
      %v899 = vmul.f32 %v889, %v896
      %v900 = vpack.c.bf16 %v898, %v897
      %v901 = vpack.c.bf16 %v899, %v899
      %v904 = vunpack.c.l.b16 %v900
      %v905 = vunpack.c.h.b16 %v900
      %v906 = vunpack.c.l.b16 %v901
      %v907 = vpack.c.b16 %v904, %v904
      %v908 = vpack.c.b16 %v905, %v905
      %v909 = vpack.c.b16 %v906, %v906
      %910 = vrot.lane.b32.xlu0 %v907, 24
      %v911 = vpop.permute.xlu0 %910
      %912 = vrot.lane.b32.xlu0 %v908, 24
      %v913 = vpop.permute.xlu0 %912
      %914 = vrot.lane.b32.xlu0 %v909, 24
      %v915 = vpop.permute.xlu0 %914
      %vm919 = vcmask 257216
      %920 = vst.msk [vmem:[%s116] sm:$0xf] %vm919, %v911
      %921 = vst.msk [vmem:[%s116 + $0x4] sm:$0xf] %vm919, %v913
      %vm922 = vcmask 255168
      %923 = vst.msk [vmem:[%s116 + $0x8] sm:$0x3] %vm922, %v915
      %p924 = scmp.lt.s32.totalorder %s12, 1
      %s925 = scalar_select %p924, %s12, 1
      %s926 = smul.addr %s925, 3
      %s927 = smul.addr %s926, 4
      %s928 = scalar_lea.vmem %s1, %s927
      // Predicated region
      $region25: #{transformer_forward.39} parent=23 // pred_check
        %p929 = pneg %p56
      $region26: #{transformer_forward.39} parent=23 // pred_check_branch
        %931 = sbr.rel (%p929) target = $region28
      $region27: #{transformer_forward.39} parent=23 // pred_region
        _
      $region28: #{transformer_forward.39} parent=23 // pred_fallthru
        _
    $region24: #{transformer_forward.39} parent=5 // pred_fallthru
      _
    %p932 = scmp.le.s32.totalorder 2, %s7
    // Predicated region
    $region29: #{transformer_forward.39} parent=5 // pred_check
      %p933 = pneg %p932
    $region30: #{transformer_forward.39} parent=5 // pred_check_branch
      %935 = sbr.rel (%p933) target = $region32
    $region31: #{transformer_forward.39} parent=5 // pred_region
      %s936 = ssub.s32 %s7, 2
      // Predicated region
      $region33: #{transformer_forward.39} parent=31 // pred_check
        %p937 = pneg %p62
      $region34: #{transformer_forward.39} parent=31 // pred_check_branch
        %939 = sbr.rel (%p937) target = $region36
      $region35: #{transformer_forward.39} parent=31 // pred_region
        %p940 = scmp.lt.s32.totalorder %s13, 1
        %s941 = scalar_select %p940, %s13, 1
        %s942 = smul.addr %s941, 3
        %s943 = smul.addr %s942, 4
        %s944 = scalar_lea.vmem %s1, %s943
      $region36: #{transformer_forward.39} parent=31 // pred_fallthru
        _
    $region32: #{transformer_forward.39} parent=5 // pred_fallthru
      _
  $region6: #{transformer_forward.39} parent=0 // loop_footer
    %s11 = sadd.s32 1, %s7
  $region7: #{transformer_forward.39} parent=0 // loop_footer_branch
    %6 = sbr.rel target = $region3
  $region8: #{transformer_forward.39} parent=0 // loop_exit
    _

// kernel: transformer_forward.42
$region0: #{transformer_forward.42}
  #allocation0 [shape = 'u32[]', space=smem, size = 0x4, offset = 0x4, fixed_abs, tag = 'smem constant byte address 0x4 - core index']
  #allocation1 [shape = 'u32[144,128]{1,0:T(1,128)}', space=vmem, size = 0x12000, scoped, tag = 'internal scratch']
  #allocation2 [shape = 'f32[40,32]{1,0:T(8,128)}', space=vmem, size = 0x5000, scoped, tag = 'scratch operand']
  %s0 = inlined_call_operand.vmem [shape: bf16[40,64], index: 0, kind: input, shape index: {}]
  %s1 = inlined_call_operand.vmem [shape: bf16[64,32], index: 1, kind: input, shape index: {}]
  %s2 = inlined_call_operand.vmem [shape: f32[1,32], index: 2, kind: input, shape index: {}]
  %s3 = inlined_call_operand.vmem [shape: f32[40,32], index: 3, kind: input, shape index: {}]
  %s4 = inlined_call_operand.vmem [shape: f32[1,32], index: 4, kind: input, shape index: {}]
  %s5 = inlined_call_operand.vmem [shape: f32[1,32], index: 5, kind: input, shape index: {}]
  %s6 = inlined_call_operand.hbm [shape: f32[40,32], index: 6, kind: output, shape index: {0}]
  %s7 = inlined_call_operand.vmem [shape: bf16[40,32], index: 7, kind: output, shape index: {1}]
  %8 = xla_tuple %s6, %s7
  %s9 = sld [smem:[#allocation0]]
  $region50: #{transformer_forward.42} parent=0
    _
  %s11 = ssub.s32 1, %s9
  %s12 = scalar_select 0, %s11, %s9
  $region1: #{transformer_forward.42} parent=0
    #allocation3 [shape = 'u8[20480]{0}', space=vmem, size = 0x5000, scoped, tag = 'output window, operand 0, single buffered']
    #allocation4 [shape = 's32[1]{0}', space=sflag, size = 0x4, scoped, tag = 'scoped memory for transformer_forward.42']
    %13 = vsyncpa [#allocation4], 0
    // Predicated region
    $region2: #{transformer_forward.42} parent=1 // pred_check
      _
    $region3: #{transformer_forward.42} parent=1 // pred_check_branch
      %15 = sbr.rel (0) target = $region5
    $region4: #{transformer_forward.42} parent=1 // pred_region
      _
    $region5: #{transformer_forward.42} parent=1 // pred_fallthru
      _
    // Predicated region
    $region6: #{transformer_forward.42} parent=1 // pred_check
      _
    $region7: #{transformer_forward.42} parent=1 // pred_check_branch
      %17 = sbr.rel (0) target = $region9
    $region8: #{transformer_forward.42} parent=1 // pred_region
      _
    $region9: #{transformer_forward.42} parent=1 // pred_fallthru
      _
    // Predicated region
    $region10: #{transformer_forward.42} parent=1 // pred_check
      _
    $region11: #{transformer_forward.42} parent=1 // pred_check_branch
      %19 = sbr.rel (0) target = $region13
    $region12: #{transformer_forward.42} parent=1 // pred_region
      _
    $region13: #{transformer_forward.42} parent=1 // pred_fallthru
      _
    // Predicated region
    $region14: #{transformer_forward.42} parent=1 // pred_check
      _
    $region15: #{transformer_forward.42} parent=1 // pred_check_branch
      %21 = sbr.rel (0) target = $region17
    $region16: #{transformer_forward.42} parent=1 // pred_region
      _
    $region17: #{transformer_forward.42} parent=1 // pred_fallthru
      _
    // Predicated region
    $region18: #{transformer_forward.42} parent=1 // pred_check
      _
    $region19: #{transformer_forward.42} parent=1 // pred_check_branch
      %23 = sbr.rel (0) target = $region21
    $region20: #{transformer_forward.42} parent=1 // pred_region
      _
    $region21: #{transformer_forward.42} parent=1 // pred_fallthru
      _
    // Predicated region
    $region22: #{transformer_forward.42} parent=1 // pred_check
      _
    $region23: #{transformer_forward.42} parent=1 // pred_check_branch
      %25 = sbr.rel (0) target = $region25
    $region24: #{transformer_forward.42} parent=1 // pred_region
      _
    $region25: #{transformer_forward.42} parent=1 // pred_fallthru
      _
    %p27 = scmp.eq.s32.totalorder 0, 0
    // Predicated region
    $region26: #{transformer_forward.42} parent=1 // pred_check
      %p28 = pneg %p27
    $region27: #{transformer_forward.42} parent=1 // pred_check_branch
      %30 = sbr.rel (%p28) target = $region29
    $region28: #{transformer_forward.42} parent=1 // pred_region
      %vm31 = vcmask 261120
      %32 = vst.msk [vmem:[#allocation2] sm:$0xff] %vm31, 0.0
      %33 = vst.msk [vmem:[#allocation2 + $0x8] sm:$0xff] %vm31, 0.0
      %34 = vst.msk [vmem:[#allocation2 + $0x10] sm:$0xff] %vm31, 0.0
      %35 = vst.msk [vmem:[#allocation2 + $0x18] sm:$0xff] %vm31, 0.0
      %36 = vst.msk [vmem:[#allocation2 + $0x20] sm:$0xff] %vm31, 0.0
    $region29: #{transformer_forward.42} parent=1 // pred_fallthru
      _
    %v37 = vld [vmem:[#allocation2] sm:$0xff]
    %v38 = vld [vmem:[#allocation2 + $0x8] sm:$0xff]
    %v39 = vld [vmem:[#allocation2 + $0x10] sm:$0xff]
    %v40 = vld [vmem:[#allocation2 + $0x18] sm:$0xff]
    %v41 = vld [vmem:[#allocation2 + $0x20] sm:$0xff]
    %v42 = vld [vmem:[%s0] sm:$0xf]
    %v43 = vld [vmem:[%s0 + $0x4] sm:$0xf]
    %v44 = vld [vmem:[%s0 + $0x8] sm:$0xf]
    %v45 = vld [vmem:[%s0 + $0xc] sm:$0xf]
    %v46 = vld [vmem:[%s0 + $0x10] sm:$0xf]
    %v47 = vld [vmem:[%s1] sm:$0xf]
    %v48 = vld [vmem:[%s1 + $0x4] sm:$0xf]
    %v49 = vld [vmem:[%s1 + $0x8] sm:$0xf]
    %v50 = vld [vmem:[%s1 + $0xc] sm:$0xf]
    %v51 = vld [vmem:[%s1 + $0x10] sm:$0xf]
    %v52 = vld [vmem:[%s1 + $0x14] sm:$0xf]
    %v53 = vld [vmem:[%s1 + $0x18] sm:$0xf]
    %v54 = vld [vmem:[%s1 + $0x1c] sm:$0xf]
    %v60 = vunpack.c.l.b16 %v42
    %v61 = vunpack.c.l.b16 %v43
    %v62 = vunpack.c.l.b16 %v44
    %v63 = vunpack.c.l.b16 %v45
    %v64 = vunpack.c.l.b16 %v46
    %v65 = vpack.c.b16 %v61, %v60
    %v66 = vpack.c.b16 %v63, %v62
    %v67 = vpack.c.b16 %v64, %v64
    %v76 = vunpack.c.l.b16 %v47
    %v77 = vunpack.c.l.b16 %v48
    %v78 = vunpack.c.l.b16 %v49
    %v79 = vunpack.c.l.b16 %v50
    %v80 = vunpack.c.l.b16 %v51
    %v81 = vunpack.c.l.b16 %v52
    %v82 = vunpack.c.l.b16 %v53
    %v83 = vunpack.c.l.b16 %v54
    %v84 = vpack.c.b16 %v77, %v76
    %v85 = vpack.c.b16 %v79, %v78
    %v86 = vpack.c.b16 %v81, %v80
    %v87 = vpack.c.b16 %v83, %v82
    %vm92 = vcmask 523264
    %v94 = vsel %vm92, %v65, 0
    %v97 = vsel %vm92, %v66, 0
    %v100 = vsel %vm92, %v67, 0
    %102 = vmatprep.subr.bf16.mxu0 0
    %103 = vmatpush1.bf16.msra.mxu0 %v84
    %104 = vmatprep.subr.bf16.mxu0 0
    %105 = vmatpush1.bf16.msra.mxu0 %v85
    %106 = vmatprep.subr.bf16.mxu0 0
    %107 = vmatpush1.bf16.msra.mxu0 %v86
    %108 = vmatprep.subr.bf16.mxu0 0
    %109 = vmatpush1.bf16.msra.mxu0 %v87
    %110 = vmatprep.subr.bf16.mxu0 0
    %111 = vmatpush1.bf16.msra.mxu0 0
    %112 = vmatprep.subr.bf16.mxu0 0
    %113 = vmatpush1.bf16.msra.mxu0 0
    %114 = vmatprep.subr.bf16.mxu0 0
    %115 = vmatpush1.bf16.msra.mxu0 0
    %116 = vmatprep.subr.bf16.mxu0 0
    %117 = vmatpush1.bf16.msra.mxu0 0
    %118 = vmatprep.subr.bf16.mxu0 0
    %119 = vmatpush1.bf16.msra.mxu0 0
    %120 = vmatprep.subr.bf16.mxu0 0
    %121 = vmatpush1.bf16.msra.mxu0 0
    %122 = vmatprep.subr.bf16.mxu0 0
    %123 = vmatpush1.bf16.msra.mxu0 0
    %124 = vmatprep.subr.bf16.mxu0 0
    %125 = vmatpush1.bf16.msra.mxu0 0
    %126 = vmatprep.subr.bf16.mxu0 0
    %127 = vmatpush1.bf16.msra.mxu0 0
    %128 = vmatprep.subr.bf16.mxu0 0
    %129 = vmatpush1.bf16.msra.mxu0 0
    %130 = vmatprep.subr.bf16.mxu0 0
    %131 = vmatpush1.bf16.msra.mxu0 0
    %132 = vmatprep.subr.bf16.mxu0 0
    %133 = vmatpush1.bf16.msra.mxu0 0
    %134 = vmatprep.mubr.bf16.mxu0 0
    %135 = vmatmul.mubr.bf16.gmra.mrb[0].mxu0 %v94
    %v136 = vpop.f32.mrb[0].mxu0
    %v137 = vadd.f32 0.0, %v136
    %v138 = vpop.f32.mrb[0].mxu0
    %v139 = vpop.f32.mrb[0].mxu0
    %v140 = vadd.f32 0.0, %v139
    %v141 = vpop.f32.mrb[0].mxu0
    %142 = vmatprep.mubr.bf16.mxu0 0
    %143 = vmatmul.mubr.bf16.gmra.mrb[0].mxu0 %v97
    %v144 = vpop.f32.mrb[0].mxu0
    %v145 = vadd.f32 0.0, %v144
    %v146 = vpop.f32.mrb[0].mxu0
    %v147 = vpop.f32.mrb[0].mxu0
    %v148 = vadd.f32 0.0, %v147
    %v149 = vpop.f32.mrb[0].mxu0
    %150 = vmatprep.mubr.bf16.mxu0 0
    %151 = vmatmul.mubr.bf16.gmra.mrb[0].mxu0 %v100
    %v152 = vpop.f32.mrb[0].mxu0
    %v153 = vadd.f32 0.0, %v152
    %v154 = vpop.f32.mrb[0].mxu0
    %v155 = vpop.f32.mrb[0].mxu0
    %v156 = vpop.f32.mrb[0].mxu0
    %157 = vdwg.mxu0
    %v158 = vadd.f32 %v37, %v137
    %v159 = vadd.f32 %v38, %v140
    %v160 = vadd.f32 %v39, %v145
    %v161 = vadd.f32 %v40, %v148
    %v162 = vadd.f32 %v41, %v153
    %vm163 = vcmask 261120
    %164 = vst.msk [vmem:[#allocation2] sm:$0xff] %vm163, %v158
    %165 = vst.msk [vmem:[#allocation2 + $0x8] sm:$0xff] %vm163, %v159
    %166 = vst.msk [vmem:[#allocation2 + $0x10] sm:$0xff] %vm163, %v160
    %167 = vst.msk [vmem:[#allocation2 + $0x18] sm:$0xff] %vm163, %v161
    %168 = vst.msk [vmem:[#allocation2 + $0x20] sm:$0xff] %vm163, %v162
    // Predicated region
    $region30: #{transformer_forward.42} parent=1 // pred_check
      %p169 = pneg %p27
    $region31: #{transformer_forward.42} parent=1 // pred_check_branch
      %171 = sbr.rel (%p169) target = $region33
    $region32: #{transformer_forward.42} parent=1 // pred_region
      %v172 = vld [vmem:[#allocation2] sm:$0xff]
      %v173 = vld [vmem:[#allocation2 + $0x8] sm:$0xff]
      %v174 = vld [vmem:[#allocation2 + $0x10] sm:$0xff]
      %v175 = vld [vmem:[#allocation2 + $0x18] sm:$0xff]
      %v176 = vld [vmem:[#allocation2 + $0x20] sm:$0xff]
      %v177 = vld [vmem:[%s2] sm:$0x1]
      %v179 = vlaneseq
      %v180 = vshrl.u32 %v179, 7
      %v181 = vsub.s32 0, %v180
      %v182 = vrot.slane %v177, %v181
      %v184 = vadd.f32 %v172, %v182
      %v185 = vadd.f32 %v173, %v182
      %v186 = vadd.f32 %v174, %v182
      %v187 = vadd.f32 %v175, %v182
      %v188 = vadd.f32 %v176, %v182
      %v189 = vld [vmem:[%s3] sm:$0xff]
      %v190 = vld [vmem:[%s3 + $0x8] sm:$0xff]
      %v191 = vld [vmem:[%s3 + $0x10] sm:$0xff]
      %v192 = vld [vmem:[%s3 + $0x18] sm:$0xff]
      %v193 = vld [vmem:[%s3 + $0x20] sm:$0xff]
      %v194 = vadd.f32 %v184, %v189
      %v195 = vadd.f32 %v185, %v190
      %v196 = vadd.f32 %v186, %v191
      %v197 = vadd.f32 %v187, %v192
      %v198 = vadd.f32 %v188, %v193
      %199 = vst.msk [vmem:[#allocation3] sm:$0xff] %vm163, %v194
      %200 = vst.msk [vmem:[#allocation3 + $0x8] sm:$0xff] %vm163, %v195
      %201 = vst.msk [vmem:[#allocation3 + $0x10] sm:$0xff] %vm163, %v196
      %202 = vst.msk [vmem:[#allocation3 + $0x18] sm:$0xff] %vm163, %v197
      %203 = vst.msk [vmem:[#allocation3 + $0x20] sm:$0xff] %vm163, %v198
      %v204 = vsel %vm163, %v194, 0.0
      %205 = vadd.xlane.f32.xlu0 %v204
      %v206 = vpop.xlane.xlu0 %205
      %v207 = vsel %vm163, %v195, 0.0
      %208 = vadd.xlane.f32.xlu0 %v207
      %v209 = vpop.xlane.xlu0 %208
      %v210 = vsel %vm163, %v196, 0.0
      %211 = vadd.xlane.f32.xlu0 %v210
      %v212 = vpop.xlane.xlu0 %211
      %v213 = vsel %vm163, %v197, 0.0
      %214 = vadd.xlane.f32.xlu0 %v213
      %v215 = vpop.xlane.xlu0 %214
      %v216 = vsel %vm163, %v198, 0.0
      %217 = vadd.xlane.f32.xlu0 %v216
      %v218 = vpop.xlane.xlu0 %217
      %v219 = vrcp.pop 32.0
      %v220 = vmul.f32 %v206, %v219
      %v221 = vmul.f32 %v209, %v219
      %v222 = vmul.f32 %v212, %v219
      %v223 = vmul.f32 %v215, %v219
      %v224 = vmul.f32 %v218, %v219
      %v225 = vsub.f32 %v194, %v220
      %v226 = vsub.f32 %v195, %v221
      %v227 = vsub.f32 %v196, %v222
      %v228 = vsub.f32 %v197, %v223
      %v229 = vsub.f32 %v198, %v224
      %v230 = vmul.f32 %v225, %v225
      %v231 = vmul.f32 %v226, %v226
      %v232 = vmul.f32 %v227, %v227
      %v233 = vmul.f32 %v228, %v228
      %v234 = vmul.f32 %v229, %v229
      %v235 = vsel %vm163, %v230, 0.0
      %236 = vadd.xlane.f32.xlu0 %v235
      %v237 = vpop.xlane.xlu0 %236
      %v238 = vsel %vm163, %v231, 0.0
      %239 = vadd.xlane.f32.xlu0 %v238
      %v240 = vpop.xlane.xlu0 %239
      %v241 = vsel %vm163, %v232, 0.0
      %242 = vadd.xlane.f32.xlu0 %v241
      %v243 = vpop.xlane.xlu0 %242
      %v244 = vsel %vm163, %v233, 0.0
      %245 = vadd.xlane.f32.xlu0 %v244
      %v246 = vpop.xlane.xlu0 %245
      %v247 = vsel %vm163, %v234, 0.0
      %248 = vadd.xlane.f32.xlu0 %v247
      %v249 = vpop.xlane.xlu0 %248
      %v250 = vmul.f32 %v237, %v219
      %v251 = vmul.f32 %v240, %v219
      %v252 = vmul.f32 %v243, %v219
      %v253 = vmul.f32 %v246, %v219
      %v254 = vmul.f32 %v249, %v219
      %v255 = vadd.f32 %v250, 1e-05
      %v256 = vadd.f32 %v251, 1e-05
      %v257 = vadd.f32 %v252, 1e-05
      %v258 = vadd.f32 %v253, 1e-05
      %v259 = vadd.f32 %v254, 1e-05
      %v260 = vrsqrt.pop %v255
      %v261 = vrsqrt.pop %v256
      %v262 = vrsqrt.pop %v257
      %v263 = vrsqrt.pop %v258
      %v264 = vrsqrt.pop %v259
      %v265 = vmul.f32 %v225, %v260
      %v266 = vmul.f32 %v226, %v261
      %v267 = vmul.f32 %v227, %v262
      %v268 = vmul.f32 %v228, %v263
      %v269 = vmul.f32 %v229, %v264
      %v270 = vld [vmem:[%s4] sm:$0x1]
      %v272 = vlaneseq
      %v273 = vshrl.u32 %v272, 7
      %v274 = vsub.s32 0, %v273
      %v275 = vrot.slane %v270, %v274
      %v277 = vmul.f32 %v265, %v275
      %v278 = vmul.f32 %v266, %v275
      %v279 = vmul.f32 %v267, %v275
      %v280 = vmul.f32 %v268, %v275
      %v281 = vmul.f32 %v269, %v275
      %v282 = vld [vmem:[%s5] sm:$0x1]
      %v284 = vlaneseq
      %v285 = vshrl.u32 %v284, 7
      %v286 = vsub.s32 0, %v285
      %v287 = vrot.slane %v282, %v286
      %v289 = vadd.f32 %v277, %v287
      %v290 = vadd.f32 %v278, %v287
      %v291 = vadd.f32 %v279, %v287
      %v292 = vadd.f32 %v280, %v287
      %v293 = vadd.f32 %v281, %v287
      %v294 = vpack.c.bf16 %v290, %v289
      %v295 = vpack.c.bf16 %v292, %v291
      %v296 = vpack.c.bf16 %v293, %v293
      %v300 = vunpack.c.l.b16 %v294
      %v301 = vunpack.c.h.b16 %v294
      %v302 = vunpack.c.l.b16 %v295
      %v303 = vunpack.c.h.b16 %v295
      %v304 = vunpack.c.l.b16 %v296
      %v305 = vpack.c.b16 %v300, %v300
      %v306 = vpack.c.b16 %v301, %v301
      %v307 = vpack.c.b16 %v302, %v302
      %v308 = vpack.c.b16 %v303, %v303
      %v309 = vpack.c.b16 %v304, %v304
      %vm315 = vcmask 257024
      %316 = vst.msk [vmem:[%s7] sm:$0xf] %vm315, %v305
      %317 = vst.msk [vmem:[%s7 + $0x4] sm:$0xf] %vm315, %v306
      %318 = vst.msk [vmem:[%s7 + $0x8] sm:$0xf] %vm315, %v307
      %319 = vst.msk [vmem:[%s7 + $0xc] sm:$0xf] %vm315, %v308
      %320 = vst.msk [vmem:[%s7 + $0x10] sm:$0xf] %vm315, %v309
    $region33: #{transformer_forward.42} parent=1 // pred_fallthru
      _
    // Predicated region
    $region34: #{transformer_forward.42} parent=1 // pred_check
      _
    $region35: #{transformer_forward.42} parent=1 // pred_check_branch
      %322 = sbr.rel (0) target = $region37
    $region36: #{transformer_forward.42} parent=1 // pred_region
      %s324 = ssub.s32 640, 640
      %325 = vsyncadd [#allocation4], %s324
      %s326 = sshll.u32 [#allocation3], 4
      %s327 = int_to_ptr.vmem [resolvable:$true] %s326
      %332 = dma.vmem_to_hbm [thread:$0]  %s327, 640, %s6, [#allocation4], 128, 128, 8
    $region37: #{transformer_forward.42} parent=1 // pred_fallthru
      _
    // Predicated region
    $region38: #{transformer_forward.42} parent=1 // pred_check
      _
    $region39: #{transformer_forward.42} parent=1 // pred_check_branch
      %334 = sbr.rel (0) target = $region41
    $region40: #{transformer_forward.42} parent=1 // pred_region
      _
    $region41: #{transformer_forward.42} parent=1 // pred_fallthru
      _
    // Predicated region
    $region42: #{transformer_forward.42} parent=1 // pred_check
      _
    $region43: #{transformer_forward.42} parent=1 // pred_check_branch
      %336 = sbr.rel (0) target = $region45
    $region44: #{transformer_forward.42} parent=1 // pred_region
      %337 = dma.done [#allocation4], 640
    $region45: #{transformer_forward.42} parent=1 // pred_fallthru
      _
    // Predicated region
    $region46: #{transformer_forward.42} parent=1 // pred_check
      _
    $region47: #{transformer_forward.42} parent=1 // pred_check_branch
      %339 = sbr.rel (0) target = $region49
    $region48: #{transformer_forward.42} parent=1 // pred_region
      _
    $region49: #{transformer_forward.42} parent=1 // pred_fallthru
      _
    %340 = vsyncpa [#allocation4], 1

// kernel: transformer_forward.44
$region0: #{transformer_forward.44}
  #allocation0 [shape = 'u32[]', space=smem, size = 0x4, offset = 0x4, fixed_abs, tag = 'smem constant byte address 0x4 - core index']
  #allocation1 [shape = 'u32[144,128]{1,0:T(1,128)}', space=vmem, size = 0x12000, scoped, tag = 'internal scratch']
  #allocation2 [shape = 'f32[8,32]{1,0:T(8,128)}', space=vmem, size = 0x1000, scoped, tag = 'scratch operand']
  %s0 = inlined_call_operand.vmem [shape: bf16[8,32], index: 0, kind: input, shape index: {}]
  %s1 = inlined_call_operand.vmem [shape: bf16[32,32], index: 1, kind: input, shape index: {}]
  %s2 = inlined_call_operand.vmem [shape: f32[1,32], index: 2, kind: input, shape index: {}]
  %s3 = inlined_call_operand.vmem [shape: f32[8,32], index: 3, kind: output, shape index: {}]
  %s4 = sld [smem:[#allocation0]]
  $region30: #{transformer_forward.44} parent=0
    _
  %s6 = ssub.s32 1, %s4
  %s7 = scalar_select 0, %s6, %s4
  // Predicated region
  $region2: #{transformer_forward.44} parent=0 // pred_check
    _
  $region3: #{transformer_forward.44} parent=0 // pred_check_branch
    %9 = sbr.rel (0) target = $region5
  $region4: #{transformer_forward.44} parent=0 // pred_region
    _
  $region5: #{transformer_forward.44} parent=0 // pred_fallthru
    _
  // Predicated region
  $region6: #{transformer_forward.44} parent=0 // pred_check
    _
  $region7: #{transformer_forward.44} parent=0 // pred_check_branch
    %11 = sbr.rel (0) target = $region9
  $region8: #{transformer_forward.44} parent=0 // pred_region
    _
  $region9: #{transformer_forward.44} parent=0 // pred_fallthru
    _
  // Predicated region
  $region10: #{transformer_forward.44} parent=0 // pred_check
    _
  $region11: #{transformer_forward.44} parent=0 // pred_check_branch
    %13 = sbr.rel (0) target = $region13
  $region12: #{transformer_forward.44} parent=0 // pred_region
    _
  $region13: #{transformer_forward.44} parent=0 // pred_fallthru
    _
  %p15 = scmp.eq.s32.totalorder 0, 0
  // Predicated region
  $region14: #{transformer_forward.44} parent=0 // pred_check
    %p16 = pneg %p15
  $region15: #{transformer_forward.44} parent=0 // pred_check_branch
    %18 = sbr.rel (%p16) target = $region17
  $region16: #{transformer_forward.44} parent=0 // pred_region
    %vm19 = vcmask 261120
    %20 = vst.msk [vmem:[#allocation2] sm:$0xff] %vm19, 0.0
  $region17: #{transformer_forward.44} parent=0 // pred_fallthru
    _
  %v21 = vld [vmem:[#allocation2] sm:$0xff]
  %v22 = vld [vmem:[%s0] sm:$0xf]
  %v23 = vld [vmem:[%s1] sm:$0xf]
  %v24 = vld [vmem:[%s1 + $0x4] sm:$0xf]
  %v25 = vld [vmem:[%s1 + $0x8] sm:$0xf]
  %v26 = vld [vmem:[%s1 + $0xc] sm:$0xf]
  %v31 = vunpack.c.l.b16 %v23
  %v32 = vunpack.c.l.b16 %v24
  %v33 = vunpack.c.l.b16 %v25
  %v34 = vunpack.c.l.b16 %v26
  %v35 = vpack.c.b16 %v32, %v31
  %v36 = vpack.c.b16 %v34, %v33
  %vm39 = vcmask 261120
  %v41 = vsel %vm39, %v22, 0
  %43 = vmatprep.subr.bf16.mxu0 0
  %44 = vmatpush1.bf16.msra.mxu0 %v35
  %45 = vmatprep.subr.bf16.mxu0 0
  %46 = vmatpush1.bf16.msra.mxu0 %v36
  %47 = vmatprep.subr.bf16.mxu0 0
  %48 = vmatpush1.bf16.msra.mxu0 0
  %49 = vmatprep.subr.bf16.mxu0 0
  %50 = vmatpush1.bf16.msra.mxu0 0
  %51 = vmatprep.subr.bf16.mxu0 0
  %52 = vmatpush1.bf16.msra.mxu0 0
  %53 = vmatprep.subr.bf16.mxu0 0
  %54 = vmatpush1.bf16.msra.mxu0 0
  %55 = vmatprep.subr.bf16.mxu0 0
  %56 = vmatpush1.bf16.msra.mxu0 0
  %57 = vmatprep.subr.bf16.mxu0 0
  %58 = vmatpush1.bf16.msra.mxu0 0
  %59 = vmatprep.subr.bf16.mxu0 0
  %60 = vmatpush1.bf16.msra.mxu0 0
  %61 = vmatprep.subr.bf16.mxu0 0
  %62 = vmatpush1.bf16.msra.mxu0 0
  %63 = vmatprep.subr.bf16.mxu0 0
  %64 = vmatpush1.bf16.msra.mxu0 0
  %65 = vmatprep.subr.bf16.mxu0 0
  %66 = vmatpush1.bf16.msra.mxu0 0
  %67 = vmatprep.subr.bf16.mxu0 0
  %68 = vmatpush1.bf16.msra.mxu0 0
  %69 = vmatprep.subr.bf16.mxu0 0
  %70 = vmatpush1.bf16.msra.mxu0 0
  %71 = vmatprep.subr.bf16.mxu0 0
  %72 = vmatpush1.bf16.msra.mxu0 0
  %73 = vmatprep.subr.bf16.mxu0 0
  %74 = vmatpush1.bf16.msra.mxu0 0
  %75 = vmatprep.mubr.bf16.mxu0 0
  %76 = vmatmul.mubr.bf16.gmra.mrb[0].mxu0 %v41
  %v77 = vpop.f32.mrb[0].mxu0
  %v78 = vadd.f32 0.0, %v77
  %v79 = vpop.f32.mrb[0].mxu0
  %v80 = vpop.f32.mrb[0].mxu0
  %v81 = vpop.f32.mrb[0].mxu0
  %82 = vdwg.mxu0
  %v83 = vadd.f32 %v21, %v78
  %84 = vst.msk [vmem:[#allocation2] sm:$0xff] %vm39, %v83
  // Predicated region
  $region18: #{transformer_forward.44} parent=0 // pred_check
    %p85 = pneg %p15
  $region19: #{transformer_forward.44} parent=0 // pred_check_branch
    %87 = sbr.rel (%p85) target = $region21
  $region20: #{transformer_forward.44} parent=0 // pred_region
    %v88 = vld [vmem:[#allocation2] sm:$0xff]
    %v89 = vld [vmem:[%s2] sm:$0x1]
    %v91 = vlaneseq
    %v92 = vshrl.u32 %v91, 7
    %v93 = vsub.s32 0, %v92
    %v94 = vrot.slane %v89, %v93
    %v96 = vadd.f32 %v88, %v94
    %97 = vst.msk [vmem:[%s3] sm:$0xff] %vm39, %v96
  $region21: #{transformer_forward.44} parent=0 // pred_fallthru
    _
  // Predicated region
  $region22: #{transformer_forward.44} parent=0 // pred_check
    _
  $region23: #{transformer_forward.44} parent=0 // pred_check_branch
    %99 = sbr.rel (0) target = $region25
  $region24: #{transformer_forward.44} parent=0 // pred_region
    _
  $region25: #{transformer_forward.44} parent=0 // pred_fallthru
    _
  // Predicated region
  $region26: #{transformer_forward.44} parent=0 // pred_check
    _
  $region27: #{transformer_forward.44} parent=0 // pred_check_branch
    %101 = sbr.rel (0) target = $region29
  $region28: #{transformer_forward.44} parent=0 // pred_region
    _
  $region29: #{transformer_forward.44} parent=0 // pred_fallthru
    _

// kernel: transformer_forward.45
$region0: #{transformer_forward.45}
  #allocation0 [shape = 'u32[]', space=smem, size = 0x4, offset = 0x4, fixed_abs, tag = 'smem constant byte address 0x4 - core index']
  #allocation1 [shape = 'u32[144,128]{1,0:T(1,128)}', space=vmem, size = 0x12000, scoped, tag = 'internal scratch']
  %s0 = inlined_call_operand.vmem [shape: bf16[2,4,32], index: 0, kind: input, shape index: {}]
  %s1 = inlined_call_operand.vmem [shape: bf16[2,16,32], index: 1, kind: input, shape index: {}]
  %s2 = inlined_call_operand.vmem [shape: f32[4,1], index: 2, kind: input, shape index: {}]
  %s3 = inlined_call_operand.vmem [shape: f32[4,1], index: 3, kind: input, shape index: {}]
  %s4 = inlined_call_operand.vmem [shape: f32[2,4,16], index: 4, kind: output, shape index: {}]
  %s5 = sld [smem:[#allocation0]]
  $region49: #{transformer_forward.45} parent=0
    _
  %s7 = ssub.s32 1, %s5
  %s8 = scalar_select 0, %s7, %s5
  loop: start=0, step=1, limit=4
  $region2: #{transformer_forward.45} parent=0 // loop_pre_header
    _
  $region3: #{transformer_forward.45} parent=0 // loop_header
    %s10 = sphi 0, %s14
    %p11 = scmp.ge.s32.totalorder %s10, 4
    %s17 = sphi 0, %s29
    %s18 = sphi 0, %s25
    %s19 = sphi 0, %s17
    %s20 = sphi 0, %s18
    %s21 = sphi 0, %s19
    %s22 = sphi 0, %s20
    %s32 = sphi 0, %s34
    %s35 = sphi 0, %s32
    %s36 = sphi 0, %s35
    %s52 = sphi 0, %s36
    %s60 = sphi 0, %s62
    %s63 = sphi 0, %s60
    %s64 = sphi 0, %s63
    %s80 = sphi 0, %s64
    %s84 = sphi 0, %s84
    %s86 = sphi 0, %s84
    %s87 = sphi 0, %s86
    %s101 = sphi 0, %s87
    %s105 = sphi 0, %s105
    %s107 = sphi 0, %s105
    %s108 = sphi 0, %s107
    %s122 = sphi 0, %s108
    %s130 = sphi 0, %s132
    %s133 = sphi 0, %s130
    %s134 = sphi 0, %s133
    %s150 = sphi 0, %s134
  $region4: #{transformer_forward.45} parent=0 // loop_header_branch
    %13 = sbr.rel (%p11) target = $region8
  $region5: #{transformer_forward.45} parent=0 // loop_body
    %s15 = ssub.s32 %s10, 1
    %s16 = ssub.s32 %s10, 2
    %s23 = sadd.s32 1, %s18
    %p24 = scmp.ge.s32.totalorder %s23, 1
    %s25 = scalar_select %p24, 0, %s23
    %s26 = sadd.s32 1, %s17
    %s27 = scalar_select %p24, %s26, %s17
    %p28 = scmp.ge.s32.totalorder %s27, 2
    %s29 = scalar_select %p28, 0, %s27
    %s30 = ssub.s32 %s17, %s29
    %p31 = scmp.eq.s32.totalorder %s30, 0
    %s33 = sadd.s32 %s32, 1
    %s34 = scalar_select %p31, %s32, %s33
    %p37 = pneg %p31
    %p38 = scmp.eq.s32.totalorder %s10, 1
    %p39 = por %p37, %p38
    %p40 = scmp.ne.s32.totalorder %s32, %s35
    %p41 = scmp.eq.s32.totalorder %s10, 0
    %p42 = por %p40, %p41
    %p43 = scmp.ne.s32.totalorder %s32, %s35
    %p44 = scmp.eq.s32.totalorder %s15, 1
    %p45 = por %p43, %p44
    %p46 = scmp.ne.s32.totalorder %s35, %s36
    %p47 = scmp.eq.s32.totalorder %s15, 0
    %p48 = por %p46, %p47
    %p49 = scmp.ne.s32.totalorder %s35, %s36
    %p50 = scmp.eq.s32.totalorder %s16, 1
    %p51 = por %p49, %p50
    %p53 = scmp.ne.s32.totalorder %s36, %s52
    %p54 = scmp.eq.s32.totalorder %s16, 0
    %p55 = por %p53, %p54
    %s56 = ssub.s32 %s17, %s29
    %s57 = ssub.s32 %s18, %s25
    %s58 = sor.u32 %s56, %s57
    %p59 = scmp.eq.s32.totalorder %s58, 0
    %s61 = sadd.s32 %s60, 1
    %s62 = scalar_select %p59, %s60, %s61
    %p65 = pneg %p59
    %p66 = scmp.eq.s32.totalorder %s10, 1
    %p67 = por %p65, %p66
    %p68 = scmp.ne.s32.totalorder %s60, %s63
    %p69 = scmp.eq.s32.totalorder %s10, 0
    %p70 = por %p68, %p69
    %p71 = scmp.ne.s32.totalorder %s60, %s63
    %p72 = scmp.eq.s32.totalorder %s15, 1
    %p73 = por %p71, %p72
    %p74 = scmp.ne.s32.totalorder %s63, %s64
    %p75 = scmp.eq.s32.totalorder %s15, 0
    %p76 = por %p74, %p75
    %p77 = scmp.ne.s32.totalorder %s63, %s64
    %p78 = scmp.eq.s32.totalorder %s16, 1
    %p79 = por %p77, %p78
    %p81 = scmp.ne.s32.totalorder %s64, %s80
    %p82 = scmp.eq.s32.totalorder %s16, 0
    %p83 = por %p81, %p82
    %s85 = sadd.s32 %s84, 1
    %p88 = scmp.eq.s32.totalorder %s10, 1
    %p89 = scmp.ne.s32.totalorder %s84, %s86
    %p90 = scmp.eq.s32.totalorder %s10, 0
    %p91 = por %p89, %p90
    %p92 = scmp.ne.s32.totalorder %s84, %s86
    %p93 = scmp.eq.s32.totalorder %s15, 1
    %p94 = por %p92, %p93
    %p95 = scmp.ne.s32.totalorder %s86, %s87
    %p96 = scmp.eq.s32.totalorder %s15, 0
    %p97 = por %p95, %p96
    %p98 = scmp.ne.s32.totalorder %s86, %s87
    %p99 = scmp.eq.s32.totalorder %s16, 1
    %p100 = por %p98, %p99
    %p102 = scmp.ne.s32.totalorder %s87, %s101
    %p103 = scmp.eq.s32.totalorder %s16, 0
    %p104 = por %p102, %p103
    %s106 = sadd.s32 %s105, 1
    %p109 = scmp.eq.s32.totalorder %s10, 1
    %p110 = scmp.ne.s32.totalorder %s105, %s107
    %p111 = scmp.eq.s32.totalorder %s10, 0
    %p112 = por %p110, %p111
    %p113 = scmp.ne.s32.totalorder %s105, %s107
    %p114 = scmp.eq.s32.totalorder %s15, 1
    %p115 = por %p113, %p114
    %p116 = scmp.ne.s32.totalorder %s107, %s108
    %p117 = scmp.eq.s32.totalorder %s15, 0
    %p118 = por %p116, %p117
    %p119 = scmp.ne.s32.totalorder %s107, %s108
    %p120 = scmp.eq.s32.totalorder %s16, 1
    %p121 = por %p119, %p120
    %p123 = scmp.ne.s32.totalorder %s108, %s122
    %p124 = scmp.eq.s32.totalorder %s16, 0
    %p125 = por %p123, %p124
    %s126 = ssub.s32 %s17, %s29
    %s127 = ssub.s32 %s18, %s25
    %s128 = sor.u32 %s126, %s127
    %p129 = scmp.eq.s32.totalorder %s128, 0
    %s131 = sadd.s32 %s130, 1
    %s132 = scalar_select %p129, %s130, %s131
    %p135 = pneg %p129
    %p136 = scmp.eq.s32.totalorder %s10, 1
    %p137 = por %p135, %p136
    %p138 = scmp.ne.s32.totalorder %s130, %s133
    %p139 = scmp.eq.s32.totalorder %s10, 0
    %p140 = por %p138, %p139
    %p141 = scmp.ne.s32.totalorder %s130, %s133
    %p142 = scmp.eq.s32.totalorder %s15, 1
    %p143 = por %p141, %p142
    %p144 = scmp.ne.s32.totalorder %s133, %s134
    %p145 = scmp.eq.s32.totalorder %s15, 0
    %p146 = por %p144, %p145
    %p147 = scmp.ne.s32.totalorder %s133, %s134
    %p148 = scmp.eq.s32.totalorder %s16, 1
    %p149 = por %p147, %p148
    %p151 = scmp.ne.s32.totalorder %s134, %s150
    %p152 = scmp.eq.s32.totalorder %s16, 0
    %p153 = por %p151, %p152
    %p154 = scmp.le.s32.totalorder 1, %s10
    %p155 = scmp.lt.s32.totalorder %s10, 3
    %p156 = pnand %p154, %p155
    %p157 = pneg %p156
    // Predicated region
    $region9: #{transformer_forward.45} parent=5 // pred_check
      _
    $region10: #{transformer_forward.45} parent=5 // pred_check_branch
      %159 = sbr.rel (%p156) target = $region12
    $region11: #{transformer_forward.45} parent=5 // pred_region
      %s160 = ssub.s32 %s10, 1
      // Predicated region
      $region13: #{transformer_forward.45} parent=11 // pred_check
        %p161 = pneg %p97
      $region14: #{transformer_forward.45} parent=11 // pred_check_branch
        %163 = sbr.rel (%p161) target = $region16
      $region15: #{transformer_forward.45} parent=11 // pred_region
        _
      $region16: #{transformer_forward.45} parent=11 // pred_fallthru
        _
      // Predicated region
      $region17: #{transformer_forward.45} parent=11 // pred_check
        %p164 = pneg %p118
      $region18: #{transformer_forward.45} parent=11 // pred_check_branch
        %166 = sbr.rel (%p164) target = $region20
      $region19: #{transformer_forward.45} parent=11 // pred_region
        _
      $region20: #{transformer_forward.45} parent=11 // pred_fallthru
        _
    $region12: #{transformer_forward.45} parent=5 // pred_fallthru
      _
    %p167 = scmp.lt.s32.totalorder %s10, 2
    // Predicated region
    $region21: #{transformer_forward.45} parent=5 // pred_check
      %p168 = pneg %p167
    $region22: #{transformer_forward.45} parent=5 // pred_check_branch
      %170 = sbr.rel (%p168) target = $region24
    $region23: #{transformer_forward.45} parent=5 // pred_region
      // Predicated region
      $region25: #{transformer_forward.45} parent=23 // pred_check
        %p171 = pneg %p42
      $region26: #{transformer_forward.45} parent=23 // pred_check_branch
        %173 = sbr.rel (%p171) target = $region28
      $region27: #{transformer_forward.45} parent=23 // pred_region
        %p174 = scmp.lt.s32.totalorder %s17, 1
        %s175 = scalar_select %p174, %s17, 1
        %s176 = smul.addr %s175, 2
        %s177 = scalar_lea.vmem %s0, %s176
      $region28: #{transformer_forward.45} parent=23 // pred_fallthru
        _
      // Predicated region
      $region29: #{transformer_forward.45} parent=23 // pred_check
        %p178 = pneg %p70
      $region30: #{transformer_forward.45} parent=23 // pred_check_branch
        %180 = sbr.rel (%p178) target = $region32
      $region31: #{transformer_forward.45} parent=23 // pred_region
        %s181 = smul.u32 2, %s18
        %p182 = scmp.lt.s32.totalorder %s17, 1
        %s183 = scalar_select %p182, %s17, 1
        %p184 = scmp.lt.s32.totalorder %s181, 1
        %s185 = scalar_select %p184, %s181, 1
        %s186 = smul.addr %s183, 2
        %s187 = sadd.s32 %s185, %s186
        %s188 = smul.addr %s187, 4
        %s189 = scalar_lea.vmem %s1, %s188
        %s190 = smul.u32 2, %s18
      $region32: #{transformer_forward.45} parent=23 // pred_fallthru
        _
    $region24: #{transformer_forward.45} parent=5 // pred_fallthru
      _
    %p191 = scmp.le.s32.totalorder 1, %s10
    %p192 = scmp.lt.s32.totalorder %s10, 3
    %p193 = pnand %p191, %p192
    %p194 = pneg %p193
    // Predicated region
    $region33: #{transformer_forward.45} parent=5 // pred_check
      _
    $region34: #{transformer_forward.45} parent=5 // pred_check_branch
      %196 = sbr.rel (%p193) target = $region36
    $region35: #{transformer_forward.45} parent=5 // pred_region
      %s197 = ssub.s32 %s10, 1
      %p198 = scmp.lt.s32.totalorder %s19, 1
      %s199 = scalar_select %p198, %s19, 1
      %s200 = smul.addr %s199, 2
      %s201 = scalar_lea.vmem %s0, %s200
      %p202 = pneg %p48
      %p203 = pneg %p45
      %s204 = smul.u32 2, %s20
      %p205 = scmp.lt.s32.totalorder %s19, 1
      %s206 = scalar_select %p205, %s19, 1
      %p207 = scmp.lt.s32.totalorder %s204, 1
      %s208 = scalar_select %p207, %s204, 1
      %s209 = smul.addr %s206, 2
      %s210 = sadd.s32 %s208, %s209
      %s211 = smul.addr %s210, 4
      %s212 = scalar_lea.vmem %s1, %s211
      %p213 = pneg %p76
      %p214 = pneg %p73
      %p215 = pneg %p97
      %p216 = pneg %p94
      %p217 = pneg %p118
      %p218 = pneg %p115
      %p219 = pneg %p146
      %p220 = pneg %p143
      %p221 = scmp.lt.s32.totalorder %s19, 1
      %s222 = scalar_select %p221, %s19, 1
      %p223 = scmp.lt.s32.totalorder %s20, 0
      %s224 = scalar_select %p223, %s20, 0
      %s225 = sadd.s32 %s224, %s222
      %s226 = smul.addr %s225, 4
      %s227 = scalar_lea.vmem %s4, %s226
      %p228 = scmp.lt.s32.totalorder %s19, 1
      %s229 = scalar_select %p228, %s19, 1
      %s230 = smul.addr %s229, 2
      %s231 = scalar_lea.vmem %s0, %s230
      %s232 = smul.u32 2, %s20
      %p233 = scmp.lt.s32.totalorder %s19, 1
      %s234 = scalar_select %p233, %s19, 1
      %p235 = scmp.lt.s32.totalorder %s232, 1
      %s236 = scalar_select %p235, %s232, 1
      %s237 = smul.addr %s234, 2
      %s238 = sadd.s32 %s236, %s237
      %s239 = smul.addr %s238, 4
      %s240 = scalar_lea.vmem %s1, %s239
      %s241 = smul.u32 2, %s20
      %p242 = scmp.lt.s32.totalorder %s19, 1
      %s243 = scalar_select %p242, %s19, 1
      %p244 = scmp.lt.s32.totalorder %s20, 0
      %s245 = scalar_select %p244, %s20, 0
      %s246 = sadd.s32 %s245, %s243
      %s247 = smul.addr %s246, 4
      %s248 = scalar_lea.vmem %s4, %s247
      %v250 = vld [vmem:[%s231] sm:$0x3]
      %v251 = vld [vmem:[%s240] sm:$0xf]
      %v252 = vld [vmem:[%s240 + $0x4] sm:$0xf]
      %v255 = vunpack.c.l.b16 %v251
      %v256 = vunpack.c.l.b16 %v252
      %v257 = vpack.c.b16 %v256, %v255
      %vm258 = vcmask 261120
      %v260 = vsel %vm258, %v250, 0
      %v263 = vsel %vm258, %v257, 0
      %265 = vmatprep.subr.bf16.mxu0 0
      %266 = vmatpush1.bf16.xpose.msra.mxu0 %v263
      %267 = vmatprep.subr.bf16.mxu0 0
      %268 = vmatpush1.bf16.xpose.msra.mxu0 0
      %269 = vmatprep.subr.bf16.mxu0 0
      %270 = vmatpush1.bf16.xpose.msra.mxu0 0
      %271 = vmatprep.subr.bf16.mxu0 0
      %272 = vmatpush1.bf16.xpose.msra.mxu0 0
      %273 = vmatprep.subr.bf16.mxu0 0
      %274 = vmatpush1.bf16.xpose.msra.mxu0 0
      %275 = vmatprep.subr.bf16.mxu0 0
      %276 = vmatpush1.bf16.xpose.msra.mxu0 0
      %277 = vmatprep.subr.bf16.mxu0 0
      %278 = vmatpush1.bf16.xpose.msra.mxu0 0
      %279 = vmatprep.subr.bf16.mxu0 0
      %280 = vmatpush1.bf16.xpose.msra.mxu0 0
      %281 = vmatprep.subr.bf16.mxu0 0
      %282 = vmatpush1.bf16.xpose.msra.mxu0 0
      %283 = vmatprep.subr.bf16.mxu0 0
      %284 = vmatpush1.bf16.xpose.msra.mxu0 0
      %285 = vmatprep.subr.bf16.mxu0 0
      %286 = vmatpush1.bf16.xpose.msra.mxu0 0
      %287 = vmatprep.subr.bf16.mxu0 0
      %288 = vmatpush1.bf16.xpose.msra.mxu0 0
      %289 = vmatprep.subr.bf16.mxu0 0
      %290 = vmatpush1.bf16.xpose.msra.mxu0 0
      %291 = vmatprep.subr.bf16.mxu0 0
      %292 = vmatpush1.bf16.xpose.msra.mxu0 0
      %293 = vmatprep.subr.bf16.mxu0 0
      %294 = vmatpush1.bf16.xpose.msra.mxu0 0
      %295 = vmatprep.subr.bf16.mxu0 0
      %296 = vmatpush1.bf16.xpose.msra.mxu0 0
      %297 = vmatprep.mubr.bf16.mxu0 0
      %298 = vmatmul.mubr.bf16.gmra.mrb[0].mxu0 %v260
      %v299 = vpop.f32.mrb[0].mxu0
      %v300 = vadd.f32 0.0, %v299
      %v301 = vpop.f32.mrb[0].mxu0
      %v302 = vpop.f32.mrb[0].mxu0
      %v303 = vpop.f32.mrb[0].mxu0
      %304 = vdwg.mxu0
      %vm305 = vcmask 125952
      %v306 = vsel %vm305, %v300, 0.0
      %v307 = vrot.slane %v306, 4
      %v308 = vadd.f32 %v306, %v307
      %v309 = vrot.slane %v308, 2
      %v310 = vadd.f32 %v308, %v309
      %v311 = vrot.slane %v310, 1
      %v312 = vadd.f32 %v310, %v311
      %v313 = vrcp.pop 4.0
      %v314 = vmul.f32 %v312, %v313
      %v315 = vsub.f32 %v300, %v314
      %v316 = vmul.f32 %v315, %v315
      %v317 = vsel %vm305, %v316, 0.0
      %v318 = vrot.slane %v317, 4
      %v319 = vadd.f32 %v317, %v318
      %v320 = vrot.slane %v319, 2
      %v321 = vadd.f32 %v319, %v320
      %v322 = vrot.slane %v321, 1
      %v323 = vadd.f32 %v321, %v322
      %v324 = vmul.f32 %v323, %v313
      %v325 = vadd.f32 %v324, 1e-05
      %v326 = vrsqrt.pop %v325
      %v327 = vmul.f32 %v315, %v326
      %v328 = vld [vmem:[%s2] sm:$0xf]
      %330 = vset.pattern.permute.xlu0 0
      %331 = vperm.xlu0 %330, %v328
      %v332 = vpop.permute.xlu0 %331
      %v334 = vmul.f32 %v327, %v332
      %v335 = vld [vmem:[%s3] sm:$0xf]
      %337 = vset.pattern.permute.xlu0 0
      %338 = vperm.xlu0 %337, %v335
      %v339 = vpop.permute.xlu0 %338
      %v341 = vadd.f32 %v334, %v339
      %342 = vst.msk [vmem:[%s248] sm:$0xf] %vm305, %v341
      %p343 = scmp.lt.s32.totalorder %s19, 1
      %s344 = scalar_select %p343, %s19, 1
      %p345 = scmp.lt.s32.totalorder %s20, 0
      %s346 = scalar_select %p345, %s20, 0
      %s347 = sadd.s32 %s346, %s344
      %s348 = smul.addr %s347, 4
      %s349 = scalar_lea.vmem %s4, %s348
      // Predicated region
      $region37: #{transformer_forward.45} parent=35 // pred_check
        %p350 = pneg %p143
      $region38: #{transformer_forward.45} parent=35 // pred_check_branch
        %352 = sbr.rel (%p350) target = $region40
      $region39: #{transformer_forward.45} parent=35 // pred_region
        _
      $region40: #{transformer_forward.45} parent=35 // pred_fallthru
        _
    $region36: #{transformer_forward.45} parent=5 // pred_fallthru
      _
    %p353 = scmp.le.s32.totalorder 2, %s10
    // Predicated region
    $region41: #{transformer_forward.45} parent=5 // pred_check
      %p354 = pneg %p353
    $region42: #{transformer_forward.45} parent=5 // pred_check_branch
      %356 = sbr.rel (%p354) target = $region44
    $region43: #{transformer_forward.45} parent=5 // pred_region
      %s357 = ssub.s32 %s10, 2
      // Predicated region
      $region45: #{transformer_forward.45} parent=43 // pred_check
        %p358 = pneg %p149
      $region46: #{transformer_forward.45} parent=43 // pred_check_branch
        %360 = sbr.rel (%p358) target = $region48
      $region47: #{transformer_forward.45} parent=43 // pred_region
        %p361 = scmp.lt.s32.totalorder %s21, 1
        %s362 = scalar_select %p361, %s21, 1
        %p363 = scmp.lt.s32.totalorder %s22, 0
        %s364 = scalar_select %p363, %s22, 0
        %s365 = sadd.s32 %s364, %s362
        %s366 = smul.addr %s365, 4
        %s367 = scalar_lea.vmem %s4, %s366
      $region48: #{transformer_forward.45} parent=43 // pred_fallthru
        _
    $region44: #{transformer_forward.45} parent=5 // pred_fallthru
      _
  $region6: #{transformer_forward.45} parent=0 // loop_footer
    %s14 = sadd.s32 1, %s10
  $region7: #{transformer_forward.45} parent=0 // loop_footer_branch
    %9 = sbr.rel target = $region3
  $region8: #{transformer_forward.45} parent=0 // loop_exit
    _

// kernel: transformer_forward.46
$region0: #{transformer_forward.46}
  #allocation0 [shape = 'u32[]', space=smem, size = 0x4, offset = 0x4, fixed_abs, tag = 'smem constant byte address 0x4 - core index']
  #allocation1 [shape = 'u32[144,128]{1,0:T(1,128)}', space=vmem, size = 0x12000, scoped, tag = 'internal scratch']
  #allocation2 [shape = 'f32[32,32]{1,0:T(8,128)}', space=vmem, size = 0x4000, scoped, tag = 'scratch operand']
  %s0 = inlined_call_operand.vmem [shape: bf16[32,32], index: 0, kind: input, shape index: {}]
  %s1 = inlined_call_operand.vmem [shape: bf16[32,32], index: 1, kind: input, shape index: {}]
  %s2 = inlined_call_operand.vmem [shape: f32[1,32], index: 2, kind: input, shape index: {}]
  %s3 = inlined_call_operand.vmem [shape: bf16[32,32], index: 3, kind: output, shape index: {}]
  %s4 = sld [smem:[#allocation0]]
  $region30: #{transformer_forward.46} parent=0
    _
  %s6 = ssub.s32 1, %s4
  %s7 = scalar_select 0, %s6, %s4
  // Predicated region
  $region2: #{transformer_forward.46} parent=0 // pred_check
    _
  $region3: #{transformer_forward.46} parent=0 // pred_check_branch
    %9 = sbr.rel (0) target = $region5
  $region4: #{transformer_forward.46} parent=0 // pred_region
    _
  $region5: #{transformer_forward.46} parent=0 // pred_fallthru
    _
  // Predicated region
  $region6: #{transformer_forward.46} parent=0 // pred_check
    _
  $region7: #{transformer_forward.46} parent=0 // pred_check_branch
    %11 = sbr.rel (0) target = $region9
  $region8: #{transformer_forward.46} parent=0 // pred_region
    _
  $region9: #{transformer_forward.46} parent=0 // pred_fallthru
    _
  // Predicated region
  $region10: #{transformer_forward.46} parent=0 // pred_check
    _
  $region11: #{transformer_forward.46} parent=0 // pred_check_branch
    %13 = sbr.rel (0) target = $region13
  $region12: #{transformer_forward.46} parent=0 // pred_region
    _
  $region13: #{transformer_forward.46} parent=0 // pred_fallthru
    _
  %p15 = scmp.eq.s32.totalorder 0, 0
  // Predicated region
  $region14: #{transformer_forward.46} parent=0 // pred_check
    %p16 = pneg %p15
  $region15: #{transformer_forward.46} parent=0 // pred_check_branch
    %18 = sbr.rel (%p16) target = $region17
  $region16: #{transformer_forward.46} parent=0 // pred_region
    %vm19 = vcmask 261120
    %20 = vst.msk [vmem:[#allocation2] sm:$0xff] %vm19, 0.0
    %21 = vst.msk [vmem:[#allocation2 + $0x8] sm:$0xff] %vm19, 0.0
    %22 = vst.msk [vmem:[#allocation2 + $0x10] sm:$0xff] %vm19, 0.0
    %23 = vst.msk [vmem:[#allocation2 + $0x18] sm:$0xff] %vm19, 0.0
  $region17: #{transformer_forward.46} parent=0 // pred_fallthru
    _
  %v24 = vld [vmem:[#allocation2] sm:$0xff]
  %v25 = vld [vmem:[#allocation2 + $0x8] sm:$0xff]
  %v26 = vld [vmem:[#allocation2 + $0x10] sm:$0xff]
  %v27 = vld [vmem:[#allocation2 + $0x18] sm:$0xff]
  %v28 = vld [vmem:[%s0] sm:$0xf]
  %v29 = vld [vmem:[%s0 + $0x4] sm:$0xf]
  %v30 = vld [vmem:[%s0 + $0x8] sm:$0xf]
  %v31 = vld [vmem:[%s0 + $0xc] sm:$0xf]
  %v32 = vld [vmem:[%s1] sm:$0xf]
  %v33 = vld [vmem:[%s1 + $0x4] sm:$0xf]
  %v34 = vld [vmem:[%s1 + $0x8] sm:$0xf]
  %v35 = vld [vmem:[%s1 + $0xc] sm:$0xf]
  %v40 = vunpack.c.l.b16 %v28
  %v41 = vunpack.c.l.b16 %v29
  %v42 = vunpack.c.l.b16 %v30
  %v43 = vunpack.c.l.b16 %v31
  %v44 = vpack.c.b16 %v41, %v40
  %v45 = vpack.c.b16 %v43, %v42
  %v50 = vunpack.c.l.b16 %v32
  %v51 = vunpack.c.l.b16 %v33
  %v52 = vunpack.c.l.b16 %v34
  %v53 = vunpack.c.l.b16 %v35
  %v54 = vpack.c.b16 %v51, %v50
  %v55 = vpack.c.b16 %v53, %v52
  %vm58 = vcmask 261120
  %v60 = vsel %vm58, %v44, 0
  %v63 = vsel %vm58, %v45, 0
  %65 = vmatprep.subr.bf16.mxu0 0
  %66 = vmatpush1.bf16.msra.mxu0 %v54
  %67 = vmatprep.subr.bf16.mxu0 0
  %68 = vmatpush1.bf16.msra.mxu0 %v55
  %69 = vmatprep.subr.bf16.mxu0 0
  %70 = vmatpush1.bf16.msra.mxu0 0
  %71 = vmatprep.subr.bf16.mxu0 0
  %72 = vmatpush1.bf16.msra.mxu0 0
  %73 = vmatprep.subr.bf16.mxu0 0
  %74 = vmatpush1.bf16.msra.mxu0 0
  %75 = vmatprep.subr.bf16.mxu0 0
  %76 = vmatpush1.bf16.msra.mxu0 0
  %77 = vmatprep.subr.bf16.mxu0 0
  %78 = vmatpush1.bf16.msra.mxu0 0
  %79 = vmatprep.subr.bf16.mxu0 0
  %80 = vmatpush1.bf16.msra.mxu0 0
  %81 = vmatprep.subr.bf16.mxu0 0
  %82 = vmatpush1.bf16.msra.mxu0 0
  %83 = vmatprep.subr.bf16.mxu0 0
  %84 = vmatpush1.bf16.msra.mxu0 0
  %85 = vmatprep.subr.bf16.mxu0 0
  %86 = vmatpush1.bf16.msra.mxu0 0
  %87 = vmatprep.subr.bf16.mxu0 0
  %88 = vmatpush1.bf16.msra.mxu0 0
  %89 = vmatprep.subr.bf16.mxu0 0
  %90 = vmatpush1.bf16.msra.mxu0 0
  %91 = vmatprep.subr.bf16.mxu0 0
  %92 = vmatpush1.bf16.msra.mxu0 0
  %93 = vmatprep.subr.bf16.mxu0 0
  %94 = vmatpush1.bf16.msra.mxu0 0
  %95 = vmatprep.subr.bf16.mxu0 0
  %96 = vmatpush1.bf16.msra.mxu0 0
  %97 = vmatprep.mubr.bf16.mxu0 0
  %98 = vmatmul.mubr.bf16.gmra.mrb[0].mxu0 %v60
  %v99 = vpop.f32.mrb[0].mxu0
  %v100 = vadd.f32 0.0, %v99
  %v101 = vpop.f32.mrb[0].mxu0
  %v102 = vpop.f32.mrb[0].mxu0
  %v103 = vadd.f32 0.0, %v102
  %v104 = vpop.f32.mrb[0].mxu0
  %105 = vmatprep.mubr.bf16.mxu0 0
  %106 = vmatmul.mubr.bf16.gmra.mrb[0].mxu0 %v63
  %v107 = vpop.f32.mrb[0].mxu0
  %v108 = vadd.f32 0.0, %v107
  %v109 = vpop.f32.mrb[0].mxu0
  %v110 = vpop.f32.mrb[0].mxu0
  %v111 = vadd.f32 0.0, %v110
  %v112 = vpop.f32.mrb[0].mxu0
  %113 = vdwg.mxu0
  %v114 = vadd.f32 %v24, %v100
  %v115 = vadd.f32 %v25, %v103
  %v116 = vadd.f32 %v26, %v108
  %v117 = vadd.f32 %v27, %v111
  %118 = vst.msk [vmem:[#allocation2] sm:$0xff] %vm58, %v114
  %119 = vst.msk [vmem:[#allocation2 + $0x8] sm:$0xff] %vm58, %v115
  %120 = vst.msk [vmem:[#allocation2 + $0x10] sm:$0xff] %vm58, %v116
  %121 = vst.msk [vmem:[#allocation2 + $0x18] sm:$0xff] %vm58, %v117
  // Predicated region
  $region18: #{transformer_forward.46} parent=0 // pred_check
    %p122 = pneg %p15
  $region19: #{transformer_forward.46} parent=0 // pred_check_branch
    %124 = sbr.rel (%p122) target = $region21
  $region20: #{transformer_forward.46} parent=0 // pred_region
    %v125 = vld [vmem:[#allocation2] sm:$0xff]
    %v126 = vld [vmem:[#allocation2 + $0x8] sm:$0xff]
    %v127 = vld [vmem:[#allocation2 + $0x10] sm:$0xff]
    %v128 = vld [vmem:[#allocation2 + $0x18] sm:$0xff]
    %v129 = vld [vmem:[%s2] sm:$0x1]
    %v131 = vlaneseq
    %v132 = vshrl.u32 %v131, 7
    %v133 = vsub.s32 0, %v132
    %v134 = vrot.slane %v129, %v133
    %v136 = vadd.f32 %v125, %v134
    %v137 = vadd.f32 %v126, %v134
    %v138 = vadd.f32 %v127, %v134
    %v139 = vadd.f32 %v128, %v134
    %v140 = vmax.f32 %v136, 0.0
    %v141 = vmax.f32 %v137, 0.0
    %v142 = vmax.f32 %v138, 0.0
    %v143 = vmax.f32 %v139, 0.0
    %v144 = vpack.c.bf16 %v141, %v140
    %v145 = vpack.c.bf16 %v143, %v142
    %146 = vst.msk [vmem:[%s3] sm:$0xff] %vm58, %v144
    %147 = vst.msk [vmem:[%s3 + $0x8] sm:$0xff] %vm58, %v145
  $region21: #{transformer_forward.46} parent=0 // pred_fallthru
    _
  // Predicated region
  $region22: #{transformer_forward.46} parent=0 // pred_check
    _
  $region23: #{transformer_forward.46} parent=0 // pred_check_branch
    %149 = sbr.rel (0) target = $region25
  $region24: #{transformer_forward.46} parent=0 // pred_region
    _
  $region25: #{transformer_forward.46} parent=0 // pred_fallthru
    _
  // Predicated region
  $region26: #{transformer_forward.46} parent=0 // pred_check
    _
  $region27: #{transformer_forward.46} parent=0 // pred_check_branch
    %151 = sbr.rel (0) target = $region29
  $region28: #{transformer_forward.46} parent=0 // pred_region
    _
  $region29: #{transformer_forward.46} parent=0 // pred_fallthru
    _

// kernel: transformer_forward.47
$region0: #{transformer_forward.47}
  #allocation0 [shape = 'u32[]', space=smem, size = 0x4, offset = 0x4, fixed_abs, tag = 'smem constant byte address 0x4 - core index']
  #allocation1 [shape = 'u32[144,128]{1,0:T(1,128)}', space=vmem, size = 0x12000, scoped, tag = 'internal scratch']
  %s0 = inlined_call_operand.vmem [shape: f32[4,8], index: 0, kind: input, shape index: {}]
  %s1 = inlined_call_operand.vmem [shape: f32[4,1], index: 1, kind: input, shape index: {}]
  %s2 = inlined_call_operand.vmem [shape: f32[2,4,256], index: 2, kind: input, shape index: {}]
  %s3 = inlined_call_operand.vmem [shape: f32[2,4,256], index: 3, kind: input, shape index: {}]
  %s4 = inlined_call_operand.vmem [shape: f32[2,1,256], index: 4, kind: input, shape index: {}]
  %s5 = inlined_call_operand.vmem [shape: f32[2,4,256], index: 5, kind: output, shape index: {}]
  %s6 = sld [smem:[#allocation0]]
  $region53: #{transformer_forward.47} parent=0
    _
  %s8 = ssub.s32 1, %s6
  %s9 = scalar_select 0, %s8, %s6
  loop: start=0, step=1, limit=4
  $region2: #{transformer_forward.47} parent=0 // loop_pre_header
    _
  $region3: #{transformer_forward.47} parent=0 // loop_header
    %s11 = sphi 0, %s15
    %p12 = scmp.ge.s32.totalorder %s11, 4
    %s18 = sphi 0, %s30
    %s19 = sphi 0, %s26
    %s20 = sphi 0, %s18
    %s21 = sphi 0, %s19
    %s22 = sphi 0, %s20
    %s23 = sphi 0, %s21
    %s31 = sphi 0, %s31
    %s33 = sphi 0, %s31
    %s34 = sphi 0, %s33
    %s48 = sphi 0, %s34
    %s52 = sphi 0, %s52
    %s54 = sphi 0, %s52
    %s55 = sphi 0, %s54
    %s69 = sphi 0, %s55
    %s77 = sphi 0, %s79
    %s80 = sphi 0, %s77
    %s81 = sphi 0, %s80
    %s97 = sphi 0, %s81
    %s105 = sphi 0, %s107
    %s108 = sphi 0, %s105
    %s109 = sphi 0, %s108
    %s125 = sphi 0, %s109
    %s133 = sphi 0, %s135
    %s136 = sphi 0, %s133
    %s137 = sphi 0, %s136
    %s153 = sphi 0, %s137
    %s161 = sphi 0, %s163
    %s164 = sphi 0, %s161
    %s165 = sphi 0, %s164
    %s181 = sphi 0, %s165
  $region4: #{transformer_forward.47} parent=0 // loop_header_branch
    %14 = sbr.rel (%p12) target = $region8
  $region5: #{transformer_forward.47} parent=0 // loop_body
    %s16 = ssub.s32 %s11, 1
    %s17 = ssub.s32 %s11, 2
    %s24 = sadd.s32 1, %s19
    %p25 = scmp.ge.s32.totalorder %s24, 1
    %s26 = scalar_select %p25, 0, %s24
    %s27 = sadd.s32 1, %s18
    %s28 = scalar_select %p25, %s27, %s18
    %p29 = scmp.ge.s32.totalorder %s28, 2
    %s30 = scalar_select %p29, 0, %s28
    %s32 = sadd.s32 %s31, 1
    %p35 = scmp.eq.s32.totalorder %s11, 1
    %p36 = scmp.ne.s32.totalorder %s31, %s33
    %p37 = scmp.eq.s32.totalorder %s11, 0
    %p38 = por %p36, %p37
    %p39 = scmp.ne.s32.totalorder %s31, %s33
    %p40 = scmp.eq.s32.totalorder %s16, 1
    %p41 = por %p39, %p40
    %p42 = scmp.ne.s32.totalorder %s33, %s34
    %p43 = scmp.eq.s32.totalorder %s16, 0
    %p44 = por %p42, %p43
    %p45 = scmp.ne.s32.totalorder %s33, %s34
    %p46 = scmp.eq.s32.totalorder %s17, 1
    %p47 = por %p45, %p46
    %p49 = scmp.ne.s32.totalorder %s34, %s48
    %p50 = scmp.eq.s32.totalorder %s17, 0
    %p51 = por %p49, %p50
    %s53 = sadd.s32 %s52, 1
    %p56 = scmp.eq.s32.totalorder %s11, 1
    %p57 = scmp.ne.s32.totalorder %s52, %s54
    %p58 = scmp.eq.s32.totalorder %s11, 0
    %p59 = por %p57, %p58
    %p60 = scmp.ne.s32.totalorder %s52, %s54
    %p61 = scmp.eq.s32.totalorder %s16, 1
    %p62 = por %p60, %p61
    %p63 = scmp.ne.s32.totalorder %s54, %s55
    %p64 = scmp.eq.s32.totalorder %s16, 0
    %p65 = por %p63, %p64
    %p66 = scmp.ne.s32.totalorder %s54, %s55
    %p67 = scmp.eq.s32.totalorder %s17, 1
    %p68 = por %p66, %p67
    %p70 = scmp.ne.s32.totalorder %s55, %s69
    %p71 = scmp.eq.s32.totalorder %s17, 0
    %p72 = por %p70, %p71
    %s73 = ssub.s32 %s18, %s30
    %s74 = ssub.s32 %s19, %s26
    %s75 = sor.u32 %s73, %s74
    %p76 = scmp.eq.s32.totalorder %s75, 0
    %s78 = sadd.s32 %s77, 1
    %s79 = scalar_select %p76, %s77, %s78
    %p82 = pneg %p76
    %p83 = scmp.eq.s32.totalorder %s11, 1
    %p84 = por %p82, %p83
    %p85 = scmp.ne.s32.totalorder %s77, %s80
    %p86 = scmp.eq.s32.totalorder %s11, 0
    %p87 = por %p85, %p86
    %p88 = scmp.ne.s32.totalorder %s77, %s80
    %p89 = scmp.eq.s32.totalorder %s16, 1
    %p90 = por %p88, %p89
    %p91 = scmp.ne.s32.totalorder %s80, %s81
    %p92 = scmp.eq.s32.totalorder %s16, 0
    %p93 = por %p91, %p92
    %p94 = scmp.ne.s32.totalorder %s80, %s81
    %p95 = scmp.eq.s32.totalorder %s17, 1
    %p96 = por %p94, %p95
    %p98 = scmp.ne.s32.totalorder %s81, %s97
    %p99 = scmp.eq.s32.totalorder %s17, 0
    %p100 = por %p98, %p99
    %s101 = ssub.s32 %s18, %s30
    %s102 = ssub.s32 %s19, %s26
    %s103 = sor.u32 %s101, %s102
    %p104 = scmp.eq.s32.totalorder %s103, 0
    %s106 = sadd.s32 %s105, 1
    %s107 = scalar_select %p104, %s105, %s106
    %p110 = pneg %p104
    %p111 = scmp.eq.s32.totalorder %s11, 1
    %p112 = por %p110, %p111
    %p113 = scmp.ne.s32.totalorder %s105, %s108
    %p114 = scmp.eq.s32.totalorder %s11, 0
    %p115 = por %p113, %p114
    %p116 = scmp.ne.s32.totalorder %s105, %s108
    %p117 = scmp.eq.s32.totalorder %s16, 1
    %p118 = por %p116, %p117
    %p119 = scmp.ne.s32.totalorder %s108, %s109
    %p120 = scmp.eq.s32.totalorder %s16, 0
    %p121 = por %p119, %p120
    %p122 = scmp.ne.s32.totalorder %s108, %s109
    %p123 = scmp.eq.s32.totalorder %s17, 1
    %p124 = por %p122, %p123
    %p126 = scmp.ne.s32.totalorder %s109, %s125
    %p127 = scmp.eq.s32.totalorder %s17, 0
    %p128 = por %p126, %p127
    %s129 = ssub.s32 %s18, %s30
    %s130 = ssub.s32 %s19, %s26
    %s131 = sor.u32 %s129, %s130
    %p132 = scmp.eq.s32.totalorder %s131, 0
    %s134 = sadd.s32 %s133, 1
    %s135 = scalar_select %p132, %s133, %s134
    %p138 = pneg %p132
    %p139 = scmp.eq.s32.totalorder %s11, 1
    %p140 = por %p138, %p139
    %p141 = scmp.ne.s32.totalorder %s133, %s136
    %p142 = scmp.eq.s32.totalorder %s11, 0
    %p143 = por %p141, %p142
    %p144 = scmp.ne.s32.totalorder %s133, %s136
    %p145 = scmp.eq.s32.totalorder %s16, 1
    %p146 = por %p144, %p145
    %p147 = scmp.ne.s32.totalorder %s136, %s137
    %p148 = scmp.eq.s32.totalorder %s16, 0
    %p149 = por %p147, %p148
    %p150 = scmp.ne.s32.totalorder %s136, %s137
    %p151 = scmp.eq.s32.totalorder %s17, 1
    %p152 = por %p150, %p151
    %p154 = scmp.ne.s32.totalorder %s137, %s153
    %p155 = scmp.eq.s32.totalorder %s17, 0
    %p156 = por %p154, %p155
    %s157 = ssub.s32 %s18, %s30
    %s158 = ssub.s32 %s19, %s26
    %s159 = sor.u32 %s157, %s158
    %p160 = scmp.eq.s32.totalorder %s159, 0
    %s162 = sadd.s32 %s161, 1
    %s163 = scalar_select %p160, %s161, %s162
    %p166 = pneg %p160
    %p167 = scmp.eq.s32.totalorder %s11, 1
    %p168 = por %p166, %p167
    %p169 = scmp.ne.s32.totalorder %s161, %s164
    %p170 = scmp.eq.s32.totalorder %s11, 0
    %p171 = por %p169, %p170
    %p172 = scmp.ne.s32.totalorder %s161, %s164
    %p173 = scmp.eq.s32.totalorder %s16, 1
    %p174 = por %p172, %p173
    %p175 = scmp.ne.s32.totalorder %s164, %s165
    %p176 = scmp.eq.s32.totalorder %s16, 0
    %p177 = por %p175, %p176
    %p178 = scmp.ne.s32.totalorder %s164, %s165
    %p179 = scmp.eq.s32.totalorder %s17, 1
    %p180 = por %p178, %p179
    %p182 = scmp.ne.s32.totalorder %s165, %s181
    %p183 = scmp.eq.s32.totalorder %s17, 0
    %p184 = por %p182, %p183
    %p185 = scmp.le.s32.totalorder 1, %s11
    %p186 = scmp.lt.s32.totalorder %s11, 3
    %p187 = pnand %p185, %p186
    %p188 = pneg %p187
    // Predicated region
    $region9: #{transformer_forward.47} parent=5 // pred_check
      _
    $region10: #{transformer_forward.47} parent=5 // pred_check_branch
      %190 = sbr.rel (%p187) target = $region12
    $region11: #{transformer_forward.47} parent=5 // pred_region
      %s191 = ssub.s32 %s11, 1
      // Predicated region
      $region13: #{transformer_forward.47} parent=11 // pred_check
        %p192 = pneg %p44
      $region14: #{transformer_forward.47} parent=11 // pred_check_branch
        %194 = sbr.rel (%p192) target = $region16
      $region15: #{transformer_forward.47} parent=11 // pred_region
        _
      $region16: #{transformer_forward.47} parent=11 // pred_fallthru
        _
      // Predicated region
      $region17: #{transformer_forward.47} parent=11 // pred_check
        %p195 = pneg %p65
      $region18: #{transformer_forward.47} parent=11 // pred_check_branch
        %197 = sbr.rel (%p195) target = $region20
      $region19: #{transformer_forward.47} parent=11 // pred_region
        _
      $region20: #{transformer_forward.47} parent=11 // pred_fallthru
        _
    $region12: #{transformer_forward.47} parent=5 // pred_fallthru
      _
    %p198 = scmp.lt.s32.totalorder %s11, 2
    // Predicated region
    $region21: #{transformer_forward.47} parent=5 // pred_check
      %p199 = pneg %p198
    $region22: #{transformer_forward.47} parent=5 // pred_check_branch
      %201 = sbr.rel (%p199) target = $region24
    $region23: #{transformer_forward.47} parent=5 // pred_region
      // Predicated region
      $region25: #{transformer_forward.47} parent=23 // pred_check
        %p202 = pneg %p87
      $region26: #{transformer_forward.47} parent=23 // pred_check_branch
        %204 = sbr.rel (%p202) target = $region28
      $region27: #{transformer_forward.47} parent=23 // pred_region
        %s205 = smul.u32 2, %s19
        %p206 = scmp.lt.s32.totalorder %s18, 1
        %s207 = scalar_select %p206, %s18, 1
        %p208 = scmp.lt.s32.totalorder %s205, 1
        %s209 = scalar_select %p208, %s205, 1
        %s210 = smul.addr %s207, 2
        %s211 = sadd.s32 %s209, %s210
        %s212 = smul.addr %s211, 4
        %s213 = scalar_lea.vmem %s2, %s212
        %s214 = smul.u32 2, %s19
      $region28: #{transformer_forward.47} parent=23 // pred_fallthru
        _
      // Predicated region
      $region29: #{transformer_forward.47} parent=23 // pred_check
        %p215 = pneg %p115
      $region30: #{transformer_forward.47} parent=23 // pred_check_branch
        %217 = sbr.rel (%p215) target = $region32
      $region31: #{transformer_forward.47} parent=23 // pred_region
        %s218 = smul.u32 2, %s19
        %p219 = scmp.lt.s32.totalorder %s18, 1
        %s220 = scalar_select %p219, %s18, 1
        %p221 = scmp.lt.s32.totalorder %s218, 1
        %s222 = scalar_select %p221, %s218, 1
        %s223 = smul.addr %s220, 2
        %s224 = sadd.s32 %s222, %s223
        %s225 = smul.addr %s224, 4
        %s226 = scalar_lea.vmem %s3, %s225
        %s227 = smul.u32 2, %s19
      $region32: #{transformer_forward.47} parent=23 // pred_fallthru
        _
      // Predicated region
      $region33: #{transformer_forward.47} parent=23 // pred_check
        %p228 = pneg %p143
      $region34: #{transformer_forward.47} parent=23 // pred_check_branch
        %230 = sbr.rel (%p228) target = $region36
      $region35: #{transformer_forward.47} parent=23 // pred_region
        %s231 = smul.u32 2, %s19
        %p232 = scmp.lt.s32.totalorder %s18, 1
        %s233 = scalar_select %p232, %s18, 1
        %p234 = scmp.lt.s32.totalorder %s231, 1
        %s235 = scalar_select %p234, %s231, 1
        %s236 = smul.addr %s233, 2
        %s237 = sadd.s32 %s235, %s236
        %s238 = scalar_lea.vmem %s4, %s237
        %s239 = smul.u32 2, %s19
      $region36: #{transformer_forward.47} parent=23 // pred_fallthru
        _
    $region24: #{transformer_forward.47} parent=5 // pred_fallthru
      _
    %p240 = scmp.le.s32.totalorder 1, %s11
    %p241 = scmp.lt.s32.totalorder %s11, 3
    %p242 = pnand %p240, %p241
    %p243 = pneg %p242
    // Predicated region
    $region37: #{transformer_forward.47} parent=5 // pred_check
      _
    $region38: #{transformer_forward.47} parent=5 // pred_check_branch
      %245 = sbr.rel (%p242) target = $region40
    $region39: #{transformer_forward.47} parent=5 // pred_region
      %s246 = ssub.s32 %s11, 1
      %p247 = pneg %p44
      %p248 = pneg %p41
      %p249 = pneg %p65
      %p250 = pneg %p62
      %s251 = smul.u32 2, %s21
      %p252 = scmp.lt.s32.totalorder %s20, 1
      %s253 = scalar_select %p252, %s20, 1
      %p254 = scmp.lt.s32.totalorder %s251, 1
      %s255 = scalar_select %p254, %s251, 1
      %s256 = smul.addr %s253, 2
      %s257 = sadd.s32 %s255, %s256
      %s258 = smul.addr %s257, 4
      %s259 = scalar_lea.vmem %s2, %s258
      %p260 = pneg %p93
      %p261 = pneg %p90
      %s262 = smul.u32 2, %s21
      %p263 = scmp.lt.s32.totalorder %s20, 1
      %s264 = scalar_select %p263, %s20, 1
      %p265 = scmp.lt.s32.totalorder %s262, 1
      %s266 = scalar_select %p265, %s262, 1
      %s267 = smul.addr %s264, 2
      %s268 = sadd.s32 %s266, %s267
      %s269 = smul.addr %s268, 4
      %s270 = scalar_lea.vmem %s3, %s269
      %p271 = pneg %p121
      %p272 = pneg %p118
      %s273 = smul.u32 2, %s21
      %p274 = scmp.lt.s32.totalorder %s20, 1
      %s275 = scalar_select %p274, %s20, 1
      %p276 = scmp.lt.s32.totalorder %s273, 1
      %s277 = scalar_select %p276, %s273, 1
      %s278 = smul.addr %s275, 2
      %s279 = sadd.s32 %s277, %s278
      %s280 = scalar_lea.vmem %s4, %s279
      %p281 = pneg %p149
      %p282 = pneg %p146
      %p283 = pneg %p177
      %p284 = pneg %p174
      %s285 = smul.u32 2, %s21
      %p286 = scmp.lt.s32.totalorder %s20, 1
      %s287 = scalar_select %p286, %s20, 1
      %p288 = scmp.lt.s32.totalorder %s285, 1
      %s289 = scalar_select %p288, %s285, 1
      %s290 = smul.addr %s287, 2
      %s291 = sadd.s32 %s289, %s290
      %s292 = smul.addr %s291, 4
      %s293 = scalar_lea.vmem %s5, %s292
      %s294 = smul.u32 2, %s21
      %p295 = scmp.lt.s32.totalorder %s20, 1
      %s296 = scalar_select %p295, %s20, 1
      %p297 = scmp.lt.s32.totalorder %s294, 1
      %s298 = scalar_select %p297, %s294, 1
      %s299 = smul.addr %s296, 2
      %s300 = sadd.s32 %s298, %s299
      %s301 = smul.addr %s300, 4
      %s302 = scalar_lea.vmem %s2, %s301
      %s303 = smul.u32 2, %s21
      %s304 = smul.u32 2, %s21
      %p305 = scmp.lt.s32.totalorder %s20, 1
      %s306 = scalar_select %p305, %s20, 1
      %p307 = scmp.lt.s32.totalorder %s304, 1
      %s308 = scalar_select %p307, %s304, 1
      %s309 = smul.addr %s306, 2
      %s310 = sadd.s32 %s308, %s309
      %s311 = smul.addr %s310, 4
      %s312 = scalar_lea.vmem %s3, %s311
      %s313 = smul.u32 2, %s21
      %s314 = smul.u32 2, %s21
      %p315 = scmp.lt.s32.totalorder %s20, 1
      %s316 = scalar_select %p315, %s20, 1
      %p317 = scmp.lt.s32.totalorder %s314, 1
      %s318 = scalar_select %p317, %s314, 1
      %s319 = smul.addr %s316, 2
      %s320 = sadd.s32 %s318, %s319
      %s321 = scalar_lea.vmem %s4, %s320
      %s322 = smul.u32 2, %s21
      %s323 = smul.u32 2, %s21
      %p324 = scmp.lt.s32.totalorder %s20, 1
      %s325 = scalar_select %p324, %s20, 1
      %p326 = scmp.lt.s32.totalorder %s323, 1
      %s327 = scalar_select %p326, %s323, 1
      %s328 = smul.addr %s325, 2
      %s329 = sadd.s32 %s327, %s328
      %s330 = smul.addr %s329, 4
      %s331 = scalar_lea.vmem %s5, %s330
      %s332 = smul.u32 2, %s21
      %v333 = vld [vmem:[%s321] sm:$0x3]
      %v334 = vld [vmem:[%s302] sm:$0xff]
      %v335 = vsub.f32 1.0, %v333
      %v337 = vlaneseq
      %v338 = vshrl.u32 %v337, 7
      %v339 = vsub.s32 0, %v338
      %v340 = vrot.slane %v335, %v339
      %v341 = vlaneseq
      %v342 = vshrl.u32 %v341, 7
      %v343 = vsub.s32 1, %v342
      %v344 = vrot.slane %v335, %v343
      %v345 = vcombine.low %v340, %v344
      %v347 = vmul.f32 %v334, %v345
      %v348 = vld [vmem:[%s312] sm:$0xff]
      %v350 = vlaneseq
      %v351 = vshrl.u32 %v350, 7
      %v352 = vsub.s32 0, %v351
      %v353 = vrot.slane %v333, %v352
      %v354 = vlaneseq
      %v355 = vshrl.u32 %v354, 7
      %v356 = vsub.s32 1, %v355
      %v357 = vrot.slane %v333, %v356
      %v358 = vcombine.low %v353, %v357
      %v360 = vmul.f32 %v348, %v358
      %v361 = vld [vmem:[%s0] sm:$0xf]
      %363 = vset.pattern.permute.xlu0 0
      %364 = vperm.xlu0 %363, %v361
      %v365 = vpop.permute.xlu0 %364
      %v368 = vlaneseq
      %v369 = vshrl.u32 %v368, 7
      %v370 = vsub.s32 0, %v369
      %v371 = vrot.slane %v347, %v370
      %v372 = vlaneseq
      %v373 = vshrl.u32 %v372, 7
      %v374 = vsub.s32 4, %v373
      %v375 = vrot.slane %v347, %v374
      %v378 = vlaneseq
      %v379 = vshrl.u32 %v378, 7
      %v380 = vsub.s32 0, %v379
      %v381 = vrot.slane %v371, %v380
      %v382 = vlaneseq
      %v383 = vshrl.u32 %v382, 7
      %v384 = vsub.s32 0, %v383
      %v385 = vrot.slane %v375, %v384
      %v386 = vmul.f32 %v365, %v381
      %v387 = vmul.f32 %v365, %v385
      %v388 = vadd.f32 %v386, 0.0
      %v389 = vadd.f32 %v387, 0.0
      %390 = vset.pattern.permute.xlu0 4
      %391 = vperm.xlu0 %390, %v361
      %v392 = vpop.permute.xlu0 %391
      %v395 = vlaneseq
      %v396 = vshrl.u32 %v395, 7
      %v397 = vsub.s32 0, %v396
      %v398 = vrot.slane %v360, %v397
      %v399 = vlaneseq
      %v400 = vshrl.u32 %v399, 7
      %v401 = vsub.s32 4, %v400
      %v402 = vrot.slane %v360, %v401
      %v405 = vlaneseq
      %v406 = vshrl.u32 %v405, 7
      %v407 = vsub.s32 0, %v406
      %v408 = vrot.slane %v398, %v407
      %v409 = vlaneseq
      %v410 = vshrl.u32 %v409, 7
      %v411 = vsub.s32 0, %v410
      %v412 = vrot.slane %v402, %v411
      %v413 = vmul.f32 %v392, %v408
      %v414 = vmul.f32 %v392, %v412
      %v415 = vadd.f32 %v388, %v413
      %v416 = vadd.f32 %v389, %v414
      %417 = vset.pattern.permute.xlu0 1
      %418 = vperm.xlu0 %417, %v361
      %v419 = vpop.permute.xlu0 %418
      %v421 = vlaneseq
      %v422 = vshrl.u32 %v421, 7
      %v423 = vsub.s32 1, %v422
      %v424 = vrot.slane %v347, %v423
      %v425 = vlaneseq
      %v426 = vshrl.u32 %v425, 7
      %v427 = vsub.s32 5, %v426
      %v428 = vrot.slane %v347, %v427
      %v431 = vlaneseq
      %v432 = vshrl.u32 %v431, 7
      %v433 = vsub.s32 1, %v432
      %v434 = vrot.slane %v424, %v433
      %v435 = vlaneseq
      %v436 = vshrl.u32 %v435, 7
      %v437 = vsub.s32 1, %v436
      %v438 = vrot.slane %v428, %v437
      %v439 = vmul.f32 %v419, %v434
      %v440 = vmul.f32 %v419, %v438
      %v441 = vadd.f32 %v415, %v439
      %v442 = vadd.f32 %v416, %v440
      %443 = vset.pattern.permute.xlu0 5
      %444 = vperm.xlu0 %443, %v361
      %v445 = vpop.permute.xlu0 %444
      %v447 = vlaneseq
      %v448 = vshrl.u32 %v447, 7
      %v449 = vsub.s32 1, %v448
      %v450 = vrot.slane %v360, %v449
      %v451 = vlaneseq
      %v452 = vshrl.u32 %v451, 7
      %v453 = vsub.s32 5, %v452
      %v454 = vrot.slane %v360, %v453
      %v457 = vlaneseq
      %v458 = vshrl.u32 %v457, 7
      %v459 = vsub.s32 1, %v458
      %v460 = vrot.slane %v450, %v459
      %v461 = vlaneseq
      %v462 = vshrl.u32 %v461, 7
      %v463 = vsub.s32 1, %v462
      %v464 = vrot.slane %v454, %v463
      %v465 = vmul.f32 %v445, %v460
      %v466 = vmul.f32 %v445, %v464
      %v467 = vadd.f32 %v441, %v465
      %v468 = vadd.f32 %v442, %v466
      %469 = vset.pattern.permute.xlu0 2
      %470 = vperm.xlu0 %469, %v361
      %v471 = vpop.permute.xlu0 %470
      %v473 = vlaneseq
      %v474 = vshrl.u32 %v473, 7
      %v475 = vsub.s32 2, %v474
      %v476 = vrot.slane %v347, %v475
      %v477 = vlaneseq
      %v478 = vshrl.u32 %v477, 7
      %v479 = vsub.s32 6, %v478
      %v480 = vrot.slane %v347, %v479
      %v483 = vlaneseq
      %v484 = vshrl.u32 %v483, 7
      %v485 = vsub.s32 2, %v484
      %v486 = vrot.slane %v476, %v485
      %v487 = vlaneseq
      %v488 = vshrl.u32 %v487, 7
      %v489 = vsub.s32 2, %v488
      %v490 = vrot.slane %v480, %v489
      %v491 = vmul.f32 %v471, %v486
      %v492 = vmul.f32 %v471, %v490
      %v493 = vadd.f32 %v467, %v491
      %v494 = vadd.f32 %v468, %v492
      %495 = vset.pattern.permute.xlu0 6
      %496 = vperm.xlu0 %495, %v361
      %v497 = vpop.permute.xlu0 %496
      %v499 = vlaneseq
      %v500 = vshrl.u32 %v499, 7
      %v501 = vsub.s32 2, %v500
      %v502 = vrot.slane %v360, %v501
      %v503 = vlaneseq
      %v504 = vshrl.u32 %v503, 7
      %v505 = vsub.s32 6, %v504
      %v506 = vrot.slane %v360, %v505
      %v509 = vlaneseq
      %v510 = vshrl.u32 %v509, 7
      %v511 = vsub.s32 2, %v510
      %v512 = vrot.slane %v502, %v511
      %v513 = vlaneseq
      %v514 = vshrl.u32 %v513, 7
      %v515 = vsub.s32 2, %v514
      %v516 = vrot.slane %v506, %v515
      %v517 = vmul.f32 %v497, %v512
      %v518 = vmul.f32 %v497, %v516
      %v519 = vadd.f32 %v493, %v517
      %v520 = vadd.f32 %v494, %v518
      %521 = vset.pattern.permute.xlu0 3
      %522 = vperm.xlu0 %521, %v361
      %v523 = vpop.permute.xlu0 %522
      %v525 = vlaneseq
      %v526 = vshrl.u32 %v525, 7
      %v527 = vsub.s32 3, %v526
      %v528 = vrot.slane %v347, %v527
      %v529 = vlaneseq
      %v530 = vshrl.u32 %v529, 7
      %v531 = vsub.s32 7, %v530
      %v532 = vrot.slane %v347, %v531
      %v535 = vlaneseq
      %v536 = vshrl.u32 %v535, 7
      %v537 = vsub.s32 3, %v536
      %v538 = vrot.slane %v528, %v537
      %v539 = vlaneseq
      %v540 = vshrl.u32 %v539, 7
      %v541 = vsub.s32 3, %v540
      %v542 = vrot.slane %v532, %v541
      %v543 = vmul.f32 %v523, %v538
      %v544 = vmul.f32 %v523, %v542
      %v545 = vadd.f32 %v519, %v543
      %v546 = vadd.f32 %v520, %v544
      %547 = vset.pattern.permute.xlu0 7
      %548 = vperm.xlu0 %547, %v361
      %v549 = vpop.permute.xlu0 %548
      %v551 = vlaneseq
      %v552 = vshrl.u32 %v551, 7
      %v553 = vsub.s32 3, %v552
      %v554 = vrot.slane %v360, %v553
      %v555 = vlaneseq
      %v556 = vshrl.u32 %v555, 7
      %v557 = vsub.s32 7, %v556
      %v558 = vrot.slane %v360, %v557
      %v561 = vlaneseq
      %v562 = vshrl.u32 %v561, 7
      %v563 = vsub.s32 3, %v562
      %v564 = vrot.slane %v554, %v563
      %v565 = vlaneseq
      %v566 = vshrl.u32 %v565, 7
      %v567 = vsub.s32 3, %v566
      %v568 = vrot.slane %v558, %v567
      %v569 = vmul.f32 %v549, %v564
      %v570 = vmul.f32 %v549, %v568
      %v571 = vadd.f32 %v545, %v569
      %v572 = vadd.f32 %v546, %v570
      %v573 = vld [vmem:[%s1] sm:$0xf]
      %575 = vset.pattern.permute.xlu0 0
      %576 = vperm.xlu0 %575, %v573
      %v577 = vpop.permute.xlu0 %576
      %v579 = vadd.f32 %v571, %v577
      %v580 = vadd.f32 %v572, %v577
      %v583 = vcombine.low %v579, %v580
      %585 = vst [vmem:[%s331] sm:$0xff] %v583
      %s586 = smul.u32 2, %s21
      %p587 = scmp.lt.s32.totalorder %s20, 1
      %s588 = scalar_select %p587, %s20, 1
      %p589 = scmp.lt.s32.totalorder %s586, 1
      %s590 = scalar_select %p589, %s586, 1
      %s591 = smul.addr %s588, 2
      %s592 = sadd.s32 %s590, %s591
      %s593 = smul.addr %s592, 4
      %s594 = scalar_lea.vmem %s5, %s593
      // Predicated region
      $region41: #{transformer_forward.47} parent=39 // pred_check
        %p595 = pneg %p174
      $region42: #{transformer_forward.47} parent=39 // pred_check_branch
        %597 = sbr.rel (%p595) target = $region44
      $region43: #{transformer_forward.47} parent=39 // pred_region
        %s598 = smul.u32 2, %s21
      $region44: #{transformer_forward.47} parent=39 // pred_fallthru
        _
    $region40: #{transformer_forward.47} parent=5 // pred_fallthru
      _
    %p599 = scmp.le.s32.totalorder 2, %s11
    // Predicated region
    $region45: #{transformer_forward.47} parent=5 // pred_check
      %p600 = pneg %p599
    $region46: #{transformer_forward.47} parent=5 // pred_check_branch
      %602 = sbr.rel (%p600) target = $region48
    $region47: #{transformer_forward.47} parent=5 // pred_region
      %s603 = ssub.s32 %s11, 2
      // Predicated region
      $region49: #{transformer_forward.47} parent=47 // pred_check
        %p604 = pneg %p180
      $region50: #{transformer_forward.47} parent=47 // pred_check_branch
        %606 = sbr.rel (%p604) target = $region52
      $region51: #{transformer_forward.47} parent=47 // pred_region
        %s607 = smul.u32 2, %s23
        %p608 = scmp.lt.s32.totalorder %s22, 1
        %s609 = scalar_select %p608, %s22, 1
        %p610 = scmp.lt.s32.totalorder %s607, 1
        %s611 = scalar_select %p610, %s607, 1
        %s612 = smul.addr %s609, 2
        %s613 = sadd.s32 %s611, %s612
        %s614 = smul.addr %s613, 4
        %s615 = scalar_lea.vmem %s5, %s614
      $region52: #{transformer_forward.47} parent=47 // pred_fallthru
        _
    $region48: #{transformer_forward.47} parent=5 // pred_fallthru
      _
  $region6: #{transformer_forward.47} parent=0 // loop_footer
    %s15 = sadd.s32 1, %s11
  $region7: #{transformer_forward.47} parent=0 // loop_footer_branch
    %10 = sbr.rel target = $region3
  $region8: #{transformer_forward.47} parent=0 // loop_exit
    _

</llo_original>
